<compile_context>
chip_gen: v7x
topology: tpu7x:2x2x1
jax: 0.10.0
libtpu: 0.0.40
codegen_flags: <defaults>
</compile_context>

<pallas_src>
import math

import jax
import jax.numpy as jnp
from jax.experimental import pallas as pl
from jax.experimental.pallas import tpu as pltpu

EPS = 1e-5
LANES = 128
SUBLANES = 8


def _round_up(x, m):
    return ((x + m - 1) // m) * m


def _conv3x3_acc(src_ref, w_ref, bias, h, w):
    """3x3 SAME conv from a zero-haloed scratch as 9 accumulating MXU matmuls.

    src_ref : (N, H+2, Wp, K)   zero-haloed, pitch-aligned (Wp % 8 == 0)
    w_ref   : (9, K, Cout)      per-tap weights (leading-dim index is free)
    bias    : (1, Cout)
    Returns (N*H*W, Cout) in f32.  No im2col patches buffer is materialized:
    every tap slice feeds jnp.dot directly and accumulates in f32."""
    n = src_ref.shape[0]
    k = src_ref.shape[-1]
    cout = w_ref.shape[-1]
    m = n * h * w
    acc = jnp.zeros((m, cout), jnp.float32)
    for dy in range(3):
        for dx in range(3):
            lhs = src_ref[:, dy:dy + h, dx:dx + w, :].reshape(m, k)
            acc = acc + jnp.dot(lhs, w_ref[dy * 3 + dx],
                                preferred_element_type=jnp.float32)
    return acc + bias


def _bn_relu(y, gamma, beta, inv_count):
    """Training-mode BatchNorm (batch mean, biased variance) + ReLU.

    Two-pass (centered) variance for numerical robustness; the normalize +
    ReLU collapses to a single per-element FMA + max applied at the store."""
    mean = jnp.sum(y, axis=0, keepdims=True) * inv_count
    c = y - mean
    var = jnp.sum(c * c, axis=0, keepdims=True) * inv_count
    scale = gamma * jax.lax.rsqrt(var + EPS)
    return jnp.maximum(c * scale + beta, 0.0)


def double_conv_kernel(x_ref, w1_ref, b1_ref, g1_ref, be1_ref,
                       w2_ref, b2_ref, g2_ref, be2_ref,
                       o_ref, xpad_ref, apad_ref):
    n, h, w, cin = x_ref.shape
    cout = o_ref.shape[-1]
    cpad = apad_ref.shape[-1]
    inv_count = 1.0 / float(n * h * w)

    # ---- stage input: memset the lane-padded, pitch-aligned halo scratch
    # once (no stale-VMEM garbage can leak into the matmuls), then write the
    # cin real channels into the interior window ----------------------------
    xpad_ref[...] = jnp.zeros_like(xpad_ref)
    xpad_ref[:, 1:h + 1, 1:w + 1, 0:cin] = x_ref[...]

    # ---- conv1 (9 accumulating matmuls) + fused BN1 + ReLU -----------------
    y1 = _conv3x3_acc(xpad_ref, w1_ref, b1_ref[...], h, w)
    a1 = _bn_relu(y1, g1_ref[...], be1_ref[...], inv_count)      # (NHW, cpad)

    # Padded output lanes of a1 are exactly 0 because weights / bias / gamma /
    # beta are all zero-padded in the wrapper, so the halo scratch stays
    # consistent for conv2's padded input channels.
    apad_ref[...] = jnp.zeros_like(apad_ref)
    apad_ref[:, 1:h + 1, 1:w + 1, :] = a1.reshape(n, h, w, cpad)

    # ---- conv2 + fused BN2 + ReLU; store only the cout real channels -------
    y2 = _conv3x3_acc(apad_ref, w2_ref, b2_ref[...], h, w)
    a2 = _bn_relu(y2, g2_ref[...], be2_ref[...], inv_count)
    o_ref[...] = a2[:, 0:cout].reshape(n, h, w, cout)


def double_conv(x_nchw, params):
    w1, b1, g1, be1, w2, b2, g2, be2 = params
    n, cin, h, w = x_nchw.shape
    cout = w1.shape[-1]

    cin_p = _round_up(cin, LANES)        # channels on the 128-lane axis
    cout_p = _round_up(cout, LANES)
    wp = _round_up(w + 2, SUBLANES)      # sublane-aligned scratch pitch

    # Single layout op on each side of the kernel: NCHW <-> NHWC transpose.
    x = jnp.transpose(x_nchw, (0, 2, 3, 1)).astype(jnp.float32)

    def pack_w(wt, ci, co, ci_p, co_p):
        # HWIO (3,3,ci,co) -> zero-pad channels -> per-tap (9, ci_p, co_p)
        wt = jnp.pad(wt.astype(jnp.float32),
                     ((0, 0), (0, 0), (0, ci_p - ci), (0, co_p - co)))
        return wt.reshape(9, ci_p, co_p)

    def pad_c(v, co, co_p):
        # NOTE: gamma is zero-padded (NOT ones) so padded-lane activations
        # stay exactly zero through BN/ReLU and into conv2.
        return jnp.pad(v.astype(jnp.float32), ((0, 0), (0, co_p - co)))

    w1r = pack_w(w1, cin, cout, cin_p, cout_p)
    w2r = pack_w(w2, cout, cout, cout_p, cout_p)
    b1p, g1p, be1p = (pad_c(v, cout, cout_p) for v in (b1, g1, be1))
    b2p, g2p, be2p = (pad_c(v, cout, cout_p) for v in (b2, g2, be2))

    vmem = pl.BlockSpec(memory_space=pltpu.MemorySpace.VMEM)
    out_nhwc = pl.pallas_call(
        double_conv_kernel,
        out_shape=jax.ShapeDtypeStruct((n, h, w, cout), jnp.float32),
        in_specs=[vmem] * 9,
        out_specs=vmem,
        scratch_shapes=[
            pltpu.VMEM((n, h + 2, wp, cin_p), jnp.float32),   # haloed input
            pltpu.VMEM((n, h + 2, wp, cout_p), jnp.float32),  # haloed a1
        ],
        compiler_params=pltpu.CompilerParams(
            vmem_limit_bytes=32 * 1024 * 1024),  # safe on v5e/v6e/v7x
    )(x, w1r, b1p, g1p, be1p, w2r, b2p, g2p, be2p)

    return jnp.transpose(out_nhwc, (0, 3, 1, 2))       # NHWC -> NCHW


def make_params(key, cin, cout):
    """Deterministic synthetic init mirroring the module's __init__:
       kaiming-normal conv weights, default-uniform conv biases,
       BatchNorm gamma=1 / beta=0.  Conv weights in HWIO (3,3,Cin,Cout)."""
    k1, k2, k3, k4 = jax.random.split(key, 4)
    fan1 = cin * 9
    fan2 = cout * 9
    w1 = jax.random.normal(k1, (3, 3, cin, cout), jnp.float32) * math.sqrt(2.0 / fan1)
    b1 = jax.random.uniform(k2, (1, cout), jnp.float32,
                            -1.0 / math.sqrt(fan1), 1.0 / math.sqrt(fan1))
    w2 = jax.random.normal(k3, (3, 3, cout, cout), jnp.float32) * math.sqrt(2.0 / fan2)
    b2 = jax.random.uniform(k4, (1, cout), jnp.float32,
                            -1.0 / math.sqrt(fan2), 1.0 / math.sqrt(fan2))
    g1 = jnp.ones((1, cout), jnp.float32)
    be1 = jnp.zeros((1, cout), jnp.float32)
    g2 = jnp.ones((1, cout), jnp.float32)
    be2 = jnp.zeros((1, cout), jnp.float32)
    return (w1, b1, g1, be1, w2, b2, g2, be2)


def _ref_forward(x_nchw, params):
    """Pure-JAX reference of the same forward pass (NHWC internally)."""
    w1, b1, g1, be1, w2, b2, g2, be2 = params
    x = jnp.transpose(x_nchw, (0, 2, 3, 1)).astype(jnp.float32)

    def conv(x, w, b):
        y = jax.lax.conv_general_dilated(
            x, w, window_strides=(1, 1), padding='SAME',
            dimension_numbers=('NHWC', 'HWIO', 'NHWC'))
        return y + b

    def bn_relu(y, g, be):
        mean = jnp.mean(y, axis=(0, 1, 2), keepdims=True)
        var = jnp.mean(jnp.square(y - mean), axis=(0, 1, 2), keepdims=True)
        yn = (y - mean) * jax.lax.rsqrt(var + EPS)
        return jnp.maximum(yn * g + be, 0.0)

    a1 = bn_relu(conv(x, w1, b1), g1, be1)
    a2 = bn_relu(conv(a1, w2, b2), g2, be2)
    return jnp.transpose(a2, (0, 3, 1, 2))


if __name__ == "__main__":
    key = jax.random.PRNGKey(0)
    kx, kp = jax.random.split(key)

    N, CIN, COUT, H, W = 2, 4, 8, 16, 16
    x = jax.random.normal(kx, (N, CIN, H, W), jnp.float32)
    params = make_params(kp, CIN, COUT)

    out = jax.jit(double_conv)(x, params)
    out = jax.block_until_ready(out)

    ref = _ref_forward(x, params)
    assert out.shape == (N, COUT, H, W)
    assert jnp.allclose(out, ref, atol=1e-4, rtol=1e-4), \
        f"max abs diff {float(jnp.max(jnp.abs(out - ref)))}"

    print("KERNEL_OK")
</pallas_src>

<mosaic_0001>
module attributes {stable_mosaic.version = 11 : i64} {
  func.func @double_conv_kernel(%arg0: memref<2x16x16x4xf32, #tpu.memory_space<vmem>>, %arg1: memref<9x128x128xf32, #tpu.memory_space<vmem>>, %arg2: memref<1x128xf32, #tpu.memory_space<vmem>>, %arg3: memref<1x128xf32, #tpu.memory_space<vmem>>, %arg4: memref<1x128xf32, #tpu.memory_space<vmem>>, %arg5: memref<9x128x128xf32, #tpu.memory_space<vmem>>, %arg6: memref<1x128xf32, #tpu.memory_space<vmem>>, %arg7: memref<1x128xf32, #tpu.memory_space<vmem>>, %arg8: memref<1x128xf32, #tpu.memory_space<vmem>>, %arg9: memref<2x16x16x8xf32, #tpu.memory_space<vmem>>, %arg10: memref<2x18x24x128xf32, #tpu.memory_space<vmem>>, %arg11: memref<2x18x24x128xf32, #tpu.memory_space<vmem>>) attributes {dimension_semantics = [], scalar_prefetch = 0 : i64, scratch_operands = 2 : i64, tpu.core_type = #tpu.core_type<tc>} {
    %cst = arith.constant 0.000000e+00 : f32
    %0 = vector.broadcast %cst : f32 to vector<2x18x24x128xf32>
    %c0 = arith.constant 0 : index
    %c0_0 = arith.constant 0 : index
    %c0_1 = arith.constant 0 : index
    %c0_2 = arith.constant 0 : index
    %1 = vector.load %arg10[%c0, %c0_0, %c0_1, %c0_2] : memref<2x18x24x128xf32, #tpu.memory_space<vmem>>, vector<2x18x24x128xf32>
    tpu.vector_store %arg10[%c0, %c0_0, %c0_1, %c0_2], %0 {strides = array<i32>} : memref<2x18x24x128xf32, #tpu.memory_space<vmem>>, vector<2x18x24x128xf32>,
    %c0_3 = arith.constant 0 : index
    %c0_4 = arith.constant 0 : index
    %c0_5 = arith.constant 0 : index
    %c0_6 = arith.constant 0 : index
    %2 = vector.load %arg0[%c0_3, %c0_4, %c0_5, %c0_6] : memref<2x16x16x4xf32, #tpu.memory_space<vmem>>, vector<2x16x16x4xf32>
    %c0_7 = arith.constant 0 : index
    %c1 = arith.constant 1 : index
    %c1_8 = arith.constant 1 : index
    %c0_9 = arith.constant 0 : index
    %3 = vector.load %arg10[%c0_7, %c1, %c1_8, %c0_9] : memref<2x18x24x128xf32, #tpu.memory_space<vmem>>, vector<2x16x16x4xf32>
    tpu.vector_store %arg10[%c0_7, %c1, %c1_8, %c0_9], %2 {strides = array<i32>} : memref<2x18x24x128xf32, #tpu.memory_space<vmem>>, vector<2x16x16x4xf32>,
    %c0_10 = arith.constant 0 : index
    %c0_11 = arith.constant 0 : index
    %4 = vector.load %arg2[%c0_10, %c0_11] : memref<1x128xf32, #tpu.memory_space<vmem>>, vector<1x128xf32>
    %cst_12 = arith.constant 0.000000e+00 : f32
    %5 = vector.broadcast %cst_12 : f32 to vector<512x128xf32>
    %c0_13 = arith.constant 0 : index
    %c0_14 = arith.constant 0 : index
    %c0_15 = arith.constant 0 : index
    %c0_16 = arith.constant 0 : index
    %6 = vector.load %arg10[%c0_13, %c0_14, %c0_15, %c0_16] : memref<2x18x24x128xf32, #tpu.memory_space<vmem>>, vector<2x16x16x128xf32>
    %7 = vector.shape_cast %6 : vector<2x16x16x128xf32> to vector<512x128xf32>
    %c0_17 = arith.constant 0 : index
    %c0_18 = arith.constant 0 : index
    %c0_19 = arith.constant 0 : index
    %8 = vector.load %arg1[%c0_17, %c0_18, %c0_19] : memref<9x128x128xf32, #tpu.memory_space<vmem>>, vector<1x128x128xf32>
    %9 = vector.shape_cast %8 : vector<1x128x128xf32> to vector<128x128xf32>
    %cst_20 = arith.constant dense<0.000000e+00> : vector<512x128xf32>
    %10 = tpu.matmul %7, %9, %cst_20 {dimension_numbers = #tpu.dot_dimension_numbers<[1], [0], [0], [1], [0, 0, 1, 1], [], []>} : vector<512x128xf32>, vector<128x128xf32>, vector<512x128xf32> -> vector<512x128xf32>
    %11 = arith.addf %5, %10 : vector<512x128xf32>
    %c0_21 = arith.constant 0 : index
    %c0_22 = arith.constant 0 : index
    %c1_23 = arith.constant 1 : index
    %c0_24 = arith.constant 0 : index
    %12 = vector.load %arg10[%c0_21, %c0_22, %c1_23, %c0_24] : memref<2x18x24x128xf32, #tpu.memory_space<vmem>>, vector<2x16x16x128xf32>
    %13 = vector.shape_cast %12 : vector<2x16x16x128xf32> to vector<512x128xf32>
    %c1_25 = arith.constant 1 : index
    %c0_26 = arith.constant 0 : index
    %c0_27 = arith.constant 0 : index
    %14 = vector.load %arg1[%c1_25, %c0_26, %c0_27] : memref<9x128x128xf32, #tpu.memory_space<vmem>>, vector<1x128x128xf32>
    %15 = vector.shape_cast %14 : vector<1x128x128xf32> to vector<128x128xf32>
    %cst_28 = arith.constant dense<0.000000e+00> : vector<512x128xf32>
    %16 = tpu.matmul %13, %15, %cst_28 {dimension_numbers = #tpu.dot_dimension_numbers<[1], [0], [0], [1], [0, 0, 1, 1], [], []>} : vector<512x128xf32>, vector<128x128xf32>, vector<512x128xf32> -> vector<512x128xf32>
    %17 = arith.addf %11, %16 : vector<512x128xf32>
    %c0_29 = arith.constant 0 : index
    %c0_30 = arith.constant 0 : index
    %c2 = arith.constant 2 : index
    %c0_31 = arith.constant 0 : index
    %18 = vector.load %arg10[%c0_29, %c0_30, %c2, %c0_31] : memref<2x18x24x128xf32, #tpu.memory_space<vmem>>, vector<2x16x16x128xf32>
    %19 = vector.shape_cast %18 : vector<2x16x16x128xf32> to vector<512x128xf32>
    %c2_32 = arith.constant 2 : index
    %c0_33 = arith.constant 0 : index
    %c0_34 = arith.constant 0 : index
    %20 = vector.load %arg1[%c2_32, %c0_33, %c0_34] : memref<9x128x128xf32, #tpu.memory_space<vmem>>, vector<1x128x128xf32>
    %21 = vector.shape_cast %20 : vector<1x128x128xf32> to vector<128x128xf32>
    %cst_35 = arith.constant dense<0.000000e+00> : vector<512x128xf32>
    %22 = tpu.matmul %19, %21, %cst_35 {dimension_numbers = #tpu.dot_dimension_numbers<[1], [0], [0], [1], [0, 0, 1, 1], [], []>} : vector<512x128xf32>, vector<128x128xf32>, vector<512x128xf32> -> vector<512x128xf32>
    %23 = arith.addf %17, %22 : vector<512x128xf32>
    %c0_36 = arith.constant 0 : index
    %c1_37 = arith.constant 1 : index
    %c0_38 = arith.constant 0 : index
    %c0_39 = arith.constant 0 : index
    %24 = vector.load %arg10[%c0_36, %c1_37, %c0_38, %c0_39] : memref<2x18x24x128xf32, #tpu.memory_space<vmem>>, vector<2x16x16x128xf32>
    %25 = vector.shape_cast %24 : vector<2x16x16x128xf32> to vector<512x128xf32>
    %c3 = arith.constant 3 : index
    %c0_40 = arith.constant 0 : index
    %c0_41 = arith.constant 0 : index
    %26 = vector.load %arg1[%c3, %c0_40, %c0_41] : memref<9x128x128xf32, #tpu.memory_space<vmem>>, vector<1x128x128xf32>
    %27 = vector.shape_cast %26 : vector<1x128x128xf32> to vector<128x128xf32>
    %cst_42 = arith.constant dense<0.000000e+00> : vector<512x128xf32>
    %28 = tpu.matmul %25, %27, %cst_42 {dimension_numbers = #tpu.dot_dimension_numbers<[1], [0], [0], [1], [0, 0, 1, 1], [], []>} : vector<512x128xf32>, vector<128x128xf32>, vector<512x128xf32> -> vector<512x128xf32>
    %29 = arith.addf %23, %28 : vector<512x128xf32>
    %c0_43 = arith.constant 0 : index
    %c1_44 = arith.constant 1 : index
    %c1_45 = arith.constant 1 : index
    %c0_46 = arith.constant 0 : index
    %30 = vector.load %arg10[%c0_43, %c1_44, %c1_45, %c0_46] : memref<2x18x24x128xf32, #tpu.memory_space<vmem>>, vector<2x16x16x128xf32>
    %31 = vector.shape_cast %30 : vector<2x16x16x128xf32> to vector<512x128xf32>
    %c4 = arith.constant 4 : index
    %c0_47 = arith.constant 0 : index
    %c0_48 = arith.constant 0 : index
    %32 = vector.load %arg1[%c4, %c0_47, %c0_48] : memref<9x128x128xf32, #tpu.memory_space<vmem>>, vector<1x128x128xf32>
    %33 = vector.shape_cast %32 : vector<1x128x128xf32> to vector<128x128xf32>
    %cst_49 = arith.constant dense<0.000000e+00> : vector<512x128xf32>
    %34 = tpu.matmul %31, %33, %cst_49 {dimension_numbers = #tpu.dot_dimension_numbers<[1], [0], [0], [1], [0, 0, 1, 1], [], []>} : vector<512x128xf32>, vector<128x128xf32>, vector<512x128xf32> -> vector<512x128xf32>
    %35 = arith.addf %29, %34 : vector<512x128xf32>
    %c0_50 = arith.constant 0 : index
    %c1_51 = arith.constant 1 : index
    %c2_52 = arith.constant 2 : index
    %c0_53 = arith.constant 0 : index
    %36 = vector.load %arg10[%c0_50, %c1_51, %c2_52, %c0_53] : memref<2x18x24x128xf32, #tpu.memory_space<vmem>>, vector<2x16x16x128xf32>
    %37 = vector.shape_cast %36 : vector<2x16x16x128xf32> to vector<512x128xf32>
    %c5 = arith.constant 5 : index
    %c0_54 = arith.constant 0 : index
    %c0_55 = arith.constant 0 : index
    %38 = vector.load %arg1[%c5, %c0_54, %c0_55] : memref<9x128x128xf32, #tpu.memory_space<vmem>>, vector<1x128x128xf32>
    %39 = vector.shape_cast %38 : vector<1x128x128xf32> to vector<128x128xf32>
    %cst_56 = arith.constant dense<0.000000e+00> : vector<512x128xf32>
    %40 = tpu.matmul %37, %39, %cst_56 {dimension_numbers = #tpu.dot_dimension_numbers<[1], [0], [0], [1], [0, 0, 1, 1], [], []>} : vector<512x128xf32>, vector<128x128xf32>, vector<512x128xf32> -> vector<512x128xf32>
    %41 = arith.addf %35, %40 : vector<512x128xf32>
    %c0_57 = arith.constant 0 : index
    %c2_58 = arith.constant 2 : index
    %c0_59 = arith.constant 0 : index
    %c0_60 = arith.constant 0 : index
    %42 = vector.load %arg10[%c0_57, %c2_58, %c0_59, %c0_60] : memref<2x18x24x128xf32, #tpu.memory_space<vmem>>, vector<2x16x16x128xf32>
    %43 = vector.shape_cast %42 : vector<2x16x16x128xf32> to vector<512x128xf32>
    %c6 = arith.constant 6 : index
    %c0_61 = arith.constant 0 : index
    %c0_62 = arith.constant 0 : index
    %44 = vector.load %arg1[%c6, %c0_61, %c0_62] : memref<9x128x128xf32, #tpu.memory_space<vmem>>, vector<1x128x128xf32>
    %45 = vector.shape_cast %44 : vector<1x128x128xf32> to vector<128x128xf32>
    %cst_63 = arith.constant dense<0.000000e+00> : vector<512x128xf32>
    %46 = tpu.matmul %43, %45, %cst_63 {dimension_numbers = #tpu.dot_dimension_numbers<[1], [0], [0], [1], [0, 0, 1, 1], [], []>} : vector<512x128xf32>, vector<128x128xf32>, vector<512x128xf32> -> vector<512x128xf32>
    %47 = arith.addf %41, %46 : vector<512x128xf32>
    %c0_64 = arith.constant 0 : index
    %c2_65 = arith.constant 2 : index
    %c1_66 = arith.constant 1 : index
    %c0_67 = arith.constant 0 : index
    %48 = vector.load %arg10[%c0_64, %c2_65, %c1_66, %c0_67] : memref<2x18x24x128xf32, #tpu.memory_space<vmem>>, vector<2x16x16x128xf32>
    %49 = vector.shape_cast %48 : vector<2x16x16x128xf32> to vector<512x128xf32>
    %c7 = arith.constant 7 : index
    %c0_68 = arith.constant 0 : index
    %c0_69 = arith.constant 0 : index
    %50 = vector.load %arg1[%c7, %c0_68, %c0_69] : memref<9x128x128xf32, #tpu.memory_space<vmem>>, vector<1x128x128xf32>
    %51 = vector.shape_cast %50 : vector<1x128x128xf32> to vector<128x128xf32>
    %cst_70 = arith.constant dense<0.000000e+00> : vector<512x128xf32>
    %52 = tpu.matmul %49, %51, %cst_70 {dimension_numbers = #tpu.dot_dimension_numbers<[1], [0], [0], [1], [0, 0, 1, 1], [], []>} : vector<512x128xf32>, vector<128x128xf32>, vector<512x128xf32> -> vector<512x128xf32>
    %53 = arith.addf %47, %52 : vector<512x128xf32>
    %c0_71 = arith.constant 0 : index
    %c2_72 = arith.constant 2 : index
    %c2_73 = arith.constant 2 : index
    %c0_74 = arith.constant 0 : index
    %54 = vector.load %arg10[%c0_71, %c2_72, %c2_73, %c0_74] : memref<2x18x24x128xf32, #tpu.memory_space<vmem>>, vector<2x16x16x128xf32>
    %55 = vector.shape_cast %54 : vector<2x16x16x128xf32> to vector<512x128xf32>
    %c8 = arith.constant 8 : index
    %c0_75 = arith.constant 0 : index
    %c0_76 = arith.constant 0 : index
    %56 = vector.load %arg1[%c8, %c0_75, %c0_76] : memref<9x128x128xf32, #tpu.memory_space<vmem>>, vector<1x128x128xf32>
    %57 = vector.shape_cast %56 : vector<1x128x128xf32> to vector<128x128xf32>
    %cst_77 = arith.constant dense<0.000000e+00> : vector<512x128xf32>
    %58 = tpu.matmul %55, %57, %cst_77 {dimension_numbers = #tpu.dot_dimension_numbers<[1], [0], [0], [1], [0, 0, 1, 1], [], []>} : vector<512x128xf32>, vector<128x128xf32>, vector<512x128xf32> -> vector<512x128xf32>
    %59 = arith.addf %53, %58 : vector<512x128xf32>
    %60 = vector.broadcast %4 : vector<1x128xf32> to vector<512x128xf32>
    %61 = arith.addf %59, %60 : vector<512x128xf32>
    %c0_78 = arith.constant 0 : index
    %c0_79 = arith.constant 0 : index
    %62 = vector.load %arg3[%c0_78, %c0_79] : memref<1x128xf32, #tpu.memory_space<vmem>>, vector<1x128xf32>
    %c0_80 = arith.constant 0 : index
    %c0_81 = arith.constant 0 : index
    %63 = vector.load %arg4[%c0_80, %c0_81] : memref<1x128xf32, #tpu.memory_space<vmem>>, vector<1x128xf32>
    %cst_82 = arith.constant dense<0.000000e+00> : vector<128xf32>
    %64 = vector.multi_reduction <add>, %61, %cst_82 [0] : vector<512x128xf32> to vector<128xf32>
    %65 = vector.shape_cast %64 : vector<128xf32> to vector<1x128xf32>
    %cst_83 = arith.constant 0.001953125 : f32
    %66 = vector.broadcast %cst_83 : f32 to vector<1x128xf32>
    %67 = arith.mulf %65, %66 : vector<1x128xf32>
    %68 = vector.broadcast %67 : vector<1x128xf32> to vector<512x128xf32>
    %69 = arith.subf %61, %68 : vector<512x128xf32>
    %70 = arith.mulf %69, %69 : vector<512x128xf32>
    %cst_84 = arith.constant dense<0.000000e+00> : vector<128xf32>
    %71 = vector.multi_reduction <add>, %70, %cst_84 [0] : vector<512x128xf32> to vector<128xf32>
    %72 = vector.shape_cast %71 : vector<128xf32> to vector<1x128xf32>
    %cst_85 = arith.constant 0.001953125 : f32
    %73 = vector.broadcast %cst_85 : f32 to vector<1x128xf32>
    %74 = arith.mulf %72, %73 : vector<1x128xf32>
    %cst_86 = arith.constant 9.99999974E-6 : f32
    %75 = vector.broadcast %cst_86 : f32 to vector<1x128xf32>
    %76 = arith.addf %74, %75 : vector<1x128xf32>
    %77 = math.rsqrt %76 : vector<1x128xf32>
    %78 = arith.mulf %62, %77 : vector<1x128xf32>
    %79 = vector.broadcast %78 : vector<1x128xf32> to vector<512x128xf32>
    %80 = arith.mulf %69, %79 : vector<512x128xf32>
    %81 = vector.broadcast %63 : vector<1x128xf32> to vector<512x128xf32>
    %82 = arith.addf %80, %81 : vector<512x128xf32>
    %cst_87 = arith.constant 0.000000e+00 : f32
    %83 = vector.broadcast %cst_87 : f32 to vector<512x128xf32>
    %84 = arith.maximumf %82, %83 : vector<512x128xf32>
    %cst_88 = arith.constant 0.000000e+00 : f32
    %85 = vector.broadcast %cst_88 : f32 to vector<2x18x24x128xf32>
    %c0_89 = arith.constant 0 : index
    %c0_90 = arith.constant 0 : index
    %c0_91 = arith.constant 0 : index
    %c0_92 = arith.constant 0 : index
    %86 = vector.load %arg11[%c0_89, %c0_90, %c0_91, %c0_92] : memref<2x18x24x128xf32, #tpu.memory_space<vmem>>, vector<2x18x24x128xf32>
    tpu.vector_store %arg11[%c0_89, %c0_90, %c0_91, %c0_92], %85 {strides = array<i32>} : memref<2x18x24x128xf32, #tpu.memory_space<vmem>>, vector<2x18x24x128xf32>,
    %87 = vector.shape_cast %84 : vector<512x128xf32> to vector<2x16x16x128xf32>
    %c0_93 = arith.constant 0 : index
    %c1_94 = arith.constant 1 : index
    %c1_95 = arith.constant 1 : index
    %c0_96 = arith.constant 0 : index
    %88 = vector.load %arg11[%c0_93, %c1_94, %c1_95, %c0_96] : memref<2x18x24x128xf32, #tpu.memory_space<vmem>>, vector<2x16x16x128xf32>
    tpu.vector_store %arg11[%c0_93, %c1_94, %c1_95, %c0_96], %87 {strides = array<i32>} : memref<2x18x24x128xf32, #tpu.memory_space<vmem>>, vector<2x16x16x128xf32>,
    %c0_97 = arith.constant 0 : index
    %c0_98 = arith.constant 0 : index
    %89 = vector.load %arg6[%c0_97, %c0_98] : memref<1x128xf32, #tpu.memory_space<vmem>>, vector<1x128xf32>
    %cst_99 = arith.constant 0.000000e+00 : f32
    %90 = vector.broadcast %cst_99 : f32 to vector<512x128xf32>
    %c0_100 = arith.constant 0 : index
    %c0_101 = arith.constant 0 : index
    %c0_102 = arith.constant 0 : index
    %c0_103 = arith.constant 0 : index
    %91 = vector.load %arg11[%c0_100, %c0_101, %c0_102, %c0_103] : memref<2x18x24x128xf32, #tpu.memory_space<vmem>>, vector<2x16x16x128xf32>
    %92 = vector.shape_cast %91 : vector<2x16x16x128xf32> to vector<512x128xf32>
    %c0_104 = arith.constant 0 : index
    %c0_105 = arith.constant 0 : index
    %c0_106 = arith.constant 0 : index
    %93 = vector.load %arg5[%c0_104, %c0_105, %c0_106] : memref<9x128x128xf32, #tpu.memory_space<vmem>>, vector<1x128x128xf32>
    %94 = vector.shape_cast %93 : vector<1x128x128xf32> to vector<128x128xf32>
    %cst_107 = arith.constant dense<0.000000e+00> : vector<512x128xf32>
    %95 = tpu.matmul %92, %94, %cst_107 {dimension_numbers = #tpu.dot_dimension_numbers<[1], [0], [0], [1], [0, 0, 1, 1], [], []>} : vector<512x128xf32>, vector<128x128xf32>, vector<512x128xf32> -> vector<512x128xf32>
    %96 = arith.addf %90, %95 : vector<512x128xf32>
    %c0_108 = arith.constant 0 : index
    %c0_109 = arith.constant 0 : index
    %c1_110 = arith.constant 1 : index
    %c0_111 = arith.constant 0 : index
    %97 = vector.load %arg11[%c0_108, %c0_109, %c1_110, %c0_111] : memref<2x18x24x128xf32, #tpu.memory_space<vmem>>, vector<2x16x16x128xf32>
    %98 = vector.shape_cast %97 : vector<2x16x16x128xf32> to vector<512x128xf32>
    %c1_112 = arith.constant 1 : index
    %c0_113 = arith.constant 0 : index
    %c0_114 = arith.constant 0 : index
    %99 = vector.load %arg5[%c1_112, %c0_113, %c0_114] : memref<9x128x128xf32, #tpu.memory_space<vmem>>, vector<1x128x128xf32>
    %100 = vector.shape_cast %99 : vector<1x128x128xf32> to vector<128x128xf32>
    %cst_115 = arith.constant dense<0.000000e+00> : vector<512x128xf32>
    %101 = tpu.matmul %98, %100, %cst_115 {dimension_numbers = #tpu.dot_dimension_numbers<[1], [0], [0], [1], [0, 0, 1, 1], [], []>} : vector<512x128xf32>, vector<128x128xf32>, vector<512x128xf32> -> vector<512x128xf32>
    %102 = arith.addf %96, %101 : vector<512x128xf32>
    %c0_116 = arith.constant 0 : index
    %c0_117 = arith.constant 0 : index
    %c2_118 = arith.constant 2 : index
    %c0_119 = arith.constant 0 : index
    %103 = vector.load %arg11[%c0_116, %c0_117, %c2_118, %c0_119] : memref<2x18x24x128xf32, #tpu.memory_space<vmem>>, vector<2x16x16x128xf32>
    %104 = vector.shape_cast %103 : vector<2x16x16x128xf32> to vector<512x128xf32>
    %c2_120 = arith.constant 2 : index
    %c0_121 = arith.constant 0 : index
    %c0_122 = arith.constant 0 : index
    %105 = vector.load %arg5[%c2_120, %c0_121, %c0_122] : memref<9x128x128xf32, #tpu.memory_space<vmem>>, vector<1x128x128xf32>
    %106 = vector.shape_cast %105 : vector<1x128x128xf32> to vector<128x128xf32>
    %cst_123 = arith.constant dense<0.000000e+00> : vector<512x128xf32>
    %107 = tpu.matmul %104, %106, %cst_123 {dimension_numbers = #tpu.dot_dimension_numbers<[1], [0], [0], [1], [0, 0, 1, 1], [], []>} : vector<512x128xf32>, vector<128x128xf32>, vector<512x128xf32> -> vector<512x128xf32>
    %108 = arith.addf %102, %107 : vector<512x128xf32>
    %c0_124 = arith.constant 0 : index
    %c1_125 = arith.constant 1 : index
    %c0_126 = arith.constant 0 : index
    %c0_127 = arith.constant 0 : index
    %109 = vector.load %arg11[%c0_124, %c1_125, %c0_126, %c0_127] : memref<2x18x24x128xf32, #tpu.memory_space<vmem>>, vector<2x16x16x128xf32>
    %110 = vector.shape_cast %109 : vector<2x16x16x128xf32> to vector<512x128xf32>
    %c3_128 = arith.constant 3 : index
    %c0_129 = arith.constant 0 : index
    %c0_130 = arith.constant 0 : index
    %111 = vector.load %arg5[%c3_128, %c0_129, %c0_130] : memref<9x128x128xf32, #tpu.memory_space<vmem>>, vector<1x128x128xf32>
    %112 = vector.shape_cast %111 : vector<1x128x128xf32> to vector<128x128xf32>
    %cst_131 = arith.constant dense<0.000000e+00> : vector<512x128xf32>
    %113 = tpu.matmul %110, %112, %cst_131 {dimension_numbers = #tpu.dot_dimension_numbers<[1], [0], [0], [1], [0, 0, 1, 1], [], []>} : vector<512x128xf32>, vector<128x128xf32>, vector<512x128xf32> -> vector<512x128xf32>
    %114 = arith.addf %108, %113 : vector<512x128xf32>
    %c0_132 = arith.constant 0 : index
    %c1_133 = arith.constant 1 : index
    %c1_134 = arith.constant 1 : index
    %c0_135 = arith.constant 0 : index
    %115 = vector.load %arg11[%c0_132, %c1_133, %c1_134, %c0_135] : memref<2x18x24x128xf32, #tpu.memory_space<vmem>>, vector<2x16x16x128xf32>
    %116 = vector.shape_cast %115 : vector<2x16x16x128xf32> to vector<512x128xf32>
    %c4_136 = arith.constant 4 : index
    %c0_137 = arith.constant 0 : index
    %c0_138 = arith.constant 0 : index
    %117 = vector.load %arg5[%c4_136, %c0_137, %c0_138] : memref<9x128x128xf32, #tpu.memory_space<vmem>>, vector<1x128x128xf32>
    %118 = vector.shape_cast %117 : vector<1x128x128xf32> to vector<128x128xf32>
    %cst_139 = arith.constant dense<0.000000e+00> : vector<512x128xf32>
    %119 = tpu.matmul %116, %118, %cst_139 {dimension_numbers = #tpu.dot_dimension_numbers<[1], [0], [0], [1], [0, 0, 1, 1], [], []>} : vector<512x128xf32>, vector<128x128xf32>, vector<512x128xf32> -> vector<512x128xf32>
    %120 = arith.addf %114, %119 : vector<512x128xf32>
    %c0_140 = arith.constant 0 : index
    %c1_141 = arith.constant 1 : index
    %c2_142 = arith.constant 2 : index
    %c0_143 = arith.constant 0 : index
    %121 = vector.load %arg11[%c0_140, %c1_141, %c2_142, %c0_143] : memref<2x18x24x128xf32, #tpu.memory_space<vmem>>, vector<2x16x16x128xf32>
    %122 = vector.shape_cast %121 : vector<2x16x16x128xf32> to vector<512x128xf32>
    %c5_144 = arith.constant 5 : index
    %c0_145 = arith.constant 0 : index
    %c0_146 = arith.constant 0 : index
    %123 = vector.load %arg5[%c5_144, %c0_145, %c0_146] : memref<9x128x128xf32, #tpu.memory_space<vmem>>, vector<1x128x128xf32>
    %124 = vector.shape_cast %123 : vector<1x128x128xf32> to vector<128x128xf32>
    %cst_147 = arith.constant dense<0.000000e+00> : vector<512x128xf32>
    %125 = tpu.matmul %122, %124, %cst_147 {dimension_numbers = #tpu.dot_dimension_numbers<[1], [0], [0], [1], [0, 0, 1, 1], [], []>} : vector<512x128xf32>, vector<128x128xf32>, vector<512x128xf32> -> vector<512x128xf32>
    %126 = arith.addf %120, %125 : vector<512x128xf32>
    %c0_148 = arith.constant 0 : index
    %c2_149 = arith.constant 2 : index
    %c0_150 = arith.constant 0 : index
    %c0_151 = arith.constant 0 : index
    %127 = vector.load %arg11[%c0_148, %c2_149, %c0_150, %c0_151] : memref<2x18x24x128xf32, #tpu.memory_space<vmem>>, vector<2x16x16x128xf32>
    %128 = vector.shape_cast %127 : vector<2x16x16x128xf32> to vector<512x128xf32>
    %c6_152 = arith.constant 6 : index
    %c0_153 = arith.constant 0 : index
    %c0_154 = arith.constant 0 : index
    %129 = vector.load %arg5[%c6_152, %c0_153, %c0_154] : memref<9x128x128xf32, #tpu.memory_space<vmem>>, vector<1x128x128xf32>
    %130 = vector.shape_cast %129 : vector<1x128x128xf32> to vector<128x128xf32>
    %cst_155 = arith.constant dense<0.000000e+00> : vector<512x128xf32>
    %131 = tpu.matmul %128, %130, %cst_155 {dimension_numbers = #tpu.dot_dimension_numbers<[1], [0], [0], [1], [0, 0, 1, 1], [], []>} : vector<512x128xf32>, vector<128x128xf32>, vector<512x128xf32> -> vector<512x128xf32>
    %132 = arith.addf %126, %131 : vector<512x128xf32>
    %c0_156 = arith.constant 0 : index
    %c2_157 = arith.constant 2 : index
    %c1_158 = arith.constant 1 : index
    %c0_159 = arith.constant 0 : index
    %133 = vector.load %arg11[%c0_156, %c2_157, %c1_158, %c0_159] : memref<2x18x24x128xf32, #tpu.memory_space<vmem>>, vector<2x16x16x128xf32>
    %134 = vector.shape_cast %133 : vector<2x16x16x128xf32> to vector<512x128xf32>
    %c7_160 = arith.constant 7 : index
    %c0_161 = arith.constant 0 : index
    %c0_162 = arith.constant 0 : index
    %135 = vector.load %arg5[%c7_160, %c0_161, %c0_162] : memref<9x128x128xf32, #tpu.memory_space<vmem>>, vector<1x128x128xf32>
    %136 = vector.shape_cast %135 : vector<1x128x128xf32> to vector<128x128xf32>
    %cst_163 = arith.constant dense<0.000000e+00> : vector<512x128xf32>
    %137 = tpu.matmul %134, %136, %cst_163 {dimension_numbers = #tpu.dot_dimension_numbers<[1], [0], [0], [1], [0, 0, 1, 1], [], []>} : vector<512x128xf32>, vector<128x128xf32>, vector<512x128xf32> -> vector<512x128xf32>
    %138 = arith.addf %132, %137 : vector<512x128xf32>
    %c0_164 = arith.constant 0 : index
    %c2_165 = arith.constant 2 : index
    %c2_166 = arith.constant 2 : index
    %c0_167 = arith.constant 0 : index
    %139 = vector.load %arg11[%c0_164, %c2_165, %c2_166, %c0_167] : memref<2x18x24x128xf32, #tpu.memory_space<vmem>>, vector<2x16x16x128xf32>
    %140 = vector.shape_cast %139 : vector<2x16x16x128xf32> to vector<512x128xf32>
    %c8_168 = arith.constant 8 : index
    %c0_169 = arith.constant 0 : index
    %c0_170 = arith.constant 0 : index
    %141 = vector.load %arg5[%c8_168, %c0_169, %c0_170] : memref<9x128x128xf32, #tpu.memory_space<vmem>>, vector<1x128x128xf32>
    %142 = vector.shape_cast %141 : vector<1x128x128xf32> to vector<128x128xf32>
    %cst_171 = arith.constant dense<0.000000e+00> : vector<512x128xf32>
    %143 = tpu.matmul %140, %142, %cst_171 {dimension_numbers = #tpu.dot_dimension_numbers<[1], [0], [0], [1], [0, 0, 1, 1], [], []>} : vector<512x128xf32>, vector<128x128xf32>, vector<512x128xf32> -> vector<512x128xf32>
    %144 = arith.addf %138, %143 : vector<512x128xf32>
    %145 = vector.broadcast %89 : vector<1x128xf32> to vector<512x128xf32>
    %146 = arith.addf %144, %145 : vector<512x128xf32>
    %c0_172 = arith.constant 0 : index
    %c0_173 = arith.constant 0 : index
    %147 = vector.load %arg7[%c0_172, %c0_173] : memref<1x128xf32, #tpu.memory_space<vmem>>, vector<1x128xf32>
    %c0_174 = arith.constant 0 : index
    %c0_175 = arith.constant 0 : index
    %148 = vector.load %arg8[%c0_174, %c0_175] : memref<1x128xf32, #tpu.memory_space<vmem>>, vector<1x128xf32>
    %cst_176 = arith.constant dense<0.000000e+00> : vector<128xf32>
    %149 = vector.multi_reduction <add>, %146, %cst_176 [0] : vector<512x128xf32> to vector<128xf32>
    %150 = vector.shape_cast %149 : vector<128xf32> to vector<1x128xf32>
    %cst_177 = arith.constant 0.001953125 : f32
    %151 = vector.broadcast %cst_177 : f32 to vector<1x128xf32>
    %152 = arith.mulf %150, %151 : vector<1x128xf32>
    %153 = vector.broadcast %152 : vector<1x128xf32> to vector<512x128xf32>
    %154 = arith.subf %146, %153 : vector<512x128xf32>
    %155 = arith.mulf %154, %154 : vector<512x128xf32>
    %cst_178 = arith.constant dense<0.000000e+00> : vector<128xf32>
    %156 = vector.multi_reduction <add>, %155, %cst_178 [0] : vector<512x128xf32> to vector<128xf32>
    %157 = vector.shape_cast %156 : vector<128xf32> to vector<1x128xf32>
    %cst_179 = arith.constant 0.001953125 : f32
    %158 = vector.broadcast %cst_179 : f32 to vector<1x128xf32>
    %159 = arith.mulf %157, %158 : vector<1x128xf32>
    %cst_180 = arith.constant 9.99999974E-6 : f32
    %160 = vector.broadcast %cst_180 : f32 to vector<1x128xf32>
    %161 = arith.addf %159, %160 : vector<1x128xf32>
    %162 = math.rsqrt %161 : vector<1x128xf32>
    %163 = arith.mulf %147, %162 : vector<1x128xf32>
    %164 = vector.broadcast %163 : vector<1x128xf32> to vector<512x128xf32>
    %165 = arith.mulf %154, %164 : vector<512x128xf32>
    %166 = vector.broadcast %148 : vector<1x128xf32> to vector<512x128xf32>
    %167 = arith.addf %165, %166 : vector<512x128xf32>
    %cst_181 = arith.constant 0.000000e+00 : f32
    %168 = vector.broadcast %cst_181 : f32 to vector<512x128xf32>
    %169 = arith.maximumf %167, %168 : vector<512x128xf32>
    %170 = vector.extract_strided_slice %169 {offsets = [0, 0], sizes = [512, 8], strides = [1, 1]} : vector<512x128xf32> to vector<512x8xf32>
    %171 = vector.shape_cast %170 : vector<512x8xf32> to vector<2x16x16x8xf32>
    %c0_182 = arith.constant 0 : index
    %c0_183 = arith.constant 0 : index
    %c0_184 = arith.constant 0 : index
    %c0_185 = arith.constant 0 : index
    %172 = vector.load %arg9[%c0_182, %c0_183, %c0_184, %c0_185] : memref<2x16x16x8xf32, #tpu.memory_space<vmem>>, vector<2x16x16x8xf32>
    tpu.vector_store %arg9[%c0_182, %c0_183, %c0_184, %c0_185], %171 {strides = array<i32>} : memref<2x16x16x8xf32, #tpu.memory_space<vmem>>, vector<2x16x16x8xf32>,
    return
  }
}

</mosaic_0001>

<llo_original>
// kernel: double_conv.1
$region0: #{double_conv.1}
  #allocation0 [shape = 'u32[]', space=smem, size = 0x4, offset = 0x4, fixed_abs, tag = 'smem constant byte address 0x4 - core index']
  #allocation1 [shape = 'u32[144,128]{1,0:T(1,128)}', space=vmem, size = 0x12000, scoped, tag = 'internal scratch']
  #allocation2 [shape = 'f32[2,18,24,128]{3,2,1,0:T(8,128)}', space=vmem, size = 0x6c000, scoped, tag = 'scratch operand']
  #allocation3 [shape = 'f32[2,18,24,128]{3,2,1,0:T(8,128)}', space=vmem, size = 0x6c000, scoped, tag = 'scratch operand']
  %s0 = inlined_call_operand.vmem [shape: f32[2,16,16,4], index: 0, kind: input, shape index: {}]
  %s1 = inlined_call_operand.vmem [shape: f32[9,128,128], index: 1, kind: input, shape index: {}]
  %s2 = inlined_call_operand.vmem [shape: f32[1,128], index: 2, kind: input, shape index: {}]
  %s3 = inlined_call_operand.vmem [shape: f32[1,128], index: 3, kind: input, shape index: {}]
  %s4 = inlined_call_operand.vmem [shape: f32[1,128], index: 4, kind: input, shape index: {}]
  %s5 = inlined_call_operand.vmem [shape: f32[9,128,128], index: 5, kind: input, shape index: {}]
  %s6 = inlined_call_operand.vmem [shape: f32[1,128], index: 6, kind: input, shape index: {}]
  %s7 = inlined_call_operand.vmem [shape: f32[1,128], index: 7, kind: input, shape index: {}]
  %s8 = inlined_call_operand.vmem [shape: f32[1,128], index: 8, kind: input, shape index: {}]
  %s9 = inlined_call_operand.vmem [shape: f32[2,16,16,8], index: 9, kind: output, shape index: {}]
  %s10 = sld [smem:[#allocation0]]
  $region46: #{double_conv.1} parent=0
    _
  %s12 = ssub.s32 1, %s10
  %s13 = scalar_select 0, %s12, %s10
  // Predicated region
  $region2: #{double_conv.1} parent=0 // pred_check
    _
  $region3: #{double_conv.1} parent=0 // pred_check_branch
    %15 = sbr.rel (0) target = $region5
  $region4: #{double_conv.1} parent=0 // pred_region
    _
  $region5: #{double_conv.1} parent=0 // pred_fallthru
    _
  // Predicated region
  $region6: #{double_conv.1} parent=0 // pred_check
    _
  $region7: #{double_conv.1} parent=0 // pred_check_branch
    %17 = sbr.rel (0) target = $region9
  $region8: #{double_conv.1} parent=0 // pred_region
    _
  $region9: #{double_conv.1} parent=0 // pred_fallthru
    _
  // Predicated region
  $region10: #{double_conv.1} parent=0 // pred_check
    _
  $region11: #{double_conv.1} parent=0 // pred_check_branch
    %19 = sbr.rel (0) target = $region13
  $region12: #{double_conv.1} parent=0 // pred_region
    _
  $region13: #{double_conv.1} parent=0 // pred_fallthru
    _
  // Predicated region
  $region14: #{double_conv.1} parent=0 // pred_check
    _
  $region15: #{double_conv.1} parent=0 // pred_check_branch
    %21 = sbr.rel (0) target = $region17
  $region16: #{double_conv.1} parent=0 // pred_region
    _
  $region17: #{double_conv.1} parent=0 // pred_fallthru
    _
  // Predicated region
  $region18: #{double_conv.1} parent=0 // pred_check
    _
  $region19: #{double_conv.1} parent=0 // pred_check_branch
    %23 = sbr.rel (0) target = $region21
  $region20: #{double_conv.1} parent=0 // pred_region
    _
  $region21: #{double_conv.1} parent=0 // pred_fallthru
    _
  // Predicated region
  $region22: #{double_conv.1} parent=0 // pred_check
    _
  $region23: #{double_conv.1} parent=0 // pred_check_branch
    %25 = sbr.rel (0) target = $region25
  $region24: #{double_conv.1} parent=0 // pred_region
    _
  $region25: #{double_conv.1} parent=0 // pred_fallthru
    _
  // Predicated region
  $region26: #{double_conv.1} parent=0 // pred_check
    _
  $region27: #{double_conv.1} parent=0 // pred_check_branch
    %27 = sbr.rel (0) target = $region29
  $region28: #{double_conv.1} parent=0 // pred_region
    _
  $region29: #{double_conv.1} parent=0 // pred_fallthru
    _
  // Predicated region
  $region30: #{double_conv.1} parent=0 // pred_check
    _
  $region31: #{double_conv.1} parent=0 // pred_check_branch
    %29 = sbr.rel (0) target = $region33
  $region32: #{double_conv.1} parent=0 // pred_region
    _
  $region33: #{double_conv.1} parent=0 // pred_fallthru
    _
  // Predicated region
  $region34: #{double_conv.1} parent=0 // pred_check
    _
  $region35: #{double_conv.1} parent=0 // pred_check_branch
    %31 = sbr.rel (0) target = $region37
  $region36: #{double_conv.1} parent=0 // pred_region
    _
  $region37: #{double_conv.1} parent=0 // pred_fallthru
    _
  %32 = vst [vmem:[#allocation2] sm:$0xff] 0.0
  %33 = vst [vmem:[#allocation2 + $0x8] sm:$0xff] 0.0
  %34 = vst [vmem:[#allocation2 + $0x10] sm:$0xff] 0.0
  %35 = vst [vmem:[#allocation2 + $0x18] sm:$0xff] 0.0
  %36 = vst [vmem:[#allocation2 + $0x20] sm:$0xff] 0.0
  %37 = vst [vmem:[#allocation2 + $0x28] sm:$0xff] 0.0
  %38 = vst [vmem:[#allocation2 + $0x30] sm:$0xff] 0.0
  %39 = vst [vmem:[#allocation2 + $0x38] sm:$0xff] 0.0
  %40 = vst [vmem:[#allocation2 + $0x40] sm:$0xff] 0.0
  %41 = vst [vmem:[#allocation2 + $0x48] sm:$0xff] 0.0
  %42 = vst [vmem:[#allocation2 + $0x50] sm:$0xff] 0.0
  %43 = vst [vmem:[#allocation2 + $0x58] sm:$0xff] 0.0
  %44 = vst [vmem:[#allocation2 + $0x60] sm:$0xff] 0.0
  %45 = vst [vmem:[#allocation2 + $0x68] sm:$0xff] 0.0
  %46 = vst [vmem:[#allocation2 + $0x70] sm:$0xff] 0.0
  %47 = vst [vmem:[#allocation2 + $0x78] sm:$0xff] 0.0
  %48 = vst [vmem:[#allocation2 + $0x80] sm:$0xff] 0.0
  %49 = vst [vmem:[#allocation2 + $0x88] sm:$0xff] 0.0
  %50 = vst [vmem:[#allocation2 + $0x90] sm:$0xff] 0.0
  %51 = vst [vmem:[#allocation2 + $0x98] sm:$0xff] 0.0
  %52 = vst [vmem:[#allocation2 + $0xa0] sm:$0xff] 0.0
  %53 = vst [vmem:[#allocation2 + $0xa8] sm:$0xff] 0.0
  %54 = vst [vmem:[#allocation2 + $0xb0] sm:$0xff] 0.0
  %55 = vst [vmem:[#allocation2 + $0xb8] sm:$0xff] 0.0
  %56 = vst [vmem:[#allocation2 + $0xc0] sm:$0xff] 0.0
  %57 = vst [vmem:[#allocation2 + $0xc8] sm:$0xff] 0.0
  %58 = vst [vmem:[#allocation2 + $0xd0] sm:$0xff] 0.0
  %59 = vst [vmem:[#allocation2 + $0xd8] sm:$0xff] 0.0
  %60 = vst [vmem:[#allocation2 + $0xe0] sm:$0xff] 0.0
  %61 = vst [vmem:[#allocation2 + $0xe8] sm:$0xff] 0.0
  %62 = vst [vmem:[#allocation2 + $0xf0] sm:$0xff] 0.0
  %63 = vst [vmem:[#allocation2 + $0xf8] sm:$0xff] 0.0
  %64 = vst [vmem:[#allocation2 + $0x100] sm:$0xff] 0.0
  %65 = vst [vmem:[#allocation2 + $0x108] sm:$0xff] 0.0
  %66 = vst [vmem:[#allocation2 + $0x110] sm:$0xff] 0.0
  %67 = vst [vmem:[#allocation2 + $0x118] sm:$0xff] 0.0
  %68 = vst [vmem:[#allocation2 + $0x120] sm:$0xff] 0.0
  %69 = vst [vmem:[#allocation2 + $0x128] sm:$0xff] 0.0
  %70 = vst [vmem:[#allocation2 + $0x130] sm:$0xff] 0.0
  %71 = vst [vmem:[#allocation2 + $0x138] sm:$0xff] 0.0
  %72 = vst [vmem:[#allocation2 + $0x140] sm:$0xff] 0.0
  %73 = vst [vmem:[#allocation2 + $0x148] sm:$0xff] 0.0
  %74 = vst [vmem:[#allocation2 + $0x150] sm:$0xff] 0.0
  %75 = vst [vmem:[#allocation2 + $0x158] sm:$0xff] 0.0
  %76 = vst [vmem:[#allocation2 + $0x160] sm:$0xff] 0.0
  %77 = vst [vmem:[#allocation2 + $0x168] sm:$0xff] 0.0
  %78 = vst [vmem:[#allocation2 + $0x170] sm:$0xff] 0.0
  %79 = vst [vmem:[#allocation2 + $0x178] sm:$0xff] 0.0
  %80 = vst [vmem:[#allocation2 + $0x180] sm:$0xff] 0.0
  %81 = vst [vmem:[#allocation2 + $0x188] sm:$0xff] 0.0
  %82 = vst [vmem:[#allocation2 + $0x190] sm:$0xff] 0.0
  %83 = vst [vmem:[#allocation2 + $0x198] sm:$0xff] 0.0
  %84 = vst [vmem:[#allocation2 + $0x1a0] sm:$0xff] 0.0
  %85 = vst [vmem:[#allocation2 + $0x1a8] sm:$0xff] 0.0
  %86 = vst [vmem:[#allocation2 + $0x1b0] sm:$0xff] 0.0
  %87 = vst [vmem:[#allocation2 + $0x1b8] sm:$0xff] 0.0
  %88 = vst [vmem:[#allocation2 + $0x1c0] sm:$0xff] 0.0
  %89 = vst [vmem:[#allocation2 + $0x1c8] sm:$0xff] 0.0
  %90 = vst [vmem:[#allocation2 + $0x1d0] sm:$0xff] 0.0
  %91 = vst [vmem:[#allocation2 + $0x1d8] sm:$0xff] 0.0
  %92 = vst [vmem:[#allocation2 + $0x1e0] sm:$0xff] 0.0
  %93 = vst [vmem:[#allocation2 + $0x1e8] sm:$0xff] 0.0
  %94 = vst [vmem:[#allocation2 + $0x1f0] sm:$0xff] 0.0
  %95 = vst [vmem:[#allocation2 + $0x1f8] sm:$0xff] 0.0
  %96 = vst [vmem:[#allocation2 + $0x200] sm:$0xff] 0.0
  %97 = vst [vmem:[#allocation2 + $0x208] sm:$0xff] 0.0
  %98 = vst [vmem:[#allocation2 + $0x210] sm:$0xff] 0.0
  %99 = vst [vmem:[#allocation2 + $0x218] sm:$0xff] 0.0
  %100 = vst [vmem:[#allocation2 + $0x220] sm:$0xff] 0.0
  %101 = vst [vmem:[#allocation2 + $0x228] sm:$0xff] 0.0
  %102 = vst [vmem:[#allocation2 + $0x230] sm:$0xff] 0.0
  %103 = vst [vmem:[#allocation2 + $0x238] sm:$0xff] 0.0
  %104 = vst [vmem:[#allocation2 + $0x240] sm:$0xff] 0.0
  %105 = vst [vmem:[#allocation2 + $0x248] sm:$0xff] 0.0
  %106 = vst [vmem:[#allocation2 + $0x250] sm:$0xff] 0.0
  %107 = vst [vmem:[#allocation2 + $0x258] sm:$0xff] 0.0
  %108 = vst [vmem:[#allocation2 + $0x260] sm:$0xff] 0.0
  %109 = vst [vmem:[#allocation2 + $0x268] sm:$0xff] 0.0
  %110 = vst [vmem:[#allocation2 + $0x270] sm:$0xff] 0.0
  %111 = vst [vmem:[#allocation2 + $0x278] sm:$0xff] 0.0
  %112 = vst [vmem:[#allocation2 + $0x280] sm:$0xff] 0.0
  %113 = vst [vmem:[#allocation2 + $0x288] sm:$0xff] 0.0
  %114 = vst [vmem:[#allocation2 + $0x290] sm:$0xff] 0.0
  %115 = vst [vmem:[#allocation2 + $0x298] sm:$0xff] 0.0
  %116 = vst [vmem:[#allocation2 + $0x2a0] sm:$0xff] 0.0
  %117 = vst [vmem:[#allocation2 + $0x2a8] sm:$0xff] 0.0
  %118 = vst [vmem:[#allocation2 + $0x2b0] sm:$0xff] 0.0
  %119 = vst [vmem:[#allocation2 + $0x2b8] sm:$0xff] 0.0
  %120 = vst [vmem:[#allocation2 + $0x2c0] sm:$0xff] 0.0
  %121 = vst [vmem:[#allocation2 + $0x2c8] sm:$0xff] 0.0
  %122 = vst [vmem:[#allocation2 + $0x2d0] sm:$0xff] 0.0
  %123 = vst [vmem:[#allocation2 + $0x2d8] sm:$0xff] 0.0
  %124 = vst [vmem:[#allocation2 + $0x2e0] sm:$0xff] 0.0
  %125 = vst [vmem:[#allocation2 + $0x2e8] sm:$0xff] 0.0
  %126 = vst [vmem:[#allocation2 + $0x2f0] sm:$0xff] 0.0
  %127 = vst [vmem:[#allocation2 + $0x2f8] sm:$0xff] 0.0
  %128 = vst [vmem:[#allocation2 + $0x300] sm:$0xff] 0.0
  %129 = vst [vmem:[#allocation2 + $0x308] sm:$0xff] 0.0
  %130 = vst [vmem:[#allocation2 + $0x310] sm:$0xff] 0.0
  %131 = vst [vmem:[#allocation2 + $0x318] sm:$0xff] 0.0
  %132 = vst [vmem:[#allocation2 + $0x320] sm:$0xff] 0.0
  %133 = vst [vmem:[#allocation2 + $0x328] sm:$0xff] 0.0
  %134 = vst [vmem:[#allocation2 + $0x330] sm:$0xff] 0.0
  %135 = vst [vmem:[#allocation2 + $0x338] sm:$0xff] 0.0
  %136 = vst [vmem:[#allocation2 + $0x340] sm:$0xff] 0.0
  %137 = vst [vmem:[#allocation2 + $0x348] sm:$0xff] 0.0
  %138 = vst [vmem:[#allocation2 + $0x350] sm:$0xff] 0.0
  %139 = vst [vmem:[#allocation2 + $0x358] sm:$0xff] 0.0
  %v140 = vld [vmem:[%s0] sm:$0xff]
  %v141 = vld [vmem:[%s0 + $0x8] sm:$0xff]
  %v142 = vld [vmem:[%s0 + $0x10] sm:$0xff]
  %v143 = vld [vmem:[%s0 + $0x18] sm:$0xff]
  %v144 = vld [vmem:[%s0 + $0x20] sm:$0xff]
  %v145 = vld [vmem:[%s0 + $0x28] sm:$0xff]
  %v146 = vld [vmem:[%s0 + $0x30] sm:$0xff]
  %v147 = vld [vmem:[%s0 + $0x38] sm:$0xff]
  %v148 = vld [vmem:[%s0 + $0x40] sm:$0xff]
  %v149 = vld [vmem:[%s0 + $0x48] sm:$0xff]
  %v150 = vld [vmem:[%s0 + $0x50] sm:$0xff]
  %v151 = vld [vmem:[%s0 + $0x58] sm:$0xff]
  %v152 = vld [vmem:[%s0 + $0x60] sm:$0xff]
  %v153 = vld [vmem:[%s0 + $0x68] sm:$0xff]
  %v154 = vld [vmem:[%s0 + $0x70] sm:$0xff]
  %v155 = vld [vmem:[%s0 + $0x78] sm:$0xff]
  %v156 = vld [vmem:[%s0 + $0x80] sm:$0xff]
  %v157 = vld [vmem:[%s0 + $0x88] sm:$0xff]
  %v158 = vld [vmem:[%s0 + $0x90] sm:$0xff]
  %v159 = vld [vmem:[%s0 + $0x98] sm:$0xff]
  %v160 = vld [vmem:[%s0 + $0xa0] sm:$0xff]
  %v161 = vld [vmem:[%s0 + $0xa8] sm:$0xff]
  %v162 = vld [vmem:[%s0 + $0xb0] sm:$0xff]
  %v163 = vld [vmem:[%s0 + $0xb8] sm:$0xff]
  %v164 = vld [vmem:[%s0 + $0xc0] sm:$0xff]
  %v165 = vld [vmem:[%s0 + $0xc8] sm:$0xff]
  %v166 = vld [vmem:[%s0 + $0xd0] sm:$0xff]
  %v167 = vld [vmem:[%s0 + $0xd8] sm:$0xff]
  %v168 = vld [vmem:[%s0 + $0xe0] sm:$0xff]
  %v169 = vld [vmem:[%s0 + $0xe8] sm:$0xff]
  %v170 = vld [vmem:[%s0 + $0xf0] sm:$0xff]
  %v171 = vld [vmem:[%s0 + $0xf8] sm:$0xff]
  %v172 = vld [vmem:[%s0 + $0x100] sm:$0xff]
  %v173 = vld [vmem:[%s0 + $0x108] sm:$0xff]
  %v174 = vld [vmem:[%s0 + $0x110] sm:$0xff]
  %v175 = vld [vmem:[%s0 + $0x118] sm:$0xff]
  %v176 = vld [vmem:[%s0 + $0x120] sm:$0xff]
  %v177 = vld [vmem:[%s0 + $0x128] sm:$0xff]
  %v178 = vld [vmem:[%s0 + $0x130] sm:$0xff]
  %v179 = vld [vmem:[%s0 + $0x138] sm:$0xff]
  %v180 = vld [vmem:[%s0 + $0x140] sm:$0xff]
  %v181 = vld [vmem:[%s0 + $0x148] sm:$0xff]
  %v182 = vld [vmem:[%s0 + $0x150] sm:$0xff]
  %v183 = vld [vmem:[%s0 + $0x158] sm:$0xff]
  %v184 = vld [vmem:[%s0 + $0x160] sm:$0xff]
  %v185 = vld [vmem:[%s0 + $0x168] sm:$0xff]
  %v186 = vld [vmem:[%s0 + $0x170] sm:$0xff]
  %v187 = vld [vmem:[%s0 + $0x178] sm:$0xff]
  %v188 = vld [vmem:[%s0 + $0x180] sm:$0xff]
  %v189 = vld [vmem:[%s0 + $0x188] sm:$0xff]
  %v190 = vld [vmem:[%s0 + $0x190] sm:$0xff]
  %v191 = vld [vmem:[%s0 + $0x198] sm:$0xff]
  %v192 = vld [vmem:[%s0 + $0x1a0] sm:$0xff]
  %v193 = vld [vmem:[%s0 + $0x1a8] sm:$0xff]
  %v194 = vld [vmem:[%s0 + $0x1b0] sm:$0xff]
  %v195 = vld [vmem:[%s0 + $0x1b8] sm:$0xff]
  %v196 = vld [vmem:[%s0 + $0x1c0] sm:$0xff]
  %v197 = vld [vmem:[%s0 + $0x1c8] sm:$0xff]
  %v198 = vld [vmem:[%s0 + $0x1d0] sm:$0xff]
  %v199 = vld [vmem:[%s0 + $0x1d8] sm:$0xff]
  %v200 = vld [vmem:[%s0 + $0x1e0] sm:$0xff]
  %v201 = vld [vmem:[%s0 + $0x1e8] sm:$0xff]
  %v202 = vld [vmem:[%s0 + $0x1f0] sm:$0xff]
  %v203 = vld [vmem:[%s0 + $0x1f8] sm:$0xff]
  %s204 = scalar_lea.vmem [#allocation2], 24
  %vm205 = vcmask 31744
  %206 = vst.msk [vmem:[%s204 + $0x1] sm:$0xff] %vm205, %v140
  %207 = vst.msk [vmem:[%s204 + $0x9] sm:$0xff] %vm205, %v141
  %208 = vst.msk [vmem:[%s204 + $0x19] sm:$0xff] %vm205, %v142
  %209 = vst.msk [vmem:[%s204 + $0x21] sm:$0xff] %vm205, %v143
  %210 = vst.msk [vmem:[%s204 + $0x31] sm:$0xff] %vm205, %v144
  %211 = vst.msk [vmem:[%s204 + $0x39] sm:$0xff] %vm205, %v145
  %212 = vst.msk [vmem:[%s204 + $0x49] sm:$0xff] %vm205, %v146
  %213 = vst.msk [vmem:[%s204 + $0x51] sm:$0xff] %vm205, %v147
  %214 = vst.msk [vmem:[%s204 + $0x61] sm:$0xff] %vm205, %v148
  %215 = vst.msk [vmem:[%s204 + $0x69] sm:$0xff] %vm205, %v149
  %216 = vst.msk [vmem:[%s204 + $0x79] sm:$0xff] %vm205, %v150
  %217 = vst.msk [vmem:[%s204 + $0x81] sm:$0xff] %vm205, %v151
  %218 = vst.msk [vmem:[%s204 + $0x91] sm:$0xff] %vm205, %v152
  %219 = vst.msk [vmem:[%s204 + $0x99] sm:$0xff] %vm205, %v153
  %220 = vst.msk [vmem:[%s204 + $0xa9] sm:$0xff] %vm205, %v154
  %221 = vst.msk [vmem:[%s204 + $0xb1] sm:$0xff] %vm205, %v155
  %222 = vst.msk [vmem:[%s204 + $0xc1] sm:$0xff] %vm205, %v156
  %223 = vst.msk [vmem:[%s204 + $0xc9] sm:$0xff] %vm205, %v157
  %224 = vst.msk [vmem:[%s204 + $0xd9] sm:$0xff] %vm205, %v158
  %225 = vst.msk [vmem:[%s204 + $0xe1] sm:$0xff] %vm205, %v159
  %226 = vst.msk [vmem:[%s204 + $0xf1] sm:$0xff] %vm205, %v160
  %227 = vst.msk [vmem:[%s204 + $0xf9] sm:$0xff] %vm205, %v161
  %228 = vst.msk [vmem:[%s204 + $0x109] sm:$0xff] %vm205, %v162
  %229 = vst.msk [vmem:[%s204 + $0x111] sm:$0xff] %vm205, %v163
  %230 = vst.msk [vmem:[%s204 + $0x121] sm:$0xff] %vm205, %v164
  %231 = vst.msk [vmem:[%s204 + $0x129] sm:$0xff] %vm205, %v165
  %232 = vst.msk [vmem:[%s204 + $0x139] sm:$0xff] %vm205, %v166
  %233 = vst.msk [vmem:[%s204 + $0x141] sm:$0xff] %vm205, %v167
  %234 = vst.msk [vmem:[%s204 + $0x151] sm:$0xff] %vm205, %v168
  %235 = vst.msk [vmem:[%s204 + $0x159] sm:$0xff] %vm205, %v169
  %236 = vst.msk [vmem:[%s204 + $0x169] sm:$0xff] %vm205, %v170
  %237 = vst.msk [vmem:[%s204 + $0x171] sm:$0xff] %vm205, %v171
  %238 = vst.msk [vmem:[%s204 + $0x1b1] sm:$0xff] %vm205, %v172
  %239 = vst.msk [vmem:[%s204 + $0x1b9] sm:$0xff] %vm205, %v173
  %240 = vst.msk [vmem:[%s204 + $0x1c9] sm:$0xff] %vm205, %v174
  %241 = vst.msk [vmem:[%s204 + $0x1d1] sm:$0xff] %vm205, %v175
  %242 = vst.msk [vmem:[%s204 + $0x1e1] sm:$0xff] %vm205, %v176
  %243 = vst.msk [vmem:[%s204 + $0x1e9] sm:$0xff] %vm205, %v177
  %244 = vst.msk [vmem:[%s204 + $0x1f9] sm:$0xff] %vm205, %v178
  %245 = vst.msk [vmem:[%s204 + $0x201] sm:$0xff] %vm205, %v179
  %246 = vst.msk [vmem:[%s204 + $0x211] sm:$0xff] %vm205, %v180
  %247 = vst.msk [vmem:[%s204 + $0x219] sm:$0xff] %vm205, %v181
  %248 = vst.msk [vmem:[%s204 + $0x229] sm:$0xff] %vm205, %v182
  %249 = vst.msk [vmem:[%s204 + $0x231] sm:$0xff] %vm205, %v183
  %250 = vst.msk [vmem:[%s204 + $0x241] sm:$0xff] %vm205, %v184
  %251 = vst.msk [vmem:[%s204 + $0x249] sm:$0xff] %vm205, %v185
  %252 = vst.msk [vmem:[%s204 + $0x259] sm:$0xff] %vm205, %v186
  %253 = vst.msk [vmem:[%s204 + $0x261] sm:$0xff] %vm205, %v187
  %254 = vst.msk [vmem:[%s204 + $0x271] sm:$0xff] %vm205, %v188
  %255 = vst.msk [vmem:[%s204 + $0x279] sm:$0xff] %vm205, %v189
  %256 = vst.msk [vmem:[%s204 + $0x289] sm:$0xff] %vm205, %v190
  %257 = vst.msk [vmem:[%s204 + $0x291] sm:$0xff] %vm205, %v191
  %258 = vst.msk [vmem:[%s204 + $0x2a1] sm:$0xff] %vm205, %v192
  %259 = vst.msk [vmem:[%s204 + $0x2a9] sm:$0xff] %vm205, %v193
  %260 = vst.msk [vmem:[%s204 + $0x2b9] sm:$0xff] %vm205, %v194
  %261 = vst.msk [vmem:[%s204 + $0x2c1] sm:$0xff] %vm205, %v195
  %262 = vst.msk [vmem:[%s204 + $0x2d1] sm:$0xff] %vm205, %v196
  %263 = vst.msk [vmem:[%s204 + $0x2d9] sm:$0xff] %vm205, %v197
  %264 = vst.msk [vmem:[%s204 + $0x2e9] sm:$0xff] %vm205, %v198
  %265 = vst.msk [vmem:[%s204 + $0x2f1] sm:$0xff] %vm205, %v199
  %266 = vst.msk [vmem:[%s204 + $0x301] sm:$0xff] %vm205, %v200
  %267 = vst.msk [vmem:[%s204 + $0x309] sm:$0xff] %vm205, %v201
  %268 = vst.msk [vmem:[%s204 + $0x319] sm:$0xff] %vm205, %v202
  %269 = vst.msk [vmem:[%s204 + $0x321] sm:$0xff] %vm205, %v203
  %v270 = vld [vmem:[%s2] sm:$0x1]
  %v271 = vld [vmem:[#allocation2] sm:$0xff]
  %v272 = vld [vmem:[#allocation2 + $0x8] sm:$0xff]
  %v273 = vld [vmem:[#allocation2 + $0x18] sm:$0xff]
  %v274 = vld [vmem:[#allocation2 + $0x20] sm:$0xff]
  %v275 = vld [vmem:[#allocation2 + $0x30] sm:$0xff]
  %v276 = vld [vmem:[#allocation2 + $0x38] sm:$0xff]
  %v277 = vld [vmem:[#allocation2 + $0x48] sm:$0xff]
  %v278 = vld [vmem:[#allocation2 + $0x50] sm:$0xff]
  %v279 = vld [vmem:[#allocation2 + $0x60] sm:$0xff]
  %v280 = vld [vmem:[#allocation2 + $0x68] sm:$0xff]
  %v281 = vld [vmem:[#allocation2 + $0x78] sm:$0xff]
  %v282 = vld [vmem:[#allocation2 + $0x80] sm:$0xff]
  %v283 = vld [vmem:[#allocation2 + $0x90] sm:$0xff]
  %v284 = vld [vmem:[#allocation2 + $0x98] sm:$0xff]
  %v285 = vld [vmem:[#allocation2 + $0xa8] sm:$0xff]
  %v286 = vld [vmem:[#allocation2 + $0xb0] sm:$0xff]
  %v287 = vld [vmem:[#allocation2 + $0xc0] sm:$0xff]
  %v288 = vld [vmem:[#allocation2 + $0xc8] sm:$0xff]
  %v289 = vld [vmem:[#allocation2 + $0xd8] sm:$0xff]
  %v290 = vld [vmem:[#allocation2 + $0xe0] sm:$0xff]
  %v291 = vld [vmem:[#allocation2 + $0xf0] sm:$0xff]
  %v292 = vld [vmem:[#allocation2 + $0xf8] sm:$0xff]
  %v293 = vld [vmem:[#allocation2 + $0x108] sm:$0xff]
  %v294 = vld [vmem:[#allocation2 + $0x110] sm:$0xff]
  %v295 = vld [vmem:[#allocation2 + $0x120] sm:$0xff]
  %v296 = vld [vmem:[#allocation2 + $0x128] sm:$0xff]
  %v297 = vld [vmem:[#allocation2 + $0x138] sm:$0xff]
  %v298 = vld [vmem:[#allocation2 + $0x140] sm:$0xff]
  %v299 = vld [vmem:[#allocation2 + $0x150] sm:$0xff]
  %v300 = vld [vmem:[#allocation2 + $0x158] sm:$0xff]
  %v301 = vld [vmem:[#allocation2 + $0x168] sm:$0xff]
  %v302 = vld [vmem:[#allocation2 + $0x170] sm:$0xff]
  %v303 = vld [vmem:[#allocation2 + $0x1b0] sm:$0xff]
  %v304 = vld [vmem:[#allocation2 + $0x1b8] sm:$0xff]
  %v305 = vld [vmem:[#allocation2 + $0x1c8] sm:$0xff]
  %v306 = vld [vmem:[#allocation2 + $0x1d0] sm:$0xff]
  %v307 = vld [vmem:[#allocation2 + $0x1e0] sm:$0xff]
  %v308 = vld [vmem:[#allocation2 + $0x1e8] sm:$0xff]
  %v309 = vld [vmem:[#allocation2 + $0x1f8] sm:$0xff]
  %v310 = vld [vmem:[#allocation2 + $0x200] sm:$0xff]
  %v311 = vld [vmem:[#allocation2 + $0x210] sm:$0xff]
  %v312 = vld [vmem:[#allocation2 + $0x218] sm:$0xff]
  %v313 = vld [vmem:[#allocation2 + $0x228] sm:$0xff]
  %v314 = vld [vmem:[#allocation2 + $0x230] sm:$0xff]
  %v315 = vld [vmem:[#allocation2 + $0x240] sm:$0xff]
  %v316 = vld [vmem:[#allocation2 + $0x248] sm:$0xff]
  %v317 = vld [vmem:[#allocation2 + $0x258] sm:$0xff]
  %v318 = vld [vmem:[#allocation2 + $0x260] sm:$0xff]
  %v319 = vld [vmem:[#allocation2 + $0x270] sm:$0xff]
  %v320 = vld [vmem:[#allocation2 + $0x278] sm:$0xff]
  %v321 = vld [vmem:[#allocation2 + $0x288] sm:$0xff]
  %v322 = vld [vmem:[#allocation2 + $0x290] sm:$0xff]
  %v323 = vld [vmem:[#allocation2 + $0x2a0] sm:$0xff]
  %v324 = vld [vmem:[#allocation2 + $0x2a8] sm:$0xff]
  %v325 = vld [vmem:[#allocation2 + $0x2b8] sm:$0xff]
  %v326 = vld [vmem:[#allocation2 + $0x2c0] sm:$0xff]
  %v327 = vld [vmem:[#allocation2 + $0x2d0] sm:$0xff]
  %v328 = vld [vmem:[#allocation2 + $0x2d8] sm:$0xff]
  %v329 = vld [vmem:[#allocation2 + $0x2e8] sm:$0xff]
  %v330 = vld [vmem:[#allocation2 + $0x2f0] sm:$0xff]
  %v331 = vld [vmem:[#allocation2 + $0x300] sm:$0xff]
  %v332 = vld [vmem:[#allocation2 + $0x308] sm:$0xff]
  %v333 = vld [vmem:[#allocation2 + $0x318] sm:$0xff]
  %v334 = vld [vmem:[#allocation2 + $0x320] sm:$0xff]
  %v335 = vld [vmem:[%s1] sm:$0xff]
  %v336 = vld [vmem:[%s1 + $0x8] sm:$0xff]
  %v337 = vld [vmem:[%s1 + $0x10] sm:$0xff]
  %v338 = vld [vmem:[%s1 + $0x18] sm:$0xff]
  %v339 = vld [vmem:[%s1 + $0x20] sm:$0xff]
  %v340 = vld [vmem:[%s1 + $0x28] sm:$0xff]
  %v341 = vld [vmem:[%s1 + $0x30] sm:$0xff]
  %v342 = vld [vmem:[%s1 + $0x38] sm:$0xff]
  %v343 = vld [vmem:[%s1 + $0x40] sm:$0xff]
  %v344 = vld [vmem:[%s1 + $0x48] sm:$0xff]
  %v345 = vld [vmem:[%s1 + $0x50] sm:$0xff]
  %v346 = vld [vmem:[%s1 + $0x58] sm:$0xff]
  %v347 = vld [vmem:[%s1 + $0x60] sm:$0xff]
  %v348 = vld [vmem:[%s1 + $0x68] sm:$0xff]
  %v349 = vld [vmem:[%s1 + $0x70] sm:$0xff]
  %v350 = vld [vmem:[%s1 + $0x78] sm:$0xff]
  %v351 = vld [vmem:[#allocation2 + $0x1] sm:$0xff]
  %v352 = vld [vmem:[#allocation2 + $0x9] sm:$0xff]
  %v353 = vld [vmem:[#allocation2 + $0x19] sm:$0xff]
  %v354 = vld [vmem:[#allocation2 + $0x21] sm:$0xff]
  %v355 = vld [vmem:[#allocation2 + $0x31] sm:$0xff]
  %v356 = vld [vmem:[#allocation2 + $0x39] sm:$0xff]
  %v357 = vld [vmem:[#allocation2 + $0x49] sm:$0xff]
  %v358 = vld [vmem:[#allocation2 + $0x51] sm:$0xff]
  %v359 = vld [vmem:[#allocation2 + $0x61] sm:$0xff]
  %v360 = vld [vmem:[#allocation2 + $0x69] sm:$0xff]
  %v361 = vld [vmem:[#allocation2 + $0x79] sm:$0xff]
  %v362 = vld [vmem:[#allocation2 + $0x81] sm:$0xff]
  %v363 = vld [vmem:[#allocation2 + $0x91] sm:$0xff]
  %v364 = vld [vmem:[#allocation2 + $0x99] sm:$0xff]
  %v365 = vld [vmem:[#allocation2 + $0xa9] sm:$0xff]
  %v366 = vld [vmem:[#allocation2 + $0xb1] sm:$0xff]
  %v367 = vld [vmem:[#allocation2 + $0xc1] sm:$0xff]
  %v368 = vld [vmem:[#allocation2 + $0xc9] sm:$0xff]
  %v369 = vld [vmem:[#allocation2 + $0xd9] sm:$0xff]
  %v370 = vld [vmem:[#allocation2 + $0xe1] sm:$0xff]
  %v371 = vld [vmem:[#allocation2 + $0xf1] sm:$0xff]
  %v372 = vld [vmem:[#allocation2 + $0xf9] sm:$0xff]
  %v373 = vld [vmem:[#allocation2 + $0x109] sm:$0xff]
  %v374 = vld [vmem:[#allocation2 + $0x111] sm:$0xff]
  %v375 = vld [vmem:[#allocation2 + $0x121] sm:$0xff]
  %v376 = vld [vmem:[#allocation2 + $0x129] sm:$0xff]
  %v377 = vld [vmem:[#allocation2 + $0x139] sm:$0xff]
  %v378 = vld [vmem:[#allocation2 + $0x141] sm:$0xff]
  %v379 = vld [vmem:[#allocation2 + $0x151] sm:$0xff]
  %v380 = vld [vmem:[#allocation2 + $0x159] sm:$0xff]
  %v381 = vld [vmem:[#allocation2 + $0x169] sm:$0xff]
  %v382 = vld [vmem:[#allocation2 + $0x171] sm:$0xff]
  %v383 = vld [vmem:[#allocation2 + $0x1b1] sm:$0xff]
  %v384 = vld [vmem:[#allocation2 + $0x1b9] sm:$0xff]
  %v385 = vld [vmem:[#allocation2 + $0x1c9] sm:$0xff]
  %v386 = vld [vmem:[#allocation2 + $0x1d1] sm:$0xff]
  %v387 = vld [vmem:[#allocation2 + $0x1e1] sm:$0xff]
  %v388 = vld [vmem:[#allocation2 + $0x1e9] sm:$0xff]
  %v389 = vld [vmem:[#allocation2 + $0x1f9] sm:$0xff]
  %v390 = vld [vmem:[#allocation2 + $0x201] sm:$0xff]
  %v391 = vld [vmem:[#allocation2 + $0x211] sm:$0xff]
  %v392 = vld [vmem:[#allocation2 + $0x219] sm:$0xff]
  %v393 = vld [vmem:[#allocation2 + $0x229] sm:$0xff]
  %v394 = vld [vmem:[#allocation2 + $0x231] sm:$0xff]
  %v395 = vld [vmem:[#allocation2 + $0x241] sm:$0xff]
  %v396 = vld [vmem:[#allocation2 + $0x249] sm:$0xff]
  %v397 = vld [vmem:[#allocation2 + $0x259] sm:$0xff]
  %v398 = vld [vmem:[#allocation2 + $0x261] sm:$0xff]
  %v399 = vld [vmem:[#allocation2 + $0x271] sm:$0xff]
  %v400 = vld [vmem:[#allocation2 + $0x279] sm:$0xff]
  %v401 = vld [vmem:[#allocation2 + $0x289] sm:$0xff]
  %v402 = vld [vmem:[#allocation2 + $0x291] sm:$0xff]
  %v403 = vld [vmem:[#allocation2 + $0x2a1] sm:$0xff]
  %v404 = vld [vmem:[#allocation2 + $0x2a9] sm:$0xff]
  %v405 = vld [vmem:[#allocation2 + $0x2b9] sm:$0xff]
  %v406 = vld [vmem:[#allocation2 + $0x2c1] sm:$0xff]
  %v407 = vld [vmem:[#allocation2 + $0x2d1] sm:$0xff]
  %v408 = vld [vmem:[#allocation2 + $0x2d9] sm:$0xff]
  %v409 = vld [vmem:[#allocation2 + $0x2e9] sm:$0xff]
  %v410 = vld [vmem:[#allocation2 + $0x2f1] sm:$0xff]
  %v411 = vld [vmem:[#allocation2 + $0x301] sm:$0xff]
  %v412 = vld [vmem:[#allocation2 + $0x309] sm:$0xff]
  %v413 = vld [vmem:[#allocation2 + $0x319] sm:$0xff]
  %v414 = vld [vmem:[#allocation2 + $0x321] sm:$0xff]
  %s415 = scalar_lea.vmem %s1, 128
  %v416 = vld [vmem:[%s415] sm:$0xff]
  %v417 = vld [vmem:[%s415 + $0x8] sm:$0xff]
  %v418 = vld [vmem:[%s415 + $0x10] sm:$0xff]
  %v419 = vld [vmem:[%s415 + $0x18] sm:$0xff]
  %v420 = vld [vmem:[%s415 + $0x20] sm:$0xff]
  %v421 = vld [vmem:[%s415 + $0x28] sm:$0xff]
  %v422 = vld [vmem:[%s415 + $0x30] sm:$0xff]
  %v423 = vld [vmem:[%s415 + $0x38] sm:$0xff]
  %v424 = vld [vmem:[%s415 + $0x40] sm:$0xff]
  %v425 = vld [vmem:[%s415 + $0x48] sm:$0xff]
  %v426 = vld [vmem:[%s415 + $0x50] sm:$0xff]
  %v427 = vld [vmem:[%s415 + $0x58] sm:$0xff]
  %v428 = vld [vmem:[%s415 + $0x60] sm:$0xff]
  %v429 = vld [vmem:[%s415 + $0x68] sm:$0xff]
  %v430 = vld [vmem:[%s415 + $0x70] sm:$0xff]
  %v431 = vld [vmem:[%s415 + $0x78] sm:$0xff]
  %432 = vmatprep.subr.mxu0 0.0
  %433 = vmatpush1.msra.mxu0 %v416
  %434 = vmatprep.subr.mxu0 0.0
  %435 = vmatpush1.msra.mxu0 %v417
  %436 = vmatprep.subr.mxu0 0.0
  %437 = vmatpush1.msra.mxu0 %v418
  %438 = vmatprep.subr.mxu0 0.0
  %439 = vmatpush1.msra.mxu0 %v419
  %440 = vmatprep.subr.mxu0 0.0
  %441 = vmatpush1.msra.mxu0 %v420
  %442 = vmatprep.subr.mxu0 0.0
  %443 = vmatpush1.msra.mxu0 %v421
  %444 = vmatprep.subr.mxu0 0.0
  %445 = vmatpush1.msra.mxu0 %v422
  %446 = vmatprep.subr.mxu0 0.0
  %447 = vmatpush1.msra.mxu0 %v423
  %448 = vmatprep.subr.mxu0 0.0
  %449 = vmatpush1.msra.mxu0 %v424
  %450 = vmatprep.subr.mxu0 0.0
  %451 = vmatpush1.msra.mxu0 %v425
  %452 = vmatprep.subr.mxu0 0.0
  %453 = vmatpush1.msra.mxu0 %v426
  %454 = vmatprep.subr.mxu0 0.0
  %455 = vmatpush1.msra.mxu0 %v427
  %456 = vmatprep.subr.mxu0 0.0
  %457 = vmatpush1.msra.mxu0 %v428
  %458 = vmatprep.subr.mxu0 0.0
  %459 = vmatpush1.msra.mxu0 %v429
  %460 = vmatprep.subr.mxu0 0.0
  %461 = vmatpush1.msra.mxu0 %v430
  %462 = vmatprep.subr.mxu0 0.0
  %463 = vmatpush1.msra.mxu0 %v431
  %464 = vmatprep.subr.mxu0 0.0
  %465 = vmatpush1.msra.mxu0 0.0
  %466 = vmatprep.subr.mxu0 0.0
  %467 = vmatpush1.msra.mxu0 0.0
  %468 = vmatprep.subr.mxu0 0.0
  %469 = vmatpush1.msra.mxu0 0.0
  %470 = vmatprep.subr.mxu0 0.0
  %471 = vmatpush1.msra.mxu0 0.0
  %472 = vmatprep.subr.mxu0 0.0
  %473 = vmatpush1.msra.mxu0 0.0
  %474 = vmatprep.subr.mxu0 0.0
  %475 = vmatpush1.msra.mxu0 0.0
  %476 = vmatprep.subr.mxu0 0.0
  %477 = vmatpush1.msra.mxu0 0.0
  %478 = vmatprep.subr.mxu0 0.0
  %479 = vmatpush1.msra.mxu0 0.0
  %480 = vmatprep.subr.mxu0 0.0
  %481 = vmatpush1.msra.mxu0 0.0
  %482 = vmatprep.subr.mxu0 0.0
  %483 = vmatpush1.msra.mxu0 0.0
  %484 = vmatprep.subr.mxu0 0.0
  %485 = vmatpush1.msra.mxu0 0.0
  %486 = vmatprep.subr.mxu0 0.0
  %487 = vmatpush1.msra.mxu0 0.0
  %488 = vmatprep.subr.mxu0 0.0
  %489 = vmatpush1.msra.mxu0 0.0
  %490 = vmatprep.subr.mxu0 0.0
  %491 = vmatpush1.msra.mxu0 0.0
  %492 = vmatprep.subr.mxu0 0.0
  %493 = vmatpush1.msra.mxu0 0.0
  %494 = vmatprep.subr.mxu0 0.0
  %495 = vmatpush1.msra.mxu0 0.0
  %496 = vmatprep.mubr.f32.mxu0 0.0
  %497 = vmatmul.mubr.f32.gmra.mrb[0].mxu0 %v351
  %v498 = vpop.f32.mrb[0].mxu0
  %v499 = vadd.f32 0.0, %v498
  %v500 = vpop.f32.mrb[0].mxu0
  %501 = vmatprep.mubr.f32.mxu0 0.0
  %502 = vmatmul.mubr.f32.gmra.mrb[0].mxu0 %v352
  %v503 = vpop.f32.mrb[0].mxu0
  %v504 = vadd.f32 0.0, %v503
  %v505 = vpop.f32.mrb[0].mxu0
  %506 = vmatprep.mubr.f32.mxu0 0.0
  %507 = vmatmul.mubr.f32.gmra.mrb[0].mxu0 %v353
  %v508 = vpop.f32.mrb[0].mxu0
  %v509 = vadd.f32 0.0, %v508
  %v510 = vpop.f32.mrb[0].mxu0
  %511 = vmatprep.mubr.f32.mxu0 0.0
  %512 = vmatmul.mubr.f32.gmra.mrb[0].mxu0 %v354
  %v513 = vpop.f32.mrb[0].mxu0
  %v514 = vadd.f32 0.0, %v513
  %v515 = vpop.f32.mrb[0].mxu0
  %516 = vmatprep.mubr.f32.mxu0 0.0
  %517 = vmatmul.mubr.f32.gmra.mrb[0].mxu0 %v355
  %v518 = vpop.f32.mrb[0].mxu0
  %v519 = vadd.f32 0.0, %v518
  %v520 = vpop.f32.mrb[0].mxu0
  %521 = vmatprep.mubr.f32.mxu0 0.0
  %522 = vmatmul.mubr.f32.gmra.mrb[0].mxu0 %v356
  %v523 = vpop.f32.mrb[0].mxu0
  %v524 = vadd.f32 0.0, %v523
  %v525 = vpop.f32.mrb[0].mxu0
  %526 = vmatprep.mubr.f32.mxu0 0.0
  %527 = vmatmul.mubr.f32.gmra.mrb[0].mxu0 %v357
  %v528 = vpop.f32.mrb[0].mxu0
  %v529 = vadd.f32 0.0, %v528
  %v530 = vpop.f32.mrb[0].mxu0
  %531 = vmatprep.mubr.f32.mxu0 0.0
  %532 = vmatmul.mubr.f32.gmra.mrb[0].mxu0 %v358
  %v533 = vpop.f32.mrb[0].mxu0
  %v534 = vadd.f32 0.0, %v533
  %v535 = vpop.f32.mrb[0].mxu0
  %536 = vmatprep.mubr.f32.mxu0 0.0
  %537 = vmatmul.mubr.f32.gmra.mrb[0].mxu0 %v359
  %v538 = vpop.f32.mrb[0].mxu0
  %v539 = vadd.f32 0.0, %v538
  %v540 = vpop.f32.mrb[0].mxu0
  %541 = vmatprep.mubr.f32.mxu0 0.0
  %542 = vmatmul.mubr.f32.gmra.mrb[0].mxu0 %v360
  %v543 = vpop.f32.mrb[0].mxu0
  %v544 = vadd.f32 0.0, %v543
  %v545 = vpop.f32.mrb[0].mxu0
  %546 = vmatprep.mubr.f32.mxu0 0.0
  %547 = vmatmul.mubr.f32.gmra.mrb[0].mxu0 %v361
  %v548 = vpop.f32.mrb[0].mxu0
  %v549 = vadd.f32 0.0, %v548
  %v550 = vpop.f32.mrb[0].mxu0
  %551 = vmatprep.mubr.f32.mxu0 0.0
  %552 = vmatmul.mubr.f32.gmra.mrb[0].mxu0 %v362
  %v553 = vpop.f32.mrb[0].mxu0
  %v554 = vadd.f32 0.0, %v553
  %v555 = vpop.f32.mrb[0].mxu0
  %556 = vmatprep.mubr.f32.mxu0 0.0
  %557 = vmatmul.mubr.f32.gmra.mrb[0].mxu0 %v363
  %v558 = vpop.f32.mrb[0].mxu0
  %v559 = vadd.f32 0.0, %v558
  %v560 = vpop.f32.mrb[0].mxu0
  %561 = vmatprep.mubr.f32.mxu0 0.0
  %562 = vmatmul.mubr.f32.gmra.mrb[0].mxu0 %v364
  %v563 = vpop.f32.mrb[0].mxu0
  %v564 = vadd.f32 0.0, %v563
  %v565 = vpop.f32.mrb[0].mxu0
  %566 = vmatprep.mubr.f32.mxu0 0.0
  %567 = vmatmul.mubr.f32.gmra.mrb[0].mxu0 %v365
  %v568 = vpop.f32.mrb[0].mxu0
  %v569 = vadd.f32 0.0, %v568
  %v570 = vpop.f32.mrb[0].mxu0
  %571 = vmatprep.mubr.f32.mxu0 0.0
  %572 = vmatmul.mubr.f32.gmra.mrb[0].mxu0 %v366
  %v573 = vpop.f32.mrb[0].mxu0
  %v574 = vadd.f32 0.0, %v573
  %v575 = vpop.f32.mrb[0].mxu0
  %576 = vmatprep.mubr.f32.mxu0 0.0
  %577 = vmatmul.mubr.f32.gmra.mrb[0].mxu0 %v367
  %v578 = vpop.f32.mrb[0].mxu0
  %v579 = vadd.f32 0.0, %v578
  %v580 = vpop.f32.mrb[0].mxu0
  %581 = vmatprep.mubr.f32.mxu0 0.0
  %582 = vmatmul.mubr.f32.gmra.mrb[0].mxu0 %v368
  %v583 = vpop.f32.mrb[0].mxu0
  %v584 = vadd.f32 0.0, %v583
  %v585 = vpop.f32.mrb[0].mxu0
  %586 = vmatprep.mubr.f32.mxu0 0.0
  %587 = vmatmul.mubr.f32.gmra.mrb[0].mxu0 %v369
  %v588 = vpop.f32.mrb[0].mxu0
  %v589 = vadd.f32 0.0, %v588
  %v590 = vpop.f32.mrb[0].mxu0
  %591 = vmatprep.mubr.f32.mxu0 0.0
  %592 = vmatmul.mubr.f32.gmra.mrb[0].mxu0 %v370
  %v593 = vpop.f32.mrb[0].mxu0
  %v594 = vadd.f32 0.0, %v593
  %v595 = vpop.f32.mrb[0].mxu0
  %596 = vmatprep.mubr.f32.mxu0 0.0
  %597 = vmatmul.mubr.f32.gmra.mrb[0].mxu0 %v371
  %v598 = vpop.f32.mrb[0].mxu0
  %v599 = vadd.f32 0.0, %v598
  %v600 = vpop.f32.mrb[0].mxu0
  %601 = vmatprep.mubr.f32.mxu0 0.0
  %602 = vmatmul.mubr.f32.gmra.mrb[0].mxu0 %v372
  %v603 = vpop.f32.mrb[0].mxu0
  %v604 = vadd.f32 0.0, %v603
  %v605 = vpop.f32.mrb[0].mxu0
  %606 = vmatprep.mubr.f32.mxu0 0.0
  %607 = vmatmul.mubr.f32.gmra.mrb[0].mxu0 %v373
  %v608 = vpop.f32.mrb[0].mxu0
  %v609 = vadd.f32 0.0, %v608
  %v610 = vpop.f32.mrb[0].mxu0
  %611 = vmatprep.mubr.f32.mxu0 0.0
  %612 = vmatmul.mubr.f32.gmra.mrb[0].mxu0 %v374
  %v613 = vpop.f32.mrb[0].mxu0
  %v614 = vadd.f32 0.0, %v613
  %v615 = vpop.f32.mrb[0].mxu0
  %616 = vmatprep.mubr.f32.mxu0 0.0
  %617 = vmatmul.mubr.f32.gmra.mrb[0].mxu0 %v375
  %v618 = vpop.f32.mrb[0].mxu0
  %v619 = vadd.f32 0.0, %v618
  %v620 = vpop.f32.mrb[0].mxu0
  %621 = vmatprep.mubr.f32.mxu0 0.0
  %622 = vmatmul.mubr.f32.gmra.mrb[0].mxu0 %v376
  %v623 = vpop.f32.mrb[0].mxu0
  %v624 = vadd.f32 0.0, %v623
  %v625 = vpop.f32.mrb[0].mxu0
  %626 = vmatprep.mubr.f32.mxu0 0.0
  %627 = vmatmul.mubr.f32.gmra.mrb[0].mxu0 %v377
  %v628 = vpop.f32.mrb[0].mxu0
  %v629 = vadd.f32 0.0, %v628
  %v630 = vpop.f32.mrb[0].mxu0
  %631 = vmatprep.mubr.f32.mxu0 0.0
  %632 = vmatmul.mubr.f32.gmra.mrb[0].mxu0 %v378
  %v633 = vpop.f32.mrb[0].mxu0
  %v634 = vadd.f32 0.0, %v633
  %v635 = vpop.f32.mrb[0].mxu0
  %636 = vmatprep.mubr.f32.mxu0 0.0
  %637 = vmatmul.mubr.f32.gmra.mrb[0].mxu0 %v379
  %v638 = vpop.f32.mrb[0].mxu0
  %v639 = vadd.f32 0.0, %v638
  %v640 = vpop.f32.mrb[0].mxu0
  %641 = vmatprep.mubr.f32.mxu0 0.0
  %642 = vmatmul.mubr.f32.gmra.mrb[0].mxu0 %v380
  %v643 = vpop.f32.mrb[0].mxu0
  %v644 = vadd.f32 0.0, %v643
  %v645 = vpop.f32.mrb[0].mxu0
  %646 = vmatprep.mubr.f32.mxu0 0.0
  %647 = vmatmul.mubr.f32.gmra.mrb[0].mxu0 %v381
  %v648 = vpop.f32.mrb[0].mxu0
  %v649 = vadd.f32 0.0, %v648
  %v650 = vpop.f32.mrb[0].mxu0
  %651 = vmatprep.mubr.f32.mxu0 0.0
  %652 = vmatmul.mubr.f32.gmra.mrb[0].mxu0 %v382
  %v653 = vpop.f32.mrb[0].mxu0
  %v654 = vadd.f32 0.0, %v653
  %v655 = vpop.f32.mrb[0].mxu0
  %656 = vmatprep.mubr.f32.mxu0 0.0
  %657 = vmatmul.mubr.f32.gmra.mrb[0].mxu0 %v383
  %v658 = vpop.f32.mrb[0].mxu0
  %v659 = vadd.f32 0.0, %v658
  %v660 = vpop.f32.mrb[0].mxu0
  %661 = vmatprep.mubr.f32.mxu0 0.0
  %662 = vmatmul.mubr.f32.gmra.mrb[0].mxu0 %v384
  %v663 = vpop.f32.mrb[0].mxu0
  %v664 = vadd.f32 0.0, %v663
  %v665 = vpop.f32.mrb[0].mxu0
  %666 = vmatprep.mubr.f32.mxu0 0.0
  %667 = vmatmul.mubr.f32.gmra.mrb[0].mxu0 %v385
  %v668 = vpop.f32.mrb[0].mxu0
  %v669 = vadd.f32 0.0, %v668
  %v670 = vpop.f32.mrb[0].mxu0
  %671 = vmatprep.mubr.f32.mxu0 0.0
  %672 = vmatmul.mubr.f32.gmra.mrb[0].mxu0 %v386
  %v673 = vpop.f32.mrb[0].mxu0
  %v674 = vadd.f32 0.0, %v673
  %v675 = vpop.f32.mrb[0].mxu0
  %676 = vmatprep.mubr.f32.mxu0 0.0
  %677 = vmatmul.mubr.f32.gmra.mrb[0].mxu0 %v387
  %v678 = vpop.f32.mrb[0].mxu0
  %v679 = vadd.f32 0.0, %v678
  %v680 = vpop.f32.mrb[0].mxu0
  %681 = vmatprep.mubr.f32.mxu0 0.0
  %682 = vmatmul.mubr.f32.gmra.mrb[0].mxu0 %v388
  %v683 = vpop.f32.mrb[0].mxu0
  %v684 = vadd.f32 0.0, %v683
  %v685 = vpop.f32.mrb[0].mxu0
  %686 = vmatprep.mubr.f32.mxu0 0.0
  %687 = vmatmul.mubr.f32.gmra.mrb[0].mxu0 %v389
  %v688 = vpop.f32.mrb[0].mxu0
  %v689 = vadd.f32 0.0, %v688
  %v690 = vpop.f32.mrb[0].mxu0
  %691 = vmatprep.mubr.f32.mxu0 0.0
  %692 = vmatmul.mubr.f32.gmra.mrb[0].mxu0 %v390
  %v693 = vpop.f32.mrb[0].mxu0
  %v694 = vadd.f32 0.0, %v693
  %v695 = vpop.f32.mrb[0].mxu0
  %696 = vmatprep.mubr.f32.mxu0 0.0
  %697 = vmatmul.mubr.f32.gmra.mrb[0].mxu0 %v391
  %v698 = vpop.f32.mrb[0].mxu0
  %v699 = vadd.f32 0.0, %v698
  %v700 = vpop.f32.mrb[0].mxu0
  %701 = vmatprep.mubr.f32.mxu0 0.0
  %702 = vmatmul.mubr.f32.gmra.mrb[0].mxu0 %v392
  %v703 = vpop.f32.mrb[0].mxu0
  %v704 = vadd.f32 0.0, %v703
  %v705 = vpop.f32.mrb[0].mxu0
  %706 = vmatprep.mubr.f32.mxu0 0.0
  %707 = vmatmul.mubr.f32.gmra.mrb[0].mxu0 %v393
  %v708 = vpop.f32.mrb[0].mxu0
  %v709 = vadd.f32 0.0, %v708
  %v710 = vpop.f32.mrb[0].mxu0
  %711 = vmatprep.mubr.f32.mxu0 0.0
  %712 = vmatmul.mubr.f32.gmra.mrb[0].mxu0 %v394
  %v713 = vpop.f32.mrb[0].mxu0
  %v714 = vadd.f32 0.0, %v713
  %v715 = vpop.f32.mrb[0].mxu0
  %716 = vmatprep.mubr.f32.mxu0 0.0
  %717 = vmatmul.mubr.f32.gmra.mrb[0].mxu0 %v395
  %v718 = vpop.f32.mrb[0].mxu0
  %v719 = vadd.f32 0.0, %v718
  %v720 = vpop.f32.mrb[0].mxu0
  %721 = vmatprep.mubr.f32.mxu0 0.0
  %722 = vmatmul.mubr.f32.gmra.mrb[0].mxu0 %v396
  %v723 = vpop.f32.mrb[0].mxu0
  %v724 = vadd.f32 0.0, %v723
  %v725 = vpop.f32.mrb[0].mxu0
  %726 = vmatprep.mubr.f32.mxu0 0.0
  %727 = vmatmul.mubr.f32.gmra.mrb[0].mxu0 %v397
  %v728 = vpop.f32.mrb[0].mxu0
  %v729 = vadd.f32 0.0, %v728
  %v730 = vpop.f32.mrb[0].mxu0
  %731 = vmatprep.mubr.f32.mxu0 0.0
  %732 = vmatmul.mubr.f32.gmra.mrb[0].mxu0 %v398
  %v733 = vpop.f32.mrb[0].mxu0
  %v734 = vadd.f32 0.0, %v733
  %v735 = vpop.f32.mrb[0].mxu0
  %736 = vmatprep.mubr.f32.mxu0 0.0
  %737 = vmatmul.mubr.f32.gmra.mrb[0].mxu0 %v399
  %v738 = vpop.f32.mrb[0].mxu0
  %v739 = vadd.f32 0.0, %v738
  %v740 = vpop.f32.mrb[0].mxu0
  %741 = vmatprep.mubr.f32.mxu0 0.0
  %742 = vmatmul.mubr.f32.gmra.mrb[0].mxu0 %v400
  %v743 = vpop.f32.mrb[0].mxu0
  %v744 = vadd.f32 0.0, %v743
  %v745 = vpop.f32.mrb[0].mxu0
  %746 = vmatprep.mubr.f32.mxu0 0.0
  %747 = vmatmul.mubr.f32.gmra.mrb[0].mxu0 %v401
  %v748 = vpop.f32.mrb[0].mxu0
  %v749 = vadd.f32 0.0, %v748
  %v750 = vpop.f32.mrb[0].mxu0
  %751 = vmatprep.mubr.f32.mxu0 0.0
  %752 = vmatmul.mubr.f32.gmra.mrb[0].mxu0 %v402
  %v753 = vpop.f32.mrb[0].mxu0
  %v754 = vadd.f32 0.0, %v753
  %v755 = vpop.f32.mrb[0].mxu0
  %756 = vmatprep.mubr.f32.mxu0 0.0
  %757 = vmatmul.mubr.f32.gmra.mrb[0].mxu0 %v403
  %v758 = vpop.f32.mrb[0].mxu0
  %v759 = vadd.f32 0.0, %v758
  %v760 = vpop.f32.mrb[0].mxu0
  %761 = vmatprep.mubr.f32.mxu0 0.0
  %762 = vmatmul.mubr.f32.gmra.mrb[0].mxu0 %v404
  %v763 = vpop.f32.mrb[0].mxu0
  %v764 = vadd.f32 0.0, %v763
  %v765 = vpop.f32.mrb[0].mxu0
  %766 = vmatprep.mubr.f32.mxu0 0.0
  %767 = vmatmul.mubr.f32.gmra.mrb[0].mxu0 %v405
  %v768 = vpop.f32.mrb[0].mxu0
  %v769 = vadd.f32 0.0, %v768
  %v770 = vpop.f32.mrb[0].mxu0
  %771 = vmatprep.mubr.f32.mxu0 0.0
  %772 = vmatmul.mubr.f32.gmra.mrb[0].mxu0 %v406
  %v773 = vpop.f32.mrb[0].mxu0
  %v774 = vadd.f32 0.0, %v773
  %v775 = vpop.f32.mrb[0].mxu0
  %776 = vmatprep.mubr.f32.mxu0 0.0
  %777 = vmatmul.mubr.f32.gmra.mrb[0].mxu0 %v407
  %v778 = vpop.f32.mrb[0].mxu0
  %v779 = vadd.f32 0.0, %v778
  %v780 = vpop.f32.mrb[0].mxu0
  %781 = vmatprep.mubr.f32.mxu0 0.0
  %782 = vmatmul.mubr.f32.gmra.mrb[0].mxu0 %v408
  %v783 = vpop.f32.mrb[0].mxu0
  %v784 = vadd.f32 0.0, %v783
  %v785 = vpop.f32.mrb[0].mxu0
  %786 = vmatprep.mubr.f32.mxu0 0.0
  %787 = vmatmul.mubr.f32.gmra.mrb[0].mxu0 %v409
  %v788 = vpop.f32.mrb[0].mxu0
  %v789 = vadd.f32 0.0, %v788
  %v790 = vpop.f32.mrb[0].mxu0
  %791 = vmatprep.mubr.f32.mxu0 0.0
  %792 = vmatmul.mubr.f32.gmra.mrb[0].mxu0 %v410
  %v793 = vpop.f32.mrb[0].mxu0
  %v794 = vadd.f32 0.0, %v793
  %v795 = vpop.f32.mrb[0].mxu0
  %796 = vmatprep.mubr.f32.mxu0 0.0
  %797 = vmatmul.mubr.f32.gmra.mrb[0].mxu0 %v411
  %v798 = vpop.f32.mrb[0].mxu0
  %v799 = vadd.f32 0.0, %v798
  %v800 = vpop.f32.mrb[0].mxu0
  %801 = vmatprep.mubr.f32.mxu0 0.0
  %802 = vmatmul.mubr.f32.gmra.mrb[0].mxu0 %v412
  %v803 = vpop.f32.mrb[0].mxu0
  %v804 = vadd.f32 0.0, %v803
  %v805 = vpop.f32.mrb[0].mxu0
  %806 = vmatprep.mubr.f32.mxu0 0.0
  %807 = vmatmul.mubr.f32.gmra.mrb[0].mxu0 %v413
  %v808 = vpop.f32.mrb[0].mxu0
  %v809 = vadd.f32 0.0, %v808
  %v810 = vpop.f32.mrb[0].mxu0
  %811 = vmatprep.mubr.f32.mxu0 0.0
  %812 = vmatmul.mubr.f32.gmra.mrb[0].mxu0 %v414
  %v813 = vpop.f32.mrb[0].mxu0
  %v814 = vadd.f32 0.0, %v813
  %v815 = vpop.f32.mrb[0].mxu0
  %816 = vdwg.mxu0
  %817 = vmatprep.subr.mxu0 0.0
  %818 = vmatpush1.msra.mxu0 %v335
  %819 = vmatprep.subr.mxu0 0.0
  %820 = vmatpush1.msra.mxu0 %v336
  %821 = vmatprep.subr.mxu0 0.0
  %822 = vmatpush1.msra.mxu0 %v337
  %823 = vmatprep.subr.mxu0 0.0
  %824 = vmatpush1.msra.mxu0 %v338
  %825 = vmatprep.subr.mxu0 0.0
  %826 = vmatpush1.msra.mxu0 %v339
  %827 = vmatprep.subr.mxu0 0.0
  %828 = vmatpush1.msra.mxu0 %v340
  %829 = vmatprep.subr.mxu0 0.0
  %830 = vmatpush1.msra.mxu0 %v341
  %831 = vmatprep.subr.mxu0 0.0
  %832 = vmatpush1.msra.mxu0 %v342
  %833 = vmatprep.subr.mxu0 0.0
  %834 = vmatpush1.msra.mxu0 %v343
  %835 = vmatprep.subr.mxu0 0.0
  %836 = vmatpush1.msra.mxu0 %v344
  %837 = vmatprep.subr.mxu0 0.0
  %838 = vmatpush1.msra.mxu0 %v345
  %839 = vmatprep.subr.mxu0 0.0
  %840 = vmatpush1.msra.mxu0 %v346
  %841 = vmatprep.subr.mxu0 0.0
  %842 = vmatpush1.msra.mxu0 %v347
  %843 = vmatprep.subr.mxu0 0.0
  %844 = vmatpush1.msra.mxu0 %v348
  %845 = vmatprep.subr.mxu0 0.0
  %846 = vmatpush1.msra.mxu0 %v349
  %847 = vmatprep.subr.mxu0 0.0
  %848 = vmatpush1.msra.mxu0 %v350
  %849 = vmatprep.subr.mxu0 0.0
  %850 = vmatpush1.msra.mxu0 0.0
  %851 = vmatprep.subr.mxu0 0.0
  %852 = vmatpush1.msra.mxu0 0.0
  %853 = vmatprep.subr.mxu0 0.0
  %854 = vmatpush1.msra.mxu0 0.0
  %855 = vmatprep.subr.mxu0 0.0
  %856 = vmatpush1.msra.mxu0 0.0
  %857 = vmatprep.subr.mxu0 0.0
  %858 = vmatpush1.msra.mxu0 0.0
  %859 = vmatprep.subr.mxu0 0.0
  %860 = vmatpush1.msra.mxu0 0.0
  %861 = vmatprep.subr.mxu0 0.0
  %862 = vmatpush1.msra.mxu0 0.0
  %863 = vmatprep.subr.mxu0 0.0
  %864 = vmatpush1.msra.mxu0 0.0
  %865 = vmatprep.subr.mxu0 0.0
  %866 = vmatpush1.msra.mxu0 0.0
  %867 = vmatprep.subr.mxu0 0.0
  %868 = vmatpush1.msra.mxu0 0.0
  %869 = vmatprep.subr.mxu0 0.0
  %870 = vmatpush1.msra.mxu0 0.0
  %871 = vmatprep.subr.mxu0 0.0
  %872 = vmatpush1.msra.mxu0 0.0
  %873 = vmatprep.subr.mxu0 0.0
  %874 = vmatpush1.msra.mxu0 0.0
  %875 = vmatprep.subr.mxu0 0.0
  %876 = vmatpush1.msra.mxu0 0.0
  %877 = vmatprep.subr.mxu0 0.0
  %878 = vmatpush1.msra.mxu0 0.0
  %879 = vmatprep.subr.mxu0 0.0
  %880 = vmatpush1.msra.mxu0 0.0
  %881 = vmatprep.mubr.f32.mxu0 0.0
  %882 = vmatmul.mubr.f32.gmra.mrb[0].mxu0 %v271
  %v883 = vpop.f32.mrb[0].mxu0
  %v884 = vadd.f32 %v499, %v883
  %v885 = vpop.f32.mrb[0].mxu0
  %886 = vmatprep.mubr.f32.mxu0 0.0
  %887 = vmatmul.mubr.f32.gmra.mrb[0].mxu0 %v272
  %v888 = vpop.f32.mrb[0].mxu0
  %v889 = vadd.f32 %v504, %v888
  %v890 = vpop.f32.mrb[0].mxu0
  %891 = vmatprep.mubr.f32.mxu0 0.0
  %892 = vmatmul.mubr.f32.gmra.mrb[0].mxu0 %v273
  %v893 = vpop.f32.mrb[0].mxu0
  %v894 = vadd.f32 %v509, %v893
  %v895 = vpop.f32.mrb[0].mxu0
  %896 = vmatprep.mubr.f32.mxu0 0.0
  %897 = vmatmul.mubr.f32.gmra.mrb[0].mxu0 %v274
  %v898 = vpop.f32.mrb[0].mxu0
  %v899 = vadd.f32 %v514, %v898
  %v900 = vpop.f32.mrb[0].mxu0
  %901 = vmatprep.mubr.f32.mxu0 0.0
  %902 = vmatmul.mubr.f32.gmra.mrb[0].mxu0 %v275
  %v903 = vpop.f32.mrb[0].mxu0
  %v904 = vadd.f32 %v519, %v903
  %v905 = vpop.f32.mrb[0].mxu0
  %906 = vmatprep.mubr.f32.mxu0 0.0
  %907 = vmatmul.mubr.f32.gmra.mrb[0].mxu0 %v276
  %v908 = vpop.f32.mrb[0].mxu0
  %v909 = vadd.f32 %v524, %v908
  %v910 = vpop.f32.mrb[0].mxu0
  %911 = vmatprep.mubr.f32.mxu0 0.0
  %912 = vmatmul.mubr.f32.gmra.mrb[0].mxu0 %v277
  %v913 = vpop.f32.mrb[0].mxu0
  %v914 = vadd.f32 %v529, %v913
  %v915 = vpop.f32.mrb[0].mxu0
  %916 = vmatprep.mubr.f32.mxu0 0.0
  %917 = vmatmul.mubr.f32.gmra.mrb[0].mxu0 %v278
  %v918 = vpop.f32.mrb[0].mxu0
  %v919 = vadd.f32 %v534, %v918
  %v920 = vpop.f32.mrb[0].mxu0
  %921 = vmatprep.mubr.f32.mxu0 0.0
  %922 = vmatmul.mubr.f32.gmra.mrb[0].mxu0 %v279
  %v923 = vpop.f32.mrb[0].mxu0
  %v924 = vadd.f32 %v539, %v923
  %v925 = vpop.f32.mrb[0].mxu0
  %926 = vmatprep.mubr.f32.mxu0 0.0
  %927 = vmatmul.mubr.f32.gmra.mrb[0].mxu0 %v280
  %v928 = vpop.f32.mrb[0].mxu0
  %v929 = vadd.f32 %v544, %v928
  %v930 = vpop.f32.mrb[0].mxu0
  %931 = vmatprep.mubr.f32.mxu0 0.0
  %932 = vmatmul.mubr.f32.gmra.mrb[0].mxu0 %v281
  %v933 = vpop.f32.mrb[0].mxu0
  %v934 = vadd.f32 %v549, %v933
  %v935 = vpop.f32.mrb[0].mxu0
  %936 = vmatprep.mubr.f32.mxu0 0.0
  %937 = vmatmul.mubr.f32.gmra.mrb[0].mxu0 %v282
  %v938 = vpop.f32.mrb[0].mxu0
  %v939 = vadd.f32 %v554, %v938
  %v940 = vpop.f32.mrb[0].mxu0
  %941 = vmatprep.mubr.f32.mxu0 0.0
  %942 = vmatmul.mubr.f32.gmra.mrb[0].mxu0 %v283
  %v943 = vpop.f32.mrb[0].mxu0
  %v944 = vadd.f32 %v559, %v943
  %v945 = vpop.f32.mrb[0].mxu0
  %946 = vmatprep.mubr.f32.mxu0 0.0
  %947 = vmatmul.mubr.f32.gmra.mrb[0].mxu0 %v284
  %v948 = vpop.f32.mrb[0].mxu0
  %v949 = vadd.f32 %v564, %v948
  %v950 = vpop.f32.mrb[0].mxu0
  %951 = vmatprep.mubr.f32.mxu0 0.0
  %952 = vmatmul.mubr.f32.gmra.mrb[0].mxu0 %v285
  %v953 = vpop.f32.mrb[0].mxu0
  %v954 = vadd.f32 %v569, %v953
  %v955 = vpop.f32.mrb[0].mxu0
  %956 = vmatprep.mubr.f32.mxu0 0.0
  %957 = vmatmul.mubr.f32.gmra.mrb[0].mxu0 %v286
  %v958 = vpop.f32.mrb[0].mxu0
  %v959 = vadd.f32 %v574, %v958
  %v960 = vpop.f32.mrb[0].mxu0
  %961 = vmatprep.mubr.f32.mxu0 0.0
  %962 = vmatmul.mubr.f32.gmra.mrb[0].mxu0 %v287
  %v963 = vpop.f32.mrb[0].mxu0
  %v964 = vadd.f32 %v579, %v963
  %v965 = vpop.f32.mrb[0].mxu0
  %966 = vmatprep.mubr.f32.mxu0 0.0
  %967 = vmatmul.mubr.f32.gmra.mrb[0].mxu0 %v288
  %v968 = vpop.f32.mrb[0].mxu0
  %v969 = vadd.f32 %v584, %v968
  %v970 = vpop.f32.mrb[0].mxu0
  %971 = vmatprep.mubr.f32.mxu0 0.0
  %972 = vmatmul.mubr.f32.gmra.mrb[0].mxu0 %v289
  %v973 = vpop.f32.mrb[0].mxu0
  %v974 = vadd.f32 %v589, %v973
  %v975 = vpop.f32.mrb[0].mxu0
  %976 = vmatprep.mubr.f32.mxu0 0.0
  %977 = vmatmul.mubr.f32.gmra.mrb[0].mxu0 %v290
  %v978 = vpop.f32.mrb[0].mxu0
  %v979 = vadd.f32 %v594, %v978
  %v980 = vpop.f32.mrb[0].mxu0
  %981 = vmatprep.mubr.f32.mxu0 0.0
  %982 = vmatmul.mubr.f32.gmra.mrb[0].mxu0 %v291
  %v983 = vpop.f32.mrb[0].mxu0
  %v984 = vadd.f32 %v599, %v983
  %v985 = vpop.f32.mrb[0].mxu0
  %986 = vmatprep.mubr.f32.mxu0 0.0
  %987 = vmatmul.mubr.f32.gmra.mrb[0].mxu0 %v292
  %v988 = vpop.f32.mrb[0].mxu0
  %v989 = vadd.f32 %v604, %v988
  %v990 = vpop.f32.mrb[0].mxu0
  %991 = vmatprep.mubr.f32.mxu0 0.0
  %992 = vmatmul.mubr.f32.gmra.mrb[0].mxu0 %v293
  %v993 = vpop.f32.mrb[0].mxu0
  %v994 = vadd.f32 %v609, %v993
  %v995 = vpop.f32.mrb[0].mxu0
  %996 = vmatprep.mubr.f32.mxu0 0.0
  %997 = vmatmul.mubr.f32.gmra.mrb[0].mxu0 %v294
  %v998 = vpop.f32.mrb[0].mxu0
  %v999 = vadd.f32 %v614, %v998
  %v1000 = vpop.f32.mrb[0].mxu0
  %1001 = vmatprep.mubr.f32.mxu0 0.0
  %1002 = vmatmul.mubr.f32.gmra.mrb[0].mxu0 %v295
  %v1003 = vpop.f32.mrb[0].mxu0
  %v1004 = vadd.f32 %v619, %v1003
  %v1005 = vpop.f32.mrb[0].mxu0
  %1006 = vmatprep.mubr.f32.mxu0 0.0
  %1007 = vmatmul.mubr.f32.gmra.mrb[0].mxu0 %v296
  %v1008 = vpop.f32.mrb[0].mxu0
  %v1009 = vadd.f32 %v624, %v1008
  %v1010 = vpop.f32.mrb[0].mxu0
  %1011 = vmatprep.mubr.f32.mxu0 0.0
  %1012 = vmatmul.mubr.f32.gmra.mrb[0].mxu0 %v297
  %v1013 = vpop.f32.mrb[0].mxu0
  %v1014 = vadd.f32 %v629, %v1013
  %v1015 = vpop.f32.mrb[0].mxu0
  %1016 = vmatprep.mubr.f32.mxu0 0.0
  %1017 = vmatmul.mubr.f32.gmra.mrb[0].mxu0 %v298
  %v1018 = vpop.f32.mrb[0].mxu0
  %v1019 = vadd.f32 %v634, %v1018
  %v1020 = vpop.f32.mrb[0].mxu0
  %1021 = vmatprep.mubr.f32.mxu0 0.0
  %1022 = vmatmul.mubr.f32.gmra.mrb[0].mxu0 %v299
  %v1023 = vpop.f32.mrb[0].mxu0
  %v1024 = vadd.f32 %v639, %v1023
  %v1025 = vpop.f32.mrb[0].mxu0
  %1026 = vmatprep.mubr.f32.mxu0 0.0
  %1027 = vmatmul.mubr.f32.gmra.mrb[0].mxu0 %v300
  %v1028 = vpop.f32.mrb[0].mxu0
  %v1029 = vadd.f32 %v644, %v1028
  %v1030 = vpop.f32.mrb[0].mxu0
  %1031 = vmatprep.mubr.f32.mxu0 0.0
  %1032 = vmatmul.mubr.f32.gmra.mrb[0].mxu0 %v301
  %v1033 = vpop.f32.mrb[0].mxu0
  %v1034 = vadd.f32 %v649, %v1033
  %v1035 = vpop.f32.mrb[0].mxu0
  %1036 = vmatprep.mubr.f32.mxu0 0.0
  %1037 = vmatmul.mubr.f32.gmra.mrb[0].mxu0 %v302
  %v1038 = vpop.f32.mrb[0].mxu0
  %v1039 = vadd.f32 %v654, %v1038
  %v1040 = vpop.f32.mrb[0].mxu0
  %1041 = vmatprep.mubr.f32.mxu0 0.0
  %1042 = vmatmul.mubr.f32.gmra.mrb[0].mxu0 %v303
  %v1043 = vpop.f32.mrb[0].mxu0
  %v1044 = vadd.f32 %v659, %v1043
  %v1045 = vpop.f32.mrb[0].mxu0
  %1046 = vmatprep.mubr.f32.mxu0 0.0
  %1047 = vmatmul.mubr.f32.gmra.mrb[0].mxu0 %v304
  %v1048 = vpop.f32.mrb[0].mxu0
  %v1049 = vadd.f32 %v664, %v1048
  %v1050 = vpop.f32.mrb[0].mxu0
  %1051 = vmatprep.mubr.f32.mxu0 0.0
  %1052 = vmatmul.mubr.f32.gmra.mrb[0].mxu0 %v305
  %v1053 = vpop.f32.mrb[0].mxu0
  %v1054 = vadd.f32 %v669, %v1053
  %v1055 = vpop.f32.mrb[0].mxu0
  %1056 = vmatprep.mubr.f32.mxu0 0.0
  %1057 = vmatmul.mubr.f32.gmra.mrb[0].mxu0 %v306
  %v1058 = vpop.f32.mrb[0].mxu0
  %v1059 = vadd.f32 %v674, %v1058
  %v1060 = vpop.f32.mrb[0].mxu0
  %1061 = vmatprep.mubr.f32.mxu0 0.0
  %1062 = vmatmul.mubr.f32.gmra.mrb[0].mxu0 %v307
  %v1063 = vpop.f32.mrb[0].mxu0
  %v1064 = vadd.f32 %v679, %v1063
  %v1065 = vpop.f32.mrb[0].mxu0
  %1066 = vmatprep.mubr.f32.mxu0 0.0
  %1067 = vmatmul.mubr.f32.gmra.mrb[0].mxu0 %v308
  %v1068 = vpop.f32.mrb[0].mxu0
  %v1069 = vadd.f32 %v684, %v1068
  %v1070 = vpop.f32.mrb[0].mxu0
  %1071 = vmatprep.mubr.f32.mxu0 0.0
  %1072 = vmatmul.mubr.f32.gmra.mrb[0].mxu0 %v309
  %v1073 = vpop.f32.mrb[0].mxu0
  %v1074 = vadd.f32 %v689, %v1073
  %v1075 = vpop.f32.mrb[0].mxu0
  %1076 = vmatprep.mubr.f32.mxu0 0.0
  %1077 = vmatmul.mubr.f32.gmra.mrb[0].mxu0 %v310
  %v1078 = vpop.f32.mrb[0].mxu0
  %v1079 = vadd.f32 %v694, %v1078
  %v1080 = vpop.f32.mrb[0].mxu0
  %1081 = vmatprep.mubr.f32.mxu0 0.0
  %1082 = vmatmul.mubr.f32.gmra.mrb[0].mxu0 %v311
  %v1083 = vpop.f32.mrb[0].mxu0
  %v1084 = vadd.f32 %v699, %v1083
  %v1085 = vpop.f32.mrb[0].mxu0
  %1086 = vmatprep.mubr.f32.mxu0 0.0
  %1087 = vmatmul.mubr.f32.gmra.mrb[0].mxu0 %v312
  %v1088 = vpop.f32.mrb[0].mxu0
  %v1089 = vadd.f32 %v704, %v1088
  %v1090 = vpop.f32.mrb[0].mxu0
  %1091 = vmatprep.mubr.f32.mxu0 0.0
  %1092 = vmatmul.mubr.f32.gmra.mrb[0].mxu0 %v313
  %v1093 = vpop.f32.mrb[0].mxu0
  %v1094 = vadd.f32 %v709, %v1093
  %v1095 = vpop.f32.mrb[0].mxu0
  %1096 = vmatprep.mubr.f32.mxu0 0.0
  %1097 = vmatmul.mubr.f32.gmra.mrb[0].mxu0 %v314
  %v1098 = vpop.f32.mrb[0].mxu0
  %v1099 = vadd.f32 %v714, %v1098
  %v1100 = vpop.f32.mrb[0].mxu0
  %1101 = vmatprep.mubr.f32.mxu0 0.0
  %1102 = vmatmul.mubr.f32.gmra.mrb[0].mxu0 %v315
  %v1103 = vpop.f32.mrb[0].mxu0
  %v1104 = vadd.f32 %v719, %v1103
  %v1105 = vpop.f32.mrb[0].mxu0
  %1106 = vmatprep.mubr.f32.mxu0 0.0
  %1107 = vmatmul.mubr.f32.gmra.mrb[0].mxu0 %v316
  %v1108 = vpop.f32.mrb[0].mxu0
  %v1109 = vadd.f32 %v724, %v1108
  %v1110 = vpop.f32.mrb[0].mxu0
  %1111 = vmatprep.mubr.f32.mxu0 0.0
  %1112 = vmatmul.mubr.f32.gmra.mrb[0].mxu0 %v317
  %v1113 = vpop.f32.mrb[0].mxu0
  %v1114 = vadd.f32 %v729, %v1113
  %v1115 = vpop.f32.mrb[0].mxu0
  %1116 = vmatprep.mubr.f32.mxu0 0.0
  %1117 = vmatmul.mubr.f32.gmra.mrb[0].mxu0 %v318
  %v1118 = vpop.f32.mrb[0].mxu0
  %v1119 = vadd.f32 %v734, %v1118
  %v1120 = vpop.f32.mrb[0].mxu0
  %1121 = vmatprep.mubr.f32.mxu0 0.0
  %1122 = vmatmul.mubr.f32.gmra.mrb[0].mxu0 %v319
  %v1123 = vpop.f32.mrb[0].mxu0
  %v1124 = vadd.f32 %v739, %v1123
  %v1125 = vpop.f32.mrb[0].mxu0
  %1126 = vmatprep.mubr.f32.mxu0 0.0
  %1127 = vmatmul.mubr.f32.gmra.mrb[0].mxu0 %v320
  %v1128 = vpop.f32.mrb[0].mxu0
  %v1129 = vadd.f32 %v744, %v1128
  %v1130 = vpop.f32.mrb[0].mxu0
  %1131 = vmatprep.mubr.f32.mxu0 0.0
  %1132 = vmatmul.mubr.f32.gmra.mrb[0].mxu0 %v321
  %v1133 = vpop.f32.mrb[0].mxu0
  %v1134 = vadd.f32 %v749, %v1133
  %v1135 = vpop.f32.mrb[0].mxu0
  %1136 = vmatprep.mubr.f32.mxu0 0.0
  %1137 = vmatmul.mubr.f32.gmra.mrb[0].mxu0 %v322
  %v1138 = vpop.f32.mrb[0].mxu0
  %v1139 = vadd.f32 %v754, %v1138
  %v1140 = vpop.f32.mrb[0].mxu0
  %1141 = vmatprep.mubr.f32.mxu0 0.0
  %1142 = vmatmul.mubr.f32.gmra.mrb[0].mxu0 %v323
  %v1143 = vpop.f32.mrb[0].mxu0
  %v1144 = vadd.f32 %v759, %v1143
  %v1145 = vpop.f32.mrb[0].mxu0
  %1146 = vmatprep.mubr.f32.mxu0 0.0
  %1147 = vmatmul.mubr.f32.gmra.mrb[0].mxu0 %v324
  %v1148 = vpop.f32.mrb[0].mxu0
  %v1149 = vadd.f32 %v764, %v1148
  %v1150 = vpop.f32.mrb[0].mxu0
  %1151 = vmatprep.mubr.f32.mxu0 0.0
  %1152 = vmatmul.mubr.f32.gmra.mrb[0].mxu0 %v325
  %v1153 = vpop.f32.mrb[0].mxu0
  %v1154 = vadd.f32 %v769, %v1153
  %v1155 = vpop.f32.mrb[0].mxu0
  %1156 = vmatprep.mubr.f32.mxu0 0.0
  %1157 = vmatmul.mubr.f32.gmra.mrb[0].mxu0 %v326
  %v1158 = vpop.f32.mrb[0].mxu0
  %v1159 = vadd.f32 %v774, %v1158
  %v1160 = vpop.f32.mrb[0].mxu0
  %1161 = vmatprep.mubr.f32.mxu0 0.0
  %1162 = vmatmul.mubr.f32.gmra.mrb[0].mxu0 %v327
  %v1163 = vpop.f32.mrb[0].mxu0
  %v1164 = vadd.f32 %v779, %v1163
  %v1165 = vpop.f32.mrb[0].mxu0
  %1166 = vmatprep.mubr.f32.mxu0 0.0
  %1167 = vmatmul.mubr.f32.gmra.mrb[0].mxu0 %v328
  %v1168 = vpop.f32.mrb[0].mxu0
  %v1169 = vadd.f32 %v784, %v1168
  %v1170 = vpop.f32.mrb[0].mxu0
  %1171 = vmatprep.mubr.f32.mxu0 0.0
  %1172 = vmatmul.mubr.f32.gmra.mrb[0].mxu0 %v329
  %v1173 = vpop.f32.mrb[0].mxu0
  %v1174 = vadd.f32 %v789, %v1173
  %v1175 = vpop.f32.mrb[0].mxu0
  %1176 = vmatprep.mubr.f32.mxu0 0.0
  %1177 = vmatmul.mubr.f32.gmra.mrb[0].mxu0 %v330
  %v1178 = vpop.f32.mrb[0].mxu0
  %v1179 = vadd.f32 %v794, %v1178
  %v1180 = vpop.f32.mrb[0].mxu0
  %1181 = vmatprep.mubr.f32.mxu0 0.0
  %1182 = vmatmul.mubr.f32.gmra.mrb[0].mxu0 %v331
  %v1183 = vpop.f32.mrb[0].mxu0
  %v1184 = vadd.f32 %v799, %v1183
  %v1185 = vpop.f32.mrb[0].mxu0
  %1186 = vmatprep.mubr.f32.mxu0 0.0
  %1187 = vmatmul.mubr.f32.gmra.mrb[0].mxu0 %v332
  %v1188 = vpop.f32.mrb[0].mxu0
  %v1189 = vadd.f32 %v804, %v1188
  %v1190 = vpop.f32.mrb[0].mxu0
  %1191 = vmatprep.mubr.f32.mxu0 0.0
  %1192 = vmatmul.mubr.f32.gmra.mrb[0].mxu0 %v333
  %v1193 = vpop.f32.mrb[0].mxu0
  %v1194 = vadd.f32 %v809, %v1193
  %v1195 = vpop.f32.mrb[0].mxu0
  %1196 = vmatprep.mubr.f32.mxu0 0.0
  %1197 = vmatmul.mubr.f32.gmra.mrb[0].mxu0 %v334
  %v1198 = vpop.f32.mrb[0].mxu0
  %v1199 = vadd.f32 %v814, %v1198
  %v1200 = vpop.f32.mrb[0].mxu0
  %1201 = vdwg.mxu0
  %v1202 = vld [vmem:[#allocation2 + $0x2] sm:$0xff]
  %v1203 = vld [vmem:[#allocation2 + $0xa] sm:$0xff]
  %v1204 = vld [vmem:[#allocation2 + $0x1a] sm:$0xff]
  %v1205 = vld [vmem:[#allocation2 + $0x22] sm:$0xff]
  %v1206 = vld [vmem:[#allocation2 + $0x32] sm:$0xff]
  %v1207 = vld [vmem:[#allocation2 + $0x3a] sm:$0xff]
  %v1208 = vld [vmem:[#allocation2 + $0x4a] sm:$0xff]
  %v1209 = vld [vmem:[#allocation2 + $0x52] sm:$0xff]
  %v1210 = vld [vmem:[#allocation2 + $0x62] sm:$0xff]
  %v1211 = vld [vmem:[#allocation2 + $0x6a] sm:$0xff]
  %v1212 = vld [vmem:[#allocation2 + $0x7a] sm:$0xff]
  %v1213 = vld [vmem:[#allocation2 + $0x82] sm:$0xff]
  %v1214 = vld [vmem:[#allocation2 + $0x92] sm:$0xff]
  %v1215 = vld [vmem:[#allocation2 + $0x9a] sm:$0xff]
  %v1216 = vld [vmem:[#allocation2 + $0xaa] sm:$0xff]
  %v1217 = vld [vmem:[#allocation2 + $0xb2] sm:$0xff]
  %v1218 = vld [vmem:[#allocation2 + $0xc2] sm:$0xff]
  %v1219 = vld [vmem:[#allocation2 + $0xca] sm:$0xff]
  %v1220 = vld [vmem:[#allocation2 + $0xda] sm:$0xff]
  %v1221 = vld [vmem:[#allocation2 + $0xe2] sm:$0xff]
  %v1222 = vld [vmem:[#allocation2 + $0xf2] sm:$0xff]
  %v1223 = vld [vmem:[#allocation2 + $0xfa] sm:$0xff]
  %v1224 = vld [vmem:[#allocation2 + $0x10a] sm:$0xff]
  %v1225 = vld [vmem:[#allocation2 + $0x112] sm:$0xff]
  %v1226 = vld [vmem:[#allocation2 + $0x122] sm:$0xff]
  %v1227 = vld [vmem:[#allocation2 + $0x12a] sm:$0xff]
  %v1228 = vld [vmem:[#allocation2 + $0x13a] sm:$0xff]
  %v1229 = vld [vmem:[#allocation2 + $0x142] sm:$0xff]
  %v1230 = vld [vmem:[#allocation2 + $0x152] sm:$0xff]
  %v1231 = vld [vmem:[#allocation2 + $0x15a] sm:$0xff]
  %v1232 = vld [vmem:[#allocation2 + $0x16a] sm:$0xff]
  %v1233 = vld [vmem:[#allocation2 + $0x172] sm:$0xff]
  %v1234 = vld [vmem:[#allocation2 + $0x1b2] sm:$0xff]
  %v1235 = vld [vmem:[#allocation2 + $0x1ba] sm:$0xff]
  %v1236 = vld [vmem:[#allocation2 + $0x1ca] sm:$0xff]
  %v1237 = vld [vmem:[#allocation2 + $0x1d2] sm:$0xff]
  %v1238 = vld [vmem:[#allocation2 + $0x1e2] sm:$0xff]
  %v1239 = vld [vmem:[#allocation2 + $0x1ea] sm:$0xff]
  %v1240 = vld [vmem:[#allocation2 + $0x1fa] sm:$0xff]
  %v1241 = vld [vmem:[#allocation2 + $0x202] sm:$0xff]
  %v1242 = vld [vmem:[#allocation2 + $0x212] sm:$0xff]
  %v1243 = vld [vmem:[#allocation2 + $0x21a] sm:$0xff]
  %v1244 = vld [vmem:[#allocation2 + $0x22a] sm:$0xff]
  %v1245 = vld [vmem:[#allocation2 + $0x232] sm:$0xff]
  %v1246 = vld [vmem:[#allocation2 + $0x242] sm:$0xff]
  %v1247 = vld [vmem:[#allocation2 + $0x24a] sm:$0xff]
  %v1248 = vld [vmem:[#allocation2 + $0x25a] sm:$0xff]
  %v1249 = vld [vmem:[#allocation2 + $0x262] sm:$0xff]
  %v1250 = vld [vmem:[#allocation2 + $0x272] sm:$0xff]
  %v1251 = vld [vmem:[#allocation2 + $0x27a] sm:$0xff]
  %v1252 = vld [vmem:[#allocation2 + $0x28a] sm:$0xff]
  %v1253 = vld [vmem:[#allocation2 + $0x292] sm:$0xff]
  %v1254 = vld [vmem:[#allocation2 + $0x2a2] sm:$0xff]
  %v1255 = vld [vmem:[#allocation2 + $0x2aa] sm:$0xff]
  %v1256 = vld [vmem:[#allocation2 + $0x2ba] sm:$0xff]
  %v1257 = vld [vmem:[#allocation2 + $0x2c2] sm:$0xff]
  %v1258 = vld [vmem:[#allocation2 + $0x2d2] sm:$0xff]
  %v1259 = vld [vmem:[#allocation2 + $0x2da] sm:$0xff]
  %v1260 = vld [vmem:[#allocation2 + $0x2ea] sm:$0xff]
  %v1261 = vld [vmem:[#allocation2 + $0x2f2] sm:$0xff]
  %v1262 = vld [vmem:[#allocation2 + $0x302] sm:$0xff]
  %v1263 = vld [vmem:[#allocation2 + $0x30a] sm:$0xff]
  %v1264 = vld [vmem:[#allocation2 + $0x31a] sm:$0xff]
  %v1265 = vld [vmem:[#allocation2 + $0x322] sm:$0xff]
  %s1266 = scalar_lea.vmem %s1, 256
  %v1267 = vld [vmem:[%s1266] sm:$0xff]
  %v1268 = vld [vmem:[%s1266 + $0x8] sm:$0xff]
  %v1269 = vld [vmem:[%s1266 + $0x10] sm:$0xff]
  %v1270 = vld [vmem:[%s1266 + $0x18] sm:$0xff]
  %v1271 = vld [vmem:[%s1266 + $0x20] sm:$0xff]
  %v1272 = vld [vmem:[%s1266 + $0x28] sm:$0xff]
  %v1273 = vld [vmem:[%s1266 + $0x30] sm:$0xff]
  %v1274 = vld [vmem:[%s1266 + $0x38] sm:$0xff]
  %v1275 = vld [vmem:[%s1266 + $0x40] sm:$0xff]
  %v1276 = vld [vmem:[%s1266 + $0x48] sm:$0xff]
  %v1277 = vld [vmem:[%s1266 + $0x50] sm:$0xff]
  %v1278 = vld [vmem:[%s1266 + $0x58] sm:$0xff]
  %v1279 = vld [vmem:[%s1266 + $0x60] sm:$0xff]
  %v1280 = vld [vmem:[%s1266 + $0x68] sm:$0xff]
  %v1281 = vld [vmem:[%s1266 + $0x70] sm:$0xff]
  %v1282 = vld [vmem:[%s1266 + $0x78] sm:$0xff]
  %1283 = vmatprep.subr.mxu0 0.0
  %1284 = vmatpush1.msra.mxu0 %v1267
  %1285 = vmatprep.subr.mxu0 0.0
  %1286 = vmatpush1.msra.mxu0 %v1268
  %1287 = vmatprep.subr.mxu0 0.0
  %1288 = vmatpush1.msra.mxu0 %v1269
  %1289 = vmatprep.subr.mxu0 0.0
  %1290 = vmatpush1.msra.mxu0 %v1270
  %1291 = vmatprep.subr.mxu0 0.0
  %1292 = vmatpush1.msra.mxu0 %v1271
  %1293 = vmatprep.subr.mxu0 0.0
  %1294 = vmatpush1.msra.mxu0 %v1272
  %1295 = vmatprep.subr.mxu0 0.0
  %1296 = vmatpush1.msra.mxu0 %v1273
  %1297 = vmatprep.subr.mxu0 0.0
  %1298 = vmatpush1.msra.mxu0 %v1274
  %1299 = vmatprep.subr.mxu0 0.0
  %1300 = vmatpush1.msra.mxu0 %v1275
  %1301 = vmatprep.subr.mxu0 0.0
  %1302 = vmatpush1.msra.mxu0 %v1276
  %1303 = vmatprep.subr.mxu0 0.0
  %1304 = vmatpush1.msra.mxu0 %v1277
  %1305 = vmatprep.subr.mxu0 0.0
  %1306 = vmatpush1.msra.mxu0 %v1278
  %1307 = vmatprep.subr.mxu0 0.0
  %1308 = vmatpush1.msra.mxu0 %v1279
  %1309 = vmatprep.subr.mxu0 0.0
  %1310 = vmatpush1.msra.mxu0 %v1280
  %1311 = vmatprep.subr.mxu0 0.0
  %1312 = vmatpush1.msra.mxu0 %v1281
  %1313 = vmatprep.subr.mxu0 0.0
  %1314 = vmatpush1.msra.mxu0 %v1282
  %1315 = vmatprep.subr.mxu0 0.0
  %1316 = vmatpush1.msra.mxu0 0.0
  %1317 = vmatprep.subr.mxu0 0.0
  %1318 = vmatpush1.msra.mxu0 0.0
  %1319 = vmatprep.subr.mxu0 0.0
  %1320 = vmatpush1.msra.mxu0 0.0
  %1321 = vmatprep.subr.mxu0 0.0
  %1322 = vmatpush1.msra.mxu0 0.0
  %1323 = vmatprep.subr.mxu0 0.0
  %1324 = vmatpush1.msra.mxu0 0.0
  %1325 = vmatprep.subr.mxu0 0.0
  %1326 = vmatpush1.msra.mxu0 0.0
  %1327 = vmatprep.subr.mxu0 0.0
  %1328 = vmatpush1.msra.mxu0 0.0
  %1329 = vmatprep.subr.mxu0 0.0
  %1330 = vmatpush1.msra.mxu0 0.0
  %1331 = vmatprep.subr.mxu0 0.0
  %1332 = vmatpush1.msra.mxu0 0.0
  %1333 = vmatprep.subr.mxu0 0.0
  %1334 = vmatpush1.msra.mxu0 0.0
  %1335 = vmatprep.subr.mxu0 0.0
  %1336 = vmatpush1.msra.mxu0 0.0
  %1337 = vmatprep.subr.mxu0 0.0
  %1338 = vmatpush1.msra.mxu0 0.0
  %1339 = vmatprep.subr.mxu0 0.0
  %1340 = vmatpush1.msra.mxu0 0.0
  %1341 = vmatprep.subr.mxu0 0.0
  %1342 = vmatpush1.msra.mxu0 0.0
  %1343 = vmatprep.subr.mxu0 0.0
  %1344 = vmatpush1.msra.mxu0 0.0
  %1345 = vmatprep.subr.mxu0 0.0
  %1346 = vmatpush1.msra.mxu0 0.0
  %1347 = vmatprep.mubr.f32.mxu0 0.0
  %1348 = vmatmul.mubr.f32.gmra.mrb[0].mxu0 %v1202
  %v1349 = vpop.f32.mrb[0].mxu0
  %v1350 = vadd.f32 0.0, %v1349
  %v1351 = vpop.f32.mrb[0].mxu0
  %1352 = vmatprep.mubr.f32.mxu0 0.0
  %1353 = vmatmul.mubr.f32.gmra.mrb[0].mxu0 %v1203
  %v1354 = vpop.f32.mrb[0].mxu0
  %v1355 = vadd.f32 0.0, %v1354
  %v1356 = vpop.f32.mrb[0].mxu0
  %1357 = vmatprep.mubr.f32.mxu0 0.0
  %1358 = vmatmul.mubr.f32.gmra.mrb[0].mxu0 %v1204
  %v1359 = vpop.f32.mrb[0].mxu0
  %v1360 = vadd.f32 0.0, %v1359
  %v1361 = vpop.f32.mrb[0].mxu0
  %1362 = vmatprep.mubr.f32.mxu0 0.0
  %1363 = vmatmul.mubr.f32.gmra.mrb[0].mxu0 %v1205
  %v1364 = vpop.f32.mrb[0].mxu0
  %v1365 = vadd.f32 0.0, %v1364
  %v1366 = vpop.f32.mrb[0].mxu0
  %1367 = vmatprep.mubr.f32.mxu0 0.0
  %1368 = vmatmul.mubr.f32.gmra.mrb[0].mxu0 %v1206
  %v1369 = vpop.f32.mrb[0].mxu0
  %v1370 = vadd.f32 0.0, %v1369
  %v1371 = vpop.f32.mrb[0].mxu0
  %1372 = vmatprep.mubr.f32.mxu0 0.0
  %1373 = vmatmul.mubr.f32.gmra.mrb[0].mxu0 %v1207
  %v1374 = vpop.f32.mrb[0].mxu0
  %v1375 = vadd.f32 0.0, %v1374
  %v1376 = vpop.f32.mrb[0].mxu0
  %1377 = vmatprep.mubr.f32.mxu0 0.0
  %1378 = vmatmul.mubr.f32.gmra.mrb[0].mxu0 %v1208
  %v1379 = vpop.f32.mrb[0].mxu0
  %v1380 = vadd.f32 0.0, %v1379
  %v1381 = vpop.f32.mrb[0].mxu0
  %1382 = vmatprep.mubr.f32.mxu0 0.0
  %1383 = vmatmul.mubr.f32.gmra.mrb[0].mxu0 %v1209
  %v1384 = vpop.f32.mrb[0].mxu0
  %v1385 = vadd.f32 0.0, %v1384
  %v1386 = vpop.f32.mrb[0].mxu0
  %1387 = vmatprep.mubr.f32.mxu0 0.0
  %1388 = vmatmul.mubr.f32.gmra.mrb[0].mxu0 %v1210
  %v1389 = vpop.f32.mrb[0].mxu0
  %v1390 = vadd.f32 0.0, %v1389
  %v1391 = vpop.f32.mrb[0].mxu0
  %1392 = vmatprep.mubr.f32.mxu0 0.0
  %1393 = vmatmul.mubr.f32.gmra.mrb[0].mxu0 %v1211
  %v1394 = vpop.f32.mrb[0].mxu0
  %v1395 = vadd.f32 0.0, %v1394
  %v1396 = vpop.f32.mrb[0].mxu0
  %1397 = vmatprep.mubr.f32.mxu0 0.0
  %1398 = vmatmul.mubr.f32.gmra.mrb[0].mxu0 %v1212
  %v1399 = vpop.f32.mrb[0].mxu0
  %v1400 = vadd.f32 0.0, %v1399
  %v1401 = vpop.f32.mrb[0].mxu0
  %1402 = vmatprep.mubr.f32.mxu0 0.0
  %1403 = vmatmul.mubr.f32.gmra.mrb[0].mxu0 %v1213
  %v1404 = vpop.f32.mrb[0].mxu0
  %v1405 = vadd.f32 0.0, %v1404
  %v1406 = vpop.f32.mrb[0].mxu0
  %1407 = vmatprep.mubr.f32.mxu0 0.0
  %1408 = vmatmul.mubr.f32.gmra.mrb[0].mxu0 %v1214
  %v1409 = vpop.f32.mrb[0].mxu0
  %v1410 = vadd.f32 0.0, %v1409
  %v1411 = vpop.f32.mrb[0].mxu0
  %1412 = vmatprep.mubr.f32.mxu0 0.0
  %1413 = vmatmul.mubr.f32.gmra.mrb[0].mxu0 %v1215
  %v1414 = vpop.f32.mrb[0].mxu0
  %v1415 = vadd.f32 0.0, %v1414
  %v1416 = vpop.f32.mrb[0].mxu0
  %1417 = vmatprep.mubr.f32.mxu0 0.0
  %1418 = vmatmul.mubr.f32.gmra.mrb[0].mxu0 %v1216
  %v1419 = vpop.f32.mrb[0].mxu0
  %v1420 = vadd.f32 0.0, %v1419
  %v1421 = vpop.f32.mrb[0].mxu0
  %1422 = vmatprep.mubr.f32.mxu0 0.0
  %1423 = vmatmul.mubr.f32.gmra.mrb[0].mxu0 %v1217
  %v1424 = vpop.f32.mrb[0].mxu0
  %v1425 = vadd.f32 0.0, %v1424
  %v1426 = vpop.f32.mrb[0].mxu0
  %1427 = vmatprep.mubr.f32.mxu0 0.0
  %1428 = vmatmul.mubr.f32.gmra.mrb[0].mxu0 %v1218
  %v1429 = vpop.f32.mrb[0].mxu0
  %v1430 = vadd.f32 0.0, %v1429
  %v1431 = vpop.f32.mrb[0].mxu0
  %1432 = vmatprep.mubr.f32.mxu0 0.0
  %1433 = vmatmul.mubr.f32.gmra.mrb[0].mxu0 %v1219
  %v1434 = vpop.f32.mrb[0].mxu0
  %v1435 = vadd.f32 0.0, %v1434
  %v1436 = vpop.f32.mrb[0].mxu0
  %1437 = vmatprep.mubr.f32.mxu0 0.0
  %1438 = vmatmul.mubr.f32.gmra.mrb[0].mxu0 %v1220
  %v1439 = vpop.f32.mrb[0].mxu0
  %v1440 = vadd.f32 0.0, %v1439
  %v1441 = vpop.f32.mrb[0].mxu0
  %1442 = vmatprep.mubr.f32.mxu0 0.0
  %1443 = vmatmul.mubr.f32.gmra.mrb[0].mxu0 %v1221
  %v1444 = vpop.f32.mrb[0].mxu0
  %v1445 = vadd.f32 0.0, %v1444
  %v1446 = vpop.f32.mrb[0].mxu0
  %1447 = vmatprep.mubr.f32.mxu0 0.0
  %1448 = vmatmul.mubr.f32.gmra.mrb[0].mxu0 %v1222
  %v1449 = vpop.f32.mrb[0].mxu0
  %v1450 = vadd.f32 0.0, %v1449
  %v1451 = vpop.f32.mrb[0].mxu0
  %1452 = vmatprep.mubr.f32.mxu0 0.0
  %1453 = vmatmul.mubr.f32.gmra.mrb[0].mxu0 %v1223
  %v1454 = vpop.f32.mrb[0].mxu0
  %v1455 = vadd.f32 0.0, %v1454
  %v1456 = vpop.f32.mrb[0].mxu0
  %1457 = vmatprep.mubr.f32.mxu0 0.0
  %1458 = vmatmul.mubr.f32.gmra.mrb[0].mxu0 %v1224
  %v1459 = vpop.f32.mrb[0].mxu0
  %v1460 = vadd.f32 0.0, %v1459
  %v1461 = vpop.f32.mrb[0].mxu0
  %1462 = vmatprep.mubr.f32.mxu0 0.0
  %1463 = vmatmul.mubr.f32.gmra.mrb[0].mxu0 %v1225
  %v1464 = vpop.f32.mrb[0].mxu0
  %v1465 = vadd.f32 0.0, %v1464
  %v1466 = vpop.f32.mrb[0].mxu0
  %1467 = vmatprep.mubr.f32.mxu0 0.0
  %1468 = vmatmul.mubr.f32.gmra.mrb[0].mxu0 %v1226
  %v1469 = vpop.f32.mrb[0].mxu0
  %v1470 = vadd.f32 0.0, %v1469
  %v1471 = vpop.f32.mrb[0].mxu0
  %1472 = vmatprep.mubr.f32.mxu0 0.0
  %1473 = vmatmul.mubr.f32.gmra.mrb[0].mxu0 %v1227
  %v1474 = vpop.f32.mrb[0].mxu0
  %v1475 = vadd.f32 0.0, %v1474
  %v1476 = vpop.f32.mrb[0].mxu0
  %1477 = vmatprep.mubr.f32.mxu0 0.0
  %1478 = vmatmul.mubr.f32.gmra.mrb[0].mxu0 %v1228
  %v1479 = vpop.f32.mrb[0].mxu0
  %v1480 = vadd.f32 0.0, %v1479
  %v1481 = vpop.f32.mrb[0].mxu0
  %1482 = vmatprep.mubr.f32.mxu0 0.0
  %1483 = vmatmul.mubr.f32.gmra.mrb[0].mxu0 %v1229
  %v1484 = vpop.f32.mrb[0].mxu0
  %v1485 = vadd.f32 0.0, %v1484
  %v1486 = vpop.f32.mrb[0].mxu0
  %1487 = vmatprep.mubr.f32.mxu0 0.0
  %1488 = vmatmul.mubr.f32.gmra.mrb[0].mxu0 %v1230
  %v1489 = vpop.f32.mrb[0].mxu0
  %v1490 = vadd.f32 0.0, %v1489
  %v1491 = vpop.f32.mrb[0].mxu0
  %1492 = vmatprep.mubr.f32.mxu0 0.0
  %1493 = vmatmul.mubr.f32.gmra.mrb[0].mxu0 %v1231
  %v1494 = vpop.f32.mrb[0].mxu0
  %v1495 = vadd.f32 0.0, %v1494
  %v1496 = vpop.f32.mrb[0].mxu0
  %1497 = vmatprep.mubr.f32.mxu0 0.0
  %1498 = vmatmul.mubr.f32.gmra.mrb[0].mxu0 %v1232
  %v1499 = vpop.f32.mrb[0].mxu0
  %v1500 = vadd.f32 0.0, %v1499
  %v1501 = vpop.f32.mrb[0].mxu0
  %1502 = vmatprep.mubr.f32.mxu0 0.0
  %1503 = vmatmul.mubr.f32.gmra.mrb[0].mxu0 %v1233
  %v1504 = vpop.f32.mrb[0].mxu0
  %v1505 = vadd.f32 0.0, %v1504
  %v1506 = vpop.f32.mrb[0].mxu0
  %1507 = vmatprep.mubr.f32.mxu0 0.0
  %1508 = vmatmul.mubr.f32.gmra.mrb[0].mxu0 %v1234
  %v1509 = vpop.f32.mrb[0].mxu0
  %v1510 = vadd.f32 0.0, %v1509
  %v1511 = vpop.f32.mrb[0].mxu0
  %1512 = vmatprep.mubr.f32.mxu0 0.0
  %1513 = vmatmul.mubr.f32.gmra.mrb[0].mxu0 %v1235
  %v1514 = vpop.f32.mrb[0].mxu0
  %v1515 = vadd.f32 0.0, %v1514
  %v1516 = vpop.f32.mrb[0].mxu0
  %1517 = vmatprep.mubr.f32.mxu0 0.0
  %1518 = vmatmul.mubr.f32.gmra.mrb[0].mxu0 %v1236
  %v1519 = vpop.f32.mrb[0].mxu0
  %v1520 = vadd.f32 0.0, %v1519
  %v1521 = vpop.f32.mrb[0].mxu0
  %1522 = vmatprep.mubr.f32.mxu0 0.0
  %1523 = vmatmul.mubr.f32.gmra.mrb[0].mxu0 %v1237
  %v1524 = vpop.f32.mrb[0].mxu0
  %v1525 = vadd.f32 0.0, %v1524
  %v1526 = vpop.f32.mrb[0].mxu0
  %1527 = vmatprep.mubr.f32.mxu0 0.0
  %1528 = vmatmul.mubr.f32.gmra.mrb[0].mxu0 %v1238
  %v1529 = vpop.f32.mrb[0].mxu0
  %v1530 = vadd.f32 0.0, %v1529
  %v1531 = vpop.f32.mrb[0].mxu0
  %1532 = vmatprep.mubr.f32.mxu0 0.0
  %1533 = vmatmul.mubr.f32.gmra.mrb[0].mxu0 %v1239
  %v1534 = vpop.f32.mrb[0].mxu0
  %v1535 = vadd.f32 0.0, %v1534
  %v1536 = vpop.f32.mrb[0].mxu0
  %1537 = vmatprep.mubr.f32.mxu0 0.0
  %1538 = vmatmul.mubr.f32.gmra.mrb[0].mxu0 %v1240
  %v1539 = vpop.f32.mrb[0].mxu0
  %v1540 = vadd.f32 0.0, %v1539
  %v1541 = vpop.f32.mrb[0].mxu0
  %1542 = vmatprep.mubr.f32.mxu0 0.0
  %1543 = vmatmul.mubr.f32.gmra.mrb[0].mxu0 %v1241
  %v1544 = vpop.f32.mrb[0].mxu0
  %v1545 = vadd.f32 0.0, %v1544
  %v1546 = vpop.f32.mrb[0].mxu0
  %1547 = vmatprep.mubr.f32.mxu0 0.0
  %1548 = vmatmul.mubr.f32.gmra.mrb[0].mxu0 %v1242
  %v1549 = vpop.f32.mrb[0].mxu0
  %v1550 = vadd.f32 0.0, %v1549
  %v1551 = vpop.f32.mrb[0].mxu0
  %1552 = vmatprep.mubr.f32.mxu0 0.0
  %1553 = vmatmul.mubr.f32.gmra.mrb[0].mxu0 %v1243
  %v1554 = vpop.f32.mrb[0].mxu0
  %v1555 = vadd.f32 0.0, %v1554
  %v1556 = vpop.f32.mrb[0].mxu0
  %1557 = vmatprep.mubr.f32.mxu0 0.0
  %1558 = vmatmul.mubr.f32.gmra.mrb[0].mxu0 %v1244
  %v1559 = vpop.f32.mrb[0].mxu0
  %v1560 = vadd.f32 0.0, %v1559
  %v1561 = vpop.f32.mrb[0].mxu0
  %1562 = vmatprep.mubr.f32.mxu0 0.0
  %1563 = vmatmul.mubr.f32.gmra.mrb[0].mxu0 %v1245
  %v1564 = vpop.f32.mrb[0].mxu0
  %v1565 = vadd.f32 0.0, %v1564
  %v1566 = vpop.f32.mrb[0].mxu0
  %1567 = vmatprep.mubr.f32.mxu0 0.0
  %1568 = vmatmul.mubr.f32.gmra.mrb[0].mxu0 %v1246
  %v1569 = vpop.f32.mrb[0].mxu0
  %v1570 = vadd.f32 0.0, %v1569
  %v1571 = vpop.f32.mrb[0].mxu0
  %1572 = vmatprep.mubr.f32.mxu0 0.0
  %1573 = vmatmul.mubr.f32.gmra.mrb[0].mxu0 %v1247
  %v1574 = vpop.f32.mrb[0].mxu0
  %v1575 = vadd.f32 0.0, %v1574
  %v1576 = vpop.f32.mrb[0].mxu0
  %1577 = vmatprep.mubr.f32.mxu0 0.0
  %1578 = vmatmul.mubr.f32.gmra.mrb[0].mxu0 %v1248
  %v1579 = vpop.f32.mrb[0].mxu0
  %v1580 = vadd.f32 0.0, %v1579
  %v1581 = vpop.f32.mrb[0].mxu0
  %1582 = vmatprep.mubr.f32.mxu0 0.0
  %1583 = vmatmul.mubr.f32.gmra.mrb[0].mxu0 %v1249
  %v1584 = vpop.f32.mrb[0].mxu0
  %v1585 = vadd.f32 0.0, %v1584
  %v1586 = vpop.f32.mrb[0].mxu0
  %1587 = vmatprep.mubr.f32.mxu0 0.0
  %1588 = vmatmul.mubr.f32.gmra.mrb[0].mxu0 %v1250
  %v1589 = vpop.f32.mrb[0].mxu0
  %v1590 = vadd.f32 0.0, %v1589
  %v1591 = vpop.f32.mrb[0].mxu0
  %1592 = vmatprep.mubr.f32.mxu0 0.0
  %1593 = vmatmul.mubr.f32.gmra.mrb[0].mxu0 %v1251
  %v1594 = vpop.f32.mrb[0].mxu0
  %v1595 = vadd.f32 0.0, %v1594
  %v1596 = vpop.f32.mrb[0].mxu0
  %1597 = vmatprep.mubr.f32.mxu0 0.0
  %1598 = vmatmul.mubr.f32.gmra.mrb[0].mxu0 %v1252
  %v1599 = vpop.f32.mrb[0].mxu0
  %v1600 = vadd.f32 0.0, %v1599
  %v1601 = vpop.f32.mrb[0].mxu0
  %1602 = vmatprep.mubr.f32.mxu0 0.0
  %1603 = vmatmul.mubr.f32.gmra.mrb[0].mxu0 %v1253
  %v1604 = vpop.f32.mrb[0].mxu0
  %v1605 = vadd.f32 0.0, %v1604
  %v1606 = vpop.f32.mrb[0].mxu0
  %1607 = vmatprep.mubr.f32.mxu0 0.0
  %1608 = vmatmul.mubr.f32.gmra.mrb[0].mxu0 %v1254
  %v1609 = vpop.f32.mrb[0].mxu0
  %v1610 = vadd.f32 0.0, %v1609
  %v1611 = vpop.f32.mrb[0].mxu0
  %1612 = vmatprep.mubr.f32.mxu0 0.0
  %1613 = vmatmul.mubr.f32.gmra.mrb[0].mxu0 %v1255
  %v1614 = vpop.f32.mrb[0].mxu0
  %v1615 = vadd.f32 0.0, %v1614
  %v1616 = vpop.f32.mrb[0].mxu0
  %1617 = vmatprep.mubr.f32.mxu0 0.0
  %1618 = vmatmul.mubr.f32.gmra.mrb[0].mxu0 %v1256
  %v1619 = vpop.f32.mrb[0].mxu0
  %v1620 = vadd.f32 0.0, %v1619
  %v1621 = vpop.f32.mrb[0].mxu0
  %1622 = vmatprep.mubr.f32.mxu0 0.0
  %1623 = vmatmul.mubr.f32.gmra.mrb[0].mxu0 %v1257
  %v1624 = vpop.f32.mrb[0].mxu0
  %v1625 = vadd.f32 0.0, %v1624
  %v1626 = vpop.f32.mrb[0].mxu0
  %1627 = vmatprep.mubr.f32.mxu0 0.0
  %1628 = vmatmul.mubr.f32.gmra.mrb[0].mxu0 %v1258
  %v1629 = vpop.f32.mrb[0].mxu0
  %v1630 = vadd.f32 0.0, %v1629
  %v1631 = vpop.f32.mrb[0].mxu0
  %1632 = vmatprep.mubr.f32.mxu0 0.0
  %1633 = vmatmul.mubr.f32.gmra.mrb[0].mxu0 %v1259
  %v1634 = vpop.f32.mrb[0].mxu0
  %v1635 = vadd.f32 0.0, %v1634
  %v1636 = vpop.f32.mrb[0].mxu0
  %1637 = vmatprep.mubr.f32.mxu0 0.0
  %1638 = vmatmul.mubr.f32.gmra.mrb[0].mxu0 %v1260
  %v1639 = vpop.f32.mrb[0].mxu0
  %v1640 = vadd.f32 0.0, %v1639
  %v1641 = vpop.f32.mrb[0].mxu0
  %1642 = vmatprep.mubr.f32.mxu0 0.0
  %1643 = vmatmul.mubr.f32.gmra.mrb[0].mxu0 %v1261
  %v1644 = vpop.f32.mrb[0].mxu0
  %v1645 = vadd.f32 0.0, %v1644
  %v1646 = vpop.f32.mrb[0].mxu0
  %1647 = vmatprep.mubr.f32.mxu0 0.0
  %1648 = vmatmul.mubr.f32.gmra.mrb[0].mxu0 %v1262
  %v1649 = vpop.f32.mrb[0].mxu0
  %v1650 = vadd.f32 0.0, %v1649
  %v1651 = vpop.f32.mrb[0].mxu0
  %1652 = vmatprep.mubr.f32.mxu0 0.0
  %1653 = vmatmul.mubr.f32.gmra.mrb[0].mxu0 %v1263
  %v1654 = vpop.f32.mrb[0].mxu0
  %v1655 = vadd.f32 0.0, %v1654
  %v1656 = vpop.f32.mrb[0].mxu0
  %1657 = vmatprep.mubr.f32.mxu0 0.0
  %1658 = vmatmul.mubr.f32.gmra.mrb[0].mxu0 %v1264
  %v1659 = vpop.f32.mrb[0].mxu0
  %v1660 = vadd.f32 0.0, %v1659
  %v1661 = vpop.f32.mrb[0].mxu0
  %1662 = vmatprep.mubr.f32.mxu0 0.0
  %1663 = vmatmul.mubr.f32.gmra.mrb[0].mxu0 %v1265
  %v1664 = vpop.f32.mrb[0].mxu0
  %v1665 = vadd.f32 0.0, %v1664
  %v1666 = vpop.f32.mrb[0].mxu0
  %1667 = vdwg.mxu0
  %v1668 = vadd.f32 %v884, %v1350
  %v1669 = vadd.f32 %v889, %v1355
  %v1670 = vadd.f32 %v894, %v1360
  %v1671 = vadd.f32 %v899, %v1365
  %v1672 = vadd.f32 %v904, %v1370
  %v1673 = vadd.f32 %v909, %v1375
  %v1674 = vadd.f32 %v914, %v1380
  %v1675 = vadd.f32 %v919, %v1385
  %v1676 = vadd.f32 %v924, %v1390
  %v1677 = vadd.f32 %v929, %v1395
  %v1678 = vadd.f32 %v934, %v1400
  %v1679 = vadd.f32 %v939, %v1405
  %v1680 = vadd.f32 %v944, %v1410
  %v1681 = vadd.f32 %v949, %v1415
  %v1682 = vadd.f32 %v954, %v1420
  %v1683 = vadd.f32 %v959, %v1425
  %v1684 = vadd.f32 %v964, %v1430
  %v1685 = vadd.f32 %v969, %v1435
  %v1686 = vadd.f32 %v974, %v1440
  %v1687 = vadd.f32 %v979, %v1445
  %v1688 = vadd.f32 %v984, %v1450
  %v1689 = vadd.f32 %v989, %v1455
  %v1690 = vadd.f32 %v994, %v1460
  %v1691 = vadd.f32 %v999, %v1465
  %v1692 = vadd.f32 %v1004, %v1470
  %v1693 = vadd.f32 %v1009, %v1475
  %v1694 = vadd.f32 %v1014, %v1480
  %v1695 = vadd.f32 %v1019, %v1485
  %v1696 = vadd.f32 %v1024, %v1490
  %v1697 = vadd.f32 %v1029, %v1495
  %v1698 = vadd.f32 %v1034, %v1500
  %v1699 = vadd.f32 %v1039, %v1505
  %v1700 = vadd.f32 %v1044, %v1510
  %v1701 = vadd.f32 %v1049, %v1515
  %v1702 = vadd.f32 %v1054, %v1520
  %v1703 = vadd.f32 %v1059, %v1525
  %v1704 = vadd.f32 %v1064, %v1530
  %v1705 = vadd.f32 %v1069, %v1535
  %v1706 = vadd.f32 %v1074, %v1540
  %v1707 = vadd.f32 %v1079, %v1545
  %v1708 = vadd.f32 %v1084, %v1550
  %v1709 = vadd.f32 %v1089, %v1555
  %v1710 = vadd.f32 %v1094, %v1560
  %v1711 = vadd.f32 %v1099, %v1565
  %v1712 = vadd.f32 %v1104, %v1570
  %v1713 = vadd.f32 %v1109, %v1575
  %v1714 = vadd.f32 %v1114, %v1580
  %v1715 = vadd.f32 %v1119, %v1585
  %v1716 = vadd.f32 %v1124, %v1590
  %v1717 = vadd.f32 %v1129, %v1595
  %v1718 = vadd.f32 %v1134, %v1600
  %v1719 = vadd.f32 %v1139, %v1605
  %v1720 = vadd.f32 %v1144, %v1610
  %v1721 = vadd.f32 %v1149, %v1615
  %v1722 = vadd.f32 %v1154, %v1620
  %v1723 = vadd.f32 %v1159, %v1625
  %v1724 = vadd.f32 %v1164, %v1630
  %v1725 = vadd.f32 %v1169, %v1635
  %v1726 = vadd.f32 %v1174, %v1640
  %v1727 = vadd.f32 %v1179, %v1645
  %v1728 = vadd.f32 %v1184, %v1650
  %v1729 = vadd.f32 %v1189, %v1655
  %v1730 = vadd.f32 %v1194, %v1660
  %v1731 = vadd.f32 %v1199, %v1665
  %v1732 = vld [vmem:[%s204] sm:$0xff]
  %v1733 = vld [vmem:[%s204 + $0x8] sm:$0xff]
  %v1734 = vld [vmem:[%s204 + $0x18] sm:$0xff]
  %v1735 = vld [vmem:[%s204 + $0x20] sm:$0xff]
  %v1736 = vld [vmem:[%s204 + $0x30] sm:$0xff]
  %v1737 = vld [vmem:[%s204 + $0x38] sm:$0xff]
  %v1738 = vld [vmem:[%s204 + $0x48] sm:$0xff]
  %v1739 = vld [vmem:[%s204 + $0x50] sm:$0xff]
  %v1740 = vld [vmem:[%s204 + $0x60] sm:$0xff]
  %v1741 = vld [vmem:[%s204 + $0x68] sm:$0xff]
  %v1742 = vld [vmem:[%s204 + $0x78] sm:$0xff]
  %v1743 = vld [vmem:[%s204 + $0x80] sm:$0xff]
  %v1744 = vld [vmem:[%s204 + $0x90] sm:$0xff]
  %v1745 = vld [vmem:[%s204 + $0x98] sm:$0xff]
  %v1746 = vld [vmem:[%s204 + $0xa8] sm:$0xff]
  %v1747 = vld [vmem:[%s204 + $0xb0] sm:$0xff]
  %v1748 = vld [vmem:[%s204 + $0xc0] sm:$0xff]
  %v1749 = vld [vmem:[%s204 + $0xc8] sm:$0xff]
  %v1750 = vld [vmem:[%s204 + $0xd8] sm:$0xff]
  %v1751 = vld [vmem:[%s204 + $0xe0] sm:$0xff]
  %v1752 = vld [vmem:[%s204 + $0xf0] sm:$0xff]
  %v1753 = vld [vmem:[%s204 + $0xf8] sm:$0xff]
  %v1754 = vld [vmem:[%s204 + $0x108] sm:$0xff]
  %v1755 = vld [vmem:[%s204 + $0x110] sm:$0xff]
  %v1756 = vld [vmem:[%s204 + $0x120] sm:$0xff]
  %v1757 = vld [vmem:[%s204 + $0x128] sm:$0xff]
  %v1758 = vld [vmem:[%s204 + $0x138] sm:$0xff]
  %v1759 = vld [vmem:[%s204 + $0x140] sm:$0xff]
  %v1760 = vld [vmem:[%s204 + $0x150] sm:$0xff]
  %v1761 = vld [vmem:[%s204 + $0x158] sm:$0xff]
  %v1762 = vld [vmem:[%s204 + $0x168] sm:$0xff]
  %v1763 = vld [vmem:[%s204 + $0x170] sm:$0xff]
  %v1764 = vld [vmem:[%s204 + $0x1b0] sm:$0xff]
  %v1765 = vld [vmem:[%s204 + $0x1b8] sm:$0xff]
  %v1766 = vld [vmem:[%s204 + $0x1c8] sm:$0xff]
  %v1767 = vld [vmem:[%s204 + $0x1d0] sm:$0xff]
  %v1768 = vld [vmem:[%s204 + $0x1e0] sm:$0xff]
  %v1769 = vld [vmem:[%s204 + $0x1e8] sm:$0xff]
  %v1770 = vld [vmem:[%s204 + $0x1f8] sm:$0xff]
  %v1771 = vld [vmem:[%s204 + $0x200] sm:$0xff]
  %v1772 = vld [vmem:[%s204 + $0x210] sm:$0xff]
  %v1773 = vld [vmem:[%s204 + $0x218] sm:$0xff]
  %v1774 = vld [vmem:[%s204 + $0x228] sm:$0xff]
  %v1775 = vld [vmem:[%s204 + $0x230] sm:$0xff]
  %v1776 = vld [vmem:[%s204 + $0x240] sm:$0xff]
  %v1777 = vld [vmem:[%s204 + $0x248] sm:$0xff]
  %v1778 = vld [vmem:[%s204 + $0x258] sm:$0xff]
  %v1779 = vld [vmem:[%s204 + $0x260] sm:$0xff]
  %v1780 = vld [vmem:[%s204 + $0x270] sm:$0xff]
  %v1781 = vld [vmem:[%s204 + $0x278] sm:$0xff]
  %v1782 = vld [vmem:[%s204 + $0x288] sm:$0xff]
  %v1783 = vld [vmem:[%s204 + $0x290] sm:$0xff]
  %v1784 = vld [vmem:[%s204 + $0x2a0] sm:$0xff]
  %v1785 = vld [vmem:[%s204 + $0x2a8] sm:$0xff]
  %v1786 = vld [vmem:[%s204 + $0x2b8] sm:$0xff]
  %v1787 = vld [vmem:[%s204 + $0x2c0] sm:$0xff]
  %v1788 = vld [vmem:[%s204 + $0x2d0] sm:$0xff]
  %v1789 = vld [vmem:[%s204 + $0x2d8] sm:$0xff]
  %v1790 = vld [vmem:[%s204 + $0x2e8] sm:$0xff]
  %v1791 = vld [vmem:[%s204 + $0x2f0] sm:$0xff]
  %v1792 = vld [vmem:[%s204 + $0x300] sm:$0xff]
  %v1793 = vld [vmem:[%s204 + $0x308] sm:$0xff]
  %v1794 = vld [vmem:[%s204 + $0x318] sm:$0xff]
  %v1795 = vld [vmem:[%s204 + $0x320] sm:$0xff]
  %s1796 = scalar_lea.vmem %s1, 384
  %v1797 = vld [vmem:[%s1796] sm:$0xff]
  %v1798 = vld [vmem:[%s1796 + $0x8] sm:$0xff]
  %v1799 = vld [vmem:[%s1796 + $0x10] sm:$0xff]
  %v1800 = vld [vmem:[%s1796 + $0x18] sm:$0xff]
  %v1801 = vld [vmem:[%s1796 + $0x20] sm:$0xff]
  %v1802 = vld [vmem:[%s1796 + $0x28] sm:$0xff]
  %v1803 = vld [vmem:[%s1796 + $0x30] sm:$0xff]
  %v1804 = vld [vmem:[%s1796 + $0x38] sm:$0xff]
  %v1805 = vld [vmem:[%s1796 + $0x40] sm:$0xff]
  %v1806 = vld [vmem:[%s1796 + $0x48] sm:$0xff]
  %v1807 = vld [vmem:[%s1796 + $0x50] sm:$0xff]
  %v1808 = vld [vmem:[%s1796 + $0x58] sm:$0xff]
  %v1809 = vld [vmem:[%s1796 + $0x60] sm:$0xff]
  %v1810 = vld [vmem:[%s1796 + $0x68] sm:$0xff]
  %v1811 = vld [vmem:[%s1796 + $0x70] sm:$0xff]
  %v1812 = vld [vmem:[%s1796 + $0x78] sm:$0xff]
  %1813 = vmatprep.subr.mxu0 0.0
  %1814 = vmatpush1.msra.mxu0 %v1797
  %1815 = vmatprep.subr.mxu0 0.0
  %1816 = vmatpush1.msra.mxu0 %v1798
  %1817 = vmatprep.subr.mxu0 0.0
  %1818 = vmatpush1.msra.mxu0 %v1799
  %1819 = vmatprep.subr.mxu0 0.0
  %1820 = vmatpush1.msra.mxu0 %v1800
  %1821 = vmatprep.subr.mxu0 0.0
  %1822 = vmatpush1.msra.mxu0 %v1801
  %1823 = vmatprep.subr.mxu0 0.0
  %1824 = vmatpush1.msra.mxu0 %v1802
  %1825 = vmatprep.subr.mxu0 0.0
  %1826 = vmatpush1.msra.mxu0 %v1803
  %1827 = vmatprep.subr.mxu0 0.0
  %1828 = vmatpush1.msra.mxu0 %v1804
  %1829 = vmatprep.subr.mxu0 0.0
  %1830 = vmatpush1.msra.mxu0 %v1805
  %1831 = vmatprep.subr.mxu0 0.0
  %1832 = vmatpush1.msra.mxu0 %v1806
  %1833 = vmatprep.subr.mxu0 0.0
  %1834 = vmatpush1.msra.mxu0 %v1807
  %1835 = vmatprep.subr.mxu0 0.0
  %1836 = vmatpush1.msra.mxu0 %v1808
  %1837 = vmatprep.subr.mxu0 0.0
  %1838 = vmatpush1.msra.mxu0 %v1809
  %1839 = vmatprep.subr.mxu0 0.0
  %1840 = vmatpush1.msra.mxu0 %v1810
  %1841 = vmatprep.subr.mxu0 0.0
  %1842 = vmatpush1.msra.mxu0 %v1811
  %1843 = vmatprep.subr.mxu0 0.0
  %1844 = vmatpush1.msra.mxu0 %v1812
  %1845 = vmatprep.subr.mxu0 0.0
  %1846 = vmatpush1.msra.mxu0 0.0
  %1847 = vmatprep.subr.mxu0 0.0
  %1848 = vmatpush1.msra.mxu0 0.0
  %1849 = vmatprep.subr.mxu0 0.0
  %1850 = vmatpush1.msra.mxu0 0.0
  %1851 = vmatprep.subr.mxu0 0.0
  %1852 = vmatpush1.msra.mxu0 0.0
  %1853 = vmatprep.subr.mxu0 0.0
  %1854 = vmatpush1.msra.mxu0 0.0
  %1855 = vmatprep.subr.mxu0 0.0
  %1856 = vmatpush1.msra.mxu0 0.0
  %1857 = vmatprep.subr.mxu0 0.0
  %1858 = vmatpush1.msra.mxu0 0.0
  %1859 = vmatprep.subr.mxu0 0.0
  %1860 = vmatpush1.msra.mxu0 0.0
  %1861 = vmatprep.subr.mxu0 0.0
  %1862 = vmatpush1.msra.mxu0 0.0
  %1863 = vmatprep.subr.mxu0 0.0
  %1864 = vmatpush1.msra.mxu0 0.0
  %1865 = vmatprep.subr.mxu0 0.0
  %1866 = vmatpush1.msra.mxu0 0.0
  %1867 = vmatprep.subr.mxu0 0.0
  %1868 = vmatpush1.msra.mxu0 0.0
  %1869 = vmatprep.subr.mxu0 0.0
  %1870 = vmatpush1.msra.mxu0 0.0
  %1871 = vmatprep.subr.mxu0 0.0
  %1872 = vmatpush1.msra.mxu0 0.0
  %1873 = vmatprep.subr.mxu0 0.0
  %1874 = vmatpush1.msra.mxu0 0.0
  %1875 = vmatprep.subr.mxu0 0.0
  %1876 = vmatpush1.msra.mxu0 0.0
  %1877 = vmatprep.mubr.f32.mxu0 0.0
  %1878 = vmatmul.mubr.f32.gmra.mrb[0].mxu0 %v1732
  %v1879 = vpop.f32.mrb[0].mxu0
  %v1880 = vadd.f32 0.0, %v1879
  %v1881 = vpop.f32.mrb[0].mxu0
  %1882 = vmatprep.mubr.f32.mxu0 0.0
  %1883 = vmatmul.mubr.f32.gmra.mrb[0].mxu0 %v1733
  %v1884 = vpop.f32.mrb[0].mxu0
  %v1885 = vadd.f32 0.0, %v1884
  %v1886 = vpop.f32.mrb[0].mxu0
  %1887 = vmatprep.mubr.f32.mxu0 0.0
  %1888 = vmatmul.mubr.f32.gmra.mrb[0].mxu0 %v1734
  %v1889 = vpop.f32.mrb[0].mxu0
  %v1890 = vadd.f32 0.0, %v1889
  %v1891 = vpop.f32.mrb[0].mxu0
  %1892 = vmatprep.mubr.f32.mxu0 0.0
  %1893 = vmatmul.mubr.f32.gmra.mrb[0].mxu0 %v1735
  %v1894 = vpop.f32.mrb[0].mxu0
  %v1895 = vadd.f32 0.0, %v1894
  %v1896 = vpop.f32.mrb[0].mxu0
  %1897 = vmatprep.mubr.f32.mxu0 0.0
  %1898 = vmatmul.mubr.f32.gmra.mrb[0].mxu0 %v1736
  %v1899 = vpop.f32.mrb[0].mxu0
  %v1900 = vadd.f32 0.0, %v1899
  %v1901 = vpop.f32.mrb[0].mxu0
  %1902 = vmatprep.mubr.f32.mxu0 0.0
  %1903 = vmatmul.mubr.f32.gmra.mrb[0].mxu0 %v1737
  %v1904 = vpop.f32.mrb[0].mxu0
  %v1905 = vadd.f32 0.0, %v1904
  %v1906 = vpop.f32.mrb[0].mxu0
  %1907 = vmatprep.mubr.f32.mxu0 0.0
  %1908 = vmatmul.mubr.f32.gmra.mrb[0].mxu0 %v1738
  %v1909 = vpop.f32.mrb[0].mxu0
  %v1910 = vadd.f32 0.0, %v1909
  %v1911 = vpop.f32.mrb[0].mxu0
  %1912 = vmatprep.mubr.f32.mxu0 0.0
  %1913 = vmatmul.mubr.f32.gmra.mrb[0].mxu0 %v1739
  %v1914 = vpop.f32.mrb[0].mxu0
  %v1915 = vadd.f32 0.0, %v1914
  %v1916 = vpop.f32.mrb[0].mxu0
  %1917 = vmatprep.mubr.f32.mxu0 0.0
  %1918 = vmatmul.mubr.f32.gmra.mrb[0].mxu0 %v1740
  %v1919 = vpop.f32.mrb[0].mxu0
  %v1920 = vadd.f32 0.0, %v1919
  %v1921 = vpop.f32.mrb[0].mxu0
  %1922 = vmatprep.mubr.f32.mxu0 0.0
  %1923 = vmatmul.mubr.f32.gmra.mrb[0].mxu0 %v1741
  %v1924 = vpop.f32.mrb[0].mxu0
  %v1925 = vadd.f32 0.0, %v1924
  %v1926 = vpop.f32.mrb[0].mxu0
  %1927 = vmatprep.mubr.f32.mxu0 0.0
  %1928 = vmatmul.mubr.f32.gmra.mrb[0].mxu0 %v1742
  %v1929 = vpop.f32.mrb[0].mxu0
  %v1930 = vadd.f32 0.0, %v1929
  %v1931 = vpop.f32.mrb[0].mxu0
  %1932 = vmatprep.mubr.f32.mxu0 0.0
  %1933 = vmatmul.mubr.f32.gmra.mrb[0].mxu0 %v1743
  %v1934 = vpop.f32.mrb[0].mxu0
  %v1935 = vadd.f32 0.0, %v1934
  %v1936 = vpop.f32.mrb[0].mxu0
  %1937 = vmatprep.mubr.f32.mxu0 0.0
  %1938 = vmatmul.mubr.f32.gmra.mrb[0].mxu0 %v1744
  %v1939 = vpop.f32.mrb[0].mxu0
  %v1940 = vadd.f32 0.0, %v1939
  %v1941 = vpop.f32.mrb[0].mxu0
  %1942 = vmatprep.mubr.f32.mxu0 0.0
  %1943 = vmatmul.mubr.f32.gmra.mrb[0].mxu0 %v1745
  %v1944 = vpop.f32.mrb[0].mxu0
  %v1945 = vadd.f32 0.0, %v1944
  %v1946 = vpop.f32.mrb[0].mxu0
  %1947 = vmatprep.mubr.f32.mxu0 0.0
  %1948 = vmatmul.mubr.f32.gmra.mrb[0].mxu0 %v1746
  %v1949 = vpop.f32.mrb[0].mxu0
  %v1950 = vadd.f32 0.0, %v1949
  %v1951 = vpop.f32.mrb[0].mxu0
  %1952 = vmatprep.mubr.f32.mxu0 0.0
  %1953 = vmatmul.mubr.f32.gmra.mrb[0].mxu0 %v1747
  %v1954 = vpop.f32.mrb[0].mxu0
  %v1955 = vadd.f32 0.0, %v1954
  %v1956 = vpop.f32.mrb[0].mxu0
  %1957 = vmatprep.mubr.f32.mxu0 0.0
  %1958 = vmatmul.mubr.f32.gmra.mrb[0].mxu0 %v1748
  %v1959 = vpop.f32.mrb[0].mxu0
  %v1960 = vadd.f32 0.0, %v1959
  %v1961 = vpop.f32.mrb[0].mxu0
  %1962 = vmatprep.mubr.f32.mxu0 0.0
  %1963 = vmatmul.mubr.f32.gmra.mrb[0].mxu0 %v1749
  %v1964 = vpop.f32.mrb[0].mxu0
  %v1965 = vadd.f32 0.0, %v1964
  %v1966 = vpop.f32.mrb[0].mxu0
  %1967 = vmatprep.mubr.f32.mxu0 0.0
  %1968 = vmatmul.mubr.f32.gmra.mrb[0].mxu0 %v1750
  %v1969 = vpop.f32.mrb[0].mxu0
  %v1970 = vadd.f32 0.0, %v1969
  %v1971 = vpop.f32.mrb[0].mxu0
  %1972 = vmatprep.mubr.f32.mxu0 0.0
  %1973 = vmatmul.mubr.f32.gmra.mrb[0].mxu0 %v1751
  %v1974 = vpop.f32.mrb[0].mxu0
  %v1975 = vadd.f32 0.0, %v1974
  %v1976 = vpop.f32.mrb[0].mxu0
  %1977 = vmatprep.mubr.f32.mxu0 0.0
  %1978 = vmatmul.mubr.f32.gmra.mrb[0].mxu0 %v1752
  %v1979 = vpop.f32.mrb[0].mxu0
  %v1980 = vadd.f32 0.0, %v1979
  %v1981 = vpop.f32.mrb[0].mxu0
  %1982 = vmatprep.mubr.f32.mxu0 0.0
  %1983 = vmatmul.mubr.f32.gmra.mrb[0].mxu0 %v1753
  %v1984 = vpop.f32.mrb[0].mxu0
  %v1985 = vadd.f32 0.0, %v1984
  %v1986 = vpop.f32.mrb[0].mxu0
  %1987 = vmatprep.mubr.f32.mxu0 0.0
  %1988 = vmatmul.mubr.f32.gmra.mrb[0].mxu0 %v1754
  %v1989 = vpop.f32.mrb[0].mxu0
  %v1990 = vadd.f32 0.0, %v1989
  %v1991 = vpop.f32.mrb[0].mxu0
  %1992 = vmatprep.mubr.f32.mxu0 0.0
  %1993 = vmatmul.mubr.f32.gmra.mrb[0].mxu0 %v1755
  %v1994 = vpop.f32.mrb[0].mxu0
  %v1995 = vadd.f32 0.0, %v1994
  %v1996 = vpop.f32.mrb[0].mxu0
  %1997 = vmatprep.mubr.f32.mxu0 0.0
  %1998 = vmatmul.mubr.f32.gmra.mrb[0].mxu0 %v1756
  %v1999 = vpop.f32.mrb[0].mxu0
  %v2000 = vadd.f32 0.0, %v1999
  %v2001 = vpop.f32.mrb[0].mxu0
  %2002 = vmatprep.mubr.f32.mxu0 0.0
  %2003 = vmatmul.mubr.f32.gmra.mrb[0].mxu0 %v1757
  %v2004 = vpop.f32.mrb[0].mxu0
  %v2005 = vadd.f32 0.0, %v2004
  %v2006 = vpop.f32.mrb[0].mxu0
  %2007 = vmatprep.mubr.f32.mxu0 0.0
  %2008 = vmatmul.mubr.f32.gmra.mrb[0].mxu0 %v1758
  %v2009 = vpop.f32.mrb[0].mxu0
  %v2010 = vadd.f32 0.0, %v2009
  %v2011 = vpop.f32.mrb[0].mxu0
  %2012 = vmatprep.mubr.f32.mxu0 0.0
  %2013 = vmatmul.mubr.f32.gmra.mrb[0].mxu0 %v1759
  %v2014 = vpop.f32.mrb[0].mxu0
  %v2015 = vadd.f32 0.0, %v2014
  %v2016 = vpop.f32.mrb[0].mxu0
  %2017 = vmatprep.mubr.f32.mxu0 0.0
  %2018 = vmatmul.mubr.f32.gmra.mrb[0].mxu0 %v1760
  %v2019 = vpop.f32.mrb[0].mxu0
  %v2020 = vadd.f32 0.0, %v2019
  %v2021 = vpop.f32.mrb[0].mxu0
  %2022 = vmatprep.mubr.f32.mxu0 0.0
  %2023 = vmatmul.mubr.f32.gmra.mrb[0].mxu0 %v1761
  %v2024 = vpop.f32.mrb[0].mxu0
  %v2025 = vadd.f32 0.0, %v2024
  %v2026 = vpop.f32.mrb[0].mxu0
  %2027 = vmatprep.mubr.f32.mxu0 0.0
  %2028 = vmatmul.mubr.f32.gmra.mrb[0].mxu0 %v1762
  %v2029 = vpop.f32.mrb[0].mxu0
  %v2030 = vadd.f32 0.0, %v2029
  %v2031 = vpop.f32.mrb[0].mxu0
  %2032 = vmatprep.mubr.f32.mxu0 0.0
  %2033 = vmatmul.mubr.f32.gmra.mrb[0].mxu0 %v1763
  %v2034 = vpop.f32.mrb[0].mxu0
  %v2035 = vadd.f32 0.0, %v2034
  %v2036 = vpop.f32.mrb[0].mxu0
  %2037 = vmatprep.mubr.f32.mxu0 0.0
  %2038 = vmatmul.mubr.f32.gmra.mrb[0].mxu0 %v1764
  %v2039 = vpop.f32.mrb[0].mxu0
  %v2040 = vadd.f32 0.0, %v2039
  %v2041 = vpop.f32.mrb[0].mxu0
  %2042 = vmatprep.mubr.f32.mxu0 0.0
  %2043 = vmatmul.mubr.f32.gmra.mrb[0].mxu0 %v1765
  %v2044 = vpop.f32.mrb[0].mxu0
  %v2045 = vadd.f32 0.0, %v2044
  %v2046 = vpop.f32.mrb[0].mxu0
  %2047 = vmatprep.mubr.f32.mxu0 0.0
  %2048 = vmatmul.mubr.f32.gmra.mrb[0].mxu0 %v1766
  %v2049 = vpop.f32.mrb[0].mxu0
  %v2050 = vadd.f32 0.0, %v2049
  %v2051 = vpop.f32.mrb[0].mxu0
  %2052 = vmatprep.mubr.f32.mxu0 0.0
  %2053 = vmatmul.mubr.f32.gmra.mrb[0].mxu0 %v1767
  %v2054 = vpop.f32.mrb[0].mxu0
  %v2055 = vadd.f32 0.0, %v2054
  %v2056 = vpop.f32.mrb[0].mxu0
  %2057 = vmatprep.mubr.f32.mxu0 0.0
  %2058 = vmatmul.mubr.f32.gmra.mrb[0].mxu0 %v1768
  %v2059 = vpop.f32.mrb[0].mxu0
  %v2060 = vadd.f32 0.0, %v2059
  %v2061 = vpop.f32.mrb[0].mxu0
  %2062 = vmatprep.mubr.f32.mxu0 0.0
  %2063 = vmatmul.mubr.f32.gmra.mrb[0].mxu0 %v1769
  %v2064 = vpop.f32.mrb[0].mxu0
  %v2065 = vadd.f32 0.0, %v2064
  %v2066 = vpop.f32.mrb[0].mxu0
  %2067 = vmatprep.mubr.f32.mxu0 0.0
  %2068 = vmatmul.mubr.f32.gmra.mrb[0].mxu0 %v1770
  %v2069 = vpop.f32.mrb[0].mxu0
  %v2070 = vadd.f32 0.0, %v2069
  %v2071 = vpop.f32.mrb[0].mxu0
  %2072 = vmatprep.mubr.f32.mxu0 0.0
  %2073 = vmatmul.mubr.f32.gmra.mrb[0].mxu0 %v1771
  %v2074 = vpop.f32.mrb[0].mxu0
  %v2075 = vadd.f32 0.0, %v2074
  %v2076 = vpop.f32.mrb[0].mxu0
  %2077 = vmatprep.mubr.f32.mxu0 0.0
  %2078 = vmatmul.mubr.f32.gmra.mrb[0].mxu0 %v1772
  %v2079 = vpop.f32.mrb[0].mxu0
  %v2080 = vadd.f32 0.0, %v2079
  %v2081 = vpop.f32.mrb[0].mxu0
  %2082 = vmatprep.mubr.f32.mxu0 0.0
  %2083 = vmatmul.mubr.f32.gmra.mrb[0].mxu0 %v1773
  %v2084 = vpop.f32.mrb[0].mxu0
  %v2085 = vadd.f32 0.0, %v2084
  %v2086 = vpop.f32.mrb[0].mxu0
  %2087 = vmatprep.mubr.f32.mxu0 0.0
  %2088 = vmatmul.mubr.f32.gmra.mrb[0].mxu0 %v1774
  %v2089 = vpop.f32.mrb[0].mxu0
  %v2090 = vadd.f32 0.0, %v2089
  %v2091 = vpop.f32.mrb[0].mxu0
  %2092 = vmatprep.mubr.f32.mxu0 0.0
  %2093 = vmatmul.mubr.f32.gmra.mrb[0].mxu0 %v1775
  %v2094 = vpop.f32.mrb[0].mxu0
  %v2095 = vadd.f32 0.0, %v2094
  %v2096 = vpop.f32.mrb[0].mxu0
  %2097 = vmatprep.mubr.f32.mxu0 0.0
  %2098 = vmatmul.mubr.f32.gmra.mrb[0].mxu0 %v1776
  %v2099 = vpop.f32.mrb[0].mxu0
  %v2100 = vadd.f32 0.0, %v2099
  %v2101 = vpop.f32.mrb[0].mxu0
  %2102 = vmatprep.mubr.f32.mxu0 0.0
  %2103 = vmatmul.mubr.f32.gmra.mrb[0].mxu0 %v1777
  %v2104 = vpop.f32.mrb[0].mxu0
  %v2105 = vadd.f32 0.0, %v2104
  %v2106 = vpop.f32.mrb[0].mxu0
  %2107 = vmatprep.mubr.f32.mxu0 0.0
  %2108 = vmatmul.mubr.f32.gmra.mrb[0].mxu0 %v1778
  %v2109 = vpop.f32.mrb[0].mxu0
  %v2110 = vadd.f32 0.0, %v2109
  %v2111 = vpop.f32.mrb[0].mxu0
  %2112 = vmatprep.mubr.f32.mxu0 0.0
  %2113 = vmatmul.mubr.f32.gmra.mrb[0].mxu0 %v1779
  %v2114 = vpop.f32.mrb[0].mxu0
  %v2115 = vadd.f32 0.0, %v2114
  %v2116 = vpop.f32.mrb[0].mxu0
  %2117 = vmatprep.mubr.f32.mxu0 0.0
  %2118 = vmatmul.mubr.f32.gmra.mrb[0].mxu0 %v1780
  %v2119 = vpop.f32.mrb[0].mxu0
  %v2120 = vadd.f32 0.0, %v2119
  %v2121 = vpop.f32.mrb[0].mxu0
  %2122 = vmatprep.mubr.f32.mxu0 0.0
  %2123 = vmatmul.mubr.f32.gmra.mrb[0].mxu0 %v1781
  %v2124 = vpop.f32.mrb[0].mxu0
  %v2125 = vadd.f32 0.0, %v2124
  %v2126 = vpop.f32.mrb[0].mxu0
  %2127 = vmatprep.mubr.f32.mxu0 0.0
  %2128 = vmatmul.mubr.f32.gmra.mrb[0].mxu0 %v1782
  %v2129 = vpop.f32.mrb[0].mxu0
  %v2130 = vadd.f32 0.0, %v2129
  %v2131 = vpop.f32.mrb[0].mxu0
  %2132 = vmatprep.mubr.f32.mxu0 0.0
  %2133 = vmatmul.mubr.f32.gmra.mrb[0].mxu0 %v1783
  %v2134 = vpop.f32.mrb[0].mxu0
  %v2135 = vadd.f32 0.0, %v2134
  %v2136 = vpop.f32.mrb[0].mxu0
  %2137 = vmatprep.mubr.f32.mxu0 0.0
  %2138 = vmatmul.mubr.f32.gmra.mrb[0].mxu0 %v1784
  %v2139 = vpop.f32.mrb[0].mxu0
  %v2140 = vadd.f32 0.0, %v2139
  %v2141 = vpop.f32.mrb[0].mxu0
  %2142 = vmatprep.mubr.f32.mxu0 0.0
  %2143 = vmatmul.mubr.f32.gmra.mrb[0].mxu0 %v1785
  %v2144 = vpop.f32.mrb[0].mxu0
  %v2145 = vadd.f32 0.0, %v2144
  %v2146 = vpop.f32.mrb[0].mxu0
  %2147 = vmatprep.mubr.f32.mxu0 0.0
  %2148 = vmatmul.mubr.f32.gmra.mrb[0].mxu0 %v1786
  %v2149 = vpop.f32.mrb[0].mxu0
  %v2150 = vadd.f32 0.0, %v2149
  %v2151 = vpop.f32.mrb[0].mxu0
  %2152 = vmatprep.mubr.f32.mxu0 0.0
  %2153 = vmatmul.mubr.f32.gmra.mrb[0].mxu0 %v1787
  %v2154 = vpop.f32.mrb[0].mxu0
  %v2155 = vadd.f32 0.0, %v2154
  %v2156 = vpop.f32.mrb[0].mxu0
  %2157 = vmatprep.mubr.f32.mxu0 0.0
  %2158 = vmatmul.mubr.f32.gmra.mrb[0].mxu0 %v1788
  %v2159 = vpop.f32.mrb[0].mxu0
  %v2160 = vadd.f32 0.0, %v2159
  %v2161 = vpop.f32.mrb[0].mxu0
  %2162 = vmatprep.mubr.f32.mxu0 0.0
  %2163 = vmatmul.mubr.f32.gmra.mrb[0].mxu0 %v1789
  %v2164 = vpop.f32.mrb[0].mxu0
  %v2165 = vadd.f32 0.0, %v2164
  %v2166 = vpop.f32.mrb[0].mxu0
  %2167 = vmatprep.mubr.f32.mxu0 0.0
  %2168 = vmatmul.mubr.f32.gmra.mrb[0].mxu0 %v1790
  %v2169 = vpop.f32.mrb[0].mxu0
  %v2170 = vadd.f32 0.0, %v2169
  %v2171 = vpop.f32.mrb[0].mxu0
  %2172 = vmatprep.mubr.f32.mxu0 0.0
  %2173 = vmatmul.mubr.f32.gmra.mrb[0].mxu0 %v1791
  %v2174 = vpop.f32.mrb[0].mxu0
  %v2175 = vadd.f32 0.0, %v2174
  %v2176 = vpop.f32.mrb[0].mxu0
  %2177 = vmatprep.mubr.f32.mxu0 0.0
  %2178 = vmatmul.mubr.f32.gmra.mrb[0].mxu0 %v1792
  %v2179 = vpop.f32.mrb[0].mxu0
  %v2180 = vadd.f32 0.0, %v2179
  %v2181 = vpop.f32.mrb[0].mxu0
  %2182 = vmatprep.mubr.f32.mxu0 0.0
  %2183 = vmatmul.mubr.f32.gmra.mrb[0].mxu0 %v1793
  %v2184 = vpop.f32.mrb[0].mxu0
  %v2185 = vadd.f32 0.0, %v2184
  %v2186 = vpop.f32.mrb[0].mxu0
  %2187 = vmatprep.mubr.f32.mxu0 0.0
  %2188 = vmatmul.mubr.f32.gmra.mrb[0].mxu0 %v1794
  %v2189 = vpop.f32.mrb[0].mxu0
  %v2190 = vadd.f32 0.0, %v2189
  %v2191 = vpop.f32.mrb[0].mxu0
  %2192 = vmatprep.mubr.f32.mxu0 0.0
  %2193 = vmatmul.mubr.f32.gmra.mrb[0].mxu0 %v1795
  %v2194 = vpop.f32.mrb[0].mxu0
  %v2195 = vadd.f32 0.0, %v2194
  %v2196 = vpop.f32.mrb[0].mxu0
  %2197 = vdwg.mxu0
  %v2198 = vadd.f32 %v1668, %v1880
  %v2199 = vadd.f32 %v1669, %v1885
  %v2200 = vadd.f32 %v1670, %v1890
  %v2201 = vadd.f32 %v1671, %v1895
  %v2202 = vadd.f32 %v1672, %v1900
  %v2203 = vadd.f32 %v1673, %v1905
  %v2204 = vadd.f32 %v1674, %v1910
  %v2205 = vadd.f32 %v1675, %v1915
  %v2206 = vadd.f32 %v1676, %v1920
  %v2207 = vadd.f32 %v1677, %v1925
  %v2208 = vadd.f32 %v1678, %v1930
  %v2209 = vadd.f32 %v1679, %v1935
  %v2210 = vadd.f32 %v1680, %v1940
  %v2211 = vadd.f32 %v1681, %v1945
  %v2212 = vadd.f32 %v1682, %v1950
  %v2213 = vadd.f32 %v1683, %v1955
  %v2214 = vadd.f32 %v1684, %v1960
  %v2215 = vadd.f32 %v1685, %v1965
  %v2216 = vadd.f32 %v1686, %v1970
  %v2217 = vadd.f32 %v1687, %v1975
  %v2218 = vadd.f32 %v1688, %v1980
  %v2219 = vadd.f32 %v1689, %v1985
  %v2220 = vadd.f32 %v1690, %v1990
  %v2221 = vadd.f32 %v1691, %v1995
  %v2222 = vadd.f32 %v1692, %v2000
  %v2223 = vadd.f32 %v1693, %v2005
  %v2224 = vadd.f32 %v1694, %v2010
  %v2225 = vadd.f32 %v1695, %v2015
  %v2226 = vadd.f32 %v1696, %v2020
  %v2227 = vadd.f32 %v1697, %v2025
  %v2228 = vadd.f32 %v1698, %v2030
  %v2229 = vadd.f32 %v1699, %v2035
  %v2230 = vadd.f32 %v1700, %v2040
  %v2231 = vadd.f32 %v1701, %v2045
  %v2232 = vadd.f32 %v1702, %v2050
  %v2233 = vadd.f32 %v1703, %v2055
  %v2234 = vadd.f32 %v1704, %v2060
  %v2235 = vadd.f32 %v1705, %v2065
  %v2236 = vadd.f32 %v1706, %v2070
  %v2237 = vadd.f32 %v1707, %v2075
  %v2238 = vadd.f32 %v1708, %v2080
  %v2239 = vadd.f32 %v1709, %v2085
  %v2240 = vadd.f32 %v1710, %v2090
  %v2241 = vadd.f32 %v1711, %v2095
  %v2242 = vadd.f32 %v1712, %v2100
  %v2243 = vadd.f32 %v1713, %v2105
  %v2244 = vadd.f32 %v1714, %v2110
  %v2245 = vadd.f32 %v1715, %v2115
  %v2246 = vadd.f32 %v1716, %v2120
  %v2247 = vadd.f32 %v1717, %v2125
  %v2248 = vadd.f32 %v1718, %v2130
  %v2249 = vadd.f32 %v1719, %v2135
  %v2250 = vadd.f32 %v1720, %v2140
  %v2251 = vadd.f32 %v1721, %v2145
  %v2252 = vadd.f32 %v1722, %v2150
  %v2253 = vadd.f32 %v1723, %v2155
  %v2254 = vadd.f32 %v1724, %v2160
  %v2255 = vadd.f32 %v1725, %v2165
  %v2256 = vadd.f32 %v1726, %v2170
  %v2257 = vadd.f32 %v1727, %v2175
  %v2258 = vadd.f32 %v1728, %v2180
  %v2259 = vadd.f32 %v1729, %v2185
  %v2260 = vadd.f32 %v1730, %v2190
  %v2261 = vadd.f32 %v1731, %v2195
  %v2262 = vld [vmem:[%s204 + $0x1] sm:$0xff]
  %v2263 = vld [vmem:[%s204 + $0x9] sm:$0xff]
  %v2264 = vld [vmem:[%s204 + $0x19] sm:$0xff]
  %v2265 = vld [vmem:[%s204 + $0x21] sm:$0xff]
  %v2266 = vld [vmem:[%s204 + $0x31] sm:$0xff]
  %v2267 = vld [vmem:[%s204 + $0x39] sm:$0xff]
  %v2268 = vld [vmem:[%s204 + $0x49] sm:$0xff]
  %v2269 = vld [vmem:[%s204 + $0x51] sm:$0xff]
  %v2270 = vld [vmem:[%s204 + $0x61] sm:$0xff]
  %v2271 = vld [vmem:[%s204 + $0x69] sm:$0xff]
  %v2272 = vld [vmem:[%s204 + $0x79] sm:$0xff]
  %v2273 = vld [vmem:[%s204 + $0x81] sm:$0xff]
  %v2274 = vld [vmem:[%s204 + $0x91] sm:$0xff]
  %v2275 = vld [vmem:[%s204 + $0x99] sm:$0xff]
  %v2276 = vld [vmem:[%s204 + $0xa9] sm:$0xff]
  %v2277 = vld [vmem:[%s204 + $0xb1] sm:$0xff]
  %v2278 = vld [vmem:[%s204 + $0xc1] sm:$0xff]
  %v2279 = vld [vmem:[%s204 + $0xc9] sm:$0xff]
  %v2280 = vld [vmem:[%s204 + $0xd9] sm:$0xff]
  %v2281 = vld [vmem:[%s204 + $0xe1] sm:$0xff]
  %v2282 = vld [vmem:[%s204 + $0xf1] sm:$0xff]
  %v2283 = vld [vmem:[%s204 + $0xf9] sm:$0xff]
  %v2284 = vld [vmem:[%s204 + $0x109] sm:$0xff]
  %v2285 = vld [vmem:[%s204 + $0x111] sm:$0xff]
  %v2286 = vld [vmem:[%s204 + $0x121] sm:$0xff]
  %v2287 = vld [vmem:[%s204 + $0x129] sm:$0xff]
  %v2288 = vld [vmem:[%s204 + $0x139] sm:$0xff]
  %v2289 = vld [vmem:[%s204 + $0x141] sm:$0xff]
  %v2290 = vld [vmem:[%s204 + $0x151] sm:$0xff]
  %v2291 = vld [vmem:[%s204 + $0x159] sm:$0xff]
  %v2292 = vld [vmem:[%s204 + $0x169] sm:$0xff]
  %v2293 = vld [vmem:[%s204 + $0x171] sm:$0xff]
  %v2294 = vld [vmem:[%s204 + $0x1b1] sm:$0xff]
  %v2295 = vld [vmem:[%s204 + $0x1b9] sm:$0xff]
  %v2296 = vld [vmem:[%s204 + $0x1c9] sm:$0xff]
  %v2297 = vld [vmem:[%s204 + $0x1d1] sm:$0xff]
  %v2298 = vld [vmem:[%s204 + $0x1e1] sm:$0xff]
  %v2299 = vld [vmem:[%s204 + $0x1e9] sm:$0xff]
  %v2300 = vld [vmem:[%s204 + $0x1f9] sm:$0xff]
  %v2301 = vld [vmem:[%s204 + $0x201] sm:$0xff]
  %v2302 = vld [vmem:[%s204 + $0x211] sm:$0xff]
  %v2303 = vld [vmem:[%s204 + $0x219] sm:$0xff]
  %v2304 = vld [vmem:[%s204 + $0x229] sm:$0xff]
  %v2305 = vld [vmem:[%s204 + $0x231] sm:$0xff]
  %v2306 = vld [vmem:[%s204 + $0x241] sm:$0xff]
  %v2307 = vld [vmem:[%s204 + $0x249] sm:$0xff]
  %v2308 = vld [vmem:[%s204 + $0x259] sm:$0xff]
  %v2309 = vld [vmem:[%s204 + $0x261] sm:$0xff]
  %v2310 = vld [vmem:[%s204 + $0x271] sm:$0xff]
  %v2311 = vld [vmem:[%s204 + $0x279] sm:$0xff]
  %v2312 = vld [vmem:[%s204 + $0x289] sm:$0xff]
  %v2313 = vld [vmem:[%s204 + $0x291] sm:$0xff]
  %v2314 = vld [vmem:[%s204 + $0x2a1] sm:$0xff]
  %v2315 = vld [vmem:[%s204 + $0x2a9] sm:$0xff]
  %v2316 = vld [vmem:[%s204 + $0x2b9] sm:$0xff]
  %v2317 = vld [vmem:[%s204 + $0x2c1] sm:$0xff]
  %v2318 = vld [vmem:[%s204 + $0x2d1] sm:$0xff]
  %v2319 = vld [vmem:[%s204 + $0x2d9] sm:$0xff]
  %v2320 = vld [vmem:[%s204 + $0x2e9] sm:$0xff]
  %v2321 = vld [vmem:[%s204 + $0x2f1] sm:$0xff]
  %v2322 = vld [vmem:[%s204 + $0x301] sm:$0xff]
  %v2323 = vld [vmem:[%s204 + $0x309] sm:$0xff]
  %v2324 = vld [vmem:[%s204 + $0x319] sm:$0xff]
  %v2325 = vld [vmem:[%s204 + $0x321] sm:$0xff]
  %s2326 = scalar_lea.vmem %s1, 512
  %v2327 = vld [vmem:[%s2326] sm:$0xff]
  %v2328 = vld [vmem:[%s2326 + $0x8] sm:$0xff]
  %v2329 = vld [vmem:[%s2326 + $0x10] sm:$0xff]
  %v2330 = vld [vmem:[%s2326 + $0x18] sm:$0xff]
  %v2331 = vld [vmem:[%s2326 + $0x20] sm:$0xff]
  %v2332 = vld [vmem:[%s2326 + $0x28] sm:$0xff]
  %v2333 = vld [vmem:[%s2326 + $0x30] sm:$0xff]
  %v2334 = vld [vmem:[%s2326 + $0x38] sm:$0xff]
  %v2335 = vld [vmem:[%s2326 + $0x40] sm:$0xff]
  %v2336 = vld [vmem:[%s2326 + $0x48] sm:$0xff]
  %v2337 = vld [vmem:[%s2326 + $0x50] sm:$0xff]
  %v2338 = vld [vmem:[%s2326 + $0x58] sm:$0xff]
  %v2339 = vld [vmem:[%s2326 + $0x60] sm:$0xff]
  %v2340 = vld [vmem:[%s2326 + $0x68] sm:$0xff]
  %v2341 = vld [vmem:[%s2326 + $0x70] sm:$0xff]
  %v2342 = vld [vmem:[%s2326 + $0x78] sm:$0xff]
  %2343 = vmatprep.subr.mxu0 0.0
  %2344 = vmatpush1.msra.mxu0 %v2327
  %2345 = vmatprep.subr.mxu0 0.0
  %2346 = vmatpush1.msra.mxu0 %v2328
  %2347 = vmatprep.subr.mxu0 0.0
  %2348 = vmatpush1.msra.mxu0 %v2329
  %2349 = vmatprep.subr.mxu0 0.0
  %2350 = vmatpush1.msra.mxu0 %v2330
  %2351 = vmatprep.subr.mxu0 0.0
  %2352 = vmatpush1.msra.mxu0 %v2331
  %2353 = vmatprep.subr.mxu0 0.0
  %2354 = vmatpush1.msra.mxu0 %v2332
  %2355 = vmatprep.subr.mxu0 0.0
  %2356 = vmatpush1.msra.mxu0 %v2333
  %2357 = vmatprep.subr.mxu0 0.0
  %2358 = vmatpush1.msra.mxu0 %v2334
  %2359 = vmatprep.subr.mxu0 0.0
  %2360 = vmatpush1.msra.mxu0 %v2335
  %2361 = vmatprep.subr.mxu0 0.0
  %2362 = vmatpush1.msra.mxu0 %v2336
  %2363 = vmatprep.subr.mxu0 0.0
  %2364 = vmatpush1.msra.mxu0 %v2337
  %2365 = vmatprep.subr.mxu0 0.0
  %2366 = vmatpush1.msra.mxu0 %v2338
  %2367 = vmatprep.subr.mxu0 0.0
  %2368 = vmatpush1.msra.mxu0 %v2339
  %2369 = vmatprep.subr.mxu0 0.0
  %2370 = vmatpush1.msra.mxu0 %v2340
  %2371 = vmatprep.subr.mxu0 0.0
  %2372 = vmatpush1.msra.mxu0 %v2341
  %2373 = vmatprep.subr.mxu0 0.0
  %2374 = vmatpush1.msra.mxu0 %v2342
  %2375 = vmatprep.subr.mxu0 0.0
  %2376 = vmatpush1.msra.mxu0 0.0
  %2377 = vmatprep.subr.mxu0 0.0
  %2378 = vmatpush1.msra.mxu0 0.0
  %2379 = vmatprep.subr.mxu0 0.0
  %2380 = vmatpush1.msra.mxu0 0.0
  %2381 = vmatprep.subr.mxu0 0.0
  %2382 = vmatpush1.msra.mxu0 0.0
  %2383 = vmatprep.subr.mxu0 0.0
  %2384 = vmatpush1.msra.mxu0 0.0
  %2385 = vmatprep.subr.mxu0 0.0
  %2386 = vmatpush1.msra.mxu0 0.0
  %2387 = vmatprep.subr.mxu0 0.0
  %2388 = vmatpush1.msra.mxu0 0.0
  %2389 = vmatprep.subr.mxu0 0.0
  %2390 = vmatpush1.msra.mxu0 0.0
  %2391 = vmatprep.subr.mxu0 0.0
  %2392 = vmatpush1.msra.mxu0 0.0
  %2393 = vmatprep.subr.mxu0 0.0
  %2394 = vmatpush1.msra.mxu0 0.0
  %2395 = vmatprep.subr.mxu0 0.0
  %2396 = vmatpush1.msra.mxu0 0.0
  %2397 = vmatprep.subr.mxu0 0.0
  %2398 = vmatpush1.msra.mxu0 0.0
  %2399 = vmatprep.subr.mxu0 0.0
  %2400 = vmatpush1.msra.mxu0 0.0
  %2401 = vmatprep.subr.mxu0 0.0
  %2402 = vmatpush1.msra.mxu0 0.0
  %2403 = vmatprep.subr.mxu0 0.0
  %2404 = vmatpush1.msra.mxu0 0.0
  %2405 = vmatprep.subr.mxu0 0.0
  %2406 = vmatpush1.msra.mxu0 0.0
  %2407 = vmatprep.mubr.f32.mxu0 0.0
  %2408 = vmatmul.mubr.f32.gmra.mrb[0].mxu0 %v2262
  %v2409 = vpop.f32.mrb[0].mxu0
  %v2410 = vadd.f32 0.0, %v2409
  %v2411 = vpop.f32.mrb[0].mxu0
  %2412 = vmatprep.mubr.f32.mxu0 0.0
  %2413 = vmatmul.mubr.f32.gmra.mrb[0].mxu0 %v2263
  %v2414 = vpop.f32.mrb[0].mxu0
  %v2415 = vadd.f32 0.0, %v2414
  %v2416 = vpop.f32.mrb[0].mxu0
  %2417 = vmatprep.mubr.f32.mxu0 0.0
  %2418 = vmatmul.mubr.f32.gmra.mrb[0].mxu0 %v2264
  %v2419 = vpop.f32.mrb[0].mxu0
  %v2420 = vadd.f32 0.0, %v2419
  %v2421 = vpop.f32.mrb[0].mxu0
  %2422 = vmatprep.mubr.f32.mxu0 0.0
  %2423 = vmatmul.mubr.f32.gmra.mrb[0].mxu0 %v2265
  %v2424 = vpop.f32.mrb[0].mxu0
  %v2425 = vadd.f32 0.0, %v2424
  %v2426 = vpop.f32.mrb[0].mxu0
  %2427 = vmatprep.mubr.f32.mxu0 0.0
  %2428 = vmatmul.mubr.f32.gmra.mrb[0].mxu0 %v2266
  %v2429 = vpop.f32.mrb[0].mxu0
  %v2430 = vadd.f32 0.0, %v2429
  %v2431 = vpop.f32.mrb[0].mxu0
  %2432 = vmatprep.mubr.f32.mxu0 0.0
  %2433 = vmatmul.mubr.f32.gmra.mrb[0].mxu0 %v2267
  %v2434 = vpop.f32.mrb[0].mxu0
  %v2435 = vadd.f32 0.0, %v2434
  %v2436 = vpop.f32.mrb[0].mxu0
  %2437 = vmatprep.mubr.f32.mxu0 0.0
  %2438 = vmatmul.mubr.f32.gmra.mrb[0].mxu0 %v2268
  %v2439 = vpop.f32.mrb[0].mxu0
  %v2440 = vadd.f32 0.0, %v2439
  %v2441 = vpop.f32.mrb[0].mxu0
  %2442 = vmatprep.mubr.f32.mxu0 0.0
  %2443 = vmatmul.mubr.f32.gmra.mrb[0].mxu0 %v2269
  %v2444 = vpop.f32.mrb[0].mxu0
  %v2445 = vadd.f32 0.0, %v2444
  %v2446 = vpop.f32.mrb[0].mxu0
  %2447 = vmatprep.mubr.f32.mxu0 0.0
  %2448 = vmatmul.mubr.f32.gmra.mrb[0].mxu0 %v2270
  %v2449 = vpop.f32.mrb[0].mxu0
  %v2450 = vadd.f32 0.0, %v2449
  %v2451 = vpop.f32.mrb[0].mxu0
  %2452 = vmatprep.mubr.f32.mxu0 0.0
  %2453 = vmatmul.mubr.f32.gmra.mrb[0].mxu0 %v2271
  %v2454 = vpop.f32.mrb[0].mxu0
  %v2455 = vadd.f32 0.0, %v2454
  %v2456 = vpop.f32.mrb[0].mxu0
  %2457 = vmatprep.mubr.f32.mxu0 0.0
  %2458 = vmatmul.mubr.f32.gmra.mrb[0].mxu0 %v2272
  %v2459 = vpop.f32.mrb[0].mxu0
  %v2460 = vadd.f32 0.0, %v2459
  %v2461 = vpop.f32.mrb[0].mxu0
  %2462 = vmatprep.mubr.f32.mxu0 0.0
  %2463 = vmatmul.mubr.f32.gmra.mrb[0].mxu0 %v2273
  %v2464 = vpop.f32.mrb[0].mxu0
  %v2465 = vadd.f32 0.0, %v2464
  %v2466 = vpop.f32.mrb[0].mxu0
  %2467 = vmatprep.mubr.f32.mxu0 0.0
  %2468 = vmatmul.mubr.f32.gmra.mrb[0].mxu0 %v2274
  %v2469 = vpop.f32.mrb[0].mxu0
  %v2470 = vadd.f32 0.0, %v2469
  %v2471 = vpop.f32.mrb[0].mxu0
  %2472 = vmatprep.mubr.f32.mxu0 0.0
  %2473 = vmatmul.mubr.f32.gmra.mrb[0].mxu0 %v2275
  %v2474 = vpop.f32.mrb[0].mxu0
  %v2475 = vadd.f32 0.0, %v2474
  %v2476 = vpop.f32.mrb[0].mxu0
  %2477 = vmatprep.mubr.f32.mxu0 0.0
  %2478 = vmatmul.mubr.f32.gmra.mrb[0].mxu0 %v2276
  %v2479 = vpop.f32.mrb[0].mxu0
  %v2480 = vadd.f32 0.0, %v2479
  %v2481 = vpop.f32.mrb[0].mxu0
  %2482 = vmatprep.mubr.f32.mxu0 0.0
  %2483 = vmatmul.mubr.f32.gmra.mrb[0].mxu0 %v2277
  %v2484 = vpop.f32.mrb[0].mxu0
  %v2485 = vadd.f32 0.0, %v2484
  %v2486 = vpop.f32.mrb[0].mxu0
  %2487 = vmatprep.mubr.f32.mxu0 0.0
  %2488 = vmatmul.mubr.f32.gmra.mrb[0].mxu0 %v2278
  %v2489 = vpop.f32.mrb[0].mxu0
  %v2490 = vadd.f32 0.0, %v2489
  %v2491 = vpop.f32.mrb[0].mxu0
  %2492 = vmatprep.mubr.f32.mxu0 0.0
  %2493 = vmatmul.mubr.f32.gmra.mrb[0].mxu0 %v2279
  %v2494 = vpop.f32.mrb[0].mxu0
  %v2495 = vadd.f32 0.0, %v2494
  %v2496 = vpop.f32.mrb[0].mxu0
  %2497 = vmatprep.mubr.f32.mxu0 0.0
  %2498 = vmatmul.mubr.f32.gmra.mrb[0].mxu0 %v2280
  %v2499 = vpop.f32.mrb[0].mxu0
  %v2500 = vadd.f32 0.0, %v2499
  %v2501 = vpop.f32.mrb[0].mxu0
  %2502 = vmatprep.mubr.f32.mxu0 0.0
  %2503 = vmatmul.mubr.f32.gmra.mrb[0].mxu0 %v2281
  %v2504 = vpop.f32.mrb[0].mxu0
  %v2505 = vadd.f32 0.0, %v2504
  %v2506 = vpop.f32.mrb[0].mxu0
  %2507 = vmatprep.mubr.f32.mxu0 0.0
  %2508 = vmatmul.mubr.f32.gmra.mrb[0].mxu0 %v2282
  %v2509 = vpop.f32.mrb[0].mxu0
  %v2510 = vadd.f32 0.0, %v2509
  %v2511 = vpop.f32.mrb[0].mxu0
  %2512 = vmatprep.mubr.f32.mxu0 0.0
  %2513 = vmatmul.mubr.f32.gmra.mrb[0].mxu0 %v2283
  %v2514 = vpop.f32.mrb[0].mxu0
  %v2515 = vadd.f32 0.0, %v2514
  %v2516 = vpop.f32.mrb[0].mxu0
  %2517 = vmatprep.mubr.f32.mxu0 0.0
  %2518 = vmatmul.mubr.f32.gmra.mrb[0].mxu0 %v2284
  %v2519 = vpop.f32.mrb[0].mxu0
  %v2520 = vadd.f32 0.0, %v2519
  %v2521 = vpop.f32.mrb[0].mxu0
  %2522 = vmatprep.mubr.f32.mxu0 0.0
  %2523 = vmatmul.mubr.f32.gmra.mrb[0].mxu0 %v2285
  %v2524 = vpop.f32.mrb[0].mxu0
  %v2525 = vadd.f32 0.0, %v2524
  %v2526 = vpop.f32.mrb[0].mxu0
  %2527 = vmatprep.mubr.f32.mxu0 0.0
  %2528 = vmatmul.mubr.f32.gmra.mrb[0].mxu0 %v2286
  %v2529 = vpop.f32.mrb[0].mxu0
  %v2530 = vadd.f32 0.0, %v2529
  %v2531 = vpop.f32.mrb[0].mxu0
  %2532 = vmatprep.mubr.f32.mxu0 0.0
  %2533 = vmatmul.mubr.f32.gmra.mrb[0].mxu0 %v2287
  %v2534 = vpop.f32.mrb[0].mxu0
  %v2535 = vadd.f32 0.0, %v2534
  %v2536 = vpop.f32.mrb[0].mxu0
  %2537 = vmatprep.mubr.f32.mxu0 0.0
  %2538 = vmatmul.mubr.f32.gmra.mrb[0].mxu0 %v2288
  %v2539 = vpop.f32.mrb[0].mxu0
  %v2540 = vadd.f32 0.0, %v2539
  %v2541 = vpop.f32.mrb[0].mxu0
  %2542 = vmatprep.mubr.f32.mxu0 0.0
  %2543 = vmatmul.mubr.f32.gmra.mrb[0].mxu0 %v2289
  %v2544 = vpop.f32.mrb[0].mxu0
  %v2545 = vadd.f32 0.0, %v2544
  %v2546 = vpop.f32.mrb[0].mxu0
  %2547 = vmatprep.mubr.f32.mxu0 0.0
  %2548 = vmatmul.mubr.f32.gmra.mrb[0].mxu0 %v2290
  %v2549 = vpop.f32.mrb[0].mxu0
  %v2550 = vadd.f32 0.0, %v2549
  %v2551 = vpop.f32.mrb[0].mxu0
  %2552 = vmatprep.mubr.f32.mxu0 0.0
  %2553 = vmatmul.mubr.f32.gmra.mrb[0].mxu0 %v2291
  %v2554 = vpop.f32.mrb[0].mxu0
  %v2555 = vadd.f32 0.0, %v2554
  %v2556 = vpop.f32.mrb[0].mxu0
  %2557 = vmatprep.mubr.f32.mxu0 0.0
  %2558 = vmatmul.mubr.f32.gmra.mrb[0].mxu0 %v2292
  %v2559 = vpop.f32.mrb[0].mxu0
  %v2560 = vadd.f32 0.0, %v2559
  %v2561 = vpop.f32.mrb[0].mxu0
  %2562 = vmatprep.mubr.f32.mxu0 0.0
  %2563 = vmatmul.mubr.f32.gmra.mrb[0].mxu0 %v2293
  %v2564 = vpop.f32.mrb[0].mxu0
  %v2565 = vadd.f32 0.0, %v2564
  %v2566 = vpop.f32.mrb[0].mxu0
  %2567 = vmatprep.mubr.f32.mxu0 0.0
  %2568 = vmatmul.mubr.f32.gmra.mrb[0].mxu0 %v2294
  %v2569 = vpop.f32.mrb[0].mxu0
  %v2570 = vadd.f32 0.0, %v2569
  %v2571 = vpop.f32.mrb[0].mxu0
  %2572 = vmatprep.mubr.f32.mxu0 0.0
  %2573 = vmatmul.mubr.f32.gmra.mrb[0].mxu0 %v2295
  %v2574 = vpop.f32.mrb[0].mxu0
  %v2575 = vadd.f32 0.0, %v2574
  %v2576 = vpop.f32.mrb[0].mxu0
  %2577 = vmatprep.mubr.f32.mxu0 0.0
  %2578 = vmatmul.mubr.f32.gmra.mrb[0].mxu0 %v2296
  %v2579 = vpop.f32.mrb[0].mxu0
  %v2580 = vadd.f32 0.0, %v2579
  %v2581 = vpop.f32.mrb[0].mxu0
  %2582 = vmatprep.mubr.f32.mxu0 0.0
  %2583 = vmatmul.mubr.f32.gmra.mrb[0].mxu0 %v2297
  %v2584 = vpop.f32.mrb[0].mxu0
  %v2585 = vadd.f32 0.0, %v2584
  %v2586 = vpop.f32.mrb[0].mxu0
  %2587 = vmatprep.mubr.f32.mxu0 0.0
  %2588 = vmatmul.mubr.f32.gmra.mrb[0].mxu0 %v2298
  %v2589 = vpop.f32.mrb[0].mxu0
  %v2590 = vadd.f32 0.0, %v2589
  %v2591 = vpop.f32.mrb[0].mxu0
  %2592 = vmatprep.mubr.f32.mxu0 0.0
  %2593 = vmatmul.mubr.f32.gmra.mrb[0].mxu0 %v2299
  %v2594 = vpop.f32.mrb[0].mxu0
  %v2595 = vadd.f32 0.0, %v2594
  %v2596 = vpop.f32.mrb[0].mxu0
  %2597 = vmatprep.mubr.f32.mxu0 0.0
  %2598 = vmatmul.mubr.f32.gmra.mrb[0].mxu0 %v2300
  %v2599 = vpop.f32.mrb[0].mxu0
  %v2600 = vadd.f32 0.0, %v2599
  %v2601 = vpop.f32.mrb[0].mxu0
  %2602 = vmatprep.mubr.f32.mxu0 0.0
  %2603 = vmatmul.mubr.f32.gmra.mrb[0].mxu0 %v2301
  %v2604 = vpop.f32.mrb[0].mxu0
  %v2605 = vadd.f32 0.0, %v2604
  %v2606 = vpop.f32.mrb[0].mxu0
  %2607 = vmatprep.mubr.f32.mxu0 0.0
  %2608 = vmatmul.mubr.f32.gmra.mrb[0].mxu0 %v2302
  %v2609 = vpop.f32.mrb[0].mxu0
  %v2610 = vadd.f32 0.0, %v2609
  %v2611 = vpop.f32.mrb[0].mxu0
  %2612 = vmatprep.mubr.f32.mxu0 0.0
  %2613 = vmatmul.mubr.f32.gmra.mrb[0].mxu0 %v2303
  %v2614 = vpop.f32.mrb[0].mxu0
  %v2615 = vadd.f32 0.0, %v2614
  %v2616 = vpop.f32.mrb[0].mxu0
  %2617 = vmatprep.mubr.f32.mxu0 0.0
  %2618 = vmatmul.mubr.f32.gmra.mrb[0].mxu0 %v2304
  %v2619 = vpop.f32.mrb[0].mxu0
  %v2620 = vadd.f32 0.0, %v2619
  %v2621 = vpop.f32.mrb[0].mxu0
  %2622 = vmatprep.mubr.f32.mxu0 0.0
  %2623 = vmatmul.mubr.f32.gmra.mrb[0].mxu0 %v2305
  %v2624 = vpop.f32.mrb[0].mxu0
  %v2625 = vadd.f32 0.0, %v2624
  %v2626 = vpop.f32.mrb[0].mxu0
  %2627 = vmatprep.mubr.f32.mxu0 0.0
  %2628 = vmatmul.mubr.f32.gmra.mrb[0].mxu0 %v2306
  %v2629 = vpop.f32.mrb[0].mxu0
  %v2630 = vadd.f32 0.0, %v2629
  %v2631 = vpop.f32.mrb[0].mxu0
  %2632 = vmatprep.mubr.f32.mxu0 0.0
  %2633 = vmatmul.mubr.f32.gmra.mrb[0].mxu0 %v2307
  %v2634 = vpop.f32.mrb[0].mxu0
  %v2635 = vadd.f32 0.0, %v2634
  %v2636 = vpop.f32.mrb[0].mxu0
  %2637 = vmatprep.mubr.f32.mxu0 0.0
  %2638 = vmatmul.mubr.f32.gmra.mrb[0].mxu0 %v2308
  %v2639 = vpop.f32.mrb[0].mxu0
  %v2640 = vadd.f32 0.0, %v2639
  %v2641 = vpop.f32.mrb[0].mxu0
  %2642 = vmatprep.mubr.f32.mxu0 0.0
  %2643 = vmatmul.mubr.f32.gmra.mrb[0].mxu0 %v2309
  %v2644 = vpop.f32.mrb[0].mxu0
  %v2645 = vadd.f32 0.0, %v2644
  %v2646 = vpop.f32.mrb[0].mxu0
  %2647 = vmatprep.mubr.f32.mxu0 0.0
  %2648 = vmatmul.mubr.f32.gmra.mrb[0].mxu0 %v2310
  %v2649 = vpop.f32.mrb[0].mxu0
  %v2650 = vadd.f32 0.0, %v2649
  %v2651 = vpop.f32.mrb[0].mxu0
  %2652 = vmatprep.mubr.f32.mxu0 0.0
  %2653 = vmatmul.mubr.f32.gmra.mrb[0].mxu0 %v2311
  %v2654 = vpop.f32.mrb[0].mxu0
  %v2655 = vadd.f32 0.0, %v2654
  %v2656 = vpop.f32.mrb[0].mxu0
  %2657 = vmatprep.mubr.f32.mxu0 0.0
  %2658 = vmatmul.mubr.f32.gmra.mrb[0].mxu0 %v2312
  %v2659 = vpop.f32.mrb[0].mxu0
  %v2660 = vadd.f32 0.0, %v2659
  %v2661 = vpop.f32.mrb[0].mxu0
  %2662 = vmatprep.mubr.f32.mxu0 0.0
  %2663 = vmatmul.mubr.f32.gmra.mrb[0].mxu0 %v2313
  %v2664 = vpop.f32.mrb[0].mxu0
  %v2665 = vadd.f32 0.0, %v2664
  %v2666 = vpop.f32.mrb[0].mxu0
  %2667 = vmatprep.mubr.f32.mxu0 0.0
  %2668 = vmatmul.mubr.f32.gmra.mrb[0].mxu0 %v2314
  %v2669 = vpop.f32.mrb[0].mxu0
  %v2670 = vadd.f32 0.0, %v2669
  %v2671 = vpop.f32.mrb[0].mxu0
  %2672 = vmatprep.mubr.f32.mxu0 0.0
  %2673 = vmatmul.mubr.f32.gmra.mrb[0].mxu0 %v2315
  %v2674 = vpop.f32.mrb[0].mxu0
  %v2675 = vadd.f32 0.0, %v2674
  %v2676 = vpop.f32.mrb[0].mxu0
  %2677 = vmatprep.mubr.f32.mxu0 0.0
  %2678 = vmatmul.mubr.f32.gmra.mrb[0].mxu0 %v2316
  %v2679 = vpop.f32.mrb[0].mxu0
  %v2680 = vadd.f32 0.0, %v2679
  %v2681 = vpop.f32.mrb[0].mxu0
  %2682 = vmatprep.mubr.f32.mxu0 0.0
  %2683 = vmatmul.mubr.f32.gmra.mrb[0].mxu0 %v2317
  %v2684 = vpop.f32.mrb[0].mxu0
  %v2685 = vadd.f32 0.0, %v2684
  %v2686 = vpop.f32.mrb[0].mxu0
  %2687 = vmatprep.mubr.f32.mxu0 0.0
  %2688 = vmatmul.mubr.f32.gmra.mrb[0].mxu0 %v2318
  %v2689 = vpop.f32.mrb[0].mxu0
  %v2690 = vadd.f32 0.0, %v2689
  %v2691 = vpop.f32.mrb[0].mxu0
  %2692 = vmatprep.mubr.f32.mxu0 0.0
  %2693 = vmatmul.mubr.f32.gmra.mrb[0].mxu0 %v2319
  %v2694 = vpop.f32.mrb[0].mxu0
  %v2695 = vadd.f32 0.0, %v2694
  %v2696 = vpop.f32.mrb[0].mxu0
  %2697 = vmatprep.mubr.f32.mxu0 0.0
  %2698 = vmatmul.mubr.f32.gmra.mrb[0].mxu0 %v2320
  %v2699 = vpop.f32.mrb[0].mxu0
  %v2700 = vadd.f32 0.0, %v2699
  %v2701 = vpop.f32.mrb[0].mxu0
  %2702 = vmatprep.mubr.f32.mxu0 0.0
  %2703 = vmatmul.mubr.f32.gmra.mrb[0].mxu0 %v2321
  %v2704 = vpop.f32.mrb[0].mxu0
  %v2705 = vadd.f32 0.0, %v2704
  %v2706 = vpop.f32.mrb[0].mxu0
  %2707 = vmatprep.mubr.f32.mxu0 0.0
  %2708 = vmatmul.mubr.f32.gmra.mrb[0].mxu0 %v2322
  %v2709 = vpop.f32.mrb[0].mxu0
  %v2710 = vadd.f32 0.0, %v2709
  %v2711 = vpop.f32.mrb[0].mxu0
  %2712 = vmatprep.mubr.f32.mxu0 0.0
  %2713 = vmatmul.mubr.f32.gmra.mrb[0].mxu0 %v2323
  %v2714 = vpop.f32.mrb[0].mxu0
  %v2715 = vadd.f32 0.0, %v2714
  %v2716 = vpop.f32.mrb[0].mxu0
  %2717 = vmatprep.mubr.f32.mxu0 0.0
  %2718 = vmatmul.mubr.f32.gmra.mrb[0].mxu0 %v2324
  %v2719 = vpop.f32.mrb[0].mxu0
  %v2720 = vadd.f32 0.0, %v2719
  %v2721 = vpop.f32.mrb[0].mxu0
  %2722 = vmatprep.mubr.f32.mxu0 0.0
  %2723 = vmatmul.mubr.f32.gmra.mrb[0].mxu0 %v2325
  %v2724 = vpop.f32.mrb[0].mxu0
  %v2725 = vadd.f32 0.0, %v2724
  %v2726 = vpop.f32.mrb[0].mxu0
  %2727 = vdwg.mxu0
  %v2728 = vadd.f32 %v2198, %v2410
  %v2729 = vadd.f32 %v2199, %v2415
  %v2730 = vadd.f32 %v2200, %v2420
  %v2731 = vadd.f32 %v2201, %v2425
  %v2732 = vadd.f32 %v2202, %v2430
  %v2733 = vadd.f32 %v2203, %v2435
  %v2734 = vadd.f32 %v2204, %v2440
  %v2735 = vadd.f32 %v2205, %v2445
  %v2736 = vadd.f32 %v2206, %v2450
  %v2737 = vadd.f32 %v2207, %v2455
  %v2738 = vadd.f32 %v2208, %v2460
  %v2739 = vadd.f32 %v2209, %v2465
  %v2740 = vadd.f32 %v2210, %v2470
  %v2741 = vadd.f32 %v2211, %v2475
  %v2742 = vadd.f32 %v2212, %v2480
  %v2743 = vadd.f32 %v2213, %v2485
  %v2744 = vadd.f32 %v2214, %v2490
  %v2745 = vadd.f32 %v2215, %v2495
  %v2746 = vadd.f32 %v2216, %v2500
  %v2747 = vadd.f32 %v2217, %v2505
  %v2748 = vadd.f32 %v2218, %v2510
  %v2749 = vadd.f32 %v2219, %v2515
  %v2750 = vadd.f32 %v2220, %v2520
  %v2751 = vadd.f32 %v2221, %v2525
  %v2752 = vadd.f32 %v2222, %v2530
  %v2753 = vadd.f32 %v2223, %v2535
  %v2754 = vadd.f32 %v2224, %v2540
  %v2755 = vadd.f32 %v2225, %v2545
  %v2756 = vadd.f32 %v2226, %v2550
  %v2757 = vadd.f32 %v2227, %v2555
  %v2758 = vadd.f32 %v2228, %v2560
  %v2759 = vadd.f32 %v2229, %v2565
  %v2760 = vadd.f32 %v2230, %v2570
  %v2761 = vadd.f32 %v2231, %v2575
  %v2762 = vadd.f32 %v2232, %v2580
  %v2763 = vadd.f32 %v2233, %v2585
  %v2764 = vadd.f32 %v2234, %v2590
  %v2765 = vadd.f32 %v2235, %v2595
  %v2766 = vadd.f32 %v2236, %v2600
  %v2767 = vadd.f32 %v2237, %v2605
  %v2768 = vadd.f32 %v2238, %v2610
  %v2769 = vadd.f32 %v2239, %v2615
  %v2770 = vadd.f32 %v2240, %v2620
  %v2771 = vadd.f32 %v2241, %v2625
  %v2772 = vadd.f32 %v2242, %v2630
  %v2773 = vadd.f32 %v2243, %v2635
  %v2774 = vadd.f32 %v2244, %v2640
  %v2775 = vadd.f32 %v2245, %v2645
  %v2776 = vadd.f32 %v2246, %v2650
  %v2777 = vadd.f32 %v2247, %v2655
  %v2778 = vadd.f32 %v2248, %v2660
  %v2779 = vadd.f32 %v2249, %v2665
  %v2780 = vadd.f32 %v2250, %v2670
  %v2781 = vadd.f32 %v2251, %v2675
  %v2782 = vadd.f32 %v2252, %v2680
  %v2783 = vadd.f32 %v2253, %v2685
  %v2784 = vadd.f32 %v2254, %v2690
  %v2785 = vadd.f32 %v2255, %v2695
  %v2786 = vadd.f32 %v2256, %v2700
  %v2787 = vadd.f32 %v2257, %v2705
  %v2788 = vadd.f32 %v2258, %v2710
  %v2789 = vadd.f32 %v2259, %v2715
  %v2790 = vadd.f32 %v2260, %v2720
  %v2791 = vadd.f32 %v2261, %v2725
  %v2792 = vld [vmem:[%s204 + $0x2] sm:$0xff]
  %v2793 = vld [vmem:[%s204 + $0xa] sm:$0xff]
  %v2794 = vld [vmem:[%s204 + $0x1a] sm:$0xff]
  %v2795 = vld [vmem:[%s204 + $0x22] sm:$0xff]
  %v2796 = vld [vmem:[%s204 + $0x32] sm:$0xff]
  %v2797 = vld [vmem:[%s204 + $0x3a] sm:$0xff]
  %v2798 = vld [vmem:[%s204 + $0x4a] sm:$0xff]
  %v2799 = vld [vmem:[%s204 + $0x52] sm:$0xff]
  %v2800 = vld [vmem:[%s204 + $0x62] sm:$0xff]
  %v2801 = vld [vmem:[%s204 + $0x6a] sm:$0xff]
  %v2802 = vld [vmem:[%s204 + $0x7a] sm:$0xff]
  %v2803 = vld [vmem:[%s204 + $0x82] sm:$0xff]
  %v2804 = vld [vmem:[%s204 + $0x92] sm:$0xff]
  %v2805 = vld [vmem:[%s204 + $0x9a] sm:$0xff]
  %v2806 = vld [vmem:[%s204 + $0xaa] sm:$0xff]
  %v2807 = vld [vmem:[%s204 + $0xb2] sm:$0xff]
  %v2808 = vld [vmem:[%s204 + $0xc2] sm:$0xff]
  %v2809 = vld [vmem:[%s204 + $0xca] sm:$0xff]
  %v2810 = vld [vmem:[%s204 + $0xda] sm:$0xff]
  %v2811 = vld [vmem:[%s204 + $0xe2] sm:$0xff]
  %v2812 = vld [vmem:[%s204 + $0xf2] sm:$0xff]
  %v2813 = vld [vmem:[%s204 + $0xfa] sm:$0xff]
  %v2814 = vld [vmem:[%s204 + $0x10a] sm:$0xff]
  %v2815 = vld [vmem:[%s204 + $0x112] sm:$0xff]
  %v2816 = vld [vmem:[%s204 + $0x122] sm:$0xff]
  %v2817 = vld [vmem:[%s204 + $0x12a] sm:$0xff]
  %v2818 = vld [vmem:[%s204 + $0x13a] sm:$0xff]
  %v2819 = vld [vmem:[%s204 + $0x142] sm:$0xff]
  %v2820 = vld [vmem:[%s204 + $0x152] sm:$0xff]
  %v2821 = vld [vmem:[%s204 + $0x15a] sm:$0xff]
  %v2822 = vld [vmem:[%s204 + $0x16a] sm:$0xff]
  %v2823 = vld [vmem:[%s204 + $0x172] sm:$0xff]
  %v2824 = vld [vmem:[%s204 + $0x1b2] sm:$0xff]
  %v2825 = vld [vmem:[%s204 + $0x1ba] sm:$0xff]
  %v2826 = vld [vmem:[%s204 + $0x1ca] sm:$0xff]
  %v2827 = vld [vmem:[%s204 + $0x1d2] sm:$0xff]
  %v2828 = vld [vmem:[%s204 + $0x1e2] sm:$0xff]
  %v2829 = vld [vmem:[%s204 + $0x1ea] sm:$0xff]
  %v2830 = vld [vmem:[%s204 + $0x1fa] sm:$0xff]
  %v2831 = vld [vmem:[%s204 + $0x202] sm:$0xff]
  %v2832 = vld [vmem:[%s204 + $0x212] sm:$0xff]
  %v2833 = vld [vmem:[%s204 + $0x21a] sm:$0xff]
  %v2834 = vld [vmem:[%s204 + $0x22a] sm:$0xff]
  %v2835 = vld [vmem:[%s204 + $0x232] sm:$0xff]
  %v2836 = vld [vmem:[%s204 + $0x242] sm:$0xff]
  %v2837 = vld [vmem:[%s204 + $0x24a] sm:$0xff]
  %v2838 = vld [vmem:[%s204 + $0x25a] sm:$0xff]
  %v2839 = vld [vmem:[%s204 + $0x262] sm:$0xff]
  %v2840 = vld [vmem:[%s204 + $0x272] sm:$0xff]
  %v2841 = vld [vmem:[%s204 + $0x27a] sm:$0xff]
  %v2842 = vld [vmem:[%s204 + $0x28a] sm:$0xff]
  %v2843 = vld [vmem:[%s204 + $0x292] sm:$0xff]
  %v2844 = vld [vmem:[%s204 + $0x2a2] sm:$0xff]
  %v2845 = vld [vmem:[%s204 + $0x2aa] sm:$0xff]
  %v2846 = vld [vmem:[%s204 + $0x2ba] sm:$0xff]
  %v2847 = vld [vmem:[%s204 + $0x2c2] sm:$0xff]
  %v2848 = vld [vmem:[%s204 + $0x2d2] sm:$0xff]
  %v2849 = vld [vmem:[%s204 + $0x2da] sm:$0xff]
  %v2850 = vld [vmem:[%s204 + $0x2ea] sm:$0xff]
  %v2851 = vld [vmem:[%s204 + $0x2f2] sm:$0xff]
  %v2852 = vld [vmem:[%s204 + $0x302] sm:$0xff]
  %v2853 = vld [vmem:[%s204 + $0x30a] sm:$0xff]
  %v2854 = vld [vmem:[%s204 + $0x31a] sm:$0xff]
  %v2855 = vld [vmem:[%s204 + $0x322] sm:$0xff]
  %s2856 = scalar_lea.vmem %s1, 640
  %v2857 = vld [vmem:[%s2856] sm:$0xff]
  %v2858 = vld [vmem:[%s2856 + $0x8] sm:$0xff]
  %v2859 = vld [vmem:[%s2856 + $0x10] sm:$0xff]
  %v2860 = vld [vmem:[%s2856 + $0x18] sm:$0xff]
  %v2861 = vld [vmem:[%s2856 + $0x20] sm:$0xff]
  %v2862 = vld [vmem:[%s2856 + $0x28] sm:$0xff]
  %v2863 = vld [vmem:[%s2856 + $0x30] sm:$0xff]
  %v2864 = vld [vmem:[%s2856 + $0x38] sm:$0xff]
  %v2865 = vld [vmem:[%s2856 + $0x40] sm:$0xff]
  %v2866 = vld [vmem:[%s2856 + $0x48] sm:$0xff]
  %v2867 = vld [vmem:[%s2856 + $0x50] sm:$0xff]
  %v2868 = vld [vmem:[%s2856 + $0x58] sm:$0xff]
  %v2869 = vld [vmem:[%s2856 + $0x60] sm:$0xff]
  %v2870 = vld [vmem:[%s2856 + $0x68] sm:$0xff]
  %v2871 = vld [vmem:[%s2856 + $0x70] sm:$0xff]
  %v2872 = vld [vmem:[%s2856 + $0x78] sm:$0xff]
  %2873 = vmatprep.subr.mxu0 0.0
  %2874 = vmatpush1.msra.mxu0 %v2857
  %2875 = vmatprep.subr.mxu0 0.0
  %2876 = vmatpush1.msra.mxu0 %v2858
  %2877 = vmatprep.subr.mxu0 0.0
  %2878 = vmatpush1.msra.mxu0 %v2859
  %2879 = vmatprep.subr.mxu0 0.0
  %2880 = vmatpush1.msra.mxu0 %v2860
  %2881 = vmatprep.subr.mxu0 0.0
  %2882 = vmatpush1.msra.mxu0 %v2861
  %2883 = vmatprep.subr.mxu0 0.0
  %2884 = vmatpush1.msra.mxu0 %v2862
  %2885 = vmatprep.subr.mxu0 0.0
  %2886 = vmatpush1.msra.mxu0 %v2863
  %2887 = vmatprep.subr.mxu0 0.0
  %2888 = vmatpush1.msra.mxu0 %v2864
  %2889 = vmatprep.subr.mxu0 0.0
  %2890 = vmatpush1.msra.mxu0 %v2865
  %2891 = vmatprep.subr.mxu0 0.0
  %2892 = vmatpush1.msra.mxu0 %v2866
  %2893 = vmatprep.subr.mxu0 0.0
  %2894 = vmatpush1.msra.mxu0 %v2867
  %2895 = vmatprep.subr.mxu0 0.0
  %2896 = vmatpush1.msra.mxu0 %v2868
  %2897 = vmatprep.subr.mxu0 0.0
  %2898 = vmatpush1.msra.mxu0 %v2869
  %2899 = vmatprep.subr.mxu0 0.0
  %2900 = vmatpush1.msra.mxu0 %v2870
  %2901 = vmatprep.subr.mxu0 0.0
  %2902 = vmatpush1.msra.mxu0 %v2871
  %2903 = vmatprep.subr.mxu0 0.0
  %2904 = vmatpush1.msra.mxu0 %v2872
  %2905 = vmatprep.subr.mxu0 0.0
  %2906 = vmatpush1.msra.mxu0 0.0
  %2907 = vmatprep.subr.mxu0 0.0
  %2908 = vmatpush1.msra.mxu0 0.0
  %2909 = vmatprep.subr.mxu0 0.0
  %2910 = vmatpush1.msra.mxu0 0.0
  %2911 = vmatprep.subr.mxu0 0.0
  %2912 = vmatpush1.msra.mxu0 0.0
  %2913 = vmatprep.subr.mxu0 0.0
  %2914 = vmatpush1.msra.mxu0 0.0
  %2915 = vmatprep.subr.mxu0 0.0
  %2916 = vmatpush1.msra.mxu0 0.0
  %2917 = vmatprep.subr.mxu0 0.0
  %2918 = vmatpush1.msra.mxu0 0.0
  %2919 = vmatprep.subr.mxu0 0.0
  %2920 = vmatpush1.msra.mxu0 0.0
  %2921 = vmatprep.subr.mxu0 0.0
  %2922 = vmatpush1.msra.mxu0 0.0
  %2923 = vmatprep.subr.mxu0 0.0
  %2924 = vmatpush1.msra.mxu0 0.0
  %2925 = vmatprep.subr.mxu0 0.0
  %2926 = vmatpush1.msra.mxu0 0.0
  %2927 = vmatprep.subr.mxu0 0.0
  %2928 = vmatpush1.msra.mxu0 0.0
  %2929 = vmatprep.subr.mxu0 0.0
  %2930 = vmatpush1.msra.mxu0 0.0
  %2931 = vmatprep.subr.mxu0 0.0
  %2932 = vmatpush1.msra.mxu0 0.0
  %2933 = vmatprep.subr.mxu0 0.0
  %2934 = vmatpush1.msra.mxu0 0.0
  %2935 = vmatprep.subr.mxu0 0.0
  %2936 = vmatpush1.msra.mxu0 0.0
  %2937 = vmatprep.mubr.f32.mxu0 0.0
  %2938 = vmatmul.mubr.f32.gmra.mrb[0].mxu0 %v2792
  %v2939 = vpop.f32.mrb[0].mxu0
  %v2940 = vadd.f32 0.0, %v2939
  %v2941 = vpop.f32.mrb[0].mxu0
  %2942 = vmatprep.mubr.f32.mxu0 0.0
  %2943 = vmatmul.mubr.f32.gmra.mrb[0].mxu0 %v2793
  %v2944 = vpop.f32.mrb[0].mxu0
  %v2945 = vadd.f32 0.0, %v2944
  %v2946 = vpop.f32.mrb[0].mxu0
  %2947 = vmatprep.mubr.f32.mxu0 0.0
  %2948 = vmatmul.mubr.f32.gmra.mrb[0].mxu0 %v2794
  %v2949 = vpop.f32.mrb[0].mxu0
  %v2950 = vadd.f32 0.0, %v2949
  %v2951 = vpop.f32.mrb[0].mxu0
  %2952 = vmatprep.mubr.f32.mxu0 0.0
  %2953 = vmatmul.mubr.f32.gmra.mrb[0].mxu0 %v2795
  %v2954 = vpop.f32.mrb[0].mxu0
  %v2955 = vadd.f32 0.0, %v2954
  %v2956 = vpop.f32.mrb[0].mxu0
  %2957 = vmatprep.mubr.f32.mxu0 0.0
  %2958 = vmatmul.mubr.f32.gmra.mrb[0].mxu0 %v2796
  %v2959 = vpop.f32.mrb[0].mxu0
  %v2960 = vadd.f32 0.0, %v2959
  %v2961 = vpop.f32.mrb[0].mxu0
  %2962 = vmatprep.mubr.f32.mxu0 0.0
  %2963 = vmatmul.mubr.f32.gmra.mrb[0].mxu0 %v2797
  %v2964 = vpop.f32.mrb[0].mxu0
  %v2965 = vadd.f32 0.0, %v2964
  %v2966 = vpop.f32.mrb[0].mxu0
  %2967 = vmatprep.mubr.f32.mxu0 0.0
  %2968 = vmatmul.mubr.f32.gmra.mrb[0].mxu0 %v2798
  %v2969 = vpop.f32.mrb[0].mxu0
  %v2970 = vadd.f32 0.0, %v2969
  %v2971 = vpop.f32.mrb[0].mxu0
  %2972 = vmatprep.mubr.f32.mxu0 0.0
  %2973 = vmatmul.mubr.f32.gmra.mrb[0].mxu0 %v2799
  %v2974 = vpop.f32.mrb[0].mxu0
  %v2975 = vadd.f32 0.0, %v2974
  %v2976 = vpop.f32.mrb[0].mxu0
  %2977 = vmatprep.mubr.f32.mxu0 0.0
  %2978 = vmatmul.mubr.f32.gmra.mrb[0].mxu0 %v2800
  %v2979 = vpop.f32.mrb[0].mxu0
  %v2980 = vadd.f32 0.0, %v2979
  %v2981 = vpop.f32.mrb[0].mxu0
  %2982 = vmatprep.mubr.f32.mxu0 0.0
  %2983 = vmatmul.mubr.f32.gmra.mrb[0].mxu0 %v2801
  %v2984 = vpop.f32.mrb[0].mxu0
  %v2985 = vadd.f32 0.0, %v2984
  %v2986 = vpop.f32.mrb[0].mxu0
  %2987 = vmatprep.mubr.f32.mxu0 0.0
  %2988 = vmatmul.mubr.f32.gmra.mrb[0].mxu0 %v2802
  %v2989 = vpop.f32.mrb[0].mxu0
  %v2990 = vadd.f32 0.0, %v2989
  %v2991 = vpop.f32.mrb[0].mxu0
  %2992 = vmatprep.mubr.f32.mxu0 0.0
  %2993 = vmatmul.mubr.f32.gmra.mrb[0].mxu0 %v2803
  %v2994 = vpop.f32.mrb[0].mxu0
  %v2995 = vadd.f32 0.0, %v2994
  %v2996 = vpop.f32.mrb[0].mxu0
  %2997 = vmatprep.mubr.f32.mxu0 0.0
  %2998 = vmatmul.mubr.f32.gmra.mrb[0].mxu0 %v2804
  %v2999 = vpop.f32.mrb[0].mxu0
  %v3000 = vadd.f32 0.0, %v2999
  %v3001 = vpop.f32.mrb[0].mxu0
  %3002 = vmatprep.mubr.f32.mxu0 0.0
  %3003 = vmatmul.mubr.f32.gmra.mrb[0].mxu0 %v2805
  %v3004 = vpop.f32.mrb[0].mxu0
  %v3005 = vadd.f32 0.0, %v3004
  %v3006 = vpop.f32.mrb[0].mxu0
  %3007 = vmatprep.mubr.f32.mxu0 0.0
  %3008 = vmatmul.mubr.f32.gmra.mrb[0].mxu0 %v2806
  %v3009 = vpop.f32.mrb[0].mxu0
  %v3010 = vadd.f32 0.0, %v3009
  %v3011 = vpop.f32.mrb[0].mxu0
  %3012 = vmatprep.mubr.f32.mxu0 0.0
  %3013 = vmatmul.mubr.f32.gmra.mrb[0].mxu0 %v2807
  %v3014 = vpop.f32.mrb[0].mxu0
  %v3015 = vadd.f32 0.0, %v3014
  %v3016 = vpop.f32.mrb[0].mxu0
  %3017 = vmatprep.mubr.f32.mxu0 0.0
  %3018 = vmatmul.mubr.f32.gmra.mrb[0].mxu0 %v2808
  %v3019 = vpop.f32.mrb[0].mxu0
  %v3020 = vadd.f32 0.0, %v3019
  %v3021 = vpop.f32.mrb[0].mxu0
  %3022 = vmatprep.mubr.f32.mxu0 0.0
  %3023 = vmatmul.mubr.f32.gmra.mrb[0].mxu0 %v2809
  %v3024 = vpop.f32.mrb[0].mxu0
  %v3025 = vadd.f32 0.0, %v3024
  %v3026 = vpop.f32.mrb[0].mxu0
  %3027 = vmatprep.mubr.f32.mxu0 0.0
  %3028 = vmatmul.mubr.f32.gmra.mrb[0].mxu0 %v2810
  %v3029 = vpop.f32.mrb[0].mxu0
  %v3030 = vadd.f32 0.0, %v3029
  %v3031 = vpop.f32.mrb[0].mxu0
  %3032 = vmatprep.mubr.f32.mxu0 0.0
  %3033 = vmatmul.mubr.f32.gmra.mrb[0].mxu0 %v2811
  %v3034 = vpop.f32.mrb[0].mxu0
  %v3035 = vadd.f32 0.0, %v3034
  %v3036 = vpop.f32.mrb[0].mxu0
  %3037 = vmatprep.mubr.f32.mxu0 0.0
  %3038 = vmatmul.mubr.f32.gmra.mrb[0].mxu0 %v2812
  %v3039 = vpop.f32.mrb[0].mxu0
  %v3040 = vadd.f32 0.0, %v3039
  %v3041 = vpop.f32.mrb[0].mxu0
  %3042 = vmatprep.mubr.f32.mxu0 0.0
  %3043 = vmatmul.mubr.f32.gmra.mrb[0].mxu0 %v2813
  %v3044 = vpop.f32.mrb[0].mxu0
  %v3045 = vadd.f32 0.0, %v3044
  %v3046 = vpop.f32.mrb[0].mxu0
  %3047 = vmatprep.mubr.f32.mxu0 0.0
  %3048 = vmatmul.mubr.f32.gmra.mrb[0].mxu0 %v2814
  %v3049 = vpop.f32.mrb[0].mxu0
  %v3050 = vadd.f32 0.0, %v3049
  %v3051 = vpop.f32.mrb[0].mxu0
  %3052 = vmatprep.mubr.f32.mxu0 0.0
  %3053 = vmatmul.mubr.f32.gmra.mrb[0].mxu0 %v2815
  %v3054 = vpop.f32.mrb[0].mxu0
  %v3055 = vadd.f32 0.0, %v3054
  %v3056 = vpop.f32.mrb[0].mxu0
  %3057 = vmatprep.mubr.f32.mxu0 0.0
  %3058 = vmatmul.mubr.f32.gmra.mrb[0].mxu0 %v2816
  %v3059 = vpop.f32.mrb[0].mxu0
  %v3060 = vadd.f32 0.0, %v3059
  %v3061 = vpop.f32.mrb[0].mxu0
  %3062 = vmatprep.mubr.f32.mxu0 0.0
  %3063 = vmatmul.mubr.f32.gmra.mrb[0].mxu0 %v2817
  %v3064 = vpop.f32.mrb[0].mxu0
  %v3065 = vadd.f32 0.0, %v3064
  %v3066 = vpop.f32.mrb[0].mxu0
  %3067 = vmatprep.mubr.f32.mxu0 0.0
  %3068 = vmatmul.mubr.f32.gmra.mrb[0].mxu0 %v2818
  %v3069 = vpop.f32.mrb[0].mxu0
  %v3070 = vadd.f32 0.0, %v3069
  %v3071 = vpop.f32.mrb[0].mxu0
  %3072 = vmatprep.mubr.f32.mxu0 0.0
  %3073 = vmatmul.mubr.f32.gmra.mrb[0].mxu0 %v2819
  %v3074 = vpop.f32.mrb[0].mxu0
  %v3075 = vadd.f32 0.0, %v3074
  %v3076 = vpop.f32.mrb[0].mxu0
  %3077 = vmatprep.mubr.f32.mxu0 0.0
  %3078 = vmatmul.mubr.f32.gmra.mrb[0].mxu0 %v2820
  %v3079 = vpop.f32.mrb[0].mxu0
  %v3080 = vadd.f32 0.0, %v3079
  %v3081 = vpop.f32.mrb[0].mxu0
  %3082 = vmatprep.mubr.f32.mxu0 0.0
  %3083 = vmatmul.mubr.f32.gmra.mrb[0].mxu0 %v2821
  %v3084 = vpop.f32.mrb[0].mxu0
  %v3085 = vadd.f32 0.0, %v3084
  %v3086 = vpop.f32.mrb[0].mxu0
  %3087 = vmatprep.mubr.f32.mxu0 0.0
  %3088 = vmatmul.mubr.f32.gmra.mrb[0].mxu0 %v2822
  %v3089 = vpop.f32.mrb[0].mxu0
  %v3090 = vadd.f32 0.0, %v3089
  %v3091 = vpop.f32.mrb[0].mxu0
  %3092 = vmatprep.mubr.f32.mxu0 0.0
  %3093 = vmatmul.mubr.f32.gmra.mrb[0].mxu0 %v2823
  %v3094 = vpop.f32.mrb[0].mxu0
  %v3095 = vadd.f32 0.0, %v3094
  %v3096 = vpop.f32.mrb[0].mxu0
  %3097 = vmatprep.mubr.f32.mxu0 0.0
  %3098 = vmatmul.mubr.f32.gmra.mrb[0].mxu0 %v2824
  %v3099 = vpop.f32.mrb[0].mxu0
  %v3100 = vadd.f32 0.0, %v3099
  %v3101 = vpop.f32.mrb[0].mxu0
  %3102 = vmatprep.mubr.f32.mxu0 0.0
  %3103 = vmatmul.mubr.f32.gmra.mrb[0].mxu0 %v2825
  %v3104 = vpop.f32.mrb[0].mxu0
  %v3105 = vadd.f32 0.0, %v3104
  %v3106 = vpop.f32.mrb[0].mxu0
  %3107 = vmatprep.mubr.f32.mxu0 0.0
  %3108 = vmatmul.mubr.f32.gmra.mrb[0].mxu0 %v2826
  %v3109 = vpop.f32.mrb[0].mxu0
  %v3110 = vadd.f32 0.0, %v3109
  %v3111 = vpop.f32.mrb[0].mxu0
  %3112 = vmatprep.mubr.f32.mxu0 0.0
  %3113 = vmatmul.mubr.f32.gmra.mrb[0].mxu0 %v2827
  %v3114 = vpop.f32.mrb[0].mxu0
  %v3115 = vadd.f32 0.0, %v3114
  %v3116 = vpop.f32.mrb[0].mxu0
  %3117 = vmatprep.mubr.f32.mxu0 0.0
  %3118 = vmatmul.mubr.f32.gmra.mrb[0].mxu0 %v2828
  %v3119 = vpop.f32.mrb[0].mxu0
  %v3120 = vadd.f32 0.0, %v3119
  %v3121 = vpop.f32.mrb[0].mxu0
  %3122 = vmatprep.mubr.f32.mxu0 0.0
  %3123 = vmatmul.mubr.f32.gmra.mrb[0].mxu0 %v2829
  %v3124 = vpop.f32.mrb[0].mxu0
  %v3125 = vadd.f32 0.0, %v3124
  %v3126 = vpop.f32.mrb[0].mxu0
  %3127 = vmatprep.mubr.f32.mxu0 0.0
  %3128 = vmatmul.mubr.f32.gmra.mrb[0].mxu0 %v2830
  %v3129 = vpop.f32.mrb[0].mxu0
  %v3130 = vadd.f32 0.0, %v3129
  %v3131 = vpop.f32.mrb[0].mxu0
  %3132 = vmatprep.mubr.f32.mxu0 0.0
  %3133 = vmatmul.mubr.f32.gmra.mrb[0].mxu0 %v2831
  %v3134 = vpop.f32.mrb[0].mxu0
  %v3135 = vadd.f32 0.0, %v3134
  %v3136 = vpop.f32.mrb[0].mxu0
  %3137 = vmatprep.mubr.f32.mxu0 0.0
  %3138 = vmatmul.mubr.f32.gmra.mrb[0].mxu0 %v2832
  %v3139 = vpop.f32.mrb[0].mxu0
  %v3140 = vadd.f32 0.0, %v3139
  %v3141 = vpop.f32.mrb[0].mxu0
  %3142 = vmatprep.mubr.f32.mxu0 0.0
  %3143 = vmatmul.mubr.f32.gmra.mrb[0].mxu0 %v2833
  %v3144 = vpop.f32.mrb[0].mxu0
  %v3145 = vadd.f32 0.0, %v3144
  %v3146 = vpop.f32.mrb[0].mxu0
  %3147 = vmatprep.mubr.f32.mxu0 0.0
  %3148 = vmatmul.mubr.f32.gmra.mrb[0].mxu0 %v2834
  %v3149 = vpop.f32.mrb[0].mxu0
  %v3150 = vadd.f32 0.0, %v3149
  %v3151 = vpop.f32.mrb[0].mxu0
  %3152 = vmatprep.mubr.f32.mxu0 0.0
  %3153 = vmatmul.mubr.f32.gmra.mrb[0].mxu0 %v2835
  %v3154 = vpop.f32.mrb[0].mxu0
  %v3155 = vadd.f32 0.0, %v3154
  %v3156 = vpop.f32.mrb[0].mxu0
  %3157 = vmatprep.mubr.f32.mxu0 0.0
  %3158 = vmatmul.mubr.f32.gmra.mrb[0].mxu0 %v2836
  %v3159 = vpop.f32.mrb[0].mxu0
  %v3160 = vadd.f32 0.0, %v3159
  %v3161 = vpop.f32.mrb[0].mxu0
  %3162 = vmatprep.mubr.f32.mxu0 0.0
  %3163 = vmatmul.mubr.f32.gmra.mrb[0].mxu0 %v2837
  %v3164 = vpop.f32.mrb[0].mxu0
  %v3165 = vadd.f32 0.0, %v3164
  %v3166 = vpop.f32.mrb[0].mxu0
  %3167 = vmatprep.mubr.f32.mxu0 0.0
  %3168 = vmatmul.mubr.f32.gmra.mrb[0].mxu0 %v2838
  %v3169 = vpop.f32.mrb[0].mxu0
  %v3170 = vadd.f32 0.0, %v3169
  %v3171 = vpop.f32.mrb[0].mxu0
  %3172 = vmatprep.mubr.f32.mxu0 0.0
  %3173 = vmatmul.mubr.f32.gmra.mrb[0].mxu0 %v2839
  %v3174 = vpop.f32.mrb[0].mxu0
  %v3175 = vadd.f32 0.0, %v3174
  %v3176 = vpop.f32.mrb[0].mxu0
  %3177 = vmatprep.mubr.f32.mxu0 0.0
  %3178 = vmatmul.mubr.f32.gmra.mrb[0].mxu0 %v2840
  %v3179 = vpop.f32.mrb[0].mxu0
  %v3180 = vadd.f32 0.0, %v3179
  %v3181 = vpop.f32.mrb[0].mxu0
  %3182 = vmatprep.mubr.f32.mxu0 0.0
  %3183 = vmatmul.mubr.f32.gmra.mrb[0].mxu0 %v2841
  %v3184 = vpop.f32.mrb[0].mxu0
  %v3185 = vadd.f32 0.0, %v3184
  %v3186 = vpop.f32.mrb[0].mxu0
  %3187 = vmatprep.mubr.f32.mxu0 0.0
  %3188 = vmatmul.mubr.f32.gmra.mrb[0].mxu0 %v2842
  %v3189 = vpop.f32.mrb[0].mxu0
  %v3190 = vadd.f32 0.0, %v3189
  %v3191 = vpop.f32.mrb[0].mxu0
  %3192 = vmatprep.mubr.f32.mxu0 0.0
  %3193 = vmatmul.mubr.f32.gmra.mrb[0].mxu0 %v2843
  %v3194 = vpop.f32.mrb[0].mxu0
  %v3195 = vadd.f32 0.0, %v3194
  %v3196 = vpop.f32.mrb[0].mxu0
  %3197 = vmatprep.mubr.f32.mxu0 0.0
  %3198 = vmatmul.mubr.f32.gmra.mrb[0].mxu0 %v2844
  %v3199 = vpop.f32.mrb[0].mxu0
  %v3200 = vadd.f32 0.0, %v3199
  %v3201 = vpop.f32.mrb[0].mxu0
  %3202 = vmatprep.mubr.f32.mxu0 0.0
  %3203 = vmatmul.mubr.f32.gmra.mrb[0].mxu0 %v2845
  %v3204 = vpop.f32.mrb[0].mxu0
  %v3205 = vadd.f32 0.0, %v3204
  %v3206 = vpop.f32.mrb[0].mxu0
  %3207 = vmatprep.mubr.f32.mxu0 0.0
  %3208 = vmatmul.mubr.f32.gmra.mrb[0].mxu0 %v2846
  %v3209 = vpop.f32.mrb[0].mxu0
  %v3210 = vadd.f32 0.0, %v3209
  %v3211 = vpop.f32.mrb[0].mxu0
  %3212 = vmatprep.mubr.f32.mxu0 0.0
  %3213 = vmatmul.mubr.f32.gmra.mrb[0].mxu0 %v2847
  %v3214 = vpop.f32.mrb[0].mxu0
  %v3215 = vadd.f32 0.0, %v3214
  %v3216 = vpop.f32.mrb[0].mxu0
  %3217 = vmatprep.mubr.f32.mxu0 0.0
  %3218 = vmatmul.mubr.f32.gmra.mrb[0].mxu0 %v2848
  %v3219 = vpop.f32.mrb[0].mxu0
  %v3220 = vadd.f32 0.0, %v3219
  %v3221 = vpop.f32.mrb[0].mxu0
  %3222 = vmatprep.mubr.f32.mxu0 0.0
  %3223 = vmatmul.mubr.f32.gmra.mrb[0].mxu0 %v2849
  %v3224 = vpop.f32.mrb[0].mxu0
  %v3225 = vadd.f32 0.0, %v3224
  %v3226 = vpop.f32.mrb[0].mxu0
  %3227 = vmatprep.mubr.f32.mxu0 0.0
  %3228 = vmatmul.mubr.f32.gmra.mrb[0].mxu0 %v2850
  %v3229 = vpop.f32.mrb[0].mxu0
  %v3230 = vadd.f32 0.0, %v3229
  %v3231 = vpop.f32.mrb[0].mxu0
  %3232 = vmatprep.mubr.f32.mxu0 0.0
  %3233 = vmatmul.mubr.f32.gmra.mrb[0].mxu0 %v2851
  %v3234 = vpop.f32.mrb[0].mxu0
  %v3235 = vadd.f32 0.0, %v3234
  %v3236 = vpop.f32.mrb[0].mxu0
  %3237 = vmatprep.mubr.f32.mxu0 0.0
  %3238 = vmatmul.mubr.f32.gmra.mrb[0].mxu0 %v2852
  %v3239 = vpop.f32.mrb[0].mxu0
  %v3240 = vadd.f32 0.0, %v3239
  %v3241 = vpop.f32.mrb[0].mxu0
  %3242 = vmatprep.mubr.f32.mxu0 0.0
  %3243 = vmatmul.mubr.f32.gmra.mrb[0].mxu0 %v2853
  %v3244 = vpop.f32.mrb[0].mxu0
  %v3245 = vadd.f32 0.0, %v3244
  %v3246 = vpop.f32.mrb[0].mxu0
  %3247 = vmatprep.mubr.f32.mxu0 0.0
  %3248 = vmatmul.mubr.f32.gmra.mrb[0].mxu0 %v2854
  %v3249 = vpop.f32.mrb[0].mxu0
  %v3250 = vadd.f32 0.0, %v3249
  %v3251 = vpop.f32.mrb[0].mxu0
  %3252 = vmatprep.mubr.f32.mxu0 0.0
  %3253 = vmatmul.mubr.f32.gmra.mrb[0].mxu0 %v2855
  %v3254 = vpop.f32.mrb[0].mxu0
  %v3255 = vadd.f32 0.0, %v3254
  %v3256 = vpop.f32.mrb[0].mxu0
  %3257 = vdwg.mxu0
  %v3258 = vadd.f32 %v2728, %v2940
  %v3259 = vadd.f32 %v2729, %v2945
  %v3260 = vadd.f32 %v2730, %v2950
  %v3261 = vadd.f32 %v2731, %v2955
  %v3262 = vadd.f32 %v2732, %v2960
  %v3263 = vadd.f32 %v2733, %v2965
  %v3264 = vadd.f32 %v2734, %v2970
  %v3265 = vadd.f32 %v2735, %v2975
  %v3266 = vadd.f32 %v2736, %v2980
  %v3267 = vadd.f32 %v2737, %v2985
  %v3268 = vadd.f32 %v2738, %v2990
  %v3269 = vadd.f32 %v2739, %v2995
  %v3270 = vadd.f32 %v2740, %v3000
  %v3271 = vadd.f32 %v2741, %v3005
  %v3272 = vadd.f32 %v2742, %v3010
  %v3273 = vadd.f32 %v2743, %v3015
  %v3274 = vadd.f32 %v2744, %v3020
  %v3275 = vadd.f32 %v2745, %v3025
  %v3276 = vadd.f32 %v2746, %v3030
  %v3277 = vadd.f32 %v2747, %v3035
  %v3278 = vadd.f32 %v2748, %v3040
  %v3279 = vadd.f32 %v2749, %v3045
  %v3280 = vadd.f32 %v2750, %v3050
  %v3281 = vadd.f32 %v2751, %v3055
  %v3282 = vadd.f32 %v2752, %v3060
  %v3283 = vadd.f32 %v2753, %v3065
  %v3284 = vadd.f32 %v2754, %v3070
  %v3285 = vadd.f32 %v2755, %v3075
  %v3286 = vadd.f32 %v2756, %v3080
  %v3287 = vadd.f32 %v2757, %v3085
  %v3288 = vadd.f32 %v2758, %v3090
  %v3289 = vadd.f32 %v2759, %v3095
  %v3290 = vadd.f32 %v2760, %v3100
  %v3291 = vadd.f32 %v2761, %v3105
  %v3292 = vadd.f32 %v2762, %v3110
  %v3293 = vadd.f32 %v2763, %v3115
  %v3294 = vadd.f32 %v2764, %v3120
  %v3295 = vadd.f32 %v2765, %v3125
  %v3296 = vadd.f32 %v2766, %v3130
  %v3297 = vadd.f32 %v2767, %v3135
  %v3298 = vadd.f32 %v2768, %v3140
  %v3299 = vadd.f32 %v2769, %v3145
  %v3300 = vadd.f32 %v2770, %v3150
  %v3301 = vadd.f32 %v2771, %v3155
  %v3302 = vadd.f32 %v2772, %v3160
  %v3303 = vadd.f32 %v2773, %v3165
  %v3304 = vadd.f32 %v2774, %v3170
  %v3305 = vadd.f32 %v2775, %v3175
  %v3306 = vadd.f32 %v2776, %v3180
  %v3307 = vadd.f32 %v2777, %v3185
  %v3308 = vadd.f32 %v2778, %v3190
  %v3309 = vadd.f32 %v2779, %v3195
  %v3310 = vadd.f32 %v2780, %v3200
  %v3311 = vadd.f32 %v2781, %v3205
  %v3312 = vadd.f32 %v2782, %v3210
  %v3313 = vadd.f32 %v2783, %v3215
  %v3314 = vadd.f32 %v2784, %v3220
  %v3315 = vadd.f32 %v2785, %v3225
  %v3316 = vadd.f32 %v2786, %v3230
  %v3317 = vadd.f32 %v2787, %v3235
  %v3318 = vadd.f32 %v2788, %v3240
  %v3319 = vadd.f32 %v2789, %v3245
  %v3320 = vadd.f32 %v2790, %v3250
  %v3321 = vadd.f32 %v2791, %v3255
  %s3322 = scalar_lea.vmem [#allocation2], 48
  %v3323 = vld [vmem:[%s3322] sm:$0xff]
  %v3324 = vld [vmem:[%s3322 + $0x8] sm:$0xff]
  %v3325 = vld [vmem:[%s3322 + $0x18] sm:$0xff]
  %v3326 = vld [vmem:[%s3322 + $0x20] sm:$0xff]
  %v3327 = vld [vmem:[%s3322 + $0x30] sm:$0xff]
  %v3328 = vld [vmem:[%s3322 + $0x38] sm:$0xff]
  %v3329 = vld [vmem:[%s3322 + $0x48] sm:$0xff]
  %v3330 = vld [vmem:[%s3322 + $0x50] sm:$0xff]
  %v3331 = vld [vmem:[%s3322 + $0x60] sm:$0xff]
  %v3332 = vld [vmem:[%s3322 + $0x68] sm:$0xff]
  %v3333 = vld [vmem:[%s3322 + $0x78] sm:$0xff]
  %v3334 = vld [vmem:[%s3322 + $0x80] sm:$0xff]
  %v3335 = vld [vmem:[%s3322 + $0x90] sm:$0xff]
  %v3336 = vld [vmem:[%s3322 + $0x98] sm:$0xff]
  %v3337 = vld [vmem:[%s3322 + $0xa8] sm:$0xff]
  %v3338 = vld [vmem:[%s3322 + $0xb0] sm:$0xff]
  %v3339 = vld [vmem:[%s3322 + $0xc0] sm:$0xff]
  %v3340 = vld [vmem:[%s3322 + $0xc8] sm:$0xff]
  %v3341 = vld [vmem:[%s3322 + $0xd8] sm:$0xff]
  %v3342 = vld [vmem:[%s3322 + $0xe0] sm:$0xff]
  %v3343 = vld [vmem:[%s3322 + $0xf0] sm:$0xff]
  %v3344 = vld [vmem:[%s3322 + $0xf8] sm:$0xff]
  %v3345 = vld [vmem:[%s3322 + $0x108] sm:$0xff]
  %v3346 = vld [vmem:[%s3322 + $0x110] sm:$0xff]
  %v3347 = vld [vmem:[%s3322 + $0x120] sm:$0xff]
  %v3348 = vld [vmem:[%s3322 + $0x128] sm:$0xff]
  %v3349 = vld [vmem:[%s3322 + $0x138] sm:$0xff]
  %v3350 = vld [vmem:[%s3322 + $0x140] sm:$0xff]
  %v3351 = vld [vmem:[%s3322 + $0x150] sm:$0xff]
  %v3352 = vld [vmem:[%s3322 + $0x158] sm:$0xff]
  %v3353 = vld [vmem:[%s3322 + $0x168] sm:$0xff]
  %v3354 = vld [vmem:[%s3322 + $0x170] sm:$0xff]
  %v3355 = vld [vmem:[%s3322 + $0x1b0] sm:$0xff]
  %v3356 = vld [vmem:[%s3322 + $0x1b8] sm:$0xff]
  %v3357 = vld [vmem:[%s3322 + $0x1c8] sm:$0xff]
  %v3358 = vld [vmem:[%s3322 + $0x1d0] sm:$0xff]
  %v3359 = vld [vmem:[%s3322 + $0x1e0] sm:$0xff]
  %v3360 = vld [vmem:[%s3322 + $0x1e8] sm:$0xff]
  %v3361 = vld [vmem:[%s3322 + $0x1f8] sm:$0xff]
  %v3362 = vld [vmem:[%s3322 + $0x200] sm:$0xff]
  %v3363 = vld [vmem:[%s3322 + $0x210] sm:$0xff]
  %v3364 = vld [vmem:[%s3322 + $0x218] sm:$0xff]
  %v3365 = vld [vmem:[%s3322 + $0x228] sm:$0xff]
  %v3366 = vld [vmem:[%s3322 + $0x230] sm:$0xff]
  %v3367 = vld [vmem:[%s3322 + $0x240] sm:$0xff]
  %v3368 = vld [vmem:[%s3322 + $0x248] sm:$0xff]
  %v3369 = vld [vmem:[%s3322 + $0x258] sm:$0xff]
  %v3370 = vld [vmem:[%s3322 + $0x260] sm:$0xff]
  %v3371 = vld [vmem:[%s3322 + $0x270] sm:$0xff]
  %v3372 = vld [vmem:[%s3322 + $0x278] sm:$0xff]
  %v3373 = vld [vmem:[%s3322 + $0x288] sm:$0xff]
  %v3374 = vld [vmem:[%s3322 + $0x290] sm:$0xff]
  %v3375 = vld [vmem:[%s3322 + $0x2a0] sm:$0xff]
  %v3376 = vld [vmem:[%s3322 + $0x2a8] sm:$0xff]
  %v3377 = vld [vmem:[%s3322 + $0x2b8] sm:$0xff]
  %v3378 = vld [vmem:[%s3322 + $0x2c0] sm:$0xff]
  %v3379 = vld [vmem:[%s3322 + $0x2d0] sm:$0xff]
  %v3380 = vld [vmem:[%s3322 + $0x2d8] sm:$0xff]
  %v3381 = vld [vmem:[%s3322 + $0x2e8] sm:$0xff]
  %v3382 = vld [vmem:[%s3322 + $0x2f0] sm:$0xff]
  %v3383 = vld [vmem:[%s3322 + $0x300] sm:$0xff]
  %v3384 = vld [vmem:[%s3322 + $0x308] sm:$0xff]
  %v3385 = vld [vmem:[%s3322 + $0x318] sm:$0xff]
  %v3386 = vld [vmem:[%s3322 + $0x320] sm:$0xff]
  %s3387 = scalar_lea.vmem %s1, 768
  %v3388 = vld [vmem:[%s3387] sm:$0xff]
  %v3389 = vld [vmem:[%s3387 + $0x8] sm:$0xff]
  %v3390 = vld [vmem:[%s3387 + $0x10] sm:$0xff]
  %v3391 = vld [vmem:[%s3387 + $0x18] sm:$0xff]
  %v3392 = vld [vmem:[%s3387 + $0x20] sm:$0xff]
  %v3393 = vld [vmem:[%s3387 + $0x28] sm:$0xff]
  %v3394 = vld [vmem:[%s3387 + $0x30] sm:$0xff]
  %v3395 = vld [vmem:[%s3387 + $0x38] sm:$0xff]
  %v3396 = vld [vmem:[%s3387 + $0x40] sm:$0xff]
  %v3397 = vld [vmem:[%s3387 + $0x48] sm:$0xff]
  %v3398 = vld [vmem:[%s3387 + $0x50] sm:$0xff]
  %v3399 = vld [vmem:[%s3387 + $0x58] sm:$0xff]
  %v3400 = vld [vmem:[%s3387 + $0x60] sm:$0xff]
  %v3401 = vld [vmem:[%s3387 + $0x68] sm:$0xff]
  %v3402 = vld [vmem:[%s3387 + $0x70] sm:$0xff]
  %v3403 = vld [vmem:[%s3387 + $0x78] sm:$0xff]
  %3404 = vmatprep.subr.mxu0 0.0
  %3405 = vmatpush1.msra.mxu0 %v3388
  %3406 = vmatprep.subr.mxu0 0.0
  %3407 = vmatpush1.msra.mxu0 %v3389
  %3408 = vmatprep.subr.mxu0 0.0
  %3409 = vmatpush1.msra.mxu0 %v3390
  %3410 = vmatprep.subr.mxu0 0.0
  %3411 = vmatpush1.msra.mxu0 %v3391
  %3412 = vmatprep.subr.mxu0 0.0
  %3413 = vmatpush1.msra.mxu0 %v3392
  %3414 = vmatprep.subr.mxu0 0.0
  %3415 = vmatpush1.msra.mxu0 %v3393
  %3416 = vmatprep.subr.mxu0 0.0
  %3417 = vmatpush1.msra.mxu0 %v3394
  %3418 = vmatprep.subr.mxu0 0.0
  %3419 = vmatpush1.msra.mxu0 %v3395
  %3420 = vmatprep.subr.mxu0 0.0
  %3421 = vmatpush1.msra.mxu0 %v3396
  %3422 = vmatprep.subr.mxu0 0.0
  %3423 = vmatpush1.msra.mxu0 %v3397
  %3424 = vmatprep.subr.mxu0 0.0
  %3425 = vmatpush1.msra.mxu0 %v3398
  %3426 = vmatprep.subr.mxu0 0.0
  %3427 = vmatpush1.msra.mxu0 %v3399
  %3428 = vmatprep.subr.mxu0 0.0
  %3429 = vmatpush1.msra.mxu0 %v3400
  %3430 = vmatprep.subr.mxu0 0.0
  %3431 = vmatpush1.msra.mxu0 %v3401
  %3432 = vmatprep.subr.mxu0 0.0
  %3433 = vmatpush1.msra.mxu0 %v3402
  %3434 = vmatprep.subr.mxu0 0.0
  %3435 = vmatpush1.msra.mxu0 %v3403
  %3436 = vmatprep.subr.mxu0 0.0
  %3437 = vmatpush1.msra.mxu0 0.0
  %3438 = vmatprep.subr.mxu0 0.0
  %3439 = vmatpush1.msra.mxu0 0.0
  %3440 = vmatprep.subr.mxu0 0.0
  %3441 = vmatpush1.msra.mxu0 0.0
  %3442 = vmatprep.subr.mxu0 0.0
  %3443 = vmatpush1.msra.mxu0 0.0
  %3444 = vmatprep.subr.mxu0 0.0
  %3445 = vmatpush1.msra.mxu0 0.0
  %3446 = vmatprep.subr.mxu0 0.0
  %3447 = vmatpush1.msra.mxu0 0.0
  %3448 = vmatprep.subr.mxu0 0.0
  %3449 = vmatpush1.msra.mxu0 0.0
  %3450 = vmatprep.subr.mxu0 0.0
  %3451 = vmatpush1.msra.mxu0 0.0
  %3452 = vmatprep.subr.mxu0 0.0
  %3453 = vmatpush1.msra.mxu0 0.0
  %3454 = vmatprep.subr.mxu0 0.0
  %3455 = vmatpush1.msra.mxu0 0.0
  %3456 = vmatprep.subr.mxu0 0.0
  %3457 = vmatpush1.msra.mxu0 0.0
  %3458 = vmatprep.subr.mxu0 0.0
  %3459 = vmatpush1.msra.mxu0 0.0
  %3460 = vmatprep.subr.mxu0 0.0
  %3461 = vmatpush1.msra.mxu0 0.0
  %3462 = vmatprep.subr.mxu0 0.0
  %3463 = vmatpush1.msra.mxu0 0.0
  %3464 = vmatprep.subr.mxu0 0.0
  %3465 = vmatpush1.msra.mxu0 0.0
  %3466 = vmatprep.subr.mxu0 0.0
  %3467 = vmatpush1.msra.mxu0 0.0
  %3468 = vmatprep.mubr.f32.mxu0 0.0
  %3469 = vmatmul.mubr.f32.gmra.mrb[0].mxu0 %v3323
  %v3470 = vpop.f32.mrb[0].mxu0
  %v3471 = vadd.f32 0.0, %v3470
  %v3472 = vpop.f32.mrb[0].mxu0
  %3473 = vmatprep.mubr.f32.mxu0 0.0
  %3474 = vmatmul.mubr.f32.gmra.mrb[0].mxu0 %v3324
  %v3475 = vpop.f32.mrb[0].mxu0
  %v3476 = vadd.f32 0.0, %v3475
  %v3477 = vpop.f32.mrb[0].mxu0
  %3478 = vmatprep.mubr.f32.mxu0 0.0
  %3479 = vmatmul.mubr.f32.gmra.mrb[0].mxu0 %v3325
  %v3480 = vpop.f32.mrb[0].mxu0
  %v3481 = vadd.f32 0.0, %v3480
  %v3482 = vpop.f32.mrb[0].mxu0
  %3483 = vmatprep.mubr.f32.mxu0 0.0
  %3484 = vmatmul.mubr.f32.gmra.mrb[0].mxu0 %v3326
  %v3485 = vpop.f32.mrb[0].mxu0
  %v3486 = vadd.f32 0.0, %v3485
  %v3487 = vpop.f32.mrb[0].mxu0
  %3488 = vmatprep.mubr.f32.mxu0 0.0
  %3489 = vmatmul.mubr.f32.gmra.mrb[0].mxu0 %v3327
  %v3490 = vpop.f32.mrb[0].mxu0
  %v3491 = vadd.f32 0.0, %v3490
  %v3492 = vpop.f32.mrb[0].mxu0
  %3493 = vmatprep.mubr.f32.mxu0 0.0
  %3494 = vmatmul.mubr.f32.gmra.mrb[0].mxu0 %v3328
  %v3495 = vpop.f32.mrb[0].mxu0
  %v3496 = vadd.f32 0.0, %v3495
  %v3497 = vpop.f32.mrb[0].mxu0
  %3498 = vmatprep.mubr.f32.mxu0 0.0
  %3499 = vmatmul.mubr.f32.gmra.mrb[0].mxu0 %v3329
  %v3500 = vpop.f32.mrb[0].mxu0
  %v3501 = vadd.f32 0.0, %v3500
  %v3502 = vpop.f32.mrb[0].mxu0
  %3503 = vmatprep.mubr.f32.mxu0 0.0
  %3504 = vmatmul.mubr.f32.gmra.mrb[0].mxu0 %v3330
  %v3505 = vpop.f32.mrb[0].mxu0
  %v3506 = vadd.f32 0.0, %v3505
  %v3507 = vpop.f32.mrb[0].mxu0
  %3508 = vmatprep.mubr.f32.mxu0 0.0
  %3509 = vmatmul.mubr.f32.gmra.mrb[0].mxu0 %v3331
  %v3510 = vpop.f32.mrb[0].mxu0
  %v3511 = vadd.f32 0.0, %v3510
  %v3512 = vpop.f32.mrb[0].mxu0
  %3513 = vmatprep.mubr.f32.mxu0 0.0
  %3514 = vmatmul.mubr.f32.gmra.mrb[0].mxu0 %v3332
  %v3515 = vpop.f32.mrb[0].mxu0
  %v3516 = vadd.f32 0.0, %v3515
  %v3517 = vpop.f32.mrb[0].mxu0
  %3518 = vmatprep.mubr.f32.mxu0 0.0
  %3519 = vmatmul.mubr.f32.gmra.mrb[0].mxu0 %v3333
  %v3520 = vpop.f32.mrb[0].mxu0
  %v3521 = vadd.f32 0.0, %v3520
  %v3522 = vpop.f32.mrb[0].mxu0
  %3523 = vmatprep.mubr.f32.mxu0 0.0
  %3524 = vmatmul.mubr.f32.gmra.mrb[0].mxu0 %v3334
  %v3525 = vpop.f32.mrb[0].mxu0
  %v3526 = vadd.f32 0.0, %v3525
  %v3527 = vpop.f32.mrb[0].mxu0
  %3528 = vmatprep.mubr.f32.mxu0 0.0
  %3529 = vmatmul.mubr.f32.gmra.mrb[0].mxu0 %v3335
  %v3530 = vpop.f32.mrb[0].mxu0
  %v3531 = vadd.f32 0.0, %v3530
  %v3532 = vpop.f32.mrb[0].mxu0
  %3533 = vmatprep.mubr.f32.mxu0 0.0
  %3534 = vmatmul.mubr.f32.gmra.mrb[0].mxu0 %v3336
  %v3535 = vpop.f32.mrb[0].mxu0
  %v3536 = vadd.f32 0.0, %v3535
  %v3537 = vpop.f32.mrb[0].mxu0
  %3538 = vmatprep.mubr.f32.mxu0 0.0
  %3539 = vmatmul.mubr.f32.gmra.mrb[0].mxu0 %v3337
  %v3540 = vpop.f32.mrb[0].mxu0
  %v3541 = vadd.f32 0.0, %v3540
  %v3542 = vpop.f32.mrb[0].mxu0
  %3543 = vmatprep.mubr.f32.mxu0 0.0
  %3544 = vmatmul.mubr.f32.gmra.mrb[0].mxu0 %v3338
  %v3545 = vpop.f32.mrb[0].mxu0
  %v3546 = vadd.f32 0.0, %v3545
  %v3547 = vpop.f32.mrb[0].mxu0
  %3548 = vmatprep.mubr.f32.mxu0 0.0
  %3549 = vmatmul.mubr.f32.gmra.mrb[0].mxu0 %v3339
  %v3550 = vpop.f32.mrb[0].mxu0
  %v3551 = vadd.f32 0.0, %v3550
  %v3552 = vpop.f32.mrb[0].mxu0
  %3553 = vmatprep.mubr.f32.mxu0 0.0
  %3554 = vmatmul.mubr.f32.gmra.mrb[0].mxu0 %v3340
  %v3555 = vpop.f32.mrb[0].mxu0
  %v3556 = vadd.f32 0.0, %v3555
  %v3557 = vpop.f32.mrb[0].mxu0
  %3558 = vmatprep.mubr.f32.mxu0 0.0
  %3559 = vmatmul.mubr.f32.gmra.mrb[0].mxu0 %v3341
  %v3560 = vpop.f32.mrb[0].mxu0
  %v3561 = vadd.f32 0.0, %v3560
  %v3562 = vpop.f32.mrb[0].mxu0
  %3563 = vmatprep.mubr.f32.mxu0 0.0
  %3564 = vmatmul.mubr.f32.gmra.mrb[0].mxu0 %v3342
  %v3565 = vpop.f32.mrb[0].mxu0
  %v3566 = vadd.f32 0.0, %v3565
  %v3567 = vpop.f32.mrb[0].mxu0
  %3568 = vmatprep.mubr.f32.mxu0 0.0
  %3569 = vmatmul.mubr.f32.gmra.mrb[0].mxu0 %v3343
  %v3570 = vpop.f32.mrb[0].mxu0
  %v3571 = vadd.f32 0.0, %v3570
  %v3572 = vpop.f32.mrb[0].mxu0
  %3573 = vmatprep.mubr.f32.mxu0 0.0
  %3574 = vmatmul.mubr.f32.gmra.mrb[0].mxu0 %v3344
  %v3575 = vpop.f32.mrb[0].mxu0
  %v3576 = vadd.f32 0.0, %v3575
  %v3577 = vpop.f32.mrb[0].mxu0
  %3578 = vmatprep.mubr.f32.mxu0 0.0
  %3579 = vmatmul.mubr.f32.gmra.mrb[0].mxu0 %v3345
  %v3580 = vpop.f32.mrb[0].mxu0
  %v3581 = vadd.f32 0.0, %v3580
  %v3582 = vpop.f32.mrb[0].mxu0
  %3583 = vmatprep.mubr.f32.mxu0 0.0
  %3584 = vmatmul.mubr.f32.gmra.mrb[0].mxu0 %v3346
  %v3585 = vpop.f32.mrb[0].mxu0
  %v3586 = vadd.f32 0.0, %v3585
  %v3587 = vpop.f32.mrb[0].mxu0
  %3588 = vmatprep.mubr.f32.mxu0 0.0
  %3589 = vmatmul.mubr.f32.gmra.mrb[0].mxu0 %v3347
  %v3590 = vpop.f32.mrb[0].mxu0
  %v3591 = vadd.f32 0.0, %v3590
  %v3592 = vpop.f32.mrb[0].mxu0
  %3593 = vmatprep.mubr.f32.mxu0 0.0
  %3594 = vmatmul.mubr.f32.gmra.mrb[0].mxu0 %v3348
  %v3595 = vpop.f32.mrb[0].mxu0
  %v3596 = vadd.f32 0.0, %v3595
  %v3597 = vpop.f32.mrb[0].mxu0
  %3598 = vmatprep.mubr.f32.mxu0 0.0
  %3599 = vmatmul.mubr.f32.gmra.mrb[0].mxu0 %v3349
  %v3600 = vpop.f32.mrb[0].mxu0
  %v3601 = vadd.f32 0.0, %v3600
  %v3602 = vpop.f32.mrb[0].mxu0
  %3603 = vmatprep.mubr.f32.mxu0 0.0
  %3604 = vmatmul.mubr.f32.gmra.mrb[0].mxu0 %v3350
  %v3605 = vpop.f32.mrb[0].mxu0
  %v3606 = vadd.f32 0.0, %v3605
  %v3607 = vpop.f32.mrb[0].mxu0
  %3608 = vmatprep.mubr.f32.mxu0 0.0
  %3609 = vmatmul.mubr.f32.gmra.mrb[0].mxu0 %v3351
  %v3610 = vpop.f32.mrb[0].mxu0
  %v3611 = vadd.f32 0.0, %v3610
  %v3612 = vpop.f32.mrb[0].mxu0
  %3613 = vmatprep.mubr.f32.mxu0 0.0
  %3614 = vmatmul.mubr.f32.gmra.mrb[0].mxu0 %v3352
  %v3615 = vpop.f32.mrb[0].mxu0
  %v3616 = vadd.f32 0.0, %v3615
  %v3617 = vpop.f32.mrb[0].mxu0
  %3618 = vmatprep.mubr.f32.mxu0 0.0
  %3619 = vmatmul.mubr.f32.gmra.mrb[0].mxu0 %v3353
  %v3620 = vpop.f32.mrb[0].mxu0
  %v3621 = vadd.f32 0.0, %v3620
  %v3622 = vpop.f32.mrb[0].mxu0
  %3623 = vmatprep.mubr.f32.mxu0 0.0
  %3624 = vmatmul.mubr.f32.gmra.mrb[0].mxu0 %v3354
  %v3625 = vpop.f32.mrb[0].mxu0
  %v3626 = vadd.f32 0.0, %v3625
  %v3627 = vpop.f32.mrb[0].mxu0
  %3628 = vmatprep.mubr.f32.mxu0 0.0
  %3629 = vmatmul.mubr.f32.gmra.mrb[0].mxu0 %v3355
  %v3630 = vpop.f32.mrb[0].mxu0
  %v3631 = vadd.f32 0.0, %v3630
  %v3632 = vpop.f32.mrb[0].mxu0
  %3633 = vmatprep.mubr.f32.mxu0 0.0
  %3634 = vmatmul.mubr.f32.gmra.mrb[0].mxu0 %v3356
  %v3635 = vpop.f32.mrb[0].mxu0
  %v3636 = vadd.f32 0.0, %v3635
  %v3637 = vpop.f32.mrb[0].mxu0
  %3638 = vmatprep.mubr.f32.mxu0 0.0
  %3639 = vmatmul.mubr.f32.gmra.mrb[0].mxu0 %v3357
  %v3640 = vpop.f32.mrb[0].mxu0
  %v3641 = vadd.f32 0.0, %v3640
  %v3642 = vpop.f32.mrb[0].mxu0
  %3643 = vmatprep.mubr.f32.mxu0 0.0
  %3644 = vmatmul.mubr.f32.gmra.mrb[0].mxu0 %v3358
  %v3645 = vpop.f32.mrb[0].mxu0
  %v3646 = vadd.f32 0.0, %v3645
  %v3647 = vpop.f32.mrb[0].mxu0
  %3648 = vmatprep.mubr.f32.mxu0 0.0
  %3649 = vmatmul.mubr.f32.gmra.mrb[0].mxu0 %v3359
  %v3650 = vpop.f32.mrb[0].mxu0
  %v3651 = vadd.f32 0.0, %v3650
  %v3652 = vpop.f32.mrb[0].mxu0
  %3653 = vmatprep.mubr.f32.mxu0 0.0
  %3654 = vmatmul.mubr.f32.gmra.mrb[0].mxu0 %v3360
  %v3655 = vpop.f32.mrb[0].mxu0
  %v3656 = vadd.f32 0.0, %v3655
  %v3657 = vpop.f32.mrb[0].mxu0
  %3658 = vmatprep.mubr.f32.mxu0 0.0
  %3659 = vmatmul.mubr.f32.gmra.mrb[0].mxu0 %v3361
  %v3660 = vpop.f32.mrb[0].mxu0
  %v3661 = vadd.f32 0.0, %v3660
  %v3662 = vpop.f32.mrb[0].mxu0
  %3663 = vmatprep.mubr.f32.mxu0 0.0
  %3664 = vmatmul.mubr.f32.gmra.mrb[0].mxu0 %v3362
  %v3665 = vpop.f32.mrb[0].mxu0
  %v3666 = vadd.f32 0.0, %v3665
  %v3667 = vpop.f32.mrb[0].mxu0
  %3668 = vmatprep.mubr.f32.mxu0 0.0
  %3669 = vmatmul.mubr.f32.gmra.mrb[0].mxu0 %v3363
  %v3670 = vpop.f32.mrb[0].mxu0
  %v3671 = vadd.f32 0.0, %v3670
  %v3672 = vpop.f32.mrb[0].mxu0
  %3673 = vmatprep.mubr.f32.mxu0 0.0
  %3674 = vmatmul.mubr.f32.gmra.mrb[0].mxu0 %v3364
  %v3675 = vpop.f32.mrb[0].mxu0
  %v3676 = vadd.f32 0.0, %v3675
  %v3677 = vpop.f32.mrb[0].mxu0
  %3678 = vmatprep.mubr.f32.mxu0 0.0
  %3679 = vmatmul.mubr.f32.gmra.mrb[0].mxu0 %v3365
  %v3680 = vpop.f32.mrb[0].mxu0
  %v3681 = vadd.f32 0.0, %v3680
  %v3682 = vpop.f32.mrb[0].mxu0
  %3683 = vmatprep.mubr.f32.mxu0 0.0
  %3684 = vmatmul.mubr.f32.gmra.mrb[0].mxu0 %v3366
  %v3685 = vpop.f32.mrb[0].mxu0
  %v3686 = vadd.f32 0.0, %v3685
  %v3687 = vpop.f32.mrb[0].mxu0
  %3688 = vmatprep.mubr.f32.mxu0 0.0
  %3689 = vmatmul.mubr.f32.gmra.mrb[0].mxu0 %v3367
  %v3690 = vpop.f32.mrb[0].mxu0
  %v3691 = vadd.f32 0.0, %v3690
  %v3692 = vpop.f32.mrb[0].mxu0
  %3693 = vmatprep.mubr.f32.mxu0 0.0
  %3694 = vmatmul.mubr.f32.gmra.mrb[0].mxu0 %v3368
  %v3695 = vpop.f32.mrb[0].mxu0
  %v3696 = vadd.f32 0.0, %v3695
  %v3697 = vpop.f32.mrb[0].mxu0
  %3698 = vmatprep.mubr.f32.mxu0 0.0
  %3699 = vmatmul.mubr.f32.gmra.mrb[0].mxu0 %v3369
  %v3700 = vpop.f32.mrb[0].mxu0
  %v3701 = vadd.f32 0.0, %v3700
  %v3702 = vpop.f32.mrb[0].mxu0
  %3703 = vmatprep.mubr.f32.mxu0 0.0
  %3704 = vmatmul.mubr.f32.gmra.mrb[0].mxu0 %v3370
  %v3705 = vpop.f32.mrb[0].mxu0
  %v3706 = vadd.f32 0.0, %v3705
  %v3707 = vpop.f32.mrb[0].mxu0
  %3708 = vmatprep.mubr.f32.mxu0 0.0
  %3709 = vmatmul.mubr.f32.gmra.mrb[0].mxu0 %v3371
  %v3710 = vpop.f32.mrb[0].mxu0
  %v3711 = vadd.f32 0.0, %v3710
  %v3712 = vpop.f32.mrb[0].mxu0
  %3713 = vmatprep.mubr.f32.mxu0 0.0
  %3714 = vmatmul.mubr.f32.gmra.mrb[0].mxu0 %v3372
  %v3715 = vpop.f32.mrb[0].mxu0
  %v3716 = vadd.f32 0.0, %v3715
  %v3717 = vpop.f32.mrb[0].mxu0
  %3718 = vmatprep.mubr.f32.mxu0 0.0
  %3719 = vmatmul.mubr.f32.gmra.mrb[0].mxu0 %v3373
  %v3720 = vpop.f32.mrb[0].mxu0
  %v3721 = vadd.f32 0.0, %v3720
  %v3722 = vpop.f32.mrb[0].mxu0
  %3723 = vmatprep.mubr.f32.mxu0 0.0
  %3724 = vmatmul.mubr.f32.gmra.mrb[0].mxu0 %v3374
  %v3725 = vpop.f32.mrb[0].mxu0
  %v3726 = vadd.f32 0.0, %v3725
  %v3727 = vpop.f32.mrb[0].mxu0
  %3728 = vmatprep.mubr.f32.mxu0 0.0
  %3729 = vmatmul.mubr.f32.gmra.mrb[0].mxu0 %v3375
  %v3730 = vpop.f32.mrb[0].mxu0
  %v3731 = vadd.f32 0.0, %v3730
  %v3732 = vpop.f32.mrb[0].mxu0
  %3733 = vmatprep.mubr.f32.mxu0 0.0
  %3734 = vmatmul.mubr.f32.gmra.mrb[0].mxu0 %v3376
  %v3735 = vpop.f32.mrb[0].mxu0
  %v3736 = vadd.f32 0.0, %v3735
  %v3737 = vpop.f32.mrb[0].mxu0
  %3738 = vmatprep.mubr.f32.mxu0 0.0
  %3739 = vmatmul.mubr.f32.gmra.mrb[0].mxu0 %v3377
  %v3740 = vpop.f32.mrb[0].mxu0
  %v3741 = vadd.f32 0.0, %v3740
  %v3742 = vpop.f32.mrb[0].mxu0
  %3743 = vmatprep.mubr.f32.mxu0 0.0
  %3744 = vmatmul.mubr.f32.gmra.mrb[0].mxu0 %v3378
  %v3745 = vpop.f32.mrb[0].mxu0
  %v3746 = vadd.f32 0.0, %v3745
  %v3747 = vpop.f32.mrb[0].mxu0
  %3748 = vmatprep.mubr.f32.mxu0 0.0
  %3749 = vmatmul.mubr.f32.gmra.mrb[0].mxu0 %v3379
  %v3750 = vpop.f32.mrb[0].mxu0
  %v3751 = vadd.f32 0.0, %v3750
  %v3752 = vpop.f32.mrb[0].mxu0
  %3753 = vmatprep.mubr.f32.mxu0 0.0
  %3754 = vmatmul.mubr.f32.gmra.mrb[0].mxu0 %v3380
  %v3755 = vpop.f32.mrb[0].mxu0
  %v3756 = vadd.f32 0.0, %v3755
  %v3757 = vpop.f32.mrb[0].mxu0
  %3758 = vmatprep.mubr.f32.mxu0 0.0
  %3759 = vmatmul.mubr.f32.gmra.mrb[0].mxu0 %v3381
  %v3760 = vpop.f32.mrb[0].mxu0
  %v3761 = vadd.f32 0.0, %v3760
  %v3762 = vpop.f32.mrb[0].mxu0
  %3763 = vmatprep.mubr.f32.mxu0 0.0
  %3764 = vmatmul.mubr.f32.gmra.mrb[0].mxu0 %v3382
  %v3765 = vpop.f32.mrb[0].mxu0
  %v3766 = vadd.f32 0.0, %v3765
  %v3767 = vpop.f32.mrb[0].mxu0
  %3768 = vmatprep.mubr.f32.mxu0 0.0
  %3769 = vmatmul.mubr.f32.gmra.mrb[0].mxu0 %v3383
  %v3770 = vpop.f32.mrb[0].mxu0
  %v3771 = vadd.f32 0.0, %v3770
  %v3772 = vpop.f32.mrb[0].mxu0
  %3773 = vmatprep.mubr.f32.mxu0 0.0
  %3774 = vmatmul.mubr.f32.gmra.mrb[0].mxu0 %v3384
  %v3775 = vpop.f32.mrb[0].mxu0
  %v3776 = vadd.f32 0.0, %v3775
  %v3777 = vpop.f32.mrb[0].mxu0
  %3778 = vmatprep.mubr.f32.mxu0 0.0
  %3779 = vmatmul.mubr.f32.gmra.mrb[0].mxu0 %v3385
  %v3780 = vpop.f32.mrb[0].mxu0
  %v3781 = vadd.f32 0.0, %v3780
  %v3782 = vpop.f32.mrb[0].mxu0
  %3783 = vmatprep.mubr.f32.mxu0 0.0
  %3784 = vmatmul.mubr.f32.gmra.mrb[0].mxu0 %v3386
  %v3785 = vpop.f32.mrb[0].mxu0
  %v3786 = vadd.f32 0.0, %v3785
  %v3787 = vpop.f32.mrb[0].mxu0
  %3788 = vdwg.mxu0
  %v3789 = vadd.f32 %v3258, %v3471
  %v3790 = vadd.f32 %v3259, %v3476
  %v3791 = vadd.f32 %v3260, %v3481
  %v3792 = vadd.f32 %v3261, %v3486
  %v3793 = vadd.f32 %v3262, %v3491
  %v3794 = vadd.f32 %v3263, %v3496
  %v3795 = vadd.f32 %v3264, %v3501
  %v3796 = vadd.f32 %v3265, %v3506
  %v3797 = vadd.f32 %v3266, %v3511
  %v3798 = vadd.f32 %v3267, %v3516
  %v3799 = vadd.f32 %v3268, %v3521
  %v3800 = vadd.f32 %v3269, %v3526
  %v3801 = vadd.f32 %v3270, %v3531
  %v3802 = vadd.f32 %v3271, %v3536
  %v3803 = vadd.f32 %v3272, %v3541
  %v3804 = vadd.f32 %v3273, %v3546
  %v3805 = vadd.f32 %v3274, %v3551
  %v3806 = vadd.f32 %v3275, %v3556
  %v3807 = vadd.f32 %v3276, %v3561
  %v3808 = vadd.f32 %v3277, %v3566
  %v3809 = vadd.f32 %v3278, %v3571
  %v3810 = vadd.f32 %v3279, %v3576
  %v3811 = vadd.f32 %v3280, %v3581
  %v3812 = vadd.f32 %v3281, %v3586
  %v3813 = vadd.f32 %v3282, %v3591
  %v3814 = vadd.f32 %v3283, %v3596
  %v3815 = vadd.f32 %v3284, %v3601
  %v3816 = vadd.f32 %v3285, %v3606
  %v3817 = vadd.f32 %v3286, %v3611
  %v3818 = vadd.f32 %v3287, %v3616
  %v3819 = vadd.f32 %v3288, %v3621
  %v3820 = vadd.f32 %v3289, %v3626
  %v3821 = vadd.f32 %v3290, %v3631
  %v3822 = vadd.f32 %v3291, %v3636
  %v3823 = vadd.f32 %v3292, %v3641
  %v3824 = vadd.f32 %v3293, %v3646
  %v3825 = vadd.f32 %v3294, %v3651
  %v3826 = vadd.f32 %v3295, %v3656
  %v3827 = vadd.f32 %v3296, %v3661
  %v3828 = vadd.f32 %v3297, %v3666
  %v3829 = vadd.f32 %v3298, %v3671
  %v3830 = vadd.f32 %v3299, %v3676
  %v3831 = vadd.f32 %v3300, %v3681
  %v3832 = vadd.f32 %v3301, %v3686
  %v3833 = vadd.f32 %v3302, %v3691
  %v3834 = vadd.f32 %v3303, %v3696
  %v3835 = vadd.f32 %v3304, %v3701
  %v3836 = vadd.f32 %v3305, %v3706
  %v3837 = vadd.f32 %v3306, %v3711
  %v3838 = vadd.f32 %v3307, %v3716
  %v3839 = vadd.f32 %v3308, %v3721
  %v3840 = vadd.f32 %v3309, %v3726
  %v3841 = vadd.f32 %v3310, %v3731
  %v3842 = vadd.f32 %v3311, %v3736
  %v3843 = vadd.f32 %v3312, %v3741
  %v3844 = vadd.f32 %v3313, %v3746
  %v3845 = vadd.f32 %v3314, %v3751
  %v3846 = vadd.f32 %v3315, %v3756
  %v3847 = vadd.f32 %v3316, %v3761
  %v3848 = vadd.f32 %v3317, %v3766
  %v3849 = vadd.f32 %v3318, %v3771
  %v3850 = vadd.f32 %v3319, %v3776
  %v3851 = vadd.f32 %v3320, %v3781
  %v3852 = vadd.f32 %v3321, %v3786
  %v3853 = vld [vmem:[%s3322 + $0x1] sm:$0xff]
  %v3854 = vld [vmem:[%s3322 + $0x9] sm:$0xff]
  %v3855 = vld [vmem:[%s3322 + $0x19] sm:$0xff]
  %v3856 = vld [vmem:[%s3322 + $0x21] sm:$0xff]
  %v3857 = vld [vmem:[%s3322 + $0x31] sm:$0xff]
  %v3858 = vld [vmem:[%s3322 + $0x39] sm:$0xff]
  %v3859 = vld [vmem:[%s3322 + $0x49] sm:$0xff]
  %v3860 = vld [vmem:[%s3322 + $0x51] sm:$0xff]
  %v3861 = vld [vmem:[%s3322 + $0x61] sm:$0xff]
  %v3862 = vld [vmem:[%s3322 + $0x69] sm:$0xff]
  %v3863 = vld [vmem:[%s3322 + $0x79] sm:$0xff]
  %v3864 = vld [vmem:[%s3322 + $0x81] sm:$0xff]
  %v3865 = vld [vmem:[%s3322 + $0x91] sm:$0xff]
  %v3866 = vld [vmem:[%s3322 + $0x99] sm:$0xff]
  %v3867 = vld [vmem:[%s3322 + $0xa9] sm:$0xff]
  %v3868 = vld [vmem:[%s3322 + $0xb1] sm:$0xff]
  %v3869 = vld [vmem:[%s3322 + $0xc1] sm:$0xff]
  %v3870 = vld [vmem:[%s3322 + $0xc9] sm:$0xff]
  %v3871 = vld [vmem:[%s3322 + $0xd9] sm:$0xff]
  %v3872 = vld [vmem:[%s3322 + $0xe1] sm:$0xff]
  %v3873 = vld [vmem:[%s3322 + $0xf1] sm:$0xff]
  %v3874 = vld [vmem:[%s3322 + $0xf9] sm:$0xff]
  %v3875 = vld [vmem:[%s3322 + $0x109] sm:$0xff]
  %v3876 = vld [vmem:[%s3322 + $0x111] sm:$0xff]
  %v3877 = vld [vmem:[%s3322 + $0x121] sm:$0xff]
  %v3878 = vld [vmem:[%s3322 + $0x129] sm:$0xff]
  %v3879 = vld [vmem:[%s3322 + $0x139] sm:$0xff]
  %v3880 = vld [vmem:[%s3322 + $0x141] sm:$0xff]
  %v3881 = vld [vmem:[%s3322 + $0x151] sm:$0xff]
  %v3882 = vld [vmem:[%s3322 + $0x159] sm:$0xff]
  %v3883 = vld [vmem:[%s3322 + $0x169] sm:$0xff]
  %v3884 = vld [vmem:[%s3322 + $0x171] sm:$0xff]
  %v3885 = vld [vmem:[%s3322 + $0x1b1] sm:$0xff]
  %v3886 = vld [vmem:[%s3322 + $0x1b9] sm:$0xff]
  %v3887 = vld [vmem:[%s3322 + $0x1c9] sm:$0xff]
  %v3888 = vld [vmem:[%s3322 + $0x1d1] sm:$0xff]
  %v3889 = vld [vmem:[%s3322 + $0x1e1] sm:$0xff]
  %v3890 = vld [vmem:[%s3322 + $0x1e9] sm:$0xff]
  %v3891 = vld [vmem:[%s3322 + $0x1f9] sm:$0xff]
  %v3892 = vld [vmem:[%s3322 + $0x201] sm:$0xff]
  %v3893 = vld [vmem:[%s3322 + $0x211] sm:$0xff]
  %v3894 = vld [vmem:[%s3322 + $0x219] sm:$0xff]
  %v3895 = vld [vmem:[%s3322 + $0x229] sm:$0xff]
  %v3896 = vld [vmem:[%s3322 + $0x231] sm:$0xff]
  %v3897 = vld [vmem:[%s3322 + $0x241] sm:$0xff]
  %v3898 = vld [vmem:[%s3322 + $0x249] sm:$0xff]
  %v3899 = vld [vmem:[%s3322 + $0x259] sm:$0xff]
  %v3900 = vld [vmem:[%s3322 + $0x261] sm:$0xff]
  %v3901 = vld [vmem:[%s3322 + $0x271] sm:$0xff]
  %v3902 = vld [vmem:[%s3322 + $0x279] sm:$0xff]
  %v3903 = vld [vmem:[%s3322 + $0x289] sm:$0xff]
  %v3904 = vld [vmem:[%s3322 + $0x291] sm:$0xff]
  %v3905 = vld [vmem:[%s3322 + $0x2a1] sm:$0xff]
  %v3906 = vld [vmem:[%s3322 + $0x2a9] sm:$0xff]
  %v3907 = vld [vmem:[%s3322 + $0x2b9] sm:$0xff]
  %v3908 = vld [vmem:[%s3322 + $0x2c1] sm:$0xff]
  %v3909 = vld [vmem:[%s3322 + $0x2d1] sm:$0xff]
  %v3910 = vld [vmem:[%s3322 + $0x2d9] sm:$0xff]
  %v3911 = vld [vmem:[%s3322 + $0x2e9] sm:$0xff]
  %v3912 = vld [vmem:[%s3322 + $0x2f1] sm:$0xff]
  %v3913 = vld [vmem:[%s3322 + $0x301] sm:$0xff]
  %v3914 = vld [vmem:[%s3322 + $0x309] sm:$0xff]
  %v3915 = vld [vmem:[%s3322 + $0x319] sm:$0xff]
  %v3916 = vld [vmem:[%s3322 + $0x321] sm:$0xff]
  %s3917 = scalar_lea.vmem %s1, 896
  %v3918 = vld [vmem:[%s3917] sm:$0xff]
  %v3919 = vld [vmem:[%s3917 + $0x8] sm:$0xff]
  %v3920 = vld [vmem:[%s3917 + $0x10] sm:$0xff]
  %v3921 = vld [vmem:[%s3917 + $0x18] sm:$0xff]
  %v3922 = vld [vmem:[%s3917 + $0x20] sm:$0xff]
  %v3923 = vld [vmem:[%s3917 + $0x28] sm:$0xff]
  %v3924 = vld [vmem:[%s3917 + $0x30] sm:$0xff]
  %v3925 = vld [vmem:[%s3917 + $0x38] sm:$0xff]
  %v3926 = vld [vmem:[%s3917 + $0x40] sm:$0xff]
  %v3927 = vld [vmem:[%s3917 + $0x48] sm:$0xff]
  %v3928 = vld [vmem:[%s3917 + $0x50] sm:$0xff]
  %v3929 = vld [vmem:[%s3917 + $0x58] sm:$0xff]
  %v3930 = vld [vmem:[%s3917 + $0x60] sm:$0xff]
  %v3931 = vld [vmem:[%s3917 + $0x68] sm:$0xff]
  %v3932 = vld [vmem:[%s3917 + $0x70] sm:$0xff]
  %v3933 = vld [vmem:[%s3917 + $0x78] sm:$0xff]
  %3934 = vmatprep.subr.mxu0 0.0
  %3935 = vmatpush1.msra.mxu0 %v3918
  %3936 = vmatprep.subr.mxu0 0.0
  %3937 = vmatpush1.msra.mxu0 %v3919
  %3938 = vmatprep.subr.mxu0 0.0
  %3939 = vmatpush1.msra.mxu0 %v3920
  %3940 = vmatprep.subr.mxu0 0.0
  %3941 = vmatpush1.msra.mxu0 %v3921
  %3942 = vmatprep.subr.mxu0 0.0
  %3943 = vmatpush1.msra.mxu0 %v3922
  %3944 = vmatprep.subr.mxu0 0.0
  %3945 = vmatpush1.msra.mxu0 %v3923
  %3946 = vmatprep.subr.mxu0 0.0
  %3947 = vmatpush1.msra.mxu0 %v3924
  %3948 = vmatprep.subr.mxu0 0.0
  %3949 = vmatpush1.msra.mxu0 %v3925
  %3950 = vmatprep.subr.mxu0 0.0
  %3951 = vmatpush1.msra.mxu0 %v3926
  %3952 = vmatprep.subr.mxu0 0.0
  %3953 = vmatpush1.msra.mxu0 %v3927
  %3954 = vmatprep.subr.mxu0 0.0
  %3955 = vmatpush1.msra.mxu0 %v3928
  %3956 = vmatprep.subr.mxu0 0.0
  %3957 = vmatpush1.msra.mxu0 %v3929
  %3958 = vmatprep.subr.mxu0 0.0
  %3959 = vmatpush1.msra.mxu0 %v3930
  %3960 = vmatprep.subr.mxu0 0.0
  %3961 = vmatpush1.msra.mxu0 %v3931
  %3962 = vmatprep.subr.mxu0 0.0
  %3963 = vmatpush1.msra.mxu0 %v3932
  %3964 = vmatprep.subr.mxu0 0.0
  %3965 = vmatpush1.msra.mxu0 %v3933
  %3966 = vmatprep.subr.mxu0 0.0
  %3967 = vmatpush1.msra.mxu0 0.0
  %3968 = vmatprep.subr.mxu0 0.0
  %3969 = vmatpush1.msra.mxu0 0.0
  %3970 = vmatprep.subr.mxu0 0.0
  %3971 = vmatpush1.msra.mxu0 0.0
  %3972 = vmatprep.subr.mxu0 0.0
  %3973 = vmatpush1.msra.mxu0 0.0
  %3974 = vmatprep.subr.mxu0 0.0
  %3975 = vmatpush1.msra.mxu0 0.0
  %3976 = vmatprep.subr.mxu0 0.0
  %3977 = vmatpush1.msra.mxu0 0.0
  %3978 = vmatprep.subr.mxu0 0.0
  %3979 = vmatpush1.msra.mxu0 0.0
  %3980 = vmatprep.subr.mxu0 0.0
  %3981 = vmatpush1.msra.mxu0 0.0
  %3982 = vmatprep.subr.mxu0 0.0
  %3983 = vmatpush1.msra.mxu0 0.0
  %3984 = vmatprep.subr.mxu0 0.0
  %3985 = vmatpush1.msra.mxu0 0.0
  %3986 = vmatprep.subr.mxu0 0.0
  %3987 = vmatpush1.msra.mxu0 0.0
  %3988 = vmatprep.subr.mxu0 0.0
  %3989 = vmatpush1.msra.mxu0 0.0
  %3990 = vmatprep.subr.mxu0 0.0
  %3991 = vmatpush1.msra.mxu0 0.0
  %3992 = vmatprep.subr.mxu0 0.0
  %3993 = vmatpush1.msra.mxu0 0.0
  %3994 = vmatprep.subr.mxu0 0.0
  %3995 = vmatpush1.msra.mxu0 0.0
  %3996 = vmatprep.subr.mxu0 0.0
  %3997 = vmatpush1.msra.mxu0 0.0
  %3998 = vmatprep.mubr.f32.mxu0 0.0
  %3999 = vmatmul.mubr.f32.gmra.mrb[0].mxu0 %v3853
  %v4000 = vpop.f32.mrb[0].mxu0
  %v4001 = vadd.f32 0.0, %v4000
  %v4002 = vpop.f32.mrb[0].mxu0
  %4003 = vmatprep.mubr.f32.mxu0 0.0
  %4004 = vmatmul.mubr.f32.gmra.mrb[0].mxu0 %v3854
  %v4005 = vpop.f32.mrb[0].mxu0
  %v4006 = vadd.f32 0.0, %v4005
  %v4007 = vpop.f32.mrb[0].mxu0
  %4008 = vmatprep.mubr.f32.mxu0 0.0
  %4009 = vmatmul.mubr.f32.gmra.mrb[0].mxu0 %v3855
  %v4010 = vpop.f32.mrb[0].mxu0
  %v4011 = vadd.f32 0.0, %v4010
  %v4012 = vpop.f32.mrb[0].mxu0
  %4013 = vmatprep.mubr.f32.mxu0 0.0
  %4014 = vmatmul.mubr.f32.gmra.mrb[0].mxu0 %v3856
  %v4015 = vpop.f32.mrb[0].mxu0
  %v4016 = vadd.f32 0.0, %v4015
  %v4017 = vpop.f32.mrb[0].mxu0
  %4018 = vmatprep.mubr.f32.mxu0 0.0
  %4019 = vmatmul.mubr.f32.gmra.mrb[0].mxu0 %v3857
  %v4020 = vpop.f32.mrb[0].mxu0
  %v4021 = vadd.f32 0.0, %v4020
  %v4022 = vpop.f32.mrb[0].mxu0
  %4023 = vmatprep.mubr.f32.mxu0 0.0
  %4024 = vmatmul.mubr.f32.gmra.mrb[0].mxu0 %v3858
  %v4025 = vpop.f32.mrb[0].mxu0
  %v4026 = vadd.f32 0.0, %v4025
  %v4027 = vpop.f32.mrb[0].mxu0
  %4028 = vmatprep.mubr.f32.mxu0 0.0
  %4029 = vmatmul.mubr.f32.gmra.mrb[0].mxu0 %v3859
  %v4030 = vpop.f32.mrb[0].mxu0
  %v4031 = vadd.f32 0.0, %v4030
  %v4032 = vpop.f32.mrb[0].mxu0
  %4033 = vmatprep.mubr.f32.mxu0 0.0
  %4034 = vmatmul.mubr.f32.gmra.mrb[0].mxu0 %v3860
  %v4035 = vpop.f32.mrb[0].mxu0
  %v4036 = vadd.f32 0.0, %v4035
  %v4037 = vpop.f32.mrb[0].mxu0
  %4038 = vmatprep.mubr.f32.mxu0 0.0
  %4039 = vmatmul.mubr.f32.gmra.mrb[0].mxu0 %v3861
  %v4040 = vpop.f32.mrb[0].mxu0
  %v4041 = vadd.f32 0.0, %v4040
  %v4042 = vpop.f32.mrb[0].mxu0
  %4043 = vmatprep.mubr.f32.mxu0 0.0
  %4044 = vmatmul.mubr.f32.gmra.mrb[0].mxu0 %v3862
  %v4045 = vpop.f32.mrb[0].mxu0
  %v4046 = vadd.f32 0.0, %v4045
  %v4047 = vpop.f32.mrb[0].mxu0
  %4048 = vmatprep.mubr.f32.mxu0 0.0
  %4049 = vmatmul.mubr.f32.gmra.mrb[0].mxu0 %v3863
  %v4050 = vpop.f32.mrb[0].mxu0
  %v4051 = vadd.f32 0.0, %v4050
  %v4052 = vpop.f32.mrb[0].mxu0
  %4053 = vmatprep.mubr.f32.mxu0 0.0
  %4054 = vmatmul.mubr.f32.gmra.mrb[0].mxu0 %v3864
  %v4055 = vpop.f32.mrb[0].mxu0
  %v4056 = vadd.f32 0.0, %v4055
  %v4057 = vpop.f32.mrb[0].mxu0
  %4058 = vmatprep.mubr.f32.mxu0 0.0
  %4059 = vmatmul.mubr.f32.gmra.mrb[0].mxu0 %v3865
  %v4060 = vpop.f32.mrb[0].mxu0
  %v4061 = vadd.f32 0.0, %v4060
  %v4062 = vpop.f32.mrb[0].mxu0
  %4063 = vmatprep.mubr.f32.mxu0 0.0
  %4064 = vmatmul.mubr.f32.gmra.mrb[0].mxu0 %v3866
  %v4065 = vpop.f32.mrb[0].mxu0
  %v4066 = vadd.f32 0.0, %v4065
  %v4067 = vpop.f32.mrb[0].mxu0
  %4068 = vmatprep.mubr.f32.mxu0 0.0
  %4069 = vmatmul.mubr.f32.gmra.mrb[0].mxu0 %v3867
  %v4070 = vpop.f32.mrb[0].mxu0
  %v4071 = vadd.f32 0.0, %v4070
  %v4072 = vpop.f32.mrb[0].mxu0
  %4073 = vmatprep.mubr.f32.mxu0 0.0
  %4074 = vmatmul.mubr.f32.gmra.mrb[0].mxu0 %v3868
  %v4075 = vpop.f32.mrb[0].mxu0
  %v4076 = vadd.f32 0.0, %v4075
  %v4077 = vpop.f32.mrb[0].mxu0
  %4078 = vmatprep.mubr.f32.mxu0 0.0
  %4079 = vmatmul.mubr.f32.gmra.mrb[0].mxu0 %v3869
  %v4080 = vpop.f32.mrb[0].mxu0
  %v4081 = vadd.f32 0.0, %v4080
  %v4082 = vpop.f32.mrb[0].mxu0
  %4083 = vmatprep.mubr.f32.mxu0 0.0
  %4084 = vmatmul.mubr.f32.gmra.mrb[0].mxu0 %v3870
  %v4085 = vpop.f32.mrb[0].mxu0
  %v4086 = vadd.f32 0.0, %v4085
  %v4087 = vpop.f32.mrb[0].mxu0
  %4088 = vmatprep.mubr.f32.mxu0 0.0
  %4089 = vmatmul.mubr.f32.gmra.mrb[0].mxu0 %v3871
  %v4090 = vpop.f32.mrb[0].mxu0
  %v4091 = vadd.f32 0.0, %v4090
  %v4092 = vpop.f32.mrb[0].mxu0
  %4093 = vmatprep.mubr.f32.mxu0 0.0
  %4094 = vmatmul.mubr.f32.gmra.mrb[0].mxu0 %v3872
  %v4095 = vpop.f32.mrb[0].mxu0
  %v4096 = vadd.f32 0.0, %v4095
  %v4097 = vpop.f32.mrb[0].mxu0
  %4098 = vmatprep.mubr.f32.mxu0 0.0
  %4099 = vmatmul.mubr.f32.gmra.mrb[0].mxu0 %v3873
  %v4100 = vpop.f32.mrb[0].mxu0
  %v4101 = vadd.f32 0.0, %v4100
  %v4102 = vpop.f32.mrb[0].mxu0
  %4103 = vmatprep.mubr.f32.mxu0 0.0
  %4104 = vmatmul.mubr.f32.gmra.mrb[0].mxu0 %v3874
  %v4105 = vpop.f32.mrb[0].mxu0
  %v4106 = vadd.f32 0.0, %v4105
  %v4107 = vpop.f32.mrb[0].mxu0
  %4108 = vmatprep.mubr.f32.mxu0 0.0
  %4109 = vmatmul.mubr.f32.gmra.mrb[0].mxu0 %v3875
  %v4110 = vpop.f32.mrb[0].mxu0
  %v4111 = vadd.f32 0.0, %v4110
  %v4112 = vpop.f32.mrb[0].mxu0
  %4113 = vmatprep.mubr.f32.mxu0 0.0
  %4114 = vmatmul.mubr.f32.gmra.mrb[0].mxu0 %v3876
  %v4115 = vpop.f32.mrb[0].mxu0
  %v4116 = vadd.f32 0.0, %v4115
  %v4117 = vpop.f32.mrb[0].mxu0
  %4118 = vmatprep.mubr.f32.mxu0 0.0
  %4119 = vmatmul.mubr.f32.gmra.mrb[0].mxu0 %v3877
  %v4120 = vpop.f32.mrb[0].mxu0
  %v4121 = vadd.f32 0.0, %v4120
  %v4122 = vpop.f32.mrb[0].mxu0
  %4123 = vmatprep.mubr.f32.mxu0 0.0
  %4124 = vmatmul.mubr.f32.gmra.mrb[0].mxu0 %v3878
  %v4125 = vpop.f32.mrb[0].mxu0
  %v4126 = vadd.f32 0.0, %v4125
  %v4127 = vpop.f32.mrb[0].mxu0
  %4128 = vmatprep.mubr.f32.mxu0 0.0
  %4129 = vmatmul.mubr.f32.gmra.mrb[0].mxu0 %v3879
  %v4130 = vpop.f32.mrb[0].mxu0
  %v4131 = vadd.f32 0.0, %v4130
  %v4132 = vpop.f32.mrb[0].mxu0
  %4133 = vmatprep.mubr.f32.mxu0 0.0
  %4134 = vmatmul.mubr.f32.gmra.mrb[0].mxu0 %v3880
  %v4135 = vpop.f32.mrb[0].mxu0
  %v4136 = vadd.f32 0.0, %v4135
  %v4137 = vpop.f32.mrb[0].mxu0
  %4138 = vmatprep.mubr.f32.mxu0 0.0
  %4139 = vmatmul.mubr.f32.gmra.mrb[0].mxu0 %v3881
  %v4140 = vpop.f32.mrb[0].mxu0
  %v4141 = vadd.f32 0.0, %v4140
  %v4142 = vpop.f32.mrb[0].mxu0
  %4143 = vmatprep.mubr.f32.mxu0 0.0
  %4144 = vmatmul.mubr.f32.gmra.mrb[0].mxu0 %v3882
  %v4145 = vpop.f32.mrb[0].mxu0
  %v4146 = vadd.f32 0.0, %v4145
  %v4147 = vpop.f32.mrb[0].mxu0
  %4148 = vmatprep.mubr.f32.mxu0 0.0
  %4149 = vmatmul.mubr.f32.gmra.mrb[0].mxu0 %v3883
  %v4150 = vpop.f32.mrb[0].mxu0
  %v4151 = vadd.f32 0.0, %v4150
  %v4152 = vpop.f32.mrb[0].mxu0
  %4153 = vmatprep.mubr.f32.mxu0 0.0
  %4154 = vmatmul.mubr.f32.gmra.mrb[0].mxu0 %v3884
  %v4155 = vpop.f32.mrb[0].mxu0
  %v4156 = vadd.f32 0.0, %v4155
  %v4157 = vpop.f32.mrb[0].mxu0
  %4158 = vmatprep.mubr.f32.mxu0 0.0
  %4159 = vmatmul.mubr.f32.gmra.mrb[0].mxu0 %v3885
  %v4160 = vpop.f32.mrb[0].mxu0
  %v4161 = vadd.f32 0.0, %v4160
  %v4162 = vpop.f32.mrb[0].mxu0
  %4163 = vmatprep.mubr.f32.mxu0 0.0
  %4164 = vmatmul.mubr.f32.gmra.mrb[0].mxu0 %v3886
  %v4165 = vpop.f32.mrb[0].mxu0
  %v4166 = vadd.f32 0.0, %v4165
  %v4167 = vpop.f32.mrb[0].mxu0
  %4168 = vmatprep.mubr.f32.mxu0 0.0
  %4169 = vmatmul.mubr.f32.gmra.mrb[0].mxu0 %v3887
  %v4170 = vpop.f32.mrb[0].mxu0
  %v4171 = vadd.f32 0.0, %v4170
  %v4172 = vpop.f32.mrb[0].mxu0
  %4173 = vmatprep.mubr.f32.mxu0 0.0
  %4174 = vmatmul.mubr.f32.gmra.mrb[0].mxu0 %v3888
  %v4175 = vpop.f32.mrb[0].mxu0
  %v4176 = vadd.f32 0.0, %v4175
  %v4177 = vpop.f32.mrb[0].mxu0
  %4178 = vmatprep.mubr.f32.mxu0 0.0
  %4179 = vmatmul.mubr.f32.gmra.mrb[0].mxu0 %v3889
  %v4180 = vpop.f32.mrb[0].mxu0
  %v4181 = vadd.f32 0.0, %v4180
  %v4182 = vpop.f32.mrb[0].mxu0
  %4183 = vmatprep.mubr.f32.mxu0 0.0
  %4184 = vmatmul.mubr.f32.gmra.mrb[0].mxu0 %v3890
  %v4185 = vpop.f32.mrb[0].mxu0
  %v4186 = vadd.f32 0.0, %v4185
  %v4187 = vpop.f32.mrb[0].mxu0
  %4188 = vmatprep.mubr.f32.mxu0 0.0
  %4189 = vmatmul.mubr.f32.gmra.mrb[0].mxu0 %v3891
  %v4190 = vpop.f32.mrb[0].mxu0
  %v4191 = vadd.f32 0.0, %v4190
  %v4192 = vpop.f32.mrb[0].mxu0
  %4193 = vmatprep.mubr.f32.mxu0 0.0
  %4194 = vmatmul.mubr.f32.gmra.mrb[0].mxu0 %v3892
  %v4195 = vpop.f32.mrb[0].mxu0
  %v4196 = vadd.f32 0.0, %v4195
  %v4197 = vpop.f32.mrb[0].mxu0
  %4198 = vmatprep.mubr.f32.mxu0 0.0
  %4199 = vmatmul.mubr.f32.gmra.mrb[0].mxu0 %v3893
  %v4200 = vpop.f32.mrb[0].mxu0
  %v4201 = vadd.f32 0.0, %v4200
  %v4202 = vpop.f32.mrb[0].mxu0
  %4203 = vmatprep.mubr.f32.mxu0 0.0
  %4204 = vmatmul.mubr.f32.gmra.mrb[0].mxu0 %v3894
  %v4205 = vpop.f32.mrb[0].mxu0
  %v4206 = vadd.f32 0.0, %v4205
  %v4207 = vpop.f32.mrb[0].mxu0
  %4208 = vmatprep.mubr.f32.mxu0 0.0
  %4209 = vmatmul.mubr.f32.gmra.mrb[0].mxu0 %v3895
  %v4210 = vpop.f32.mrb[0].mxu0
  %v4211 = vadd.f32 0.0, %v4210
  %v4212 = vpop.f32.mrb[0].mxu0
  %4213 = vmatprep.mubr.f32.mxu0 0.0
  %4214 = vmatmul.mubr.f32.gmra.mrb[0].mxu0 %v3896
  %v4215 = vpop.f32.mrb[0].mxu0
  %v4216 = vadd.f32 0.0, %v4215
  %v4217 = vpop.f32.mrb[0].mxu0
  %4218 = vmatprep.mubr.f32.mxu0 0.0
  %4219 = vmatmul.mubr.f32.gmra.mrb[0].mxu0 %v3897
  %v4220 = vpop.f32.mrb[0].mxu0
  %v4221 = vadd.f32 0.0, %v4220
  %v4222 = vpop.f32.mrb[0].mxu0
  %4223 = vmatprep.mubr.f32.mxu0 0.0
  %4224 = vmatmul.mubr.f32.gmra.mrb[0].mxu0 %v3898
  %v4225 = vpop.f32.mrb[0].mxu0
  %v4226 = vadd.f32 0.0, %v4225
  %v4227 = vpop.f32.mrb[0].mxu0
  %4228 = vmatprep.mubr.f32.mxu0 0.0
  %4229 = vmatmul.mubr.f32.gmra.mrb[0].mxu0 %v3899
  %v4230 = vpop.f32.mrb[0].mxu0
  %v4231 = vadd.f32 0.0, %v4230
  %v4232 = vpop.f32.mrb[0].mxu0
  %4233 = vmatprep.mubr.f32.mxu0 0.0
  %4234 = vmatmul.mubr.f32.gmra.mrb[0].mxu0 %v3900
  %v4235 = vpop.f32.mrb[0].mxu0
  %v4236 = vadd.f32 0.0, %v4235
  %v4237 = vpop.f32.mrb[0].mxu0
  %4238 = vmatprep.mubr.f32.mxu0 0.0
  %4239 = vmatmul.mubr.f32.gmra.mrb[0].mxu0 %v3901
  %v4240 = vpop.f32.mrb[0].mxu0
  %v4241 = vadd.f32 0.0, %v4240
  %v4242 = vpop.f32.mrb[0].mxu0
  %4243 = vmatprep.mubr.f32.mxu0 0.0
  %4244 = vmatmul.mubr.f32.gmra.mrb[0].mxu0 %v3902
  %v4245 = vpop.f32.mrb[0].mxu0
  %v4246 = vadd.f32 0.0, %v4245
  %v4247 = vpop.f32.mrb[0].mxu0
  %4248 = vmatprep.mubr.f32.mxu0 0.0
  %4249 = vmatmul.mubr.f32.gmra.mrb[0].mxu0 %v3903
  %v4250 = vpop.f32.mrb[0].mxu0
  %v4251 = vadd.f32 0.0, %v4250
  %v4252 = vpop.f32.mrb[0].mxu0
  %4253 = vmatprep.mubr.f32.mxu0 0.0
  %4254 = vmatmul.mubr.f32.gmra.mrb[0].mxu0 %v3904
  %v4255 = vpop.f32.mrb[0].mxu0
  %v4256 = vadd.f32 0.0, %v4255
  %v4257 = vpop.f32.mrb[0].mxu0
  %4258 = vmatprep.mubr.f32.mxu0 0.0
  %4259 = vmatmul.mubr.f32.gmra.mrb[0].mxu0 %v3905
  %v4260 = vpop.f32.mrb[0].mxu0
  %v4261 = vadd.f32 0.0, %v4260
  %v4262 = vpop.f32.mrb[0].mxu0
  %4263 = vmatprep.mubr.f32.mxu0 0.0
  %4264 = vmatmul.mubr.f32.gmra.mrb[0].mxu0 %v3906
  %v4265 = vpop.f32.mrb[0].mxu0
  %v4266 = vadd.f32 0.0, %v4265
  %v4267 = vpop.f32.mrb[0].mxu0
  %4268 = vmatprep.mubr.f32.mxu0 0.0
  %4269 = vmatmul.mubr.f32.gmra.mrb[0].mxu0 %v3907
  %v4270 = vpop.f32.mrb[0].mxu0
  %v4271 = vadd.f32 0.0, %v4270
  %v4272 = vpop.f32.mrb[0].mxu0
  %4273 = vmatprep.mubr.f32.mxu0 0.0
  %4274 = vmatmul.mubr.f32.gmra.mrb[0].mxu0 %v3908
  %v4275 = vpop.f32.mrb[0].mxu0
  %v4276 = vadd.f32 0.0, %v4275
  %v4277 = vpop.f32.mrb[0].mxu0
  %4278 = vmatprep.mubr.f32.mxu0 0.0
  %4279 = vmatmul.mubr.f32.gmra.mrb[0].mxu0 %v3909
  %v4280 = vpop.f32.mrb[0].mxu0
  %v4281 = vadd.f32 0.0, %v4280
  %v4282 = vpop.f32.mrb[0].mxu0
  %4283 = vmatprep.mubr.f32.mxu0 0.0
  %4284 = vmatmul.mubr.f32.gmra.mrb[0].mxu0 %v3910
  %v4285 = vpop.f32.mrb[0].mxu0
  %v4286 = vadd.f32 0.0, %v4285
  %v4287 = vpop.f32.mrb[0].mxu0
  %4288 = vmatprep.mubr.f32.mxu0 0.0
  %4289 = vmatmul.mubr.f32.gmra.mrb[0].mxu0 %v3911
  %v4290 = vpop.f32.mrb[0].mxu0
  %v4291 = vadd.f32 0.0, %v4290
  %v4292 = vpop.f32.mrb[0].mxu0
  %4293 = vmatprep.mubr.f32.mxu0 0.0
  %4294 = vmatmul.mubr.f32.gmra.mrb[0].mxu0 %v3912
  %v4295 = vpop.f32.mrb[0].mxu0
  %v4296 = vadd.f32 0.0, %v4295
  %v4297 = vpop.f32.mrb[0].mxu0
  %4298 = vmatprep.mubr.f32.mxu0 0.0
  %4299 = vmatmul.mubr.f32.gmra.mrb[0].mxu0 %v3913
  %v4300 = vpop.f32.mrb[0].mxu0
  %v4301 = vadd.f32 0.0, %v4300
  %v4302 = vpop.f32.mrb[0].mxu0
  %4303 = vmatprep.mubr.f32.mxu0 0.0
  %4304 = vmatmul.mubr.f32.gmra.mrb[0].mxu0 %v3914
  %v4305 = vpop.f32.mrb[0].mxu0
  %v4306 = vadd.f32 0.0, %v4305
  %v4307 = vpop.f32.mrb[0].mxu0
  %4308 = vmatprep.mubr.f32.mxu0 0.0
  %4309 = vmatmul.mubr.f32.gmra.mrb[0].mxu0 %v3915
  %v4310 = vpop.f32.mrb[0].mxu0
  %v4311 = vadd.f32 0.0, %v4310
  %v4312 = vpop.f32.mrb[0].mxu0
  %4313 = vmatprep.mubr.f32.mxu0 0.0
  %4314 = vmatmul.mubr.f32.gmra.mrb[0].mxu0 %v3916
  %v4315 = vpop.f32.mrb[0].mxu0
  %v4316 = vadd.f32 0.0, %v4315
  %v4317 = vpop.f32.mrb[0].mxu0
  %4318 = vdwg.mxu0
  %v4319 = vadd.f32 %v3789, %v4001
  %v4320 = vadd.f32 %v3790, %v4006
  %v4321 = vadd.f32 %v3791, %v4011
  %v4322 = vadd.f32 %v3792, %v4016
  %v4323 = vadd.f32 %v3793, %v4021
  %v4324 = vadd.f32 %v3794, %v4026
  %v4325 = vadd.f32 %v3795, %v4031
  %v4326 = vadd.f32 %v3796, %v4036
  %v4327 = vadd.f32 %v3797, %v4041
  %v4328 = vadd.f32 %v3798, %v4046
  %v4329 = vadd.f32 %v3799, %v4051
  %v4330 = vadd.f32 %v3800, %v4056
  %v4331 = vadd.f32 %v3801, %v4061
  %v4332 = vadd.f32 %v3802, %v4066
  %v4333 = vadd.f32 %v3803, %v4071
  %v4334 = vadd.f32 %v3804, %v4076
  %v4335 = vadd.f32 %v3805, %v4081
  %v4336 = vadd.f32 %v3806, %v4086
  %v4337 = vadd.f32 %v3807, %v4091
  %v4338 = vadd.f32 %v3808, %v4096
  %v4339 = vadd.f32 %v3809, %v4101
  %v4340 = vadd.f32 %v3810, %v4106
  %v4341 = vadd.f32 %v3811, %v4111
  %v4342 = vadd.f32 %v3812, %v4116
  %v4343 = vadd.f32 %v3813, %v4121
  %v4344 = vadd.f32 %v3814, %v4126
  %v4345 = vadd.f32 %v3815, %v4131
  %v4346 = vadd.f32 %v3816, %v4136
  %v4347 = vadd.f32 %v3817, %v4141
  %v4348 = vadd.f32 %v3818, %v4146
  %v4349 = vadd.f32 %v3819, %v4151
  %v4350 = vadd.f32 %v3820, %v4156
  %v4351 = vadd.f32 %v3821, %v4161
  %v4352 = vadd.f32 %v3822, %v4166
  %v4353 = vadd.f32 %v3823, %v4171
  %v4354 = vadd.f32 %v3824, %v4176
  %v4355 = vadd.f32 %v3825, %v4181
  %v4356 = vadd.f32 %v3826, %v4186
  %v4357 = vadd.f32 %v3827, %v4191
  %v4358 = vadd.f32 %v3828, %v4196
  %v4359 = vadd.f32 %v3829, %v4201
  %v4360 = vadd.f32 %v3830, %v4206
  %v4361 = vadd.f32 %v3831, %v4211
  %v4362 = vadd.f32 %v3832, %v4216
  %v4363 = vadd.f32 %v3833, %v4221
  %v4364 = vadd.f32 %v3834, %v4226
  %v4365 = vadd.f32 %v3835, %v4231
  %v4366 = vadd.f32 %v3836, %v4236
  %v4367 = vadd.f32 %v3837, %v4241
  %v4368 = vadd.f32 %v3838, %v4246
  %v4369 = vadd.f32 %v3839, %v4251
  %v4370 = vadd.f32 %v3840, %v4256
  %v4371 = vadd.f32 %v3841, %v4261
  %v4372 = vadd.f32 %v3842, %v4266
  %v4373 = vadd.f32 %v3843, %v4271
  %v4374 = vadd.f32 %v3844, %v4276
  %v4375 = vadd.f32 %v3845, %v4281
  %v4376 = vadd.f32 %v3846, %v4286
  %v4377 = vadd.f32 %v3847, %v4291
  %v4378 = vadd.f32 %v3848, %v4296
  %v4379 = vadd.f32 %v3849, %v4301
  %v4380 = vadd.f32 %v3850, %v4306
  %v4381 = vadd.f32 %v3851, %v4311
  %v4382 = vadd.f32 %v3852, %v4316
  %v4383 = vld [vmem:[%s3322 + $0x2] sm:$0xff]
  %v4384 = vld [vmem:[%s3322 + $0xa] sm:$0xff]
  %v4385 = vld [vmem:[%s3322 + $0x1a] sm:$0xff]
  %v4386 = vld [vmem:[%s3322 + $0x22] sm:$0xff]
  %v4387 = vld [vmem:[%s3322 + $0x32] sm:$0xff]
  %v4388 = vld [vmem:[%s3322 + $0x3a] sm:$0xff]
  %v4389 = vld [vmem:[%s3322 + $0x4a] sm:$0xff]
  %v4390 = vld [vmem:[%s3322 + $0x52] sm:$0xff]
  %v4391 = vld [vmem:[%s3322 + $0x62] sm:$0xff]
  %v4392 = vld [vmem:[%s3322 + $0x6a] sm:$0xff]
  %v4393 = vld [vmem:[%s3322 + $0x7a] sm:$0xff]
  %v4394 = vld [vmem:[%s3322 + $0x82] sm:$0xff]
  %v4395 = vld [vmem:[%s3322 + $0x92] sm:$0xff]
  %v4396 = vld [vmem:[%s3322 + $0x9a] sm:$0xff]
  %v4397 = vld [vmem:[%s3322 + $0xaa] sm:$0xff]
  %v4398 = vld [vmem:[%s3322 + $0xb2] sm:$0xff]
  %v4399 = vld [vmem:[%s3322 + $0xc2] sm:$0xff]
  %v4400 = vld [vmem:[%s3322 + $0xca] sm:$0xff]
  %v4401 = vld [vmem:[%s3322 + $0xda] sm:$0xff]
  %v4402 = vld [vmem:[%s3322 + $0xe2] sm:$0xff]
  %v4403 = vld [vmem:[%s3322 + $0xf2] sm:$0xff]
  %v4404 = vld [vmem:[%s3322 + $0xfa] sm:$0xff]
  %v4405 = vld [vmem:[%s3322 + $0x10a] sm:$0xff]
  %v4406 = vld [vmem:[%s3322 + $0x112] sm:$0xff]
  %v4407 = vld [vmem:[%s3322 + $0x122] sm:$0xff]
  %v4408 = vld [vmem:[%s3322 + $0x12a] sm:$0xff]
  %v4409 = vld [vmem:[%s3322 + $0x13a] sm:$0xff]
  %v4410 = vld [vmem:[%s3322 + $0x142] sm:$0xff]
  %v4411 = vld [vmem:[%s3322 + $0x152] sm:$0xff]
  %v4412 = vld [vmem:[%s3322 + $0x15a] sm:$0xff]
  %v4413 = vld [vmem:[%s3322 + $0x16a] sm:$0xff]
  %v4414 = vld [vmem:[%s3322 + $0x172] sm:$0xff]
  %v4415 = vld [vmem:[%s3322 + $0x1b2] sm:$0xff]
  %v4416 = vld [vmem:[%s3322 + $0x1ba] sm:$0xff]
  %v4417 = vld [vmem:[%s3322 + $0x1ca] sm:$0xff]
  %v4418 = vld [vmem:[%s3322 + $0x1d2] sm:$0xff]
  %v4419 = vld [vmem:[%s3322 + $0x1e2] sm:$0xff]
  %v4420 = vld [vmem:[%s3322 + $0x1ea] sm:$0xff]
  %v4421 = vld [vmem:[%s3322 + $0x1fa] sm:$0xff]
  %v4422 = vld [vmem:[%s3322 + $0x202] sm:$0xff]
  %v4423 = vld [vmem:[%s3322 + $0x212] sm:$0xff]
  %v4424 = vld [vmem:[%s3322 + $0x21a] sm:$0xff]
  %v4425 = vld [vmem:[%s3322 + $0x22a] sm:$0xff]
  %v4426 = vld [vmem:[%s3322 + $0x232] sm:$0xff]
  %v4427 = vld [vmem:[%s3322 + $0x242] sm:$0xff]
  %v4428 = vld [vmem:[%s3322 + $0x24a] sm:$0xff]
  %v4429 = vld [vmem:[%s3322 + $0x25a] sm:$0xff]
  %v4430 = vld [vmem:[%s3322 + $0x262] sm:$0xff]
  %v4431 = vld [vmem:[%s3322 + $0x272] sm:$0xff]
  %v4432 = vld [vmem:[%s3322 + $0x27a] sm:$0xff]
  %v4433 = vld [vmem:[%s3322 + $0x28a] sm:$0xff]
  %v4434 = vld [vmem:[%s3322 + $0x292] sm:$0xff]
  %v4435 = vld [vmem:[%s3322 + $0x2a2] sm:$0xff]
  %v4436 = vld [vmem:[%s3322 + $0x2aa] sm:$0xff]
  %v4437 = vld [vmem:[%s3322 + $0x2ba] sm:$0xff]
  %v4438 = vld [vmem:[%s3322 + $0x2c2] sm:$0xff]
  %v4439 = vld [vmem:[%s3322 + $0x2d2] sm:$0xff]
  %v4440 = vld [vmem:[%s3322 + $0x2da] sm:$0xff]
  %v4441 = vld [vmem:[%s3322 + $0x2ea] sm:$0xff]
  %v4442 = vld [vmem:[%s3322 + $0x2f2] sm:$0xff]
  %v4443 = vld [vmem:[%s3322 + $0x302] sm:$0xff]
  %v4444 = vld [vmem:[%s3322 + $0x30a] sm:$0xff]
  %v4445 = vld [vmem:[%s3322 + $0x31a] sm:$0xff]
  %v4446 = vld [vmem:[%s3322 + $0x322] sm:$0xff]
  %s4447 = scalar_lea.vmem %s1, 1024
  %v4448 = vld [vmem:[%s4447] sm:$0xff]
  %v4449 = vld [vmem:[%s4447 + $0x8] sm:$0xff]
  %v4450 = vld [vmem:[%s4447 + $0x10] sm:$0xff]
  %v4451 = vld [vmem:[%s4447 + $0x18] sm:$0xff]
  %v4452 = vld [vmem:[%s4447 + $0x20] sm:$0xff]
  %v4453 = vld [vmem:[%s4447 + $0x28] sm:$0xff]
  %v4454 = vld [vmem:[%s4447 + $0x30] sm:$0xff]
  %v4455 = vld [vmem:[%s4447 + $0x38] sm:$0xff]
  %v4456 = vld [vmem:[%s4447 + $0x40] sm:$0xff]
  %v4457 = vld [vmem:[%s4447 + $0x48] sm:$0xff]
  %v4458 = vld [vmem:[%s4447 + $0x50] sm:$0xff]
  %v4459 = vld [vmem:[%s4447 + $0x58] sm:$0xff]
  %v4460 = vld [vmem:[%s4447 + $0x60] sm:$0xff]
  %v4461 = vld [vmem:[%s4447 + $0x68] sm:$0xff]
  %v4462 = vld [vmem:[%s4447 + $0x70] sm:$0xff]
  %v4463 = vld [vmem:[%s4447 + $0x78] sm:$0xff]
  %4464 = vmatprep.subr.mxu0 0.0
  %4465 = vmatpush1.msra.mxu0 %v4448
  %4466 = vmatprep.subr.mxu0 0.0
  %4467 = vmatpush1.msra.mxu0 %v4449
  %4468 = vmatprep.subr.mxu0 0.0
  %4469 = vmatpush1.msra.mxu0 %v4450
  %4470 = vmatprep.subr.mxu0 0.0
  %4471 = vmatpush1.msra.mxu0 %v4451
  %4472 = vmatprep.subr.mxu0 0.0
  %4473 = vmatpush1.msra.mxu0 %v4452
  %4474 = vmatprep.subr.mxu0 0.0
  %4475 = vmatpush1.msra.mxu0 %v4453
  %4476 = vmatprep.subr.mxu0 0.0
  %4477 = vmatpush1.msra.mxu0 %v4454
  %4478 = vmatprep.subr.mxu0 0.0
  %4479 = vmatpush1.msra.mxu0 %v4455
  %4480 = vmatprep.subr.mxu0 0.0
  %4481 = vmatpush1.msra.mxu0 %v4456
  %4482 = vmatprep.subr.mxu0 0.0
  %4483 = vmatpush1.msra.mxu0 %v4457
  %4484 = vmatprep.subr.mxu0 0.0
  %4485 = vmatpush1.msra.mxu0 %v4458
  %4486 = vmatprep.subr.mxu0 0.0
  %4487 = vmatpush1.msra.mxu0 %v4459
  %4488 = vmatprep.subr.mxu0 0.0
  %4489 = vmatpush1.msra.mxu0 %v4460
  %4490 = vmatprep.subr.mxu0 0.0
  %4491 = vmatpush1.msra.mxu0 %v4461
  %4492 = vmatprep.subr.mxu0 0.0
  %4493 = vmatpush1.msra.mxu0 %v4462
  %4494 = vmatprep.subr.mxu0 0.0
  %4495 = vmatpush1.msra.mxu0 %v4463
  %4496 = vmatprep.subr.mxu0 0.0
  %4497 = vmatpush1.msra.mxu0 0.0
  %4498 = vmatprep.subr.mxu0 0.0
  %4499 = vmatpush1.msra.mxu0 0.0
  %4500 = vmatprep.subr.mxu0 0.0
  %4501 = vmatpush1.msra.mxu0 0.0
  %4502 = vmatprep.subr.mxu0 0.0
  %4503 = vmatpush1.msra.mxu0 0.0
  %4504 = vmatprep.subr.mxu0 0.0
  %4505 = vmatpush1.msra.mxu0 0.0
  %4506 = vmatprep.subr.mxu0 0.0
  %4507 = vmatpush1.msra.mxu0 0.0
  %4508 = vmatprep.subr.mxu0 0.0
  %4509 = vmatpush1.msra.mxu0 0.0
  %4510 = vmatprep.subr.mxu0 0.0
  %4511 = vmatpush1.msra.mxu0 0.0
  %4512 = vmatprep.subr.mxu0 0.0
  %4513 = vmatpush1.msra.mxu0 0.0
  %4514 = vmatprep.subr.mxu0 0.0
  %4515 = vmatpush1.msra.mxu0 0.0
  %4516 = vmatprep.subr.mxu0 0.0
  %4517 = vmatpush1.msra.mxu0 0.0
  %4518 = vmatprep.subr.mxu0 0.0
  %4519 = vmatpush1.msra.mxu0 0.0
  %4520 = vmatprep.subr.mxu0 0.0
  %4521 = vmatpush1.msra.mxu0 0.0
  %4522 = vmatprep.subr.mxu0 0.0
  %4523 = vmatpush1.msra.mxu0 0.0
  %4524 = vmatprep.subr.mxu0 0.0
  %4525 = vmatpush1.msra.mxu0 0.0
  %4526 = vmatprep.subr.mxu0 0.0
  %4527 = vmatpush1.msra.mxu0 0.0
  %4528 = vmatprep.mubr.f32.mxu0 0.0
  %4529 = vmatmul.mubr.f32.gmra.mrb[0].mxu0 %v4383
  %v4530 = vpop.f32.mrb[0].mxu0
  %v4531 = vadd.f32 0.0, %v4530
  %v4532 = vpop.f32.mrb[0].mxu0
  %4533 = vmatprep.mubr.f32.mxu0 0.0
  %4534 = vmatmul.mubr.f32.gmra.mrb[0].mxu0 %v4384
  %v4535 = vpop.f32.mrb[0].mxu0
  %v4536 = vadd.f32 0.0, %v4535
  %v4537 = vpop.f32.mrb[0].mxu0
  %4538 = vmatprep.mubr.f32.mxu0 0.0
  %4539 = vmatmul.mubr.f32.gmra.mrb[0].mxu0 %v4385
  %v4540 = vpop.f32.mrb[0].mxu0
  %v4541 = vadd.f32 0.0, %v4540
  %v4542 = vpop.f32.mrb[0].mxu0
  %4543 = vmatprep.mubr.f32.mxu0 0.0
  %4544 = vmatmul.mubr.f32.gmra.mrb[0].mxu0 %v4386
  %v4545 = vpop.f32.mrb[0].mxu0
  %v4546 = vadd.f32 0.0, %v4545
  %v4547 = vpop.f32.mrb[0].mxu0
  %4548 = vmatprep.mubr.f32.mxu0 0.0
  %4549 = vmatmul.mubr.f32.gmra.mrb[0].mxu0 %v4387
  %v4550 = vpop.f32.mrb[0].mxu0
  %v4551 = vadd.f32 0.0, %v4550
  %v4552 = vpop.f32.mrb[0].mxu0
  %4553 = vmatprep.mubr.f32.mxu0 0.0
  %4554 = vmatmul.mubr.f32.gmra.mrb[0].mxu0 %v4388
  %v4555 = vpop.f32.mrb[0].mxu0
  %v4556 = vadd.f32 0.0, %v4555
  %v4557 = vpop.f32.mrb[0].mxu0
  %4558 = vmatprep.mubr.f32.mxu0 0.0
  %4559 = vmatmul.mubr.f32.gmra.mrb[0].mxu0 %v4389
  %v4560 = vpop.f32.mrb[0].mxu0
  %v4561 = vadd.f32 0.0, %v4560
  %v4562 = vpop.f32.mrb[0].mxu0
  %4563 = vmatprep.mubr.f32.mxu0 0.0
  %4564 = vmatmul.mubr.f32.gmra.mrb[0].mxu0 %v4390
  %v4565 = vpop.f32.mrb[0].mxu0
  %v4566 = vadd.f32 0.0, %v4565
  %v4567 = vpop.f32.mrb[0].mxu0
  %4568 = vmatprep.mubr.f32.mxu0 0.0
  %4569 = vmatmul.mubr.f32.gmra.mrb[0].mxu0 %v4391
  %v4570 = vpop.f32.mrb[0].mxu0
  %v4571 = vadd.f32 0.0, %v4570
  %v4572 = vpop.f32.mrb[0].mxu0
  %4573 = vmatprep.mubr.f32.mxu0 0.0
  %4574 = vmatmul.mubr.f32.gmra.mrb[0].mxu0 %v4392
  %v4575 = vpop.f32.mrb[0].mxu0
  %v4576 = vadd.f32 0.0, %v4575
  %v4577 = vpop.f32.mrb[0].mxu0
  %4578 = vmatprep.mubr.f32.mxu0 0.0
  %4579 = vmatmul.mubr.f32.gmra.mrb[0].mxu0 %v4393
  %v4580 = vpop.f32.mrb[0].mxu0
  %v4581 = vadd.f32 0.0, %v4580
  %v4582 = vpop.f32.mrb[0].mxu0
  %4583 = vmatprep.mubr.f32.mxu0 0.0
  %4584 = vmatmul.mubr.f32.gmra.mrb[0].mxu0 %v4394
  %v4585 = vpop.f32.mrb[0].mxu0
  %v4586 = vadd.f32 0.0, %v4585
  %v4587 = vpop.f32.mrb[0].mxu0
  %4588 = vmatprep.mubr.f32.mxu0 0.0
  %4589 = vmatmul.mubr.f32.gmra.mrb[0].mxu0 %v4395
  %v4590 = vpop.f32.mrb[0].mxu0
  %v4591 = vadd.f32 0.0, %v4590
  %v4592 = vpop.f32.mrb[0].mxu0
  %4593 = vmatprep.mubr.f32.mxu0 0.0
  %4594 = vmatmul.mubr.f32.gmra.mrb[0].mxu0 %v4396
  %v4595 = vpop.f32.mrb[0].mxu0
  %v4596 = vadd.f32 0.0, %v4595
  %v4597 = vpop.f32.mrb[0].mxu0
  %4598 = vmatprep.mubr.f32.mxu0 0.0
  %4599 = vmatmul.mubr.f32.gmra.mrb[0].mxu0 %v4397
  %v4600 = vpop.f32.mrb[0].mxu0
  %v4601 = vadd.f32 0.0, %v4600
  %v4602 = vpop.f32.mrb[0].mxu0
  %4603 = vmatprep.mubr.f32.mxu0 0.0
  %4604 = vmatmul.mubr.f32.gmra.mrb[0].mxu0 %v4398
  %v4605 = vpop.f32.mrb[0].mxu0
  %v4606 = vadd.f32 0.0, %v4605
  %v4607 = vpop.f32.mrb[0].mxu0
  %4608 = vmatprep.mubr.f32.mxu0 0.0
  %4609 = vmatmul.mubr.f32.gmra.mrb[0].mxu0 %v4399
  %v4610 = vpop.f32.mrb[0].mxu0
  %v4611 = vadd.f32 0.0, %v4610
  %v4612 = vpop.f32.mrb[0].mxu0
  %4613 = vmatprep.mubr.f32.mxu0 0.0
  %4614 = vmatmul.mubr.f32.gmra.mrb[0].mxu0 %v4400
  %v4615 = vpop.f32.mrb[0].mxu0
  %v4616 = vadd.f32 0.0, %v4615
  %v4617 = vpop.f32.mrb[0].mxu0
  %4618 = vmatprep.mubr.f32.mxu0 0.0
  %4619 = vmatmul.mubr.f32.gmra.mrb[0].mxu0 %v4401
  %v4620 = vpop.f32.mrb[0].mxu0
  %v4621 = vadd.f32 0.0, %v4620
  %v4622 = vpop.f32.mrb[0].mxu0
  %4623 = vmatprep.mubr.f32.mxu0 0.0
  %4624 = vmatmul.mubr.f32.gmra.mrb[0].mxu0 %v4402
  %v4625 = vpop.f32.mrb[0].mxu0
  %v4626 = vadd.f32 0.0, %v4625
  %v4627 = vpop.f32.mrb[0].mxu0
  %4628 = vmatprep.mubr.f32.mxu0 0.0
  %4629 = vmatmul.mubr.f32.gmra.mrb[0].mxu0 %v4403
  %v4630 = vpop.f32.mrb[0].mxu0
  %v4631 = vadd.f32 0.0, %v4630
  %v4632 = vpop.f32.mrb[0].mxu0
  %4633 = vmatprep.mubr.f32.mxu0 0.0
  %4634 = vmatmul.mubr.f32.gmra.mrb[0].mxu0 %v4404
  %v4635 = vpop.f32.mrb[0].mxu0
  %v4636 = vadd.f32 0.0, %v4635
  %v4637 = vpop.f32.mrb[0].mxu0
  %4638 = vmatprep.mubr.f32.mxu0 0.0
  %4639 = vmatmul.mubr.f32.gmra.mrb[0].mxu0 %v4405
  %v4640 = vpop.f32.mrb[0].mxu0
  %v4641 = vadd.f32 0.0, %v4640
  %v4642 = vpop.f32.mrb[0].mxu0
  %4643 = vmatprep.mubr.f32.mxu0 0.0
  %4644 = vmatmul.mubr.f32.gmra.mrb[0].mxu0 %v4406
  %v4645 = vpop.f32.mrb[0].mxu0
  %v4646 = vadd.f32 0.0, %v4645
  %v4647 = vpop.f32.mrb[0].mxu0
  %4648 = vmatprep.mubr.f32.mxu0 0.0
  %4649 = vmatmul.mubr.f32.gmra.mrb[0].mxu0 %v4407
  %v4650 = vpop.f32.mrb[0].mxu0
  %v4651 = vadd.f32 0.0, %v4650
  %v4652 = vpop.f32.mrb[0].mxu0
  %4653 = vmatprep.mubr.f32.mxu0 0.0
  %4654 = vmatmul.mubr.f32.gmra.mrb[0].mxu0 %v4408
  %v4655 = vpop.f32.mrb[0].mxu0
  %v4656 = vadd.f32 0.0, %v4655
  %v4657 = vpop.f32.mrb[0].mxu0
  %4658 = vmatprep.mubr.f32.mxu0 0.0
  %4659 = vmatmul.mubr.f32.gmra.mrb[0].mxu0 %v4409
  %v4660 = vpop.f32.mrb[0].mxu0
  %v4661 = vadd.f32 0.0, %v4660
  %v4662 = vpop.f32.mrb[0].mxu0
  %4663 = vmatprep.mubr.f32.mxu0 0.0
  %4664 = vmatmul.mubr.f32.gmra.mrb[0].mxu0 %v4410
  %v4665 = vpop.f32.mrb[0].mxu0
  %v4666 = vadd.f32 0.0, %v4665
  %v4667 = vpop.f32.mrb[0].mxu0
  %4668 = vmatprep.mubr.f32.mxu0 0.0
  %4669 = vmatmul.mubr.f32.gmra.mrb[0].mxu0 %v4411
  %v4670 = vpop.f32.mrb[0].mxu0
  %v4671 = vadd.f32 0.0, %v4670
  %v4672 = vpop.f32.mrb[0].mxu0
  %4673 = vmatprep.mubr.f32.mxu0 0.0
  %4674 = vmatmul.mubr.f32.gmra.mrb[0].mxu0 %v4412
  %v4675 = vpop.f32.mrb[0].mxu0
  %v4676 = vadd.f32 0.0, %v4675
  %v4677 = vpop.f32.mrb[0].mxu0
  %4678 = vmatprep.mubr.f32.mxu0 0.0
  %4679 = vmatmul.mubr.f32.gmra.mrb[0].mxu0 %v4413
  %v4680 = vpop.f32.mrb[0].mxu0
  %v4681 = vadd.f32 0.0, %v4680
  %v4682 = vpop.f32.mrb[0].mxu0
  %4683 = vmatprep.mubr.f32.mxu0 0.0
  %4684 = vmatmul.mubr.f32.gmra.mrb[0].mxu0 %v4414
  %v4685 = vpop.f32.mrb[0].mxu0
  %v4686 = vadd.f32 0.0, %v4685
  %v4687 = vpop.f32.mrb[0].mxu0
  %4688 = vmatprep.mubr.f32.mxu0 0.0
  %4689 = vmatmul.mubr.f32.gmra.mrb[0].mxu0 %v4415
  %v4690 = vpop.f32.mrb[0].mxu0
  %v4691 = vadd.f32 0.0, %v4690
  %v4692 = vpop.f32.mrb[0].mxu0
  %4693 = vmatprep.mubr.f32.mxu0 0.0
  %4694 = vmatmul.mubr.f32.gmra.mrb[0].mxu0 %v4416
  %v4695 = vpop.f32.mrb[0].mxu0
  %v4696 = vadd.f32 0.0, %v4695
  %v4697 = vpop.f32.mrb[0].mxu0
  %4698 = vmatprep.mubr.f32.mxu0 0.0
  %4699 = vmatmul.mubr.f32.gmra.mrb[0].mxu0 %v4417
  %v4700 = vpop.f32.mrb[0].mxu0
  %v4701 = vadd.f32 0.0, %v4700
  %v4702 = vpop.f32.mrb[0].mxu0
  %4703 = vmatprep.mubr.f32.mxu0 0.0
  %4704 = vmatmul.mubr.f32.gmra.mrb[0].mxu0 %v4418
  %v4705 = vpop.f32.mrb[0].mxu0
  %v4706 = vadd.f32 0.0, %v4705
  %v4707 = vpop.f32.mrb[0].mxu0
  %4708 = vmatprep.mubr.f32.mxu0 0.0
  %4709 = vmatmul.mubr.f32.gmra.mrb[0].mxu0 %v4419
  %v4710 = vpop.f32.mrb[0].mxu0
  %v4711 = vadd.f32 0.0, %v4710
  %v4712 = vpop.f32.mrb[0].mxu0
  %4713 = vmatprep.mubr.f32.mxu0 0.0
  %4714 = vmatmul.mubr.f32.gmra.mrb[0].mxu0 %v4420
  %v4715 = vpop.f32.mrb[0].mxu0
  %v4716 = vadd.f32 0.0, %v4715
  %v4717 = vpop.f32.mrb[0].mxu0
  %4718 = vmatprep.mubr.f32.mxu0 0.0
  %4719 = vmatmul.mubr.f32.gmra.mrb[0].mxu0 %v4421
  %v4720 = vpop.f32.mrb[0].mxu0
  %v4721 = vadd.f32 0.0, %v4720
  %v4722 = vpop.f32.mrb[0].mxu0
  %4723 = vmatprep.mubr.f32.mxu0 0.0
  %4724 = vmatmul.mubr.f32.gmra.mrb[0].mxu0 %v4422
  %v4725 = vpop.f32.mrb[0].mxu0
  %v4726 = vadd.f32 0.0, %v4725
  %v4727 = vpop.f32.mrb[0].mxu0
  %4728 = vmatprep.mubr.f32.mxu0 0.0
  %4729 = vmatmul.mubr.f32.gmra.mrb[0].mxu0 %v4423
  %v4730 = vpop.f32.mrb[0].mxu0
  %v4731 = vadd.f32 0.0, %v4730
  %v4732 = vpop.f32.mrb[0].mxu0
  %4733 = vmatprep.mubr.f32.mxu0 0.0
  %4734 = vmatmul.mubr.f32.gmra.mrb[0].mxu0 %v4424
  %v4735 = vpop.f32.mrb[0].mxu0
  %v4736 = vadd.f32 0.0, %v4735
  %v4737 = vpop.f32.mrb[0].mxu0
  %4738 = vmatprep.mubr.f32.mxu0 0.0
  %4739 = vmatmul.mubr.f32.gmra.mrb[0].mxu0 %v4425
  %v4740 = vpop.f32.mrb[0].mxu0
  %v4741 = vadd.f32 0.0, %v4740
  %v4742 = vpop.f32.mrb[0].mxu0
  %4743 = vmatprep.mubr.f32.mxu0 0.0
  %4744 = vmatmul.mubr.f32.gmra.mrb[0].mxu0 %v4426
  %v4745 = vpop.f32.mrb[0].mxu0
  %v4746 = vadd.f32 0.0, %v4745
  %v4747 = vpop.f32.mrb[0].mxu0
  %4748 = vmatprep.mubr.f32.mxu0 0.0
  %4749 = vmatmul.mubr.f32.gmra.mrb[0].mxu0 %v4427
  %v4750 = vpop.f32.mrb[0].mxu0
  %v4751 = vadd.f32 0.0, %v4750
  %v4752 = vpop.f32.mrb[0].mxu0
  %4753 = vmatprep.mubr.f32.mxu0 0.0
  %4754 = vmatmul.mubr.f32.gmra.mrb[0].mxu0 %v4428
  %v4755 = vpop.f32.mrb[0].mxu0
  %v4756 = vadd.f32 0.0, %v4755
  %v4757 = vpop.f32.mrb[0].mxu0
  %4758 = vmatprep.mubr.f32.mxu0 0.0
  %4759 = vmatmul.mubr.f32.gmra.mrb[0].mxu0 %v4429
  %v4760 = vpop.f32.mrb[0].mxu0
  %v4761 = vadd.f32 0.0, %v4760
  %v4762 = vpop.f32.mrb[0].mxu0
  %4763 = vmatprep.mubr.f32.mxu0 0.0
  %4764 = vmatmul.mubr.f32.gmra.mrb[0].mxu0 %v4430
  %v4765 = vpop.f32.mrb[0].mxu0
  %v4766 = vadd.f32 0.0, %v4765
  %v4767 = vpop.f32.mrb[0].mxu0
  %4768 = vmatprep.mubr.f32.mxu0 0.0
  %4769 = vmatmul.mubr.f32.gmra.mrb[0].mxu0 %v4431
  %v4770 = vpop.f32.mrb[0].mxu0
  %v4771 = vadd.f32 0.0, %v4770
  %v4772 = vpop.f32.mrb[0].mxu0
  %4773 = vmatprep.mubr.f32.mxu0 0.0
  %4774 = vmatmul.mubr.f32.gmra.mrb[0].mxu0 %v4432
  %v4775 = vpop.f32.mrb[0].mxu0
  %v4776 = vadd.f32 0.0, %v4775
  %v4777 = vpop.f32.mrb[0].mxu0
  %4778 = vmatprep.mubr.f32.mxu0 0.0
  %4779 = vmatmul.mubr.f32.gmra.mrb[0].mxu0 %v4433
  %v4780 = vpop.f32.mrb[0].mxu0
  %v4781 = vadd.f32 0.0, %v4780
  %v4782 = vpop.f32.mrb[0].mxu0
  %4783 = vmatprep.mubr.f32.mxu0 0.0
  %4784 = vmatmul.mubr.f32.gmra.mrb[0].mxu0 %v4434
  %v4785 = vpop.f32.mrb[0].mxu0
  %v4786 = vadd.f32 0.0, %v4785
  %v4787 = vpop.f32.mrb[0].mxu0
  %4788 = vmatprep.mubr.f32.mxu0 0.0
  %4789 = vmatmul.mubr.f32.gmra.mrb[0].mxu0 %v4435
  %v4790 = vpop.f32.mrb[0].mxu0
  %v4791 = vadd.f32 0.0, %v4790
  %v4792 = vpop.f32.mrb[0].mxu0
  %4793 = vmatprep.mubr.f32.mxu0 0.0
  %4794 = vmatmul.mubr.f32.gmra.mrb[0].mxu0 %v4436
  %v4795 = vpop.f32.mrb[0].mxu0
  %v4796 = vadd.f32 0.0, %v4795
  %v4797 = vpop.f32.mrb[0].mxu0
  %4798 = vmatprep.mubr.f32.mxu0 0.0
  %4799 = vmatmul.mubr.f32.gmra.mrb[0].mxu0 %v4437
  %v4800 = vpop.f32.mrb[0].mxu0
  %v4801 = vadd.f32 0.0, %v4800
  %v4802 = vpop.f32.mrb[0].mxu0
  %4803 = vmatprep.mubr.f32.mxu0 0.0
  %4804 = vmatmul.mubr.f32.gmra.mrb[0].mxu0 %v4438
  %v4805 = vpop.f32.mrb[0].mxu0
  %v4806 = vadd.f32 0.0, %v4805
  %v4807 = vpop.f32.mrb[0].mxu0
  %4808 = vmatprep.mubr.f32.mxu0 0.0
  %4809 = vmatmul.mubr.f32.gmra.mrb[0].mxu0 %v4439
  %v4810 = vpop.f32.mrb[0].mxu0
  %v4811 = vadd.f32 0.0, %v4810
  %v4812 = vpop.f32.mrb[0].mxu0
  %4813 = vmatprep.mubr.f32.mxu0 0.0
  %4814 = vmatmul.mubr.f32.gmra.mrb[0].mxu0 %v4440
  %v4815 = vpop.f32.mrb[0].mxu0
  %v4816 = vadd.f32 0.0, %v4815
  %v4817 = vpop.f32.mrb[0].mxu0
  %4818 = vmatprep.mubr.f32.mxu0 0.0
  %4819 = vmatmul.mubr.f32.gmra.mrb[0].mxu0 %v4441
  %v4820 = vpop.f32.mrb[0].mxu0
  %v4821 = vadd.f32 0.0, %v4820
  %v4822 = vpop.f32.mrb[0].mxu0
  %4823 = vmatprep.mubr.f32.mxu0 0.0
  %4824 = vmatmul.mubr.f32.gmra.mrb[0].mxu0 %v4442
  %v4825 = vpop.f32.mrb[0].mxu0
  %v4826 = vadd.f32 0.0, %v4825
  %v4827 = vpop.f32.mrb[0].mxu0
  %4828 = vmatprep.mubr.f32.mxu0 0.0
  %4829 = vmatmul.mubr.f32.gmra.mrb[0].mxu0 %v4443
  %v4830 = vpop.f32.mrb[0].mxu0
  %v4831 = vadd.f32 0.0, %v4830
  %v4832 = vpop.f32.mrb[0].mxu0
  %4833 = vmatprep.mubr.f32.mxu0 0.0
  %4834 = vmatmul.mubr.f32.gmra.mrb[0].mxu0 %v4444
  %v4835 = vpop.f32.mrb[0].mxu0
  %v4836 = vadd.f32 0.0, %v4835
  %v4837 = vpop.f32.mrb[0].mxu0
  %4838 = vmatprep.mubr.f32.mxu0 0.0
  %4839 = vmatmul.mubr.f32.gmra.mrb[0].mxu0 %v4445
  %v4840 = vpop.f32.mrb[0].mxu0
  %v4841 = vadd.f32 0.0, %v4840
  %v4842 = vpop.f32.mrb[0].mxu0
  %4843 = vmatprep.mubr.f32.mxu0 0.0
  %4844 = vmatmul.mubr.f32.gmra.mrb[0].mxu0 %v4446
  %v4845 = vpop.f32.mrb[0].mxu0
  %v4846 = vadd.f32 0.0, %v4845
  %v4847 = vpop.f32.mrb[0].mxu0
  %4848 = vdwg.mxu0
  %v4849 = vadd.f32 %v4319, %v4531
  %v4850 = vadd.f32 %v4320, %v4536
  %v4851 = vadd.f32 %v4321, %v4541
  %v4852 = vadd.f32 %v4322, %v4546
  %v4853 = vadd.f32 %v4323, %v4551
  %v4854 = vadd.f32 %v4324, %v4556
  %v4855 = vadd.f32 %v4325, %v4561
  %v4856 = vadd.f32 %v4326, %v4566
  %v4857 = vadd.f32 %v4327, %v4571
  %v4858 = vadd.f32 %v4328, %v4576
  %v4859 = vadd.f32 %v4329, %v4581
  %v4860 = vadd.f32 %v4330, %v4586
  %v4861 = vadd.f32 %v4331, %v4591
  %v4862 = vadd.f32 %v4332, %v4596
  %v4863 = vadd.f32 %v4333, %v4601
  %v4864 = vadd.f32 %v4334, %v4606
  %v4865 = vadd.f32 %v4335, %v4611
  %v4866 = vadd.f32 %v4336, %v4616
  %v4867 = vadd.f32 %v4337, %v4621
  %v4868 = vadd.f32 %v4338, %v4626
  %v4869 = vadd.f32 %v4339, %v4631
  %v4870 = vadd.f32 %v4340, %v4636
  %v4871 = vadd.f32 %v4341, %v4641
  %v4872 = vadd.f32 %v4342, %v4646
  %v4873 = vadd.f32 %v4343, %v4651
  %v4874 = vadd.f32 %v4344, %v4656
  %v4875 = vadd.f32 %v4345, %v4661
  %v4876 = vadd.f32 %v4346, %v4666
  %v4877 = vadd.f32 %v4347, %v4671
  %v4878 = vadd.f32 %v4348, %v4676
  %v4879 = vadd.f32 %v4349, %v4681
  %v4880 = vadd.f32 %v4350, %v4686
  %v4881 = vadd.f32 %v4351, %v4691
  %v4882 = vadd.f32 %v4352, %v4696
  %v4883 = vadd.f32 %v4353, %v4701
  %v4884 = vadd.f32 %v4354, %v4706
  %v4885 = vadd.f32 %v4355, %v4711
  %v4886 = vadd.f32 %v4356, %v4716
  %v4887 = vadd.f32 %v4357, %v4721
  %v4888 = vadd.f32 %v4358, %v4726
  %v4889 = vadd.f32 %v4359, %v4731
  %v4890 = vadd.f32 %v4360, %v4736
  %v4891 = vadd.f32 %v4361, %v4741
  %v4892 = vadd.f32 %v4362, %v4746
  %v4893 = vadd.f32 %v4363, %v4751
  %v4894 = vadd.f32 %v4364, %v4756
  %v4895 = vadd.f32 %v4365, %v4761
  %v4896 = vadd.f32 %v4366, %v4766
  %v4897 = vadd.f32 %v4367, %v4771
  %v4898 = vadd.f32 %v4368, %v4776
  %v4899 = vadd.f32 %v4369, %v4781
  %v4900 = vadd.f32 %v4370, %v4786
  %v4901 = vadd.f32 %v4371, %v4791
  %v4902 = vadd.f32 %v4372, %v4796
  %v4903 = vadd.f32 %v4373, %v4801
  %v4904 = vadd.f32 %v4374, %v4806
  %v4905 = vadd.f32 %v4375, %v4811
  %v4906 = vadd.f32 %v4376, %v4816
  %v4907 = vadd.f32 %v4377, %v4821
  %v4908 = vadd.f32 %v4378, %v4826
  %v4909 = vadd.f32 %v4379, %v4831
  %v4910 = vadd.f32 %v4380, %v4836
  %v4911 = vadd.f32 %v4381, %v4841
  %v4912 = vadd.f32 %v4382, %v4846
  %v4914 = vlaneseq
  %v4915 = vshrl.u32 %v4914, 7
  %v4916 = vsub.s32 0, %v4915
  %v4917 = vrot.slane %v270, %v4916
  %v4919 = vadd.f32 %v4849, %v4917
  %v4920 = vadd.f32 %v4850, %v4917
  %v4921 = vadd.f32 %v4851, %v4917
  %v4922 = vadd.f32 %v4852, %v4917
  %v4923 = vadd.f32 %v4853, %v4917
  %v4924 = vadd.f32 %v4854, %v4917
  %v4925 = vadd.f32 %v4855, %v4917
  %v4926 = vadd.f32 %v4856, %v4917
  %v4927 = vadd.f32 %v4857, %v4917
  %v4928 = vadd.f32 %v4858, %v4917
  %v4929 = vadd.f32 %v4859, %v4917
  %v4930 = vadd.f32 %v4860, %v4917
  %v4931 = vadd.f32 %v4861, %v4917
  %v4932 = vadd.f32 %v4862, %v4917
  %v4933 = vadd.f32 %v4863, %v4917
  %v4934 = vadd.f32 %v4864, %v4917
  %v4935 = vadd.f32 %v4865, %v4917
  %v4936 = vadd.f32 %v4866, %v4917
  %v4937 = vadd.f32 %v4867, %v4917
  %v4938 = vadd.f32 %v4868, %v4917
  %v4939 = vadd.f32 %v4869, %v4917
  %v4940 = vadd.f32 %v4870, %v4917
  %v4941 = vadd.f32 %v4871, %v4917
  %v4942 = vadd.f32 %v4872, %v4917
  %v4943 = vadd.f32 %v4873, %v4917
  %v4944 = vadd.f32 %v4874, %v4917
  %v4945 = vadd.f32 %v4875, %v4917
  %v4946 = vadd.f32 %v4876, %v4917
  %v4947 = vadd.f32 %v4877, %v4917
  %v4948 = vadd.f32 %v4878, %v4917
  %v4949 = vadd.f32 %v4879, %v4917
  %v4950 = vadd.f32 %v4880, %v4917
  %v4951 = vadd.f32 %v4881, %v4917
  %v4952 = vadd.f32 %v4882, %v4917
  %v4953 = vadd.f32 %v4883, %v4917
  %v4954 = vadd.f32 %v4884, %v4917
  %v4955 = vadd.f32 %v4885, %v4917
  %v4956 = vadd.f32 %v4886, %v4917
  %v4957 = vadd.f32 %v4887, %v4917
  %v4958 = vadd.f32 %v4888, %v4917
  %v4959 = vadd.f32 %v4889, %v4917
  %v4960 = vadd.f32 %v4890, %v4917
  %v4961 = vadd.f32 %v4891, %v4917
  %v4962 = vadd.f32 %v4892, %v4917
  %v4963 = vadd.f32 %v4893, %v4917
  %v4964 = vadd.f32 %v4894, %v4917
  %v4965 = vadd.f32 %v4895, %v4917
  %v4966 = vadd.f32 %v4896, %v4917
  %v4967 = vadd.f32 %v4897, %v4917
  %v4968 = vadd.f32 %v4898, %v4917
  %v4969 = vadd.f32 %v4899, %v4917
  %v4970 = vadd.f32 %v4900, %v4917
  %v4971 = vadd.f32 %v4901, %v4917
  %v4972 = vadd.f32 %v4902, %v4917
  %v4973 = vadd.f32 %v4903, %v4917
  %v4974 = vadd.f32 %v4904, %v4917
  %v4975 = vadd.f32 %v4905, %v4917
  %v4976 = vadd.f32 %v4906, %v4917
  %v4977 = vadd.f32 %v4907, %v4917
  %v4978 = vadd.f32 %v4908, %v4917
  %v4979 = vadd.f32 %v4909, %v4917
  %v4980 = vadd.f32 %v4910, %v4917
  %v4981 = vadd.f32 %v4911, %v4917
  %v4982 = vadd.f32 %v4912, %v4917
  %v4983 = vld [vmem:[%s3] sm:$0x1]
  %v4984 = vld [vmem:[%s4] sm:$0x1]
  %v4985 = vadd.f32 %v4919, %v4920
  %v4986 = vadd.f32 %v4985, %v4921
  %v4987 = vadd.f32 %v4986, %v4922
  %v4988 = vadd.f32 %v4987, %v4923
  %v4989 = vadd.f32 %v4988, %v4924
  %v4990 = vadd.f32 %v4989, %v4925
  %v4991 = vadd.f32 %v4990, %v4926
  %v4992 = vadd.f32 %v4991, %v4927
  %v4993 = vadd.f32 %v4992, %v4928
  %v4994 = vadd.f32 %v4993, %v4929
  %v4995 = vadd.f32 %v4994, %v4930
  %v4996 = vadd.f32 %v4995, %v4931
  %v4997 = vadd.f32 %v4996, %v4932
  %v4998 = vadd.f32 %v4997, %v4933
  %v4999 = vadd.f32 %v4998, %v4934
  %v5000 = vadd.f32 %v4999, %v4935
  %v5001 = vadd.f32 %v5000, %v4936
  %v5002 = vadd.f32 %v5001, %v4937
  %v5003 = vadd.f32 %v5002, %v4938
  %v5004 = vadd.f32 %v5003, %v4939
  %v5005 = vadd.f32 %v5004, %v4940
  %v5006 = vadd.f32 %v5005, %v4941
  %v5007 = vadd.f32 %v5006, %v4942
  %v5008 = vadd.f32 %v5007, %v4943
  %v5009 = vadd.f32 %v5008, %v4944
  %v5010 = vadd.f32 %v5009, %v4945
  %v5011 = vadd.f32 %v5010, %v4946
  %v5012 = vadd.f32 %v5011, %v4947
  %v5013 = vadd.f32 %v5012, %v4948
  %v5014 = vadd.f32 %v5013, %v4949
  %v5015 = vadd.f32 %v5014, %v4950
  %v5016 = vadd.f32 %v5015, %v4951
  %v5017 = vadd.f32 %v5016, %v4952
  %v5018 = vadd.f32 %v5017, %v4953
  %v5019 = vadd.f32 %v5018, %v4954
  %v5020 = vadd.f32 %v5019, %v4955
  %v5021 = vadd.f32 %v5020, %v4956
  %v5022 = vadd.f32 %v5021, %v4957
  %v5023 = vadd.f32 %v5022, %v4958
  %v5024 = vadd.f32 %v5023, %v4959
  %v5025 = vadd.f32 %v5024, %v4960
  %v5026 = vadd.f32 %v5025, %v4961
  %v5027 = vadd.f32 %v5026, %v4962
  %v5028 = vadd.f32 %v5027, %v4963
  %v5029 = vadd.f32 %v5028, %v4964
  %v5030 = vadd.f32 %v5029, %v4965
  %v5031 = vadd.f32 %v5030, %v4966
  %v5032 = vadd.f32 %v5031, %v4967
  %v5033 = vadd.f32 %v5032, %v4968
  %v5034 = vadd.f32 %v5033, %v4969
  %v5035 = vadd.f32 %v5034, %v4970
  %v5036 = vadd.f32 %v5035, %v4971
  %v5037 = vadd.f32 %v5036, %v4972
  %v5038 = vadd.f32 %v5037, %v4973
  %v5039 = vadd.f32 %v5038, %v4974
  %v5040 = vadd.f32 %v5039, %v4975
  %v5041 = vadd.f32 %v5040, %v4976
  %v5042 = vadd.f32 %v5041, %v4977
  %v5043 = vadd.f32 %v5042, %v4978
  %v5044 = vadd.f32 %v5043, %v4979
  %v5045 = vadd.f32 %v5044, %v4980
  %v5046 = vadd.f32 %v5045, %v4981
  %v5047 = vadd.f32 %v5046, %v4982
  %v5048 = vrot.slane %v5047, 4
  %v5049 = vadd.f32 %v5047, %v5048
  %v5050 = vrot.slane %v5049, 2
  %v5051 = vadd.f32 %v5049, %v5050
  %v5052 = vrot.slane %v5051, 1
  %v5053 = vadd.f32 %v5051, %v5052
  %v5054 = vmul.f32 %v5053, 0.001953125
  %v5055 = vsub.f32 %v4919, %v5054
  %v5056 = vsub.f32 %v4920, %v5054
  %v5057 = vsub.f32 %v4921, %v5054
  %v5058 = vsub.f32 %v4922, %v5054
  %v5059 = vsub.f32 %v4923, %v5054
  %v5060 = vsub.f32 %v4924, %v5054
  %v5061 = vsub.f32 %v4925, %v5054
  %v5062 = vsub.f32 %v4926, %v5054
  %v5063 = vsub.f32 %v4927, %v5054
  %v5064 = vsub.f32 %v4928, %v5054
  %v5065 = vsub.f32 %v4929, %v5054
  %v5066 = vsub.f32 %v4930, %v5054
  %v5067 = vsub.f32 %v4931, %v5054
  %v5068 = vsub.f32 %v4932, %v5054
  %v5069 = vsub.f32 %v4933, %v5054
  %v5070 = vsub.f32 %v4934, %v5054
  %v5071 = vsub.f32 %v4935, %v5054
  %v5072 = vsub.f32 %v4936, %v5054
  %v5073 = vsub.f32 %v4937, %v5054
  %v5074 = vsub.f32 %v4938, %v5054
  %v5075 = vsub.f32 %v4939, %v5054
  %v5076 = vsub.f32 %v4940, %v5054
  %v5077 = vsub.f32 %v4941, %v5054
  %v5078 = vsub.f32 %v4942, %v5054
  %v5079 = vsub.f32 %v4943, %v5054
  %v5080 = vsub.f32 %v4944, %v5054
  %v5081 = vsub.f32 %v4945, %v5054
  %v5082 = vsub.f32 %v4946, %v5054
  %v5083 = vsub.f32 %v4947, %v5054
  %v5084 = vsub.f32 %v4948, %v5054
  %v5085 = vsub.f32 %v4949, %v5054
  %v5086 = vsub.f32 %v4950, %v5054
  %v5087 = vsub.f32 %v4951, %v5054
  %v5088 = vsub.f32 %v4952, %v5054
  %v5089 = vsub.f32 %v4953, %v5054
  %v5090 = vsub.f32 %v4954, %v5054
  %v5091 = vsub.f32 %v4955, %v5054
  %v5092 = vsub.f32 %v4956, %v5054
  %v5093 = vsub.f32 %v4957, %v5054
  %v5094 = vsub.f32 %v4958, %v5054
  %v5095 = vsub.f32 %v4959, %v5054
  %v5096 = vsub.f32 %v4960, %v5054
  %v5097 = vsub.f32 %v4961, %v5054
  %v5098 = vsub.f32 %v4962, %v5054
  %v5099 = vsub.f32 %v4963, %v5054
  %v5100 = vsub.f32 %v4964, %v5054
  %v5101 = vsub.f32 %v4965, %v5054
  %v5102 = vsub.f32 %v4966, %v5054
  %v5103 = vsub.f32 %v4967, %v5054
  %v5104 = vsub.f32 %v4968, %v5054
  %v5105 = vsub.f32 %v4969, %v5054
  %v5106 = vsub.f32 %v4970, %v5054
  %v5107 = vsub.f32 %v4971, %v5054
  %v5108 = vsub.f32 %v4972, %v5054
  %v5109 = vsub.f32 %v4973, %v5054
  %v5110 = vsub.f32 %v4974, %v5054
  %v5111 = vsub.f32 %v4975, %v5054
  %v5112 = vsub.f32 %v4976, %v5054
  %v5113 = vsub.f32 %v4977, %v5054
  %v5114 = vsub.f32 %v4978, %v5054
  %v5115 = vsub.f32 %v4979, %v5054
  %v5116 = vsub.f32 %v4980, %v5054
  %v5117 = vsub.f32 %v4981, %v5054
  %v5118 = vsub.f32 %v4982, %v5054
  %v5119 = vmul.f32 %v5055, %v5055
  %v5120 = vmul.f32 %v5056, %v5056
  %v5121 = vmul.f32 %v5057, %v5057
  %v5122 = vmul.f32 %v5058, %v5058
  %v5123 = vmul.f32 %v5059, %v5059
  %v5124 = vmul.f32 %v5060, %v5060
  %v5125 = vmul.f32 %v5061, %v5061
  %v5126 = vmul.f32 %v5062, %v5062
  %v5127 = vmul.f32 %v5063, %v5063
  %v5128 = vmul.f32 %v5064, %v5064
  %v5129 = vmul.f32 %v5065, %v5065
  %v5130 = vmul.f32 %v5066, %v5066
  %v5131 = vmul.f32 %v5067, %v5067
  %v5132 = vmul.f32 %v5068, %v5068
  %v5133 = vmul.f32 %v5069, %v5069
  %v5134 = vmul.f32 %v5070, %v5070
  %v5135 = vmul.f32 %v5071, %v5071
  %v5136 = vmul.f32 %v5072, %v5072
  %v5137 = vmul.f32 %v5073, %v5073
  %v5138 = vmul.f32 %v5074, %v5074
  %v5139 = vmul.f32 %v5075, %v5075
  %v5140 = vmul.f32 %v5076, %v5076
  %v5141 = vmul.f32 %v5077, %v5077
  %v5142 = vmul.f32 %v5078, %v5078
  %v5143 = vmul.f32 %v5079, %v5079
  %v5144 = vmul.f32 %v5080, %v5080
  %v5145 = vmul.f32 %v5081, %v5081
  %v5146 = vmul.f32 %v5082, %v5082
  %v5147 = vmul.f32 %v5083, %v5083
  %v5148 = vmul.f32 %v5084, %v5084
  %v5149 = vmul.f32 %v5085, %v5085
  %v5150 = vmul.f32 %v5086, %v5086
  %v5151 = vmul.f32 %v5087, %v5087
  %v5152 = vmul.f32 %v5088, %v5088
  %v5153 = vmul.f32 %v5089, %v5089
  %v5154 = vmul.f32 %v5090, %v5090
  %v5155 = vmul.f32 %v5091, %v5091
  %v5156 = vmul.f32 %v5092, %v5092
  %v5157 = vmul.f32 %v5093, %v5093
  %v5158 = vmul.f32 %v5094, %v5094
  %v5159 = vmul.f32 %v5095, %v5095
  %v5160 = vmul.f32 %v5096, %v5096
  %v5161 = vmul.f32 %v5097, %v5097
  %v5162 = vmul.f32 %v5098, %v5098
  %v5163 = vmul.f32 %v5099, %v5099
  %v5164 = vmul.f32 %v5100, %v5100
  %v5165 = vmul.f32 %v5101, %v5101
  %v5166 = vmul.f32 %v5102, %v5102
  %v5167 = vmul.f32 %v5103, %v5103
  %v5168 = vmul.f32 %v5104, %v5104
  %v5169 = vmul.f32 %v5105, %v5105
  %v5170 = vmul.f32 %v5106, %v5106
  %v5171 = vmul.f32 %v5107, %v5107
  %v5172 = vmul.f32 %v5108, %v5108
  %v5173 = vmul.f32 %v5109, %v5109
  %v5174 = vmul.f32 %v5110, %v5110
  %v5175 = vmul.f32 %v5111, %v5111
  %v5176 = vmul.f32 %v5112, %v5112
  %v5177 = vmul.f32 %v5113, %v5113
  %v5178 = vmul.f32 %v5114, %v5114
  %v5179 = vmul.f32 %v5115, %v5115
  %v5180 = vmul.f32 %v5116, %v5116
  %v5181 = vmul.f32 %v5117, %v5117
  %v5182 = vmul.f32 %v5118, %v5118
  %v5183 = vadd.f32 %v5119, %v5120
  %v5184 = vadd.f32 %v5183, %v5121
  %v5185 = vadd.f32 %v5184, %v5122
  %v5186 = vadd.f32 %v5185, %v5123
  %v5187 = vadd.f32 %v5186, %v5124
  %v5188 = vadd.f32 %v5187, %v5125
  %v5189 = vadd.f32 %v5188, %v5126
  %v5190 = vadd.f32 %v5189, %v5127
  %v5191 = vadd.f32 %v5190, %v5128
  %v5192 = vadd.f32 %v5191, %v5129
  %v5193 = vadd.f32 %v5192, %v5130
  %v5194 = vadd.f32 %v5193, %v5131
  %v5195 = vadd.f32 %v5194, %v5132
  %v5196 = vadd.f32 %v5195, %v5133
  %v5197 = vadd.f32 %v5196, %v5134
  %v5198 = vadd.f32 %v5197, %v5135
  %v5199 = vadd.f32 %v5198, %v5136
  %v5200 = vadd.f32 %v5199, %v5137
  %v5201 = vadd.f32 %v5200, %v5138
  %v5202 = vadd.f32 %v5201, %v5139
  %v5203 = vadd.f32 %v5202, %v5140
  %v5204 = vadd.f32 %v5203, %v5141
  %v5205 = vadd.f32 %v5204, %v5142
  %v5206 = vadd.f32 %v5205, %v5143
  %v5207 = vadd.f32 %v5206, %v5144
  %v5208 = vadd.f32 %v5207, %v5145
  %v5209 = vadd.f32 %v5208, %v5146
  %v5210 = vadd.f32 %v5209, %v5147
  %v5211 = vadd.f32 %v5210, %v5148
  %v5212 = vadd.f32 %v5211, %v5149
  %v5213 = vadd.f32 %v5212, %v5150
  %v5214 = vadd.f32 %v5213, %v5151
  %v5215 = vadd.f32 %v5214, %v5152
  %v5216 = vadd.f32 %v5215, %v5153
  %v5217 = vadd.f32 %v5216, %v5154
  %v5218 = vadd.f32 %v5217, %v5155
  %v5219 = vadd.f32 %v5218, %v5156
  %v5220 = vadd.f32 %v5219, %v5157
  %v5221 = vadd.f32 %v5220, %v5158
  %v5222 = vadd.f32 %v5221, %v5159
  %v5223 = vadd.f32 %v5222, %v5160
  %v5224 = vadd.f32 %v5223, %v5161
  %v5225 = vadd.f32 %v5224, %v5162
  %v5226 = vadd.f32 %v5225, %v5163
  %v5227 = vadd.f32 %v5226, %v5164
  %v5228 = vadd.f32 %v5227, %v5165
  %v5229 = vadd.f32 %v5228, %v5166
  %v5230 = vadd.f32 %v5229, %v5167
  %v5231 = vadd.f32 %v5230, %v5168
  %v5232 = vadd.f32 %v5231, %v5169
  %v5233 = vadd.f32 %v5232, %v5170
  %v5234 = vadd.f32 %v5233, %v5171
  %v5235 = vadd.f32 %v5234, %v5172
  %v5236 = vadd.f32 %v5235, %v5173
  %v5237 = vadd.f32 %v5236, %v5174
  %v5238 = vadd.f32 %v5237, %v5175
  %v5239 = vadd.f32 %v5238, %v5176
  %v5240 = vadd.f32 %v5239, %v5177
  %v5241 = vadd.f32 %v5240, %v5178
  %v5242 = vadd.f32 %v5241, %v5179
  %v5243 = vadd.f32 %v5242, %v5180
  %v5244 = vadd.f32 %v5243, %v5181
  %v5245 = vadd.f32 %v5244, %v5182
  %v5246 = vrot.slane %v5245, 4
  %v5247 = vadd.f32 %v5245, %v5246
  %v5248 = vrot.slane %v5247, 2
  %v5249 = vadd.f32 %v5247, %v5248
  %v5250 = vrot.slane %v5249, 1
  %v5251 = vadd.f32 %v5249, %v5250
  %v5252 = vmul.f32 %v5251, 0.001953125
  %v5253 = vadd.f32 %v5252, 1e-05
  %v5254 = vrsqrt.pop %v5253
  %v5255 = vmul.f32 %v4983, %v5254
  %v5257 = vlaneseq
  %v5258 = vshrl.u32 %v5257, 7
  %v5259 = vsub.s32 0, %v5258
  %v5260 = vrot.slane %v5255, %v5259
  %v5262 = vmul.f32 %v5055, %v5260
  %v5263 = vmul.f32 %v5056, %v5260
  %v5264 = vmul.f32 %v5057, %v5260
  %v5265 = vmul.f32 %v5058, %v5260
  %v5266 = vmul.f32 %v5059, %v5260
  %v5267 = vmul.f32 %v5060, %v5260
  %v5268 = vmul.f32 %v5061, %v5260
  %v5269 = vmul.f32 %v5062, %v5260
  %v5270 = vmul.f32 %v5063, %v5260
  %v5271 = vmul.f32 %v5064, %v5260
  %v5272 = vmul.f32 %v5065, %v5260
  %v5273 = vmul.f32 %v5066, %v5260
  %v5274 = vmul.f32 %v5067, %v5260
  %v5275 = vmul.f32 %v5068, %v5260
  %v5276 = vmul.f32 %v5069, %v5260
  %v5277 = vmul.f32 %v5070, %v5260
  %v5278 = vmul.f32 %v5071, %v5260
  %v5279 = vmul.f32 %v5072, %v5260
  %v5280 = vmul.f32 %v5073, %v5260
  %v5281 = vmul.f32 %v5074, %v5260
  %v5282 = vmul.f32 %v5075, %v5260
  %v5283 = vmul.f32 %v5076, %v5260
  %v5284 = vmul.f32 %v5077, %v5260
  %v5285 = vmul.f32 %v5078, %v5260
  %v5286 = vmul.f32 %v5079, %v5260
  %v5287 = vmul.f32 %v5080, %v5260
  %v5288 = vmul.f32 %v5081, %v5260
  %v5289 = vmul.f32 %v5082, %v5260
  %v5290 = vmul.f32 %v5083, %v5260
  %v5291 = vmul.f32 %v5084, %v5260
  %v5292 = vmul.f32 %v5085, %v5260
  %v5293 = vmul.f32 %v5086, %v5260
  %v5294 = vmul.f32 %v5087, %v5260
  %v5295 = vmul.f32 %v5088, %v5260
  %v5296 = vmul.f32 %v5089, %v5260
  %v5297 = vmul.f32 %v5090, %v5260
  %v5298 = vmul.f32 %v5091, %v5260
  %v5299 = vmul.f32 %v5092, %v5260
  %v5300 = vmul.f32 %v5093, %v5260
  %v5301 = vmul.f32 %v5094, %v5260
  %v5302 = vmul.f32 %v5095, %v5260
  %v5303 = vmul.f32 %v5096, %v5260
  %v5304 = vmul.f32 %v5097, %v5260
  %v5305 = vmul.f32 %v5098, %v5260
  %v5306 = vmul.f32 %v5099, %v5260
  %v5307 = vmul.f32 %v5100, %v5260
  %v5308 = vmul.f32 %v5101, %v5260
  %v5309 = vmul.f32 %v5102, %v5260
  %v5310 = vmul.f32 %v5103, %v5260
  %v5311 = vmul.f32 %v5104, %v5260
  %v5312 = vmul.f32 %v5105, %v5260
  %v5313 = vmul.f32 %v5106, %v5260
  %v5314 = vmul.f32 %v5107, %v5260
  %v5315 = vmul.f32 %v5108, %v5260
  %v5316 = vmul.f32 %v5109, %v5260
  %v5317 = vmul.f32 %v5110, %v5260
  %v5318 = vmul.f32 %v5111, %v5260
  %v5319 = vmul.f32 %v5112, %v5260
  %v5320 = vmul.f32 %v5113, %v5260
  %v5321 = vmul.f32 %v5114, %v5260
  %v5322 = vmul.f32 %v5115, %v5260
  %v5323 = vmul.f32 %v5116, %v5260
  %v5324 = vmul.f32 %v5117, %v5260
  %v5325 = vmul.f32 %v5118, %v5260
  %v5327 = vlaneseq
  %v5328 = vshrl.u32 %v5327, 7
  %v5329 = vsub.s32 0, %v5328
  %v5330 = vrot.slane %v4984, %v5329
  %v5332 = vadd.f32 %v5262, %v5330
  %v5333 = vadd.f32 %v5263, %v5330
  %v5334 = vadd.f32 %v5264, %v5330
  %v5335 = vadd.f32 %v5265, %v5330
  %v5336 = vadd.f32 %v5266, %v5330
  %v5337 = vadd.f32 %v5267, %v5330
  %v5338 = vadd.f32 %v5268, %v5330
  %v5339 = vadd.f32 %v5269, %v5330
  %v5340 = vadd.f32 %v5270, %v5330
  %v5341 = vadd.f32 %v5271, %v5330
  %v5342 = vadd.f32 %v5272, %v5330
  %v5343 = vadd.f32 %v5273, %v5330
  %v5344 = vadd.f32 %v5274, %v5330
  %v5345 = vadd.f32 %v5275, %v5330
  %v5346 = vadd.f32 %v5276, %v5330
  %v5347 = vadd.f32 %v5277, %v5330
  %v5348 = vadd.f32 %v5278, %v5330
  %v5349 = vadd.f32 %v5279, %v5330
  %v5350 = vadd.f32 %v5280, %v5330
  %v5351 = vadd.f32 %v5281, %v5330
  %v5352 = vadd.f32 %v5282, %v5330
  %v5353 = vadd.f32 %v5283, %v5330
  %v5354 = vadd.f32 %v5284, %v5330
  %v5355 = vadd.f32 %v5285, %v5330
  %v5356 = vadd.f32 %v5286, %v5330
  %v5357 = vadd.f32 %v5287, %v5330
  %v5358 = vadd.f32 %v5288, %v5330
  %v5359 = vadd.f32 %v5289, %v5330
  %v5360 = vadd.f32 %v5290, %v5330
  %v5361 = vadd.f32 %v5291, %v5330
  %v5362 = vadd.f32 %v5292, %v5330
  %v5363 = vadd.f32 %v5293, %v5330
  %v5364 = vadd.f32 %v5294, %v5330
  %v5365 = vadd.f32 %v5295, %v5330
  %v5366 = vadd.f32 %v5296, %v5330
  %v5367 = vadd.f32 %v5297, %v5330
  %v5368 = vadd.f32 %v5298, %v5330
  %v5369 = vadd.f32 %v5299, %v5330
  %v5370 = vadd.f32 %v5300, %v5330
  %v5371 = vadd.f32 %v5301, %v5330
  %v5372 = vadd.f32 %v5302, %v5330
  %v5373 = vadd.f32 %v5303, %v5330
  %v5374 = vadd.f32 %v5304, %v5330
  %v5375 = vadd.f32 %v5305, %v5330
  %v5376 = vadd.f32 %v5306, %v5330
  %v5377 = vadd.f32 %v5307, %v5330
  %v5378 = vadd.f32 %v5308, %v5330
  %v5379 = vadd.f32 %v5309, %v5330
  %v5380 = vadd.f32 %v5310, %v5330
  %v5381 = vadd.f32 %v5311, %v5330
  %v5382 = vadd.f32 %v5312, %v5330
  %v5383 = vadd.f32 %v5313, %v5330
  %v5384 = vadd.f32 %v5314, %v5330
  %v5385 = vadd.f32 %v5315, %v5330
  %v5386 = vadd.f32 %v5316, %v5330
  %v5387 = vadd.f32 %v5317, %v5330
  %v5388 = vadd.f32 %v5318, %v5330
  %v5389 = vadd.f32 %v5319, %v5330
  %v5390 = vadd.f32 %v5320, %v5330
  %v5391 = vadd.f32 %v5321, %v5330
  %v5392 = vadd.f32 %v5322, %v5330
  %v5393 = vadd.f32 %v5323, %v5330
  %v5394 = vadd.f32 %v5324, %v5330
  %v5395 = vadd.f32 %v5325, %v5330
  %v5396 = vmax.f32 %v5332, 0.0
  %v5397 = vmax.f32 %v5333, 0.0
  %v5398 = vmax.f32 %v5334, 0.0
  %v5399 = vmax.f32 %v5335, 0.0
  %v5400 = vmax.f32 %v5336, 0.0
  %v5401 = vmax.f32 %v5337, 0.0
  %v5402 = vmax.f32 %v5338, 0.0
  %v5403 = vmax.f32 %v5339, 0.0
  %v5404 = vmax.f32 %v5340, 0.0
  %v5405 = vmax.f32 %v5341, 0.0
  %v5406 = vmax.f32 %v5342, 0.0
  %v5407 = vmax.f32 %v5343, 0.0
  %v5408 = vmax.f32 %v5344, 0.0
  %v5409 = vmax.f32 %v5345, 0.0
  %v5410 = vmax.f32 %v5346, 0.0
  %v5411 = vmax.f32 %v5347, 0.0
  %v5412 = vmax.f32 %v5348, 0.0
  %v5413 = vmax.f32 %v5349, 0.0
  %v5414 = vmax.f32 %v5350, 0.0
  %v5415 = vmax.f32 %v5351, 0.0
  %v5416 = vmax.f32 %v5352, 0.0
  %v5417 = vmax.f32 %v5353, 0.0
  %v5418 = vmax.f32 %v5354, 0.0
  %v5419 = vmax.f32 %v5355, 0.0
  %v5420 = vmax.f32 %v5356, 0.0
  %v5421 = vmax.f32 %v5357, 0.0
  %v5422 = vmax.f32 %v5358, 0.0
  %v5423 = vmax.f32 %v5359, 0.0
  %v5424 = vmax.f32 %v5360, 0.0
  %v5425 = vmax.f32 %v5361, 0.0
  %v5426 = vmax.f32 %v5362, 0.0
  %v5427 = vmax.f32 %v5363, 0.0
  %v5428 = vmax.f32 %v5364, 0.0
  %v5429 = vmax.f32 %v5365, 0.0
  %v5430 = vmax.f32 %v5366, 0.0
  %v5431 = vmax.f32 %v5367, 0.0
  %v5432 = vmax.f32 %v5368, 0.0
  %v5433 = vmax.f32 %v5369, 0.0
  %v5434 = vmax.f32 %v5370, 0.0
  %v5435 = vmax.f32 %v5371, 0.0
  %v5436 = vmax.f32 %v5372, 0.0
  %v5437 = vmax.f32 %v5373, 0.0
  %v5438 = vmax.f32 %v5374, 0.0
  %v5439 = vmax.f32 %v5375, 0.0
  %v5440 = vmax.f32 %v5376, 0.0
  %v5441 = vmax.f32 %v5377, 0.0
  %v5442 = vmax.f32 %v5378, 0.0
  %v5443 = vmax.f32 %v5379, 0.0
  %v5444 = vmax.f32 %v5380, 0.0
  %v5445 = vmax.f32 %v5381, 0.0
  %v5446 = vmax.f32 %v5382, 0.0
  %v5447 = vmax.f32 %v5383, 0.0
  %v5448 = vmax.f32 %v5384, 0.0
  %v5449 = vmax.f32 %v5385, 0.0
  %v5450 = vmax.f32 %v5386, 0.0
  %v5451 = vmax.f32 %v5387, 0.0
  %v5452 = vmax.f32 %v5388, 0.0
  %v5453 = vmax.f32 %v5389, 0.0
  %v5454 = vmax.f32 %v5390, 0.0
  %v5455 = vmax.f32 %v5391, 0.0
  %v5456 = vmax.f32 %v5392, 0.0
  %v5457 = vmax.f32 %v5393, 0.0
  %v5458 = vmax.f32 %v5394, 0.0
  %v5459 = vmax.f32 %v5395, 0.0
  %5460 = vst [vmem:[#allocation3] sm:$0xff] 0.0
  %5461 = vst [vmem:[#allocation3 + $0x8] sm:$0xff] 0.0
  %5462 = vst [vmem:[#allocation3 + $0x10] sm:$0xff] 0.0
  %5463 = vst [vmem:[#allocation3 + $0x18] sm:$0xff] 0.0
  %5464 = vst [vmem:[#allocation3 + $0x20] sm:$0xff] 0.0
  %5465 = vst [vmem:[#allocation3 + $0x28] sm:$0xff] 0.0
  %5466 = vst [vmem:[#allocation3 + $0x30] sm:$0xff] 0.0
  %5467 = vst [vmem:[#allocation3 + $0x38] sm:$0xff] 0.0
  %5468 = vst [vmem:[#allocation3 + $0x40] sm:$0xff] 0.0
  %5469 = vst [vmem:[#allocation3 + $0x48] sm:$0xff] 0.0
  %5470 = vst [vmem:[#allocation3 + $0x50] sm:$0xff] 0.0
  %5471 = vst [vmem:[#allocation3 + $0x58] sm:$0xff] 0.0
  %5472 = vst [vmem:[#allocation3 + $0x60] sm:$0xff] 0.0
  %5473 = vst [vmem:[#allocation3 + $0x68] sm:$0xff] 0.0
  %5474 = vst [vmem:[#allocation3 + $0x70] sm:$0xff] 0.0
  %5475 = vst [vmem:[#allocation3 + $0x78] sm:$0xff] 0.0
  %5476 = vst [vmem:[#allocation3 + $0x80] sm:$0xff] 0.0
  %5477 = vst [vmem:[#allocation3 + $0x88] sm:$0xff] 0.0
  %5478 = vst [vmem:[#allocation3 + $0x90] sm:$0xff] 0.0
  %5479 = vst [vmem:[#allocation3 + $0x98] sm:$0xff] 0.0
  %5480 = vst [vmem:[#allocation3 + $0xa0] sm:$0xff] 0.0
  %5481 = vst [vmem:[#allocation3 + $0xa8] sm:$0xff] 0.0
  %5482 = vst [vmem:[#allocation3 + $0xb0] sm:$0xff] 0.0
  %5483 = vst [vmem:[#allocation3 + $0xb8] sm:$0xff] 0.0
  %5484 = vst [vmem:[#allocation3 + $0xc0] sm:$0xff] 0.0
  %5485 = vst [vmem:[#allocation3 + $0xc8] sm:$0xff] 0.0
  %5486 = vst [vmem:[#allocation3 + $0xd0] sm:$0xff] 0.0
  %5487 = vst [vmem:[#allocation3 + $0xd8] sm:$0xff] 0.0
  %5488 = vst [vmem:[#allocation3 + $0xe0] sm:$0xff] 0.0
  %5489 = vst [vmem:[#allocation3 + $0xe8] sm:$0xff] 0.0
  %5490 = vst [vmem:[#allocation3 + $0xf0] sm:$0xff] 0.0
  %5491 = vst [vmem:[#allocation3 + $0xf8] sm:$0xff] 0.0
  %5492 = vst [vmem:[#allocation3 + $0x100] sm:$0xff] 0.0
  %5493 = vst [vmem:[#allocation3 + $0x108] sm:$0xff] 0.0
  %5494 = vst [vmem:[#allocation3 + $0x110] sm:$0xff] 0.0
  %5495 = vst [vmem:[#allocation3 + $0x118] sm:$0xff] 0.0
  %5496 = vst [vmem:[#allocation3 + $0x120] sm:$0xff] 0.0
  %5497 = vst [vmem:[#allocation3 + $0x128] sm:$0xff] 0.0
  %5498 = vst [vmem:[#allocation3 + $0x130] sm:$0xff] 0.0
  %5499 = vst [vmem:[#allocation3 + $0x138] sm:$0xff] 0.0
  %5500 = vst [vmem:[#allocation3 + $0x140] sm:$0xff] 0.0
  %5501 = vst [vmem:[#allocation3 + $0x148] sm:$0xff] 0.0
  %5502 = vst [vmem:[#allocation3 + $0x150] sm:$0xff] 0.0
  %5503 = vst [vmem:[#allocation3 + $0x158] sm:$0xff] 0.0
  %5504 = vst [vmem:[#allocation3 + $0x160] sm:$0xff] 0.0
  %5505 = vst [vmem:[#allocation3 + $0x168] sm:$0xff] 0.0
  %5506 = vst [vmem:[#allocation3 + $0x170] sm:$0xff] 0.0
  %5507 = vst [vmem:[#allocation3 + $0x178] sm:$0xff] 0.0
  %5508 = vst [vmem:[#allocation3 + $0x180] sm:$0xff] 0.0
  %5509 = vst [vmem:[#allocation3 + $0x188] sm:$0xff] 0.0
  %5510 = vst [vmem:[#allocation3 + $0x190] sm:$0xff] 0.0
  %5511 = vst [vmem:[#allocation3 + $0x198] sm:$0xff] 0.0
  %5512 = vst [vmem:[#allocation3 + $0x1a0] sm:$0xff] 0.0
  %5513 = vst [vmem:[#allocation3 + $0x1a8] sm:$0xff] 0.0
  %5514 = vst [vmem:[#allocation3 + $0x1b0] sm:$0xff] 0.0
  %5515 = vst [vmem:[#allocation3 + $0x1b8] sm:$0xff] 0.0
  %5516 = vst [vmem:[#allocation3 + $0x1c0] sm:$0xff] 0.0
  %5517 = vst [vmem:[#allocation3 + $0x1c8] sm:$0xff] 0.0
  %5518 = vst [vmem:[#allocation3 + $0x1d0] sm:$0xff] 0.0
  %5519 = vst [vmem:[#allocation3 + $0x1d8] sm:$0xff] 0.0
  %5520 = vst [vmem:[#allocation3 + $0x1e0] sm:$0xff] 0.0
  %5521 = vst [vmem:[#allocation3 + $0x1e8] sm:$0xff] 0.0
  %5522 = vst [vmem:[#allocation3 + $0x1f0] sm:$0xff] 0.0
  %5523 = vst [vmem:[#allocation3 + $0x1f8] sm:$0xff] 0.0
  %5524 = vst [vmem:[#allocation3 + $0x200] sm:$0xff] 0.0
  %5525 = vst [vmem:[#allocation3 + $0x208] sm:$0xff] 0.0
  %5526 = vst [vmem:[#allocation3 + $0x210] sm:$0xff] 0.0
  %5527 = vst [vmem:[#allocation3 + $0x218] sm:$0xff] 0.0
  %5528 = vst [vmem:[#allocation3 + $0x220] sm:$0xff] 0.0
  %5529 = vst [vmem:[#allocation3 + $0x228] sm:$0xff] 0.0
  %5530 = vst [vmem:[#allocation3 + $0x230] sm:$0xff] 0.0
  %5531 = vst [vmem:[#allocation3 + $0x238] sm:$0xff] 0.0
  %5532 = vst [vmem:[#allocation3 + $0x240] sm:$0xff] 0.0
  %5533 = vst [vmem:[#allocation3 + $0x248] sm:$0xff] 0.0
  %5534 = vst [vmem:[#allocation3 + $0x250] sm:$0xff] 0.0
  %5535 = vst [vmem:[#allocation3 + $0x258] sm:$0xff] 0.0
  %5536 = vst [vmem:[#allocation3 + $0x260] sm:$0xff] 0.0
  %5537 = vst [vmem:[#allocation3 + $0x268] sm:$0xff] 0.0
  %5538 = vst [vmem:[#allocation3 + $0x270] sm:$0xff] 0.0
  %5539 = vst [vmem:[#allocation3 + $0x278] sm:$0xff] 0.0
  %5540 = vst [vmem:[#allocation3 + $0x280] sm:$0xff] 0.0
  %5541 = vst [vmem:[#allocation3 + $0x288] sm:$0xff] 0.0
  %5542 = vst [vmem:[#allocation3 + $0x290] sm:$0xff] 0.0
  %5543 = vst [vmem:[#allocation3 + $0x298] sm:$0xff] 0.0
  %5544 = vst [vmem:[#allocation3 + $0x2a0] sm:$0xff] 0.0
  %5545 = vst [vmem:[#allocation3 + $0x2a8] sm:$0xff] 0.0
  %5546 = vst [vmem:[#allocation3 + $0x2b0] sm:$0xff] 0.0
  %5547 = vst [vmem:[#allocation3 + $0x2b8] sm:$0xff] 0.0
  %5548 = vst [vmem:[#allocation3 + $0x2c0] sm:$0xff] 0.0
  %5549 = vst [vmem:[#allocation3 + $0x2c8] sm:$0xff] 0.0
  %5550 = vst [vmem:[#allocation3 + $0x2d0] sm:$0xff] 0.0
  %5551 = vst [vmem:[#allocation3 + $0x2d8] sm:$0xff] 0.0
  %5552 = vst [vmem:[#allocation3 + $0x2e0] sm:$0xff] 0.0
  %5553 = vst [vmem:[#allocation3 + $0x2e8] sm:$0xff] 0.0
  %5554 = vst [vmem:[#allocation3 + $0x2f0] sm:$0xff] 0.0
  %5555 = vst [vmem:[#allocation3 + $0x2f8] sm:$0xff] 0.0
  %5556 = vst [vmem:[#allocation3 + $0x300] sm:$0xff] 0.0
  %5557 = vst [vmem:[#allocation3 + $0x308] sm:$0xff] 0.0
  %5558 = vst [vmem:[#allocation3 + $0x310] sm:$0xff] 0.0
  %5559 = vst [vmem:[#allocation3 + $0x318] sm:$0xff] 0.0
  %5560 = vst [vmem:[#allocation3 + $0x320] sm:$0xff] 0.0
  %5561 = vst [vmem:[#allocation3 + $0x328] sm:$0xff] 0.0
  %5562 = vst [vmem:[#allocation3 + $0x330] sm:$0xff] 0.0
  %5563 = vst [vmem:[#allocation3 + $0x338] sm:$0xff] 0.0
  %5564 = vst [vmem:[#allocation3 + $0x340] sm:$0xff] 0.0
  %5565 = vst [vmem:[#allocation3 + $0x348] sm:$0xff] 0.0
  %5566 = vst [vmem:[#allocation3 + $0x350] sm:$0xff] 0.0
  %5567 = vst [vmem:[#allocation3 + $0x358] sm:$0xff] 0.0
  %s5568 = scalar_lea.vmem [#allocation3], 24
  %5569 = vst [vmem:[%s5568 + $0x1] sm:$0xff] %v5396
  %5570 = vst [vmem:[%s5568 + $0x9] sm:$0xff] %v5397
  %5571 = vst [vmem:[%s5568 + $0x19] sm:$0xff] %v5398
  %5572 = vst [vmem:[%s5568 + $0x21] sm:$0xff] %v5399
  %5573 = vst [vmem:[%s5568 + $0x31] sm:$0xff] %v5400
  %5574 = vst [vmem:[%s5568 + $0x39] sm:$0xff] %v5401
  %5575 = vst [vmem:[%s5568 + $0x49] sm:$0xff] %v5402
  %5576 = vst [vmem:[%s5568 + $0x51] sm:$0xff] %v5403
  %5577 = vst [vmem:[%s5568 + $0x61] sm:$0xff] %v5404
  %5578 = vst [vmem:[%s5568 + $0x69] sm:$0xff] %v5405
  %5579 = vst [vmem:[%s5568 + $0x79] sm:$0xff] %v5406
  %5580 = vst [vmem:[%s5568 + $0x81] sm:$0xff] %v5407
  %5581 = vst [vmem:[%s5568 + $0x91] sm:$0xff] %v5408
  %5582 = vst [vmem:[%s5568 + $0x99] sm:$0xff] %v5409
  %5583 = vst [vmem:[%s5568 + $0xa9] sm:$0xff] %v5410
  %5584 = vst [vmem:[%s5568 + $0xb1] sm:$0xff] %v5411
  %5585 = vst [vmem:[%s5568 + $0xc1] sm:$0xff] %v5412
  %5586 = vst [vmem:[%s5568 + $0xc9] sm:$0xff] %v5413
  %5587 = vst [vmem:[%s5568 + $0xd9] sm:$0xff] %v5414
  %5588 = vst [vmem:[%s5568 + $0xe1] sm:$0xff] %v5415
  %5589 = vst [vmem:[%s5568 + $0xf1] sm:$0xff] %v5416
  %5590 = vst [vmem:[%s5568 + $0xf9] sm:$0xff] %v5417
  %5591 = vst [vmem:[%s5568 + $0x109] sm:$0xff] %v5418
  %5592 = vst [vmem:[%s5568 + $0x111] sm:$0xff] %v5419
  %5593 = vst [vmem:[%s5568 + $0x121] sm:$0xff] %v5420
  %5594 = vst [vmem:[%s5568 + $0x129] sm:$0xff] %v5421
  %5595 = vst [vmem:[%s5568 + $0x139] sm:$0xff] %v5422
  %5596 = vst [vmem:[%s5568 + $0x141] sm:$0xff] %v5423
  %5597 = vst [vmem:[%s5568 + $0x151] sm:$0xff] %v5424
  %5598 = vst [vmem:[%s5568 + $0x159] sm:$0xff] %v5425
  %5599 = vst [vmem:[%s5568 + $0x169] sm:$0xff] %v5426
  %5600 = vst [vmem:[%s5568 + $0x171] sm:$0xff] %v5427
  %5601 = vst [vmem:[%s5568 + $0x1b1] sm:$0xff] %v5428
  %5602 = vst [vmem:[%s5568 + $0x1b9] sm:$0xff] %v5429
  %5603 = vst [vmem:[%s5568 + $0x1c9] sm:$0xff] %v5430
  %5604 = vst [vmem:[%s5568 + $0x1d1] sm:$0xff] %v5431
  %5605 = vst [vmem:[%s5568 + $0x1e1] sm:$0xff] %v5432
  %5606 = vst [vmem:[%s5568 + $0x1e9] sm:$0xff] %v5433
  %5607 = vst [vmem:[%s5568 + $0x1f9] sm:$0xff] %v5434
  %5608 = vst [vmem:[%s5568 + $0x201] sm:$0xff] %v5435
  %5609 = vst [vmem:[%s5568 + $0x211] sm:$0xff] %v5436
  %5610 = vst [vmem:[%s5568 + $0x219] sm:$0xff] %v5437
  %5611 = vst [vmem:[%s5568 + $0x229] sm:$0xff] %v5438
  %5612 = vst [vmem:[%s5568 + $0x231] sm:$0xff] %v5439
  %5613 = vst [vmem:[%s5568 + $0x241] sm:$0xff] %v5440
  %5614 = vst [vmem:[%s5568 + $0x249] sm:$0xff] %v5441
  %5615 = vst [vmem:[%s5568 + $0x259] sm:$0xff] %v5442
  %5616 = vst [vmem:[%s5568 + $0x261] sm:$0xff] %v5443
  %5617 = vst [vmem:[%s5568 + $0x271] sm:$0xff] %v5444
  %5618 = vst [vmem:[%s5568 + $0x279] sm:$0xff] %v5445
  %5619 = vst [vmem:[%s5568 + $0x289] sm:$0xff] %v5446
  %5620 = vst [vmem:[%s5568 + $0x291] sm:$0xff] %v5447
  %5621 = vst [vmem:[%s5568 + $0x2a1] sm:$0xff] %v5448
  %5622 = vst [vmem:[%s5568 + $0x2a9] sm:$0xff] %v5449
  %5623 = vst [vmem:[%s5568 + $0x2b9] sm:$0xff] %v5450
  %5624 = vst [vmem:[%s5568 + $0x2c1] sm:$0xff] %v5451
  %5625 = vst [vmem:[%s5568 + $0x2d1] sm:$0xff] %v5452
  %5626 = vst [vmem:[%s5568 + $0x2d9] sm:$0xff] %v5453
  %5627 = vst [vmem:[%s5568 + $0x2e9] sm:$0xff] %v5454
  %5628 = vst [vmem:[%s5568 + $0x2f1] sm:$0xff] %v5455
  %5629 = vst [vmem:[%s5568 + $0x301] sm:$0xff] %v5456
  %5630 = vst [vmem:[%s5568 + $0x309] sm:$0xff] %v5457
  %5631 = vst [vmem:[%s5568 + $0x319] sm:$0xff] %v5458
  %5632 = vst [vmem:[%s5568 + $0x321] sm:$0xff] %v5459
  %v5633 = vld [vmem:[%s6] sm:$0x1]
  %v5634 = vld [vmem:[#allocation3] sm:$0xff]
  %v5635 = vld [vmem:[#allocation3 + $0x8] sm:$0xff]
  %v5636 = vld [vmem:[#allocation3 + $0x18] sm:$0xff]
  %v5637 = vld [vmem:[#allocation3 + $0x20] sm:$0xff]
  %v5638 = vld [vmem:[#allocation3 + $0x30] sm:$0xff]
  %v5639 = vld [vmem:[#allocation3 + $0x38] sm:$0xff]
  %v5640 = vld [vmem:[#allocation3 + $0x48] sm:$0xff]
  %v5641 = vld [vmem:[#allocation3 + $0x50] sm:$0xff]
  %v5642 = vld [vmem:[#allocation3 + $0x60] sm:$0xff]
  %v5643 = vld [vmem:[#allocation3 + $0x68] sm:$0xff]
  %v5644 = vld [vmem:[#allocation3 + $0x78] sm:$0xff]
  %v5645 = vld [vmem:[#allocation3 + $0x80] sm:$0xff]
  %v5646 = vld [vmem:[#allocation3 + $0x90] sm:$0xff]
  %v5647 = vld [vmem:[#allocation3 + $0x98] sm:$0xff]
  %v5648 = vld [vmem:[#allocation3 + $0xa8] sm:$0xff]
  %v5649 = vld [vmem:[#allocation3 + $0xb0] sm:$0xff]
  %v5650 = vld [vmem:[#allocation3 + $0xc0] sm:$0xff]
  %v5651 = vld [vmem:[#allocation3 + $0xc8] sm:$0xff]
  %v5652 = vld [vmem:[#allocation3 + $0xd8] sm:$0xff]
  %v5653 = vld [vmem:[#allocation3 + $0xe0] sm:$0xff]
  %v5654 = vld [vmem:[#allocation3 + $0xf0] sm:$0xff]
  %v5655 = vld [vmem:[#allocation3 + $0xf8] sm:$0xff]
  %v5656 = vld [vmem:[#allocation3 + $0x108] sm:$0xff]
  %v5657 = vld [vmem:[#allocation3 + $0x110] sm:$0xff]
  %v5658 = vld [vmem:[#allocation3 + $0x120] sm:$0xff]
  %v5659 = vld [vmem:[#allocation3 + $0x128] sm:$0xff]
  %v5660 = vld [vmem:[#allocation3 + $0x138] sm:$0xff]
  %v5661 = vld [vmem:[#allocation3 + $0x140] sm:$0xff]
  %v5662 = vld [vmem:[#allocation3 + $0x150] sm:$0xff]
  %v5663 = vld [vmem:[#allocation3 + $0x158] sm:$0xff]
  %v5664 = vld [vmem:[#allocation3 + $0x168] sm:$0xff]
  %v5665 = vld [vmem:[#allocation3 + $0x170] sm:$0xff]
  %v5666 = vld [vmem:[#allocation3 + $0x1b0] sm:$0xff]
  %v5667 = vld [vmem:[#allocation3 + $0x1b8] sm:$0xff]
  %v5668 = vld [vmem:[#allocation3 + $0x1c8] sm:$0xff]
  %v5669 = vld [vmem:[#allocation3 + $0x1d0] sm:$0xff]
  %v5670 = vld [vmem:[#allocation3 + $0x1e0] sm:$0xff]
  %v5671 = vld [vmem:[#allocation3 + $0x1e8] sm:$0xff]
  %v5672 = vld [vmem:[#allocation3 + $0x1f8] sm:$0xff]
  %v5673 = vld [vmem:[#allocation3 + $0x200] sm:$0xff]
  %v5674 = vld [vmem:[#allocation3 + $0x210] sm:$0xff]
  %v5675 = vld [vmem:[#allocation3 + $0x218] sm:$0xff]
  %v5676 = vld [vmem:[#allocation3 + $0x228] sm:$0xff]
  %v5677 = vld [vmem:[#allocation3 + $0x230] sm:$0xff]
  %v5678 = vld [vmem:[#allocation3 + $0x240] sm:$0xff]
  %v5679 = vld [vmem:[#allocation3 + $0x248] sm:$0xff]
  %v5680 = vld [vmem:[#allocation3 + $0x258] sm:$0xff]
  %v5681 = vld [vmem:[#allocation3 + $0x260] sm:$0xff]
  %v5682 = vld [vmem:[#allocation3 + $0x270] sm:$0xff]
  %v5683 = vld [vmem:[#allocation3 + $0x278] sm:$0xff]
  %v5684 = vld [vmem:[#allocation3 + $0x288] sm:$0xff]
  %v5685 = vld [vmem:[#allocation3 + $0x290] sm:$0xff]
  %v5686 = vld [vmem:[#allocation3 + $0x2a0] sm:$0xff]
  %v5687 = vld [vmem:[#allocation3 + $0x2a8] sm:$0xff]
  %v5688 = vld [vmem:[#allocation3 + $0x2b8] sm:$0xff]
  %v5689 = vld [vmem:[#allocation3 + $0x2c0] sm:$0xff]
  %v5690 = vld [vmem:[#allocation3 + $0x2d0] sm:$0xff]
  %v5691 = vld [vmem:[#allocation3 + $0x2d8] sm:$0xff]
  %v5692 = vld [vmem:[#allocation3 + $0x2e8] sm:$0xff]
  %v5693 = vld [vmem:[#allocation3 + $0x2f0] sm:$0xff]
  %v5694 = vld [vmem:[#allocation3 + $0x300] sm:$0xff]
  %v5695 = vld [vmem:[#allocation3 + $0x308] sm:$0xff]
  %v5696 = vld [vmem:[#allocation3 + $0x318] sm:$0xff]
  %v5697 = vld [vmem:[#allocation3 + $0x320] sm:$0xff]
  %v5698 = vld [vmem:[%s5] sm:$0xff]
  %v5699 = vld [vmem:[%s5 + $0x8] sm:$0xff]
  %v5700 = vld [vmem:[%s5 + $0x10] sm:$0xff]
  %v5701 = vld [vmem:[%s5 + $0x18] sm:$0xff]
  %v5702 = vld [vmem:[%s5 + $0x20] sm:$0xff]
  %v5703 = vld [vmem:[%s5 + $0x28] sm:$0xff]
  %v5704 = vld [vmem:[%s5 + $0x30] sm:$0xff]
  %v5705 = vld [vmem:[%s5 + $0x38] sm:$0xff]
  %v5706 = vld [vmem:[%s5 + $0x40] sm:$0xff]
  %v5707 = vld [vmem:[%s5 + $0x48] sm:$0xff]
  %v5708 = vld [vmem:[%s5 + $0x50] sm:$0xff]
  %v5709 = vld [vmem:[%s5 + $0x58] sm:$0xff]
  %v5710 = vld [vmem:[%s5 + $0x60] sm:$0xff]
  %v5711 = vld [vmem:[%s5 + $0x68] sm:$0xff]
  %v5712 = vld [vmem:[%s5 + $0x70] sm:$0xff]
  %v5713 = vld [vmem:[%s5 + $0x78] sm:$0xff]
  %v5714 = vld [vmem:[#allocation3 + $0x1] sm:$0xff]
  %v5715 = vld [vmem:[#allocation3 + $0x9] sm:$0xff]
  %v5716 = vld [vmem:[#allocation3 + $0x19] sm:$0xff]
  %v5717 = vld [vmem:[#allocation3 + $0x21] sm:$0xff]
  %v5718 = vld [vmem:[#allocation3 + $0x31] sm:$0xff]
  %v5719 = vld [vmem:[#allocation3 + $0x39] sm:$0xff]
  %v5720 = vld [vmem:[#allocation3 + $0x49] sm:$0xff]
  %v5721 = vld [vmem:[#allocation3 + $0x51] sm:$0xff]
  %v5722 = vld [vmem:[#allocation3 + $0x61] sm:$0xff]
  %v5723 = vld [vmem:[#allocation3 + $0x69] sm:$0xff]
  %v5724 = vld [vmem:[#allocation3 + $0x79] sm:$0xff]
  %v5725 = vld [vmem:[#allocation3 + $0x81] sm:$0xff]
  %v5726 = vld [vmem:[#allocation3 + $0x91] sm:$0xff]
  %v5727 = vld [vmem:[#allocation3 + $0x99] sm:$0xff]
  %v5728 = vld [vmem:[#allocation3 + $0xa9] sm:$0xff]
  %v5729 = vld [vmem:[#allocation3 + $0xb1] sm:$0xff]
  %v5730 = vld [vmem:[#allocation3 + $0xc1] sm:$0xff]
  %v5731 = vld [vmem:[#allocation3 + $0xc9] sm:$0xff]
  %v5732 = vld [vmem:[#allocation3 + $0xd9] sm:$0xff]
  %v5733 = vld [vmem:[#allocation3 + $0xe1] sm:$0xff]
  %v5734 = vld [vmem:[#allocation3 + $0xf1] sm:$0xff]
  %v5735 = vld [vmem:[#allocation3 + $0xf9] sm:$0xff]
  %v5736 = vld [vmem:[#allocation3 + $0x109] sm:$0xff]
  %v5737 = vld [vmem:[#allocation3 + $0x111] sm:$0xff]
  %v5738 = vld [vmem:[#allocation3 + $0x121] sm:$0xff]
  %v5739 = vld [vmem:[#allocation3 + $0x129] sm:$0xff]
  %v5740 = vld [vmem:[#allocation3 + $0x139] sm:$0xff]
  %v5741 = vld [vmem:[#allocation3 + $0x141] sm:$0xff]
  %v5742 = vld [vmem:[#allocation3 + $0x151] sm:$0xff]
  %v5743 = vld [vmem:[#allocation3 + $0x159] sm:$0xff]
  %v5744 = vld [vmem:[#allocation3 + $0x169] sm:$0xff]
  %v5745 = vld [vmem:[#allocation3 + $0x171] sm:$0xff]
  %v5746 = vld [vmem:[#allocation3 + $0x1b1] sm:$0xff]
  %v5747 = vld [vmem:[#allocation3 + $0x1b9] sm:$0xff]
  %v5748 = vld [vmem:[#allocation3 + $0x1c9] sm:$0xff]
  %v5749 = vld [vmem:[#allocation3 + $0x1d1] sm:$0xff]
  %v5750 = vld [vmem:[#allocation3 + $0x1e1] sm:$0xff]
  %v5751 = vld [vmem:[#allocation3 + $0x1e9] sm:$0xff]
  %v5752 = vld [vmem:[#allocation3 + $0x1f9] sm:$0xff]
  %v5753 = vld [vmem:[#allocation3 + $0x201] sm:$0xff]
  %v5754 = vld [vmem:[#allocation3 + $0x211] sm:$0xff]
  %v5755 = vld [vmem:[#allocation3 + $0x219] sm:$0xff]
  %v5756 = vld [vmem:[#allocation3 + $0x229] sm:$0xff]
  %v5757 = vld [vmem:[#allocation3 + $0x231] sm:$0xff]
  %v5758 = vld [vmem:[#allocation3 + $0x241] sm:$0xff]
  %v5759 = vld [vmem:[#allocation3 + $0x249] sm:$0xff]
  %v5760 = vld [vmem:[#allocation3 + $0x259] sm:$0xff]
  %v5761 = vld [vmem:[#allocation3 + $0x261] sm:$0xff]
  %v5762 = vld [vmem:[#allocation3 + $0x271] sm:$0xff]
  %v5763 = vld [vmem:[#allocation3 + $0x279] sm:$0xff]
  %v5764 = vld [vmem:[#allocation3 + $0x289] sm:$0xff]
  %v5765 = vld [vmem:[#allocation3 + $0x291] sm:$0xff]
  %v5766 = vld [vmem:[#allocation3 + $0x2a1] sm:$0xff]
  %v5767 = vld [vmem:[#allocation3 + $0x2a9] sm:$0xff]
  %v5768 = vld [vmem:[#allocation3 + $0x2b9] sm:$0xff]
  %v5769 = vld [vmem:[#allocation3 + $0x2c1] sm:$0xff]
  %v5770 = vld [vmem:[#allocation3 + $0x2d1] sm:$0xff]
  %v5771 = vld [vmem:[#allocation3 + $0x2d9] sm:$0xff]
  %v5772 = vld [vmem:[#allocation3 + $0x2e9] sm:$0xff]
  %v5773 = vld [vmem:[#allocation3 + $0x2f1] sm:$0xff]
  %v5774 = vld [vmem:[#allocation3 + $0x301] sm:$0xff]
  %v5775 = vld [vmem:[#allocation3 + $0x309] sm:$0xff]
  %v5776 = vld [vmem:[#allocation3 + $0x319] sm:$0xff]
  %v5777 = vld [vmem:[#allocation3 + $0x321] sm:$0xff]
  %s5778 = scalar_lea.vmem %s5, 128
  %v5779 = vld [vmem:[%s5778] sm:$0xff]
  %v5780 = vld [vmem:[%s5778 + $0x8] sm:$0xff]
  %v5781 = vld [vmem:[%s5778 + $0x10] sm:$0xff]
  %v5782 = vld [vmem:[%s5778 + $0x18] sm:$0xff]
  %v5783 = vld [vmem:[%s5778 + $0x20] sm:$0xff]
  %v5784 = vld [vmem:[%s5778 + $0x28] sm:$0xff]
  %v5785 = vld [vmem:[%s5778 + $0x30] sm:$0xff]
  %v5786 = vld [vmem:[%s5778 + $0x38] sm:$0xff]
  %v5787 = vld [vmem:[%s5778 + $0x40] sm:$0xff]
  %v5788 = vld [vmem:[%s5778 + $0x48] sm:$0xff]
  %v5789 = vld [vmem:[%s5778 + $0x50] sm:$0xff]
  %v5790 = vld [vmem:[%s5778 + $0x58] sm:$0xff]
  %v5791 = vld [vmem:[%s5778 + $0x60] sm:$0xff]
  %v5792 = vld [vmem:[%s5778 + $0x68] sm:$0xff]
  %v5793 = vld [vmem:[%s5778 + $0x70] sm:$0xff]
  %v5794 = vld [vmem:[%s5778 + $0x78] sm:$0xff]
  %5795 = vmatprep.subr.mxu0 0.0
  %5796 = vmatpush1.msra.mxu0 %v5779
  %5797 = vmatprep.subr.mxu0 0.0
  %5798 = vmatpush1.msra.mxu0 %v5780
  %5799 = vmatprep.subr.mxu0 0.0
  %5800 = vmatpush1.msra.mxu0 %v5781
  %5801 = vmatprep.subr.mxu0 0.0
  %5802 = vmatpush1.msra.mxu0 %v5782
  %5803 = vmatprep.subr.mxu0 0.0
  %5804 = vmatpush1.msra.mxu0 %v5783
  %5805 = vmatprep.subr.mxu0 0.0
  %5806 = vmatpush1.msra.mxu0 %v5784
  %5807 = vmatprep.subr.mxu0 0.0
  %5808 = vmatpush1.msra.mxu0 %v5785
  %5809 = vmatprep.subr.mxu0 0.0
  %5810 = vmatpush1.msra.mxu0 %v5786
  %5811 = vmatprep.subr.mxu0 0.0
  %5812 = vmatpush1.msra.mxu0 %v5787
  %5813 = vmatprep.subr.mxu0 0.0
  %5814 = vmatpush1.msra.mxu0 %v5788
  %5815 = vmatprep.subr.mxu0 0.0
  %5816 = vmatpush1.msra.mxu0 %v5789
  %5817 = vmatprep.subr.mxu0 0.0
  %5818 = vmatpush1.msra.mxu0 %v5790
  %5819 = vmatprep.subr.mxu0 0.0
  %5820 = vmatpush1.msra.mxu0 %v5791
  %5821 = vmatprep.subr.mxu0 0.0
  %5822 = vmatpush1.msra.mxu0 %v5792
  %5823 = vmatprep.subr.mxu0 0.0
  %5824 = vmatpush1.msra.mxu0 %v5793
  %5825 = vmatprep.subr.mxu0 0.0
  %5826 = vmatpush1.msra.mxu0 %v5794
  %5827 = vmatprep.subr.mxu0 0.0
  %5828 = vmatpush1.msra.mxu0 0.0
  %5829 = vmatprep.subr.mxu0 0.0
  %5830 = vmatpush1.msra.mxu0 0.0
  %5831 = vmatprep.subr.mxu0 0.0
  %5832 = vmatpush1.msra.mxu0 0.0
  %5833 = vmatprep.subr.mxu0 0.0
  %5834 = vmatpush1.msra.mxu0 0.0
  %5835 = vmatprep.subr.mxu0 0.0
  %5836 = vmatpush1.msra.mxu0 0.0
  %5837 = vmatprep.subr.mxu0 0.0
  %5838 = vmatpush1.msra.mxu0 0.0
  %5839 = vmatprep.subr.mxu0 0.0
  %5840 = vmatpush1.msra.mxu0 0.0
  %5841 = vmatprep.subr.mxu0 0.0
  %5842 = vmatpush1.msra.mxu0 0.0
  %5843 = vmatprep.subr.mxu0 0.0
  %5844 = vmatpush1.msra.mxu0 0.0
  %5845 = vmatprep.subr.mxu0 0.0
  %5846 = vmatpush1.msra.mxu0 0.0
  %5847 = vmatprep.subr.mxu0 0.0
  %5848 = vmatpush1.msra.mxu0 0.0
  %5849 = vmatprep.subr.mxu0 0.0
  %5850 = vmatpush1.msra.mxu0 0.0
  %5851 = vmatprep.subr.mxu0 0.0
  %5852 = vmatpush1.msra.mxu0 0.0
  %5853 = vmatprep.subr.mxu0 0.0
  %5854 = vmatpush1.msra.mxu0 0.0
  %5855 = vmatprep.subr.mxu0 0.0
  %5856 = vmatpush1.msra.mxu0 0.0
  %5857 = vmatprep.subr.mxu0 0.0
  %5858 = vmatpush1.msra.mxu0 0.0
  %5859 = vmatprep.mubr.f32.mxu0 0.0
  %5860 = vmatmul.mubr.f32.gmra.mrb[0].mxu0 %v5714
  %v5861 = vpop.f32.mrb[0].mxu0
  %v5862 = vadd.f32 0.0, %v5861
  %v5863 = vpop.f32.mrb[0].mxu0
  %5864 = vmatprep.mubr.f32.mxu0 0.0
  %5865 = vmatmul.mubr.f32.gmra.mrb[0].mxu0 %v5715
  %v5866 = vpop.f32.mrb[0].mxu0
  %v5867 = vadd.f32 0.0, %v5866
  %v5868 = vpop.f32.mrb[0].mxu0
  %5869 = vmatprep.mubr.f32.mxu0 0.0
  %5870 = vmatmul.mubr.f32.gmra.mrb[0].mxu0 %v5716
  %v5871 = vpop.f32.mrb[0].mxu0
  %v5872 = vadd.f32 0.0, %v5871
  %v5873 = vpop.f32.mrb[0].mxu0
  %5874 = vmatprep.mubr.f32.mxu0 0.0
  %5875 = vmatmul.mubr.f32.gmra.mrb[0].mxu0 %v5717
  %v5876 = vpop.f32.mrb[0].mxu0
  %v5877 = vadd.f32 0.0, %v5876
  %v5878 = vpop.f32.mrb[0].mxu0
  %5879 = vmatprep.mubr.f32.mxu0 0.0
  %5880 = vmatmul.mubr.f32.gmra.mrb[0].mxu0 %v5718
  %v5881 = vpop.f32.mrb[0].mxu0
  %v5882 = vadd.f32 0.0, %v5881
  %v5883 = vpop.f32.mrb[0].mxu0
  %5884 = vmatprep.mubr.f32.mxu0 0.0
  %5885 = vmatmul.mubr.f32.gmra.mrb[0].mxu0 %v5719
  %v5886 = vpop.f32.mrb[0].mxu0
  %v5887 = vadd.f32 0.0, %v5886
  %v5888 = vpop.f32.mrb[0].mxu0
  %5889 = vmatprep.mubr.f32.mxu0 0.0
  %5890 = vmatmul.mubr.f32.gmra.mrb[0].mxu0 %v5720
  %v5891 = vpop.f32.mrb[0].mxu0
  %v5892 = vadd.f32 0.0, %v5891
  %v5893 = vpop.f32.mrb[0].mxu0
  %5894 = vmatprep.mubr.f32.mxu0 0.0
  %5895 = vmatmul.mubr.f32.gmra.mrb[0].mxu0 %v5721
  %v5896 = vpop.f32.mrb[0].mxu0
  %v5897 = vadd.f32 0.0, %v5896
  %v5898 = vpop.f32.mrb[0].mxu0
  %5899 = vmatprep.mubr.f32.mxu0 0.0
  %5900 = vmatmul.mubr.f32.gmra.mrb[0].mxu0 %v5722
  %v5901 = vpop.f32.mrb[0].mxu0
  %v5902 = vadd.f32 0.0, %v5901
  %v5903 = vpop.f32.mrb[0].mxu0
  %5904 = vmatprep.mubr.f32.mxu0 0.0
  %5905 = vmatmul.mubr.f32.gmra.mrb[0].mxu0 %v5723
  %v5906 = vpop.f32.mrb[0].mxu0
  %v5907 = vadd.f32 0.0, %v5906
  %v5908 = vpop.f32.mrb[0].mxu0
  %5909 = vmatprep.mubr.f32.mxu0 0.0
  %5910 = vmatmul.mubr.f32.gmra.mrb[0].mxu0 %v5724
  %v5911 = vpop.f32.mrb[0].mxu0
  %v5912 = vadd.f32 0.0, %v5911
  %v5913 = vpop.f32.mrb[0].mxu0
  %5914 = vmatprep.mubr.f32.mxu0 0.0
  %5915 = vmatmul.mubr.f32.gmra.mrb[0].mxu0 %v5725
  %v5916 = vpop.f32.mrb[0].mxu0
  %v5917 = vadd.f32 0.0, %v5916
  %v5918 = vpop.f32.mrb[0].mxu0
  %5919 = vmatprep.mubr.f32.mxu0 0.0
  %5920 = vmatmul.mubr.f32.gmra.mrb[0].mxu0 %v5726
  %v5921 = vpop.f32.mrb[0].mxu0
  %v5922 = vadd.f32 0.0, %v5921
  %v5923 = vpop.f32.mrb[0].mxu0
  %5924 = vmatprep.mubr.f32.mxu0 0.0
  %5925 = vmatmul.mubr.f32.gmra.mrb[0].mxu0 %v5727
  %v5926 = vpop.f32.mrb[0].mxu0
  %v5927 = vadd.f32 0.0, %v5926
  %v5928 = vpop.f32.mrb[0].mxu0
  %5929 = vmatprep.mubr.f32.mxu0 0.0
  %5930 = vmatmul.mubr.f32.gmra.mrb[0].mxu0 %v5728
  %v5931 = vpop.f32.mrb[0].mxu0
  %v5932 = vadd.f32 0.0, %v5931
  %v5933 = vpop.f32.mrb[0].mxu0
  %5934 = vmatprep.mubr.f32.mxu0 0.0
  %5935 = vmatmul.mubr.f32.gmra.mrb[0].mxu0 %v5729
  %v5936 = vpop.f32.mrb[0].mxu0
  %v5937 = vadd.f32 0.0, %v5936
  %v5938 = vpop.f32.mrb[0].mxu0
  %5939 = vmatprep.mubr.f32.mxu0 0.0
  %5940 = vmatmul.mubr.f32.gmra.mrb[0].mxu0 %v5730
  %v5941 = vpop.f32.mrb[0].mxu0
  %v5942 = vadd.f32 0.0, %v5941
  %v5943 = vpop.f32.mrb[0].mxu0
  %5944 = vmatprep.mubr.f32.mxu0 0.0
  %5945 = vmatmul.mubr.f32.gmra.mrb[0].mxu0 %v5731
  %v5946 = vpop.f32.mrb[0].mxu0
  %v5947 = vadd.f32 0.0, %v5946
  %v5948 = vpop.f32.mrb[0].mxu0
  %5949 = vmatprep.mubr.f32.mxu0 0.0
  %5950 = vmatmul.mubr.f32.gmra.mrb[0].mxu0 %v5732
  %v5951 = vpop.f32.mrb[0].mxu0
  %v5952 = vadd.f32 0.0, %v5951
  %v5953 = vpop.f32.mrb[0].mxu0
  %5954 = vmatprep.mubr.f32.mxu0 0.0
  %5955 = vmatmul.mubr.f32.gmra.mrb[0].mxu0 %v5733
  %v5956 = vpop.f32.mrb[0].mxu0
  %v5957 = vadd.f32 0.0, %v5956
  %v5958 = vpop.f32.mrb[0].mxu0
  %5959 = vmatprep.mubr.f32.mxu0 0.0
  %5960 = vmatmul.mubr.f32.gmra.mrb[0].mxu0 %v5734
  %v5961 = vpop.f32.mrb[0].mxu0
  %v5962 = vadd.f32 0.0, %v5961
  %v5963 = vpop.f32.mrb[0].mxu0
  %5964 = vmatprep.mubr.f32.mxu0 0.0
  %5965 = vmatmul.mubr.f32.gmra.mrb[0].mxu0 %v5735
  %v5966 = vpop.f32.mrb[0].mxu0
  %v5967 = vadd.f32 0.0, %v5966
  %v5968 = vpop.f32.mrb[0].mxu0
  %5969 = vmatprep.mubr.f32.mxu0 0.0
  %5970 = vmatmul.mubr.f32.gmra.mrb[0].mxu0 %v5736
  %v5971 = vpop.f32.mrb[0].mxu0
  %v5972 = vadd.f32 0.0, %v5971
  %v5973 = vpop.f32.mrb[0].mxu0
  %5974 = vmatprep.mubr.f32.mxu0 0.0
  %5975 = vmatmul.mubr.f32.gmra.mrb[0].mxu0 %v5737
  %v5976 = vpop.f32.mrb[0].mxu0
  %v5977 = vadd.f32 0.0, %v5976
  %v5978 = vpop.f32.mrb[0].mxu0
  %5979 = vmatprep.mubr.f32.mxu0 0.0
  %5980 = vmatmul.mubr.f32.gmra.mrb[0].mxu0 %v5738
  %v5981 = vpop.f32.mrb[0].mxu0
  %v5982 = vadd.f32 0.0, %v5981
  %v5983 = vpop.f32.mrb[0].mxu0
  %5984 = vmatprep.mubr.f32.mxu0 0.0
  %5985 = vmatmul.mubr.f32.gmra.mrb[0].mxu0 %v5739
  %v5986 = vpop.f32.mrb[0].mxu0
  %v5987 = vadd.f32 0.0, %v5986
  %v5988 = vpop.f32.mrb[0].mxu0
  %5989 = vmatprep.mubr.f32.mxu0 0.0
  %5990 = vmatmul.mubr.f32.gmra.mrb[0].mxu0 %v5740
  %v5991 = vpop.f32.mrb[0].mxu0
  %v5992 = vadd.f32 0.0, %v5991
  %v5993 = vpop.f32.mrb[0].mxu0
  %5994 = vmatprep.mubr.f32.mxu0 0.0
  %5995 = vmatmul.mubr.f32.gmra.mrb[0].mxu0 %v5741
  %v5996 = vpop.f32.mrb[0].mxu0
  %v5997 = vadd.f32 0.0, %v5996
  %v5998 = vpop.f32.mrb[0].mxu0
  %5999 = vmatprep.mubr.f32.mxu0 0.0
  %6000 = vmatmul.mubr.f32.gmra.mrb[0].mxu0 %v5742
  %v6001 = vpop.f32.mrb[0].mxu0
  %v6002 = vadd.f32 0.0, %v6001
  %v6003 = vpop.f32.mrb[0].mxu0
  %6004 = vmatprep.mubr.f32.mxu0 0.0
  %6005 = vmatmul.mubr.f32.gmra.mrb[0].mxu0 %v5743
  %v6006 = vpop.f32.mrb[0].mxu0
  %v6007 = vadd.f32 0.0, %v6006
  %v6008 = vpop.f32.mrb[0].mxu0
  %6009 = vmatprep.mubr.f32.mxu0 0.0
  %6010 = vmatmul.mubr.f32.gmra.mrb[0].mxu0 %v5744
  %v6011 = vpop.f32.mrb[0].mxu0
  %v6012 = vadd.f32 0.0, %v6011
  %v6013 = vpop.f32.mrb[0].mxu0
  %6014 = vmatprep.mubr.f32.mxu0 0.0
  %6015 = vmatmul.mubr.f32.gmra.mrb[0].mxu0 %v5745
  %v6016 = vpop.f32.mrb[0].mxu0
  %v6017 = vadd.f32 0.0, %v6016
  %v6018 = vpop.f32.mrb[0].mxu0
  %6019 = vmatprep.mubr.f32.mxu0 0.0
  %6020 = vmatmul.mubr.f32.gmra.mrb[0].mxu0 %v5746
  %v6021 = vpop.f32.mrb[0].mxu0
  %v6022 = vadd.f32 0.0, %v6021
  %v6023 = vpop.f32.mrb[0].mxu0
  %6024 = vmatprep.mubr.f32.mxu0 0.0
  %6025 = vmatmul.mubr.f32.gmra.mrb[0].mxu0 %v5747
  %v6026 = vpop.f32.mrb[0].mxu0
  %v6027 = vadd.f32 0.0, %v6026
  %v6028 = vpop.f32.mrb[0].mxu0
  %6029 = vmatprep.mubr.f32.mxu0 0.0
  %6030 = vmatmul.mubr.f32.gmra.mrb[0].mxu0 %v5748
  %v6031 = vpop.f32.mrb[0].mxu0
  %v6032 = vadd.f32 0.0, %v6031
  %v6033 = vpop.f32.mrb[0].mxu0
  %6034 = vmatprep.mubr.f32.mxu0 0.0
  %6035 = vmatmul.mubr.f32.gmra.mrb[0].mxu0 %v5749
  %v6036 = vpop.f32.mrb[0].mxu0
  %v6037 = vadd.f32 0.0, %v6036
  %v6038 = vpop.f32.mrb[0].mxu0
  %6039 = vmatprep.mubr.f32.mxu0 0.0
  %6040 = vmatmul.mubr.f32.gmra.mrb[0].mxu0 %v5750
  %v6041 = vpop.f32.mrb[0].mxu0
  %v6042 = vadd.f32 0.0, %v6041
  %v6043 = vpop.f32.mrb[0].mxu0
  %6044 = vmatprep.mubr.f32.mxu0 0.0
  %6045 = vmatmul.mubr.f32.gmra.mrb[0].mxu0 %v5751
  %v6046 = vpop.f32.mrb[0].mxu0
  %v6047 = vadd.f32 0.0, %v6046
  %v6048 = vpop.f32.mrb[0].mxu0
  %6049 = vmatprep.mubr.f32.mxu0 0.0
  %6050 = vmatmul.mubr.f32.gmra.mrb[0].mxu0 %v5752
  %v6051 = vpop.f32.mrb[0].mxu0
  %v6052 = vadd.f32 0.0, %v6051
  %v6053 = vpop.f32.mrb[0].mxu0
  %6054 = vmatprep.mubr.f32.mxu0 0.0
  %6055 = vmatmul.mubr.f32.gmra.mrb[0].mxu0 %v5753
  %v6056 = vpop.f32.mrb[0].mxu0
  %v6057 = vadd.f32 0.0, %v6056
  %v6058 = vpop.f32.mrb[0].mxu0
  %6059 = vmatprep.mubr.f32.mxu0 0.0
  %6060 = vmatmul.mubr.f32.gmra.mrb[0].mxu0 %v5754
  %v6061 = vpop.f32.mrb[0].mxu0
  %v6062 = vadd.f32 0.0, %v6061
  %v6063 = vpop.f32.mrb[0].mxu0
  %6064 = vmatprep.mubr.f32.mxu0 0.0
  %6065 = vmatmul.mubr.f32.gmra.mrb[0].mxu0 %v5755
  %v6066 = vpop.f32.mrb[0].mxu0
  %v6067 = vadd.f32 0.0, %v6066
  %v6068 = vpop.f32.mrb[0].mxu0
  %6069 = vmatprep.mubr.f32.mxu0 0.0
  %6070 = vmatmul.mubr.f32.gmra.mrb[0].mxu0 %v5756
  %v6071 = vpop.f32.mrb[0].mxu0
  %v6072 = vadd.f32 0.0, %v6071
  %v6073 = vpop.f32.mrb[0].mxu0
  %6074 = vmatprep.mubr.f32.mxu0 0.0
  %6075 = vmatmul.mubr.f32.gmra.mrb[0].mxu0 %v5757
  %v6076 = vpop.f32.mrb[0].mxu0
  %v6077 = vadd.f32 0.0, %v6076
  %v6078 = vpop.f32.mrb[0].mxu0
  %6079 = vmatprep.mubr.f32.mxu0 0.0
  %6080 = vmatmul.mubr.f32.gmra.mrb[0].mxu0 %v5758
  %v6081 = vpop.f32.mrb[0].mxu0
  %v6082 = vadd.f32 0.0, %v6081
  %v6083 = vpop.f32.mrb[0].mxu0
  %6084 = vmatprep.mubr.f32.mxu0 0.0
  %6085 = vmatmul.mubr.f32.gmra.mrb[0].mxu0 %v5759
  %v6086 = vpop.f32.mrb[0].mxu0
  %v6087 = vadd.f32 0.0, %v6086
  %v6088 = vpop.f32.mrb[0].mxu0
  %6089 = vmatprep.mubr.f32.mxu0 0.0
  %6090 = vmatmul.mubr.f32.gmra.mrb[0].mxu0 %v5760
  %v6091 = vpop.f32.mrb[0].mxu0
  %v6092 = vadd.f32 0.0, %v6091
  %v6093 = vpop.f32.mrb[0].mxu0
  %6094 = vmatprep.mubr.f32.mxu0 0.0
  %6095 = vmatmul.mubr.f32.gmra.mrb[0].mxu0 %v5761
  %v6096 = vpop.f32.mrb[0].mxu0
  %v6097 = vadd.f32 0.0, %v6096
  %v6098 = vpop.f32.mrb[0].mxu0
  %6099 = vmatprep.mubr.f32.mxu0 0.0
  %6100 = vmatmul.mubr.f32.gmra.mrb[0].mxu0 %v5762
  %v6101 = vpop.f32.mrb[0].mxu0
  %v6102 = vadd.f32 0.0, %v6101
  %v6103 = vpop.f32.mrb[0].mxu0
  %6104 = vmatprep.mubr.f32.mxu0 0.0
  %6105 = vmatmul.mubr.f32.gmra.mrb[0].mxu0 %v5763
  %v6106 = vpop.f32.mrb[0].mxu0
  %v6107 = vadd.f32 0.0, %v6106
  %v6108 = vpop.f32.mrb[0].mxu0
  %6109 = vmatprep.mubr.f32.mxu0 0.0
  %6110 = vmatmul.mubr.f32.gmra.mrb[0].mxu0 %v5764
  %v6111 = vpop.f32.mrb[0].mxu0
  %v6112 = vadd.f32 0.0, %v6111
  %v6113 = vpop.f32.mrb[0].mxu0
  %6114 = vmatprep.mubr.f32.mxu0 0.0
  %6115 = vmatmul.mubr.f32.gmra.mrb[0].mxu0 %v5765
  %v6116 = vpop.f32.mrb[0].mxu0
  %v6117 = vadd.f32 0.0, %v6116
  %v6118 = vpop.f32.mrb[0].mxu0
  %6119 = vmatprep.mubr.f32.mxu0 0.0
  %6120 = vmatmul.mubr.f32.gmra.mrb[0].mxu0 %v5766
  %v6121 = vpop.f32.mrb[0].mxu0
  %v6122 = vadd.f32 0.0, %v6121
  %v6123 = vpop.f32.mrb[0].mxu0
  %6124 = vmatprep.mubr.f32.mxu0 0.0
  %6125 = vmatmul.mubr.f32.gmra.mrb[0].mxu0 %v5767
  %v6126 = vpop.f32.mrb[0].mxu0
  %v6127 = vadd.f32 0.0, %v6126
  %v6128 = vpop.f32.mrb[0].mxu0
  %6129 = vmatprep.mubr.f32.mxu0 0.0
  %6130 = vmatmul.mubr.f32.gmra.mrb[0].mxu0 %v5768
  %v6131 = vpop.f32.mrb[0].mxu0
  %v6132 = vadd.f32 0.0, %v6131
  %v6133 = vpop.f32.mrb[0].mxu0
  %6134 = vmatprep.mubr.f32.mxu0 0.0
  %6135 = vmatmul.mubr.f32.gmra.mrb[0].mxu0 %v5769
  %v6136 = vpop.f32.mrb[0].mxu0
  %v6137 = vadd.f32 0.0, %v6136
  %v6138 = vpop.f32.mrb[0].mxu0
  %6139 = vmatprep.mubr.f32.mxu0 0.0
  %6140 = vmatmul.mubr.f32.gmra.mrb[0].mxu0 %v5770
  %v6141 = vpop.f32.mrb[0].mxu0
  %v6142 = vadd.f32 0.0, %v6141
  %v6143 = vpop.f32.mrb[0].mxu0
  %6144 = vmatprep.mubr.f32.mxu0 0.0
  %6145 = vmatmul.mubr.f32.gmra.mrb[0].mxu0 %v5771
  %v6146 = vpop.f32.mrb[0].mxu0
  %v6147 = vadd.f32 0.0, %v6146
  %v6148 = vpop.f32.mrb[0].mxu0
  %6149 = vmatprep.mubr.f32.mxu0 0.0
  %6150 = vmatmul.mubr.f32.gmra.mrb[0].mxu0 %v5772
  %v6151 = vpop.f32.mrb[0].mxu0
  %v6152 = vadd.f32 0.0, %v6151
  %v6153 = vpop.f32.mrb[0].mxu0
  %6154 = vmatprep.mubr.f32.mxu0 0.0
  %6155 = vmatmul.mubr.f32.gmra.mrb[0].mxu0 %v5773
  %v6156 = vpop.f32.mrb[0].mxu0
  %v6157 = vadd.f32 0.0, %v6156
  %v6158 = vpop.f32.mrb[0].mxu0
  %6159 = vmatprep.mubr.f32.mxu0 0.0
  %6160 = vmatmul.mubr.f32.gmra.mrb[0].mxu0 %v5774
  %v6161 = vpop.f32.mrb[0].mxu0
  %v6162 = vadd.f32 0.0, %v6161
  %v6163 = vpop.f32.mrb[0].mxu0
  %6164 = vmatprep.mubr.f32.mxu0 0.0
  %6165 = vmatmul.mubr.f32.gmra.mrb[0].mxu0 %v5775
  %v6166 = vpop.f32.mrb[0].mxu0
  %v6167 = vadd.f32 0.0, %v6166
  %v6168 = vpop.f32.mrb[0].mxu0
  %6169 = vmatprep.mubr.f32.mxu0 0.0
  %6170 = vmatmul.mubr.f32.gmra.mrb[0].mxu0 %v5776
  %v6171 = vpop.f32.mrb[0].mxu0
  %v6172 = vadd.f32 0.0, %v6171
  %v6173 = vpop.f32.mrb[0].mxu0
  %6174 = vmatprep.mubr.f32.mxu0 0.0
  %6175 = vmatmul.mubr.f32.gmra.mrb[0].mxu0 %v5777
  %v6176 = vpop.f32.mrb[0].mxu0
  %v6177 = vadd.f32 0.0, %v6176
  %v6178 = vpop.f32.mrb[0].mxu0
  %6179 = vdwg.mxu0
  %6180 = vmatprep.subr.mxu0 0.0
  %6181 = vmatpush1.msra.mxu0 %v5698
  %6182 = vmatprep.subr.mxu0 0.0
  %6183 = vmatpush1.msra.mxu0 %v5699
  %6184 = vmatprep.subr.mxu0 0.0
  %6185 = vmatpush1.msra.mxu0 %v5700
  %6186 = vmatprep.subr.mxu0 0.0
  %6187 = vmatpush1.msra.mxu0 %v5701
  %6188 = vmatprep.subr.mxu0 0.0
  %6189 = vmatpush1.msra.mxu0 %v5702
  %6190 = vmatprep.subr.mxu0 0.0
  %6191 = vmatpush1.msra.mxu0 %v5703
  %6192 = vmatprep.subr.mxu0 0.0
  %6193 = vmatpush1.msra.mxu0 %v5704
  %6194 = vmatprep.subr.mxu0 0.0
  %6195 = vmatpush1.msra.mxu0 %v5705
  %6196 = vmatprep.subr.mxu0 0.0
  %6197 = vmatpush1.msra.mxu0 %v5706
  %6198 = vmatprep.subr.mxu0 0.0
  %6199 = vmatpush1.msra.mxu0 %v5707
  %6200 = vmatprep.subr.mxu0 0.0
  %6201 = vmatpush1.msra.mxu0 %v5708
  %6202 = vmatprep.subr.mxu0 0.0
  %6203 = vmatpush1.msra.mxu0 %v5709
  %6204 = vmatprep.subr.mxu0 0.0
  %6205 = vmatpush1.msra.mxu0 %v5710
  %6206 = vmatprep.subr.mxu0 0.0
  %6207 = vmatpush1.msra.mxu0 %v5711
  %6208 = vmatprep.subr.mxu0 0.0
  %6209 = vmatpush1.msra.mxu0 %v5712
  %6210 = vmatprep.subr.mxu0 0.0
  %6211 = vmatpush1.msra.mxu0 %v5713
  %6212 = vmatprep.subr.mxu0 0.0
  %6213 = vmatpush1.msra.mxu0 0.0
  %6214 = vmatprep.subr.mxu0 0.0
  %6215 = vmatpush1.msra.mxu0 0.0
  %6216 = vmatprep.subr.mxu0 0.0
  %6217 = vmatpush1.msra.mxu0 0.0
  %6218 = vmatprep.subr.mxu0 0.0
  %6219 = vmatpush1.msra.mxu0 0.0
  %6220 = vmatprep.subr.mxu0 0.0
  %6221 = vmatpush1.msra.mxu0 0.0
  %6222 = vmatprep.subr.mxu0 0.0
  %6223 = vmatpush1.msra.mxu0 0.0
  %6224 = vmatprep.subr.mxu0 0.0
  %6225 = vmatpush1.msra.mxu0 0.0
  %6226 = vmatprep.subr.mxu0 0.0
  %6227 = vmatpush1.msra.mxu0 0.0
  %6228 = vmatprep.subr.mxu0 0.0
  %6229 = vmatpush1.msra.mxu0 0.0
  %6230 = vmatprep.subr.mxu0 0.0
  %6231 = vmatpush1.msra.mxu0 0.0
  %6232 = vmatprep.subr.mxu0 0.0
  %6233 = vmatpush1.msra.mxu0 0.0
  %6234 = vmatprep.subr.mxu0 0.0
  %6235 = vmatpush1.msra.mxu0 0.0
  %6236 = vmatprep.subr.mxu0 0.0
  %6237 = vmatpush1.msra.mxu0 0.0
  %6238 = vmatprep.subr.mxu0 0.0
  %6239 = vmatpush1.msra.mxu0 0.0
  %6240 = vmatprep.subr.mxu0 0.0
  %6241 = vmatpush1.msra.mxu0 0.0
  %6242 = vmatprep.subr.mxu0 0.0
  %6243 = vmatpush1.msra.mxu0 0.0
  %6244 = vmatprep.mubr.f32.mxu0 0.0
  %6245 = vmatmul.mubr.f32.gmra.mrb[0].mxu0 %v5634
  %v6246 = vpop.f32.mrb[0].mxu0
  %v6247 = vadd.f32 %v5862, %v6246
  %v6248 = vpop.f32.mrb[0].mxu0
  %6249 = vmatprep.mubr.f32.mxu0 0.0
  %6250 = vmatmul.mubr.f32.gmra.mrb[0].mxu0 %v5635
  %v6251 = vpop.f32.mrb[0].mxu0
  %v6252 = vadd.f32 %v5867, %v6251
  %v6253 = vpop.f32.mrb[0].mxu0
  %6254 = vmatprep.mubr.f32.mxu0 0.0
  %6255 = vmatmul.mubr.f32.gmra.mrb[0].mxu0 %v5636
  %v6256 = vpop.f32.mrb[0].mxu0
  %v6257 = vadd.f32 %v5872, %v6256
  %v6258 = vpop.f32.mrb[0].mxu0
  %6259 = vmatprep.mubr.f32.mxu0 0.0
  %6260 = vmatmul.mubr.f32.gmra.mrb[0].mxu0 %v5637
  %v6261 = vpop.f32.mrb[0].mxu0
  %v6262 = vadd.f32 %v5877, %v6261
  %v6263 = vpop.f32.mrb[0].mxu0
  %6264 = vmatprep.mubr.f32.mxu0 0.0
  %6265 = vmatmul.mubr.f32.gmra.mrb[0].mxu0 %v5638
  %v6266 = vpop.f32.mrb[0].mxu0
  %v6267 = vadd.f32 %v5882, %v6266
  %v6268 = vpop.f32.mrb[0].mxu0
  %6269 = vmatprep.mubr.f32.mxu0 0.0
  %6270 = vmatmul.mubr.f32.gmra.mrb[0].mxu0 %v5639
  %v6271 = vpop.f32.mrb[0].mxu0
  %v6272 = vadd.f32 %v5887, %v6271
  %v6273 = vpop.f32.mrb[0].mxu0
  %6274 = vmatprep.mubr.f32.mxu0 0.0
  %6275 = vmatmul.mubr.f32.gmra.mrb[0].mxu0 %v5640
  %v6276 = vpop.f32.mrb[0].mxu0
  %v6277 = vadd.f32 %v5892, %v6276
  %v6278 = vpop.f32.mrb[0].mxu0
  %6279 = vmatprep.mubr.f32.mxu0 0.0
  %6280 = vmatmul.mubr.f32.gmra.mrb[0].mxu0 %v5641
  %v6281 = vpop.f32.mrb[0].mxu0
  %v6282 = vadd.f32 %v5897, %v6281
  %v6283 = vpop.f32.mrb[0].mxu0
  %6284 = vmatprep.mubr.f32.mxu0 0.0
  %6285 = vmatmul.mubr.f32.gmra.mrb[0].mxu0 %v5642
  %v6286 = vpop.f32.mrb[0].mxu0
  %v6287 = vadd.f32 %v5902, %v6286
  %v6288 = vpop.f32.mrb[0].mxu0
  %6289 = vmatprep.mubr.f32.mxu0 0.0
  %6290 = vmatmul.mubr.f32.gmra.mrb[0].mxu0 %v5643
  %v6291 = vpop.f32.mrb[0].mxu0
  %v6292 = vadd.f32 %v5907, %v6291
  %v6293 = vpop.f32.mrb[0].mxu0
  %6294 = vmatprep.mubr.f32.mxu0 0.0
  %6295 = vmatmul.mubr.f32.gmra.mrb[0].mxu0 %v5644
  %v6296 = vpop.f32.mrb[0].mxu0
  %v6297 = vadd.f32 %v5912, %v6296
  %v6298 = vpop.f32.mrb[0].mxu0
  %6299 = vmatprep.mubr.f32.mxu0 0.0
  %6300 = vmatmul.mubr.f32.gmra.mrb[0].mxu0 %v5645
  %v6301 = vpop.f32.mrb[0].mxu0
  %v6302 = vadd.f32 %v5917, %v6301
  %v6303 = vpop.f32.mrb[0].mxu0
  %6304 = vmatprep.mubr.f32.mxu0 0.0
  %6305 = vmatmul.mubr.f32.gmra.mrb[0].mxu0 %v5646
  %v6306 = vpop.f32.mrb[0].mxu0
  %v6307 = vadd.f32 %v5922, %v6306
  %v6308 = vpop.f32.mrb[0].mxu0
  %6309 = vmatprep.mubr.f32.mxu0 0.0
  %6310 = vmatmul.mubr.f32.gmra.mrb[0].mxu0 %v5647
  %v6311 = vpop.f32.mrb[0].mxu0
  %v6312 = vadd.f32 %v5927, %v6311
  %v6313 = vpop.f32.mrb[0].mxu0
  %6314 = vmatprep.mubr.f32.mxu0 0.0
  %6315 = vmatmul.mubr.f32.gmra.mrb[0].mxu0 %v5648
  %v6316 = vpop.f32.mrb[0].mxu0
  %v6317 = vadd.f32 %v5932, %v6316
  %v6318 = vpop.f32.mrb[0].mxu0
  %6319 = vmatprep.mubr.f32.mxu0 0.0
  %6320 = vmatmul.mubr.f32.gmra.mrb[0].mxu0 %v5649
  %v6321 = vpop.f32.mrb[0].mxu0
  %v6322 = vadd.f32 %v5937, %v6321
  %v6323 = vpop.f32.mrb[0].mxu0
  %6324 = vmatprep.mubr.f32.mxu0 0.0
  %6325 = vmatmul.mubr.f32.gmra.mrb[0].mxu0 %v5650
  %v6326 = vpop.f32.mrb[0].mxu0
  %v6327 = vadd.f32 %v5942, %v6326
  %v6328 = vpop.f32.mrb[0].mxu0
  %6329 = vmatprep.mubr.f32.mxu0 0.0
  %6330 = vmatmul.mubr.f32.gmra.mrb[0].mxu0 %v5651
  %v6331 = vpop.f32.mrb[0].mxu0
  %v6332 = vadd.f32 %v5947, %v6331
  %v6333 = vpop.f32.mrb[0].mxu0
  %6334 = vmatprep.mubr.f32.mxu0 0.0
  %6335 = vmatmul.mubr.f32.gmra.mrb[0].mxu0 %v5652
  %v6336 = vpop.f32.mrb[0].mxu0
  %v6337 = vadd.f32 %v5952, %v6336
  %v6338 = vpop.f32.mrb[0].mxu0
  %6339 = vmatprep.mubr.f32.mxu0 0.0
  %6340 = vmatmul.mubr.f32.gmra.mrb[0].mxu0 %v5653
  %v6341 = vpop.f32.mrb[0].mxu0
  %v6342 = vadd.f32 %v5957, %v6341
  %v6343 = vpop.f32.mrb[0].mxu0
  %6344 = vmatprep.mubr.f32.mxu0 0.0
  %6345 = vmatmul.mubr.f32.gmra.mrb[0].mxu0 %v5654
  %v6346 = vpop.f32.mrb[0].mxu0
  %v6347 = vadd.f32 %v5962, %v6346
  %v6348 = vpop.f32.mrb[0].mxu0
  %6349 = vmatprep.mubr.f32.mxu0 0.0
  %6350 = vmatmul.mubr.f32.gmra.mrb[0].mxu0 %v5655
  %v6351 = vpop.f32.mrb[0].mxu0
  %v6352 = vadd.f32 %v5967, %v6351
  %v6353 = vpop.f32.mrb[0].mxu0
  %6354 = vmatprep.mubr.f32.mxu0 0.0
  %6355 = vmatmul.mubr.f32.gmra.mrb[0].mxu0 %v5656
  %v6356 = vpop.f32.mrb[0].mxu0
  %v6357 = vadd.f32 %v5972, %v6356
  %v6358 = vpop.f32.mrb[0].mxu0
  %6359 = vmatprep.mubr.f32.mxu0 0.0
  %6360 = vmatmul.mubr.f32.gmra.mrb[0].mxu0 %v5657
  %v6361 = vpop.f32.mrb[0].mxu0
  %v6362 = vadd.f32 %v5977, %v6361
  %v6363 = vpop.f32.mrb[0].mxu0
  %6364 = vmatprep.mubr.f32.mxu0 0.0
  %6365 = vmatmul.mubr.f32.gmra.mrb[0].mxu0 %v5658
  %v6366 = vpop.f32.mrb[0].mxu0
  %v6367 = vadd.f32 %v5982, %v6366
  %v6368 = vpop.f32.mrb[0].mxu0
  %6369 = vmatprep.mubr.f32.mxu0 0.0
  %6370 = vmatmul.mubr.f32.gmra.mrb[0].mxu0 %v5659
  %v6371 = vpop.f32.mrb[0].mxu0
  %v6372 = vadd.f32 %v5987, %v6371
  %v6373 = vpop.f32.mrb[0].mxu0
  %6374 = vmatprep.mubr.f32.mxu0 0.0
  %6375 = vmatmul.mubr.f32.gmra.mrb[0].mxu0 %v5660
  %v6376 = vpop.f32.mrb[0].mxu0
  %v6377 = vadd.f32 %v5992, %v6376
  %v6378 = vpop.f32.mrb[0].mxu0
  %6379 = vmatprep.mubr.f32.mxu0 0.0
  %6380 = vmatmul.mubr.f32.gmra.mrb[0].mxu0 %v5661
  %v6381 = vpop.f32.mrb[0].mxu0
  %v6382 = vadd.f32 %v5997, %v6381
  %v6383 = vpop.f32.mrb[0].mxu0
  %6384 = vmatprep.mubr.f32.mxu0 0.0
  %6385 = vmatmul.mubr.f32.gmra.mrb[0].mxu0 %v5662
  %v6386 = vpop.f32.mrb[0].mxu0
  %v6387 = vadd.f32 %v6002, %v6386
  %v6388 = vpop.f32.mrb[0].mxu0
  %6389 = vmatprep.mubr.f32.mxu0 0.0
  %6390 = vmatmul.mubr.f32.gmra.mrb[0].mxu0 %v5663
  %v6391 = vpop.f32.mrb[0].mxu0
  %v6392 = vadd.f32 %v6007, %v6391
  %v6393 = vpop.f32.mrb[0].mxu0
  %6394 = vmatprep.mubr.f32.mxu0 0.0
  %6395 = vmatmul.mubr.f32.gmra.mrb[0].mxu0 %v5664
  %v6396 = vpop.f32.mrb[0].mxu0
  %v6397 = vadd.f32 %v6012, %v6396
  %v6398 = vpop.f32.mrb[0].mxu0
  %6399 = vmatprep.mubr.f32.mxu0 0.0
  %6400 = vmatmul.mubr.f32.gmra.mrb[0].mxu0 %v5665
  %v6401 = vpop.f32.mrb[0].mxu0
  %v6402 = vadd.f32 %v6017, %v6401
  %v6403 = vpop.f32.mrb[0].mxu0
  %6404 = vmatprep.mubr.f32.mxu0 0.0
  %6405 = vmatmul.mubr.f32.gmra.mrb[0].mxu0 %v5666
  %v6406 = vpop.f32.mrb[0].mxu0
  %v6407 = vadd.f32 %v6022, %v6406
  %v6408 = vpop.f32.mrb[0].mxu0
  %6409 = vmatprep.mubr.f32.mxu0 0.0
  %6410 = vmatmul.mubr.f32.gmra.mrb[0].mxu0 %v5667
  %v6411 = vpop.f32.mrb[0].mxu0
  %v6412 = vadd.f32 %v6027, %v6411
  %v6413 = vpop.f32.mrb[0].mxu0
  %6414 = vmatprep.mubr.f32.mxu0 0.0
  %6415 = vmatmul.mubr.f32.gmra.mrb[0].mxu0 %v5668
  %v6416 = vpop.f32.mrb[0].mxu0
  %v6417 = vadd.f32 %v6032, %v6416
  %v6418 = vpop.f32.mrb[0].mxu0
  %6419 = vmatprep.mubr.f32.mxu0 0.0
  %6420 = vmatmul.mubr.f32.gmra.mrb[0].mxu0 %v5669
  %v6421 = vpop.f32.mrb[0].mxu0
  %v6422 = vadd.f32 %v6037, %v6421
  %v6423 = vpop.f32.mrb[0].mxu0
  %6424 = vmatprep.mubr.f32.mxu0 0.0
  %6425 = vmatmul.mubr.f32.gmra.mrb[0].mxu0 %v5670
  %v6426 = vpop.f32.mrb[0].mxu0
  %v6427 = vadd.f32 %v6042, %v6426
  %v6428 = vpop.f32.mrb[0].mxu0
  %6429 = vmatprep.mubr.f32.mxu0 0.0
  %6430 = vmatmul.mubr.f32.gmra.mrb[0].mxu0 %v5671
  %v6431 = vpop.f32.mrb[0].mxu0
  %v6432 = vadd.f32 %v6047, %v6431
  %v6433 = vpop.f32.mrb[0].mxu0
  %6434 = vmatprep.mubr.f32.mxu0 0.0
  %6435 = vmatmul.mubr.f32.gmra.mrb[0].mxu0 %v5672
  %v6436 = vpop.f32.mrb[0].mxu0
  %v6437 = vadd.f32 %v6052, %v6436
  %v6438 = vpop.f32.mrb[0].mxu0
  %6439 = vmatprep.mubr.f32.mxu0 0.0
  %6440 = vmatmul.mubr.f32.gmra.mrb[0].mxu0 %v5673
  %v6441 = vpop.f32.mrb[0].mxu0
  %v6442 = vadd.f32 %v6057, %v6441
  %v6443 = vpop.f32.mrb[0].mxu0
  %6444 = vmatprep.mubr.f32.mxu0 0.0
  %6445 = vmatmul.mubr.f32.gmra.mrb[0].mxu0 %v5674
  %v6446 = vpop.f32.mrb[0].mxu0
  %v6447 = vadd.f32 %v6062, %v6446
  %v6448 = vpop.f32.mrb[0].mxu0
  %6449 = vmatprep.mubr.f32.mxu0 0.0
  %6450 = vmatmul.mubr.f32.gmra.mrb[0].mxu0 %v5675
  %v6451 = vpop.f32.mrb[0].mxu0
  %v6452 = vadd.f32 %v6067, %v6451
  %v6453 = vpop.f32.mrb[0].mxu0
  %6454 = vmatprep.mubr.f32.mxu0 0.0
  %6455 = vmatmul.mubr.f32.gmra.mrb[0].mxu0 %v5676
  %v6456 = vpop.f32.mrb[0].mxu0
  %v6457 = vadd.f32 %v6072, %v6456
  %v6458 = vpop.f32.mrb[0].mxu0
  %6459 = vmatprep.mubr.f32.mxu0 0.0
  %6460 = vmatmul.mubr.f32.gmra.mrb[0].mxu0 %v5677
  %v6461 = vpop.f32.mrb[0].mxu0
  %v6462 = vadd.f32 %v6077, %v6461
  %v6463 = vpop.f32.mrb[0].mxu0
  %6464 = vmatprep.mubr.f32.mxu0 0.0
  %6465 = vmatmul.mubr.f32.gmra.mrb[0].mxu0 %v5678
  %v6466 = vpop.f32.mrb[0].mxu0
  %v6467 = vadd.f32 %v6082, %v6466
  %v6468 = vpop.f32.mrb[0].mxu0
  %6469 = vmatprep.mubr.f32.mxu0 0.0
  %6470 = vmatmul.mubr.f32.gmra.mrb[0].mxu0 %v5679
  %v6471 = vpop.f32.mrb[0].mxu0
  %v6472 = vadd.f32 %v6087, %v6471
  %v6473 = vpop.f32.mrb[0].mxu0
  %6474 = vmatprep.mubr.f32.mxu0 0.0
  %6475 = vmatmul.mubr.f32.gmra.mrb[0].mxu0 %v5680
  %v6476 = vpop.f32.mrb[0].mxu0
  %v6477 = vadd.f32 %v6092, %v6476
  %v6478 = vpop.f32.mrb[0].mxu0
  %6479 = vmatprep.mubr.f32.mxu0 0.0
  %6480 = vmatmul.mubr.f32.gmra.mrb[0].mxu0 %v5681
  %v6481 = vpop.f32.mrb[0].mxu0
  %v6482 = vadd.f32 %v6097, %v6481
  %v6483 = vpop.f32.mrb[0].mxu0
  %6484 = vmatprep.mubr.f32.mxu0 0.0
  %6485 = vmatmul.mubr.f32.gmra.mrb[0].mxu0 %v5682
  %v6486 = vpop.f32.mrb[0].mxu0
  %v6487 = vadd.f32 %v6102, %v6486
  %v6488 = vpop.f32.mrb[0].mxu0
  %6489 = vmatprep.mubr.f32.mxu0 0.0
  %6490 = vmatmul.mubr.f32.gmra.mrb[0].mxu0 %v5683
  %v6491 = vpop.f32.mrb[0].mxu0
  %v6492 = vadd.f32 %v6107, %v6491
  %v6493 = vpop.f32.mrb[0].mxu0
  %6494 = vmatprep.mubr.f32.mxu0 0.0
  %6495 = vmatmul.mubr.f32.gmra.mrb[0].mxu0 %v5684
  %v6496 = vpop.f32.mrb[0].mxu0
  %v6497 = vadd.f32 %v6112, %v6496
  %v6498 = vpop.f32.mrb[0].mxu0
  %6499 = vmatprep.mubr.f32.mxu0 0.0
  %6500 = vmatmul.mubr.f32.gmra.mrb[0].mxu0 %v5685
  %v6501 = vpop.f32.mrb[0].mxu0
  %v6502 = vadd.f32 %v6117, %v6501
  %v6503 = vpop.f32.mrb[0].mxu0
  %6504 = vmatprep.mubr.f32.mxu0 0.0
  %6505 = vmatmul.mubr.f32.gmra.mrb[0].mxu0 %v5686
  %v6506 = vpop.f32.mrb[0].mxu0
  %v6507 = vadd.f32 %v6122, %v6506
  %v6508 = vpop.f32.mrb[0].mxu0
  %6509 = vmatprep.mubr.f32.mxu0 0.0
  %6510 = vmatmul.mubr.f32.gmra.mrb[0].mxu0 %v5687
  %v6511 = vpop.f32.mrb[0].mxu0
  %v6512 = vadd.f32 %v6127, %v6511
  %v6513 = vpop.f32.mrb[0].mxu0
  %6514 = vmatprep.mubr.f32.mxu0 0.0
  %6515 = vmatmul.mubr.f32.gmra.mrb[0].mxu0 %v5688
  %v6516 = vpop.f32.mrb[0].mxu0
  %v6517 = vadd.f32 %v6132, %v6516
  %v6518 = vpop.f32.mrb[0].mxu0
  %6519 = vmatprep.mubr.f32.mxu0 0.0
  %6520 = vmatmul.mubr.f32.gmra.mrb[0].mxu0 %v5689
  %v6521 = vpop.f32.mrb[0].mxu0
  %v6522 = vadd.f32 %v6137, %v6521
  %v6523 = vpop.f32.mrb[0].mxu0
  %6524 = vmatprep.mubr.f32.mxu0 0.0
  %6525 = vmatmul.mubr.f32.gmra.mrb[0].mxu0 %v5690
  %v6526 = vpop.f32.mrb[0].mxu0
  %v6527 = vadd.f32 %v6142, %v6526
  %v6528 = vpop.f32.mrb[0].mxu0
  %6529 = vmatprep.mubr.f32.mxu0 0.0
  %6530 = vmatmul.mubr.f32.gmra.mrb[0].mxu0 %v5691
  %v6531 = vpop.f32.mrb[0].mxu0
  %v6532 = vadd.f32 %v6147, %v6531
  %v6533 = vpop.f32.mrb[0].mxu0
  %6534 = vmatprep.mubr.f32.mxu0 0.0
  %6535 = vmatmul.mubr.f32.gmra.mrb[0].mxu0 %v5692
  %v6536 = vpop.f32.mrb[0].mxu0
  %v6537 = vadd.f32 %v6152, %v6536
  %v6538 = vpop.f32.mrb[0].mxu0
  %6539 = vmatprep.mubr.f32.mxu0 0.0
  %6540 = vmatmul.mubr.f32.gmra.mrb[0].mxu0 %v5693
  %v6541 = vpop.f32.mrb[0].mxu0
  %v6542 = vadd.f32 %v6157, %v6541
  %v6543 = vpop.f32.mrb[0].mxu0
  %6544 = vmatprep.mubr.f32.mxu0 0.0
  %6545 = vmatmul.mubr.f32.gmra.mrb[0].mxu0 %v5694
  %v6546 = vpop.f32.mrb[0].mxu0
  %v6547 = vadd.f32 %v6162, %v6546
  %v6548 = vpop.f32.mrb[0].mxu0
  %6549 = vmatprep.mubr.f32.mxu0 0.0
  %6550 = vmatmul.mubr.f32.gmra.mrb[0].mxu0 %v5695
  %v6551 = vpop.f32.mrb[0].mxu0
  %v6552 = vadd.f32 %v6167, %v6551
  %v6553 = vpop.f32.mrb[0].mxu0
  %6554 = vmatprep.mubr.f32.mxu0 0.0
  %6555 = vmatmul.mubr.f32.gmra.mrb[0].mxu0 %v5696
  %v6556 = vpop.f32.mrb[0].mxu0
  %v6557 = vadd.f32 %v6172, %v6556
  %v6558 = vpop.f32.mrb[0].mxu0
  %6559 = vmatprep.mubr.f32.mxu0 0.0
  %6560 = vmatmul.mubr.f32.gmra.mrb[0].mxu0 %v5697
  %v6561 = vpop.f32.mrb[0].mxu0
  %v6562 = vadd.f32 %v6177, %v6561
  %v6563 = vpop.f32.mrb[0].mxu0
  %6564 = vdwg.mxu0
  %v6565 = vld [vmem:[#allocation3 + $0x2] sm:$0xff]
  %v6566 = vld [vmem:[#allocation3 + $0xa] sm:$0xff]
  %v6567 = vld [vmem:[#allocation3 + $0x1a] sm:$0xff]
  %v6568 = vld [vmem:[#allocation3 + $0x22] sm:$0xff]
  %v6569 = vld [vmem:[#allocation3 + $0x32] sm:$0xff]
  %v6570 = vld [vmem:[#allocation3 + $0x3a] sm:$0xff]
  %v6571 = vld [vmem:[#allocation3 + $0x4a] sm:$0xff]
  %v6572 = vld [vmem:[#allocation3 + $0x52] sm:$0xff]
  %v6573 = vld [vmem:[#allocation3 + $0x62] sm:$0xff]
  %v6574 = vld [vmem:[#allocation3 + $0x6a] sm:$0xff]
  %v6575 = vld [vmem:[#allocation3 + $0x7a] sm:$0xff]
  %v6576 = vld [vmem:[#allocation3 + $0x82] sm:$0xff]
  %v6577 = vld [vmem:[#allocation3 + $0x92] sm:$0xff]
  %v6578 = vld [vmem:[#allocation3 + $0x9a] sm:$0xff]
  %v6579 = vld [vmem:[#allocation3 + $0xaa] sm:$0xff]
  %v6580 = vld [vmem:[#allocation3 + $0xb2] sm:$0xff]
  %v6581 = vld [vmem:[#allocation3 + $0xc2] sm:$0xff]
  %v6582 = vld [vmem:[#allocation3 + $0xca] sm:$0xff]
  %v6583 = vld [vmem:[#allocation3 + $0xda] sm:$0xff]
  %v6584 = vld [vmem:[#allocation3 + $0xe2] sm:$0xff]
  %v6585 = vld [vmem:[#allocation3 + $0xf2] sm:$0xff]
  %v6586 = vld [vmem:[#allocation3 + $0xfa] sm:$0xff]
  %v6587 = vld [vmem:[#allocation3 + $0x10a] sm:$0xff]
  %v6588 = vld [vmem:[#allocation3 + $0x112] sm:$0xff]
  %v6589 = vld [vmem:[#allocation3 + $0x122] sm:$0xff]
  %v6590 = vld [vmem:[#allocation3 + $0x12a] sm:$0xff]
  %v6591 = vld [vmem:[#allocation3 + $0x13a] sm:$0xff]
  %v6592 = vld [vmem:[#allocation3 + $0x142] sm:$0xff]
  %v6593 = vld [vmem:[#allocation3 + $0x152] sm:$0xff]
  %v6594 = vld [vmem:[#allocation3 + $0x15a] sm:$0xff]
  %v6595 = vld [vmem:[#allocation3 + $0x16a] sm:$0xff]
  %v6596 = vld [vmem:[#allocation3 + $0x172] sm:$0xff]
  %v6597 = vld [vmem:[#allocation3 + $0x1b2] sm:$0xff]
  %v6598 = vld [vmem:[#allocation3 + $0x1ba] sm:$0xff]
  %v6599 = vld [vmem:[#allocation3 + $0x1ca] sm:$0xff]
  %v6600 = vld [vmem:[#allocation3 + $0x1d2] sm:$0xff]
  %v6601 = vld [vmem:[#allocation3 + $0x1e2] sm:$0xff]
  %v6602 = vld [vmem:[#allocation3 + $0x1ea] sm:$0xff]
  %v6603 = vld [vmem:[#allocation3 + $0x1fa] sm:$0xff]
  %v6604 = vld [vmem:[#allocation3 + $0x202] sm:$0xff]
  %v6605 = vld [vmem:[#allocation3 + $0x212] sm:$0xff]
  %v6606 = vld [vmem:[#allocation3 + $0x21a] sm:$0xff]
  %v6607 = vld [vmem:[#allocation3 + $0x22a] sm:$0xff]
  %v6608 = vld [vmem:[#allocation3 + $0x232] sm:$0xff]
  %v6609 = vld [vmem:[#allocation3 + $0x242] sm:$0xff]
  %v6610 = vld [vmem:[#allocation3 + $0x24a] sm:$0xff]
  %v6611 = vld [vmem:[#allocation3 + $0x25a] sm:$0xff]
  %v6612 = vld [vmem:[#allocation3 + $0x262] sm:$0xff]
  %v6613 = vld [vmem:[#allocation3 + $0x272] sm:$0xff]
  %v6614 = vld [vmem:[#allocation3 + $0x27a] sm:$0xff]
  %v6615 = vld [vmem:[#allocation3 + $0x28a] sm:$0xff]
  %v6616 = vld [vmem:[#allocation3 + $0x292] sm:$0xff]
  %v6617 = vld [vmem:[#allocation3 + $0x2a2] sm:$0xff]
  %v6618 = vld [vmem:[#allocation3 + $0x2aa] sm:$0xff]
  %v6619 = vld [vmem:[#allocation3 + $0x2ba] sm:$0xff]
  %v6620 = vld [vmem:[#allocation3 + $0x2c2] sm:$0xff]
  %v6621 = vld [vmem:[#allocation3 + $0x2d2] sm:$0xff]
  %v6622 = vld [vmem:[#allocation3 + $0x2da] sm:$0xff]
  %v6623 = vld [vmem:[#allocation3 + $0x2ea] sm:$0xff]
  %v6624 = vld [vmem:[#allocation3 + $0x2f2] sm:$0xff]
  %v6625 = vld [vmem:[#allocation3 + $0x302] sm:$0xff]
  %v6626 = vld [vmem:[#allocation3 + $0x30a] sm:$0xff]
  %v6627 = vld [vmem:[#allocation3 + $0x31a] sm:$0xff]
  %v6628 = vld [vmem:[#allocation3 + $0x322] sm:$0xff]
  %s6629 = scalar_lea.vmem %s5, 256
  %v6630 = vld [vmem:[%s6629] sm:$0xff]
  %v6631 = vld [vmem:[%s6629 + $0x8] sm:$0xff]
  %v6632 = vld [vmem:[%s6629 + $0x10] sm:$0xff]
  %v6633 = vld [vmem:[%s6629 + $0x18] sm:$0xff]
  %v6634 = vld [vmem:[%s6629 + $0x20] sm:$0xff]
  %v6635 = vld [vmem:[%s6629 + $0x28] sm:$0xff]
  %v6636 = vld [vmem:[%s6629 + $0x30] sm:$0xff]
  %v6637 = vld [vmem:[%s6629 + $0x38] sm:$0xff]
  %v6638 = vld [vmem:[%s6629 + $0x40] sm:$0xff]
  %v6639 = vld [vmem:[%s6629 + $0x48] sm:$0xff]
  %v6640 = vld [vmem:[%s6629 + $0x50] sm:$0xff]
  %v6641 = vld [vmem:[%s6629 + $0x58] sm:$0xff]
  %v6642 = vld [vmem:[%s6629 + $0x60] sm:$0xff]
  %v6643 = vld [vmem:[%s6629 + $0x68] sm:$0xff]
  %v6644 = vld [vmem:[%s6629 + $0x70] sm:$0xff]
  %v6645 = vld [vmem:[%s6629 + $0x78] sm:$0xff]
  %6646 = vmatprep.subr.mxu0 0.0
  %6647 = vmatpush1.msra.mxu0 %v6630
  %6648 = vmatprep.subr.mxu0 0.0
  %6649 = vmatpush1.msra.mxu0 %v6631
  %6650 = vmatprep.subr.mxu0 0.0
  %6651 = vmatpush1.msra.mxu0 %v6632
  %6652 = vmatprep.subr.mxu0 0.0
  %6653 = vmatpush1.msra.mxu0 %v6633
  %6654 = vmatprep.subr.mxu0 0.0
  %6655 = vmatpush1.msra.mxu0 %v6634
  %6656 = vmatprep.subr.mxu0 0.0
  %6657 = vmatpush1.msra.mxu0 %v6635
  %6658 = vmatprep.subr.mxu0 0.0
  %6659 = vmatpush1.msra.mxu0 %v6636
  %6660 = vmatprep.subr.mxu0 0.0
  %6661 = vmatpush1.msra.mxu0 %v6637
  %6662 = vmatprep.subr.mxu0 0.0
  %6663 = vmatpush1.msra.mxu0 %v6638
  %6664 = vmatprep.subr.mxu0 0.0
  %6665 = vmatpush1.msra.mxu0 %v6639
  %6666 = vmatprep.subr.mxu0 0.0
  %6667 = vmatpush1.msra.mxu0 %v6640
  %6668 = vmatprep.subr.mxu0 0.0
  %6669 = vmatpush1.msra.mxu0 %v6641
  %6670 = vmatprep.subr.mxu0 0.0
  %6671 = vmatpush1.msra.mxu0 %v6642
  %6672 = vmatprep.subr.mxu0 0.0
  %6673 = vmatpush1.msra.mxu0 %v6643
  %6674 = vmatprep.subr.mxu0 0.0
  %6675 = vmatpush1.msra.mxu0 %v6644
  %6676 = vmatprep.subr.mxu0 0.0
  %6677 = vmatpush1.msra.mxu0 %v6645
  %6678 = vmatprep.subr.mxu0 0.0
  %6679 = vmatpush1.msra.mxu0 0.0
  %6680 = vmatprep.subr.mxu0 0.0
  %6681 = vmatpush1.msra.mxu0 0.0
  %6682 = vmatprep.subr.mxu0 0.0
  %6683 = vmatpush1.msra.mxu0 0.0
  %6684 = vmatprep.subr.mxu0 0.0
  %6685 = vmatpush1.msra.mxu0 0.0
  %6686 = vmatprep.subr.mxu0 0.0
  %6687 = vmatpush1.msra.mxu0 0.0
  %6688 = vmatprep.subr.mxu0 0.0
  %6689 = vmatpush1.msra.mxu0 0.0
  %6690 = vmatprep.subr.mxu0 0.0
  %6691 = vmatpush1.msra.mxu0 0.0
  %6692 = vmatprep.subr.mxu0 0.0
  %6693 = vmatpush1.msra.mxu0 0.0
  %6694 = vmatprep.subr.mxu0 0.0
  %6695 = vmatpush1.msra.mxu0 0.0
  %6696 = vmatprep.subr.mxu0 0.0
  %6697 = vmatpush1.msra.mxu0 0.0
  %6698 = vmatprep.subr.mxu0 0.0
  %6699 = vmatpush1.msra.mxu0 0.0
  %6700 = vmatprep.subr.mxu0 0.0
  %6701 = vmatpush1.msra.mxu0 0.0
  %6702 = vmatprep.subr.mxu0 0.0
  %6703 = vmatpush1.msra.mxu0 0.0
  %6704 = vmatprep.subr.mxu0 0.0
  %6705 = vmatpush1.msra.mxu0 0.0
  %6706 = vmatprep.subr.mxu0 0.0
  %6707 = vmatpush1.msra.mxu0 0.0
  %6708 = vmatprep.subr.mxu0 0.0
  %6709 = vmatpush1.msra.mxu0 0.0
  %6710 = vmatprep.mubr.f32.mxu0 0.0
  %6711 = vmatmul.mubr.f32.gmra.mrb[0].mxu0 %v6565
  %v6712 = vpop.f32.mrb[0].mxu0
  %v6713 = vadd.f32 0.0, %v6712
  %v6714 = vpop.f32.mrb[0].mxu0
  %6715 = vmatprep.mubr.f32.mxu0 0.0
  %6716 = vmatmul.mubr.f32.gmra.mrb[0].mxu0 %v6566
  %v6717 = vpop.f32.mrb[0].mxu0
  %v6718 = vadd.f32 0.0, %v6717
  %v6719 = vpop.f32.mrb[0].mxu0
  %6720 = vmatprep.mubr.f32.mxu0 0.0
  %6721 = vmatmul.mubr.f32.gmra.mrb[0].mxu0 %v6567
  %v6722 = vpop.f32.mrb[0].mxu0
  %v6723 = vadd.f32 0.0, %v6722
  %v6724 = vpop.f32.mrb[0].mxu0
  %6725 = vmatprep.mubr.f32.mxu0 0.0
  %6726 = vmatmul.mubr.f32.gmra.mrb[0].mxu0 %v6568
  %v6727 = vpop.f32.mrb[0].mxu0
  %v6728 = vadd.f32 0.0, %v6727
  %v6729 = vpop.f32.mrb[0].mxu0
  %6730 = vmatprep.mubr.f32.mxu0 0.0
  %6731 = vmatmul.mubr.f32.gmra.mrb[0].mxu0 %v6569
  %v6732 = vpop.f32.mrb[0].mxu0
  %v6733 = vadd.f32 0.0, %v6732
  %v6734 = vpop.f32.mrb[0].mxu0
  %6735 = vmatprep.mubr.f32.mxu0 0.0
  %6736 = vmatmul.mubr.f32.gmra.mrb[0].mxu0 %v6570
  %v6737 = vpop.f32.mrb[0].mxu0
  %v6738 = vadd.f32 0.0, %v6737
  %v6739 = vpop.f32.mrb[0].mxu0
  %6740 = vmatprep.mubr.f32.mxu0 0.0
  %6741 = vmatmul.mubr.f32.gmra.mrb[0].mxu0 %v6571
  %v6742 = vpop.f32.mrb[0].mxu0
  %v6743 = vadd.f32 0.0, %v6742
  %v6744 = vpop.f32.mrb[0].mxu0
  %6745 = vmatprep.mubr.f32.mxu0 0.0
  %6746 = vmatmul.mubr.f32.gmra.mrb[0].mxu0 %v6572
  %v6747 = vpop.f32.mrb[0].mxu0
  %v6748 = vadd.f32 0.0, %v6747
  %v6749 = vpop.f32.mrb[0].mxu0
  %6750 = vmatprep.mubr.f32.mxu0 0.0
  %6751 = vmatmul.mubr.f32.gmra.mrb[0].mxu0 %v6573
  %v6752 = vpop.f32.mrb[0].mxu0
  %v6753 = vadd.f32 0.0, %v6752
  %v6754 = vpop.f32.mrb[0].mxu0
  %6755 = vmatprep.mubr.f32.mxu0 0.0
  %6756 = vmatmul.mubr.f32.gmra.mrb[0].mxu0 %v6574
  %v6757 = vpop.f32.mrb[0].mxu0
  %v6758 = vadd.f32 0.0, %v6757
  %v6759 = vpop.f32.mrb[0].mxu0
  %6760 = vmatprep.mubr.f32.mxu0 0.0
  %6761 = vmatmul.mubr.f32.gmra.mrb[0].mxu0 %v6575
  %v6762 = vpop.f32.mrb[0].mxu0
  %v6763 = vadd.f32 0.0, %v6762
  %v6764 = vpop.f32.mrb[0].mxu0
  %6765 = vmatprep.mubr.f32.mxu0 0.0
  %6766 = vmatmul.mubr.f32.gmra.mrb[0].mxu0 %v6576
  %v6767 = vpop.f32.mrb[0].mxu0
  %v6768 = vadd.f32 0.0, %v6767
  %v6769 = vpop.f32.mrb[0].mxu0
  %6770 = vmatprep.mubr.f32.mxu0 0.0
  %6771 = vmatmul.mubr.f32.gmra.mrb[0].mxu0 %v6577
  %v6772 = vpop.f32.mrb[0].mxu0
  %v6773 = vadd.f32 0.0, %v6772
  %v6774 = vpop.f32.mrb[0].mxu0
  %6775 = vmatprep.mubr.f32.mxu0 0.0
  %6776 = vmatmul.mubr.f32.gmra.mrb[0].mxu0 %v6578
  %v6777 = vpop.f32.mrb[0].mxu0
  %v6778 = vadd.f32 0.0, %v6777
  %v6779 = vpop.f32.mrb[0].mxu0
  %6780 = vmatprep.mubr.f32.mxu0 0.0
  %6781 = vmatmul.mubr.f32.gmra.mrb[0].mxu0 %v6579
  %v6782 = vpop.f32.mrb[0].mxu0
  %v6783 = vadd.f32 0.0, %v6782
  %v6784 = vpop.f32.mrb[0].mxu0
  %6785 = vmatprep.mubr.f32.mxu0 0.0
  %6786 = vmatmul.mubr.f32.gmra.mrb[0].mxu0 %v6580
  %v6787 = vpop.f32.mrb[0].mxu0
  %v6788 = vadd.f32 0.0, %v6787
  %v6789 = vpop.f32.mrb[0].mxu0
  %6790 = vmatprep.mubr.f32.mxu0 0.0
  %6791 = vmatmul.mubr.f32.gmra.mrb[0].mxu0 %v6581
  %v6792 = vpop.f32.mrb[0].mxu0
  %v6793 = vadd.f32 0.0, %v6792
  %v6794 = vpop.f32.mrb[0].mxu0
  %6795 = vmatprep.mubr.f32.mxu0 0.0
  %6796 = vmatmul.mubr.f32.gmra.mrb[0].mxu0 %v6582
  %v6797 = vpop.f32.mrb[0].mxu0
  %v6798 = vadd.f32 0.0, %v6797
  %v6799 = vpop.f32.mrb[0].mxu0
  %6800 = vmatprep.mubr.f32.mxu0 0.0
  %6801 = vmatmul.mubr.f32.gmra.mrb[0].mxu0 %v6583
  %v6802 = vpop.f32.mrb[0].mxu0
  %v6803 = vadd.f32 0.0, %v6802
  %v6804 = vpop.f32.mrb[0].mxu0
  %6805 = vmatprep.mubr.f32.mxu0 0.0
  %6806 = vmatmul.mubr.f32.gmra.mrb[0].mxu0 %v6584
  %v6807 = vpop.f32.mrb[0].mxu0
  %v6808 = vadd.f32 0.0, %v6807
  %v6809 = vpop.f32.mrb[0].mxu0
  %6810 = vmatprep.mubr.f32.mxu0 0.0
  %6811 = vmatmul.mubr.f32.gmra.mrb[0].mxu0 %v6585
  %v6812 = vpop.f32.mrb[0].mxu0
  %v6813 = vadd.f32 0.0, %v6812
  %v6814 = vpop.f32.mrb[0].mxu0
  %6815 = vmatprep.mubr.f32.mxu0 0.0
  %6816 = vmatmul.mubr.f32.gmra.mrb[0].mxu0 %v6586
  %v6817 = vpop.f32.mrb[0].mxu0
  %v6818 = vadd.f32 0.0, %v6817
  %v6819 = vpop.f32.mrb[0].mxu0
  %6820 = vmatprep.mubr.f32.mxu0 0.0
  %6821 = vmatmul.mubr.f32.gmra.mrb[0].mxu0 %v6587
  %v6822 = vpop.f32.mrb[0].mxu0
  %v6823 = vadd.f32 0.0, %v6822
  %v6824 = vpop.f32.mrb[0].mxu0
  %6825 = vmatprep.mubr.f32.mxu0 0.0
  %6826 = vmatmul.mubr.f32.gmra.mrb[0].mxu0 %v6588
  %v6827 = vpop.f32.mrb[0].mxu0
  %v6828 = vadd.f32 0.0, %v6827
  %v6829 = vpop.f32.mrb[0].mxu0
  %6830 = vmatprep.mubr.f32.mxu0 0.0
  %6831 = vmatmul.mubr.f32.gmra.mrb[0].mxu0 %v6589
  %v6832 = vpop.f32.mrb[0].mxu0
  %v6833 = vadd.f32 0.0, %v6832
  %v6834 = vpop.f32.mrb[0].mxu0
  %6835 = vmatprep.mubr.f32.mxu0 0.0
  %6836 = vmatmul.mubr.f32.gmra.mrb[0].mxu0 %v6590
  %v6837 = vpop.f32.mrb[0].mxu0
  %v6838 = vadd.f32 0.0, %v6837
  %v6839 = vpop.f32.mrb[0].mxu0
  %6840 = vmatprep.mubr.f32.mxu0 0.0
  %6841 = vmatmul.mubr.f32.gmra.mrb[0].mxu0 %v6591
  %v6842 = vpop.f32.mrb[0].mxu0
  %v6843 = vadd.f32 0.0, %v6842
  %v6844 = vpop.f32.mrb[0].mxu0
  %6845 = vmatprep.mubr.f32.mxu0 0.0
  %6846 = vmatmul.mubr.f32.gmra.mrb[0].mxu0 %v6592
  %v6847 = vpop.f32.mrb[0].mxu0
  %v6848 = vadd.f32 0.0, %v6847
  %v6849 = vpop.f32.mrb[0].mxu0
  %6850 = vmatprep.mubr.f32.mxu0 0.0
  %6851 = vmatmul.mubr.f32.gmra.mrb[0].mxu0 %v6593
  %v6852 = vpop.f32.mrb[0].mxu0
  %v6853 = vadd.f32 0.0, %v6852
  %v6854 = vpop.f32.mrb[0].mxu0
  %6855 = vmatprep.mubr.f32.mxu0 0.0
  %6856 = vmatmul.mubr.f32.gmra.mrb[0].mxu0 %v6594
  %v6857 = vpop.f32.mrb[0].mxu0
  %v6858 = vadd.f32 0.0, %v6857
  %v6859 = vpop.f32.mrb[0].mxu0
  %6860 = vmatprep.mubr.f32.mxu0 0.0
  %6861 = vmatmul.mubr.f32.gmra.mrb[0].mxu0 %v6595
  %v6862 = vpop.f32.mrb[0].mxu0
  %v6863 = vadd.f32 0.0, %v6862
  %v6864 = vpop.f32.mrb[0].mxu0
  %6865 = vmatprep.mubr.f32.mxu0 0.0
  %6866 = vmatmul.mubr.f32.gmra.mrb[0].mxu0 %v6596
  %v6867 = vpop.f32.mrb[0].mxu0
  %v6868 = vadd.f32 0.0, %v6867
  %v6869 = vpop.f32.mrb[0].mxu0
  %6870 = vmatprep.mubr.f32.mxu0 0.0
  %6871 = vmatmul.mubr.f32.gmra.mrb[0].mxu0 %v6597
  %v6872 = vpop.f32.mrb[0].mxu0
  %v6873 = vadd.f32 0.0, %v6872
  %v6874 = vpop.f32.mrb[0].mxu0
  %6875 = vmatprep.mubr.f32.mxu0 0.0
  %6876 = vmatmul.mubr.f32.gmra.mrb[0].mxu0 %v6598
  %v6877 = vpop.f32.mrb[0].mxu0
  %v6878 = vadd.f32 0.0, %v6877
  %v6879 = vpop.f32.mrb[0].mxu0
  %6880 = vmatprep.mubr.f32.mxu0 0.0
  %6881 = vmatmul.mubr.f32.gmra.mrb[0].mxu0 %v6599
  %v6882 = vpop.f32.mrb[0].mxu0
  %v6883 = vadd.f32 0.0, %v6882
  %v6884 = vpop.f32.mrb[0].mxu0
  %6885 = vmatprep.mubr.f32.mxu0 0.0
  %6886 = vmatmul.mubr.f32.gmra.mrb[0].mxu0 %v6600
  %v6887 = vpop.f32.mrb[0].mxu0
  %v6888 = vadd.f32 0.0, %v6887
  %v6889 = vpop.f32.mrb[0].mxu0
  %6890 = vmatprep.mubr.f32.mxu0 0.0
  %6891 = vmatmul.mubr.f32.gmra.mrb[0].mxu0 %v6601
  %v6892 = vpop.f32.mrb[0].mxu0
  %v6893 = vadd.f32 0.0, %v6892
  %v6894 = vpop.f32.mrb[0].mxu0
  %6895 = vmatprep.mubr.f32.mxu0 0.0
  %6896 = vmatmul.mubr.f32.gmra.mrb[0].mxu0 %v6602
  %v6897 = vpop.f32.mrb[0].mxu0
  %v6898 = vadd.f32 0.0, %v6897
  %v6899 = vpop.f32.mrb[0].mxu0
  %6900 = vmatprep.mubr.f32.mxu0 0.0
  %6901 = vmatmul.mubr.f32.gmra.mrb[0].mxu0 %v6603
  %v6902 = vpop.f32.mrb[0].mxu0
  %v6903 = vadd.f32 0.0, %v6902
  %v6904 = vpop.f32.mrb[0].mxu0
  %6905 = vmatprep.mubr.f32.mxu0 0.0
  %6906 = vmatmul.mubr.f32.gmra.mrb[0].mxu0 %v6604
  %v6907 = vpop.f32.mrb[0].mxu0
  %v6908 = vadd.f32 0.0, %v6907
  %v6909 = vpop.f32.mrb[0].mxu0
  %6910 = vmatprep.mubr.f32.mxu0 0.0
  %6911 = vmatmul.mubr.f32.gmra.mrb[0].mxu0 %v6605
  %v6912 = vpop.f32.mrb[0].mxu0
  %v6913 = vadd.f32 0.0, %v6912
  %v6914 = vpop.f32.mrb[0].mxu0
  %6915 = vmatprep.mubr.f32.mxu0 0.0
  %6916 = vmatmul.mubr.f32.gmra.mrb[0].mxu0 %v6606
  %v6917 = vpop.f32.mrb[0].mxu0
  %v6918 = vadd.f32 0.0, %v6917
  %v6919 = vpop.f32.mrb[0].mxu0
  %6920 = vmatprep.mubr.f32.mxu0 0.0
  %6921 = vmatmul.mubr.f32.gmra.mrb[0].mxu0 %v6607
  %v6922 = vpop.f32.mrb[0].mxu0
  %v6923 = vadd.f32 0.0, %v6922
  %v6924 = vpop.f32.mrb[0].mxu0
  %6925 = vmatprep.mubr.f32.mxu0 0.0
  %6926 = vmatmul.mubr.f32.gmra.mrb[0].mxu0 %v6608
  %v6927 = vpop.f32.mrb[0].mxu0
  %v6928 = vadd.f32 0.0, %v6927
  %v6929 = vpop.f32.mrb[0].mxu0
  %6930 = vmatprep.mubr.f32.mxu0 0.0
  %6931 = vmatmul.mubr.f32.gmra.mrb[0].mxu0 %v6609
  %v6932 = vpop.f32.mrb[0].mxu0
  %v6933 = vadd.f32 0.0, %v6932
  %v6934 = vpop.f32.mrb[0].mxu0
  %6935 = vmatprep.mubr.f32.mxu0 0.0
  %6936 = vmatmul.mubr.f32.gmra.mrb[0].mxu0 %v6610
  %v6937 = vpop.f32.mrb[0].mxu0
  %v6938 = vadd.f32 0.0, %v6937
  %v6939 = vpop.f32.mrb[0].mxu0
  %6940 = vmatprep.mubr.f32.mxu0 0.0
  %6941 = vmatmul.mubr.f32.gmra.mrb[0].mxu0 %v6611
  %v6942 = vpop.f32.mrb[0].mxu0
  %v6943 = vadd.f32 0.0, %v6942
  %v6944 = vpop.f32.mrb[0].mxu0
  %6945 = vmatprep.mubr.f32.mxu0 0.0
  %6946 = vmatmul.mubr.f32.gmra.mrb[0].mxu0 %v6612
  %v6947 = vpop.f32.mrb[0].mxu0
  %v6948 = vadd.f32 0.0, %v6947
  %v6949 = vpop.f32.mrb[0].mxu0
  %6950 = vmatprep.mubr.f32.mxu0 0.0
  %6951 = vmatmul.mubr.f32.gmra.mrb[0].mxu0 %v6613
  %v6952 = vpop.f32.mrb[0].mxu0
  %v6953 = vadd.f32 0.0, %v6952
  %v6954 = vpop.f32.mrb[0].mxu0
  %6955 = vmatprep.mubr.f32.mxu0 0.0
  %6956 = vmatmul.mubr.f32.gmra.mrb[0].mxu0 %v6614
  %v6957 = vpop.f32.mrb[0].mxu0
  %v6958 = vadd.f32 0.0, %v6957
  %v6959 = vpop.f32.mrb[0].mxu0
  %6960 = vmatprep.mubr.f32.mxu0 0.0
  %6961 = vmatmul.mubr.f32.gmra.mrb[0].mxu0 %v6615
  %v6962 = vpop.f32.mrb[0].mxu0
  %v6963 = vadd.f32 0.0, %v6962
  %v6964 = vpop.f32.mrb[0].mxu0
  %6965 = vmatprep.mubr.f32.mxu0 0.0
  %6966 = vmatmul.mubr.f32.gmra.mrb[0].mxu0 %v6616
  %v6967 = vpop.f32.mrb[0].mxu0
  %v6968 = vadd.f32 0.0, %v6967
  %v6969 = vpop.f32.mrb[0].mxu0
  %6970 = vmatprep.mubr.f32.mxu0 0.0
  %6971 = vmatmul.mubr.f32.gmra.mrb[0].mxu0 %v6617
  %v6972 = vpop.f32.mrb[0].mxu0
  %v6973 = vadd.f32 0.0, %v6972
  %v6974 = vpop.f32.mrb[0].mxu0
  %6975 = vmatprep.mubr.f32.mxu0 0.0
  %6976 = vmatmul.mubr.f32.gmra.mrb[0].mxu0 %v6618
  %v6977 = vpop.f32.mrb[0].mxu0
  %v6978 = vadd.f32 0.0, %v6977
  %v6979 = vpop.f32.mrb[0].mxu0
  %6980 = vmatprep.mubr.f32.mxu0 0.0
  %6981 = vmatmul.mubr.f32.gmra.mrb[0].mxu0 %v6619
  %v6982 = vpop.f32.mrb[0].mxu0
  %v6983 = vadd.f32 0.0, %v6982
  %v6984 = vpop.f32.mrb[0].mxu0
  %6985 = vmatprep.mubr.f32.mxu0 0.0
  %6986 = vmatmul.mubr.f32.gmra.mrb[0].mxu0 %v6620
  %v6987 = vpop.f32.mrb[0].mxu0
  %v6988 = vadd.f32 0.0, %v6987
  %v6989 = vpop.f32.mrb[0].mxu0
  %6990 = vmatprep.mubr.f32.mxu0 0.0
  %6991 = vmatmul.mubr.f32.gmra.mrb[0].mxu0 %v6621
  %v6992 = vpop.f32.mrb[0].mxu0
  %v6993 = vadd.f32 0.0, %v6992
  %v6994 = vpop.f32.mrb[0].mxu0
  %6995 = vmatprep.mubr.f32.mxu0 0.0
  %6996 = vmatmul.mubr.f32.gmra.mrb[0].mxu0 %v6622
  %v6997 = vpop.f32.mrb[0].mxu0
  %v6998 = vadd.f32 0.0, %v6997
  %v6999 = vpop.f32.mrb[0].mxu0
  %7000 = vmatprep.mubr.f32.mxu0 0.0
  %7001 = vmatmul.mubr.f32.gmra.mrb[0].mxu0 %v6623
  %v7002 = vpop.f32.mrb[0].mxu0
  %v7003 = vadd.f32 0.0, %v7002
  %v7004 = vpop.f32.mrb[0].mxu0
  %7005 = vmatprep.mubr.f32.mxu0 0.0
  %7006 = vmatmul.mubr.f32.gmra.mrb[0].mxu0 %v6624
  %v7007 = vpop.f32.mrb[0].mxu0
  %v7008 = vadd.f32 0.0, %v7007
  %v7009 = vpop.f32.mrb[0].mxu0
  %7010 = vmatprep.mubr.f32.mxu0 0.0
  %7011 = vmatmul.mubr.f32.gmra.mrb[0].mxu0 %v6625
  %v7012 = vpop.f32.mrb[0].mxu0
  %v7013 = vadd.f32 0.0, %v7012
  %v7014 = vpop.f32.mrb[0].mxu0
  %7015 = vmatprep.mubr.f32.mxu0 0.0
  %7016 = vmatmul.mubr.f32.gmra.mrb[0].mxu0 %v6626
  %v7017 = vpop.f32.mrb[0].mxu0
  %v7018 = vadd.f32 0.0, %v7017
  %v7019 = vpop.f32.mrb[0].mxu0
  %7020 = vmatprep.mubr.f32.mxu0 0.0
  %7021 = vmatmul.mubr.f32.gmra.mrb[0].mxu0 %v6627
  %v7022 = vpop.f32.mrb[0].mxu0
  %v7023 = vadd.f32 0.0, %v7022
  %v7024 = vpop.f32.mrb[0].mxu0
  %7025 = vmatprep.mubr.f32.mxu0 0.0
  %7026 = vmatmul.mubr.f32.gmra.mrb[0].mxu0 %v6628
  %v7027 = vpop.f32.mrb[0].mxu0
  %v7028 = vadd.f32 0.0, %v7027
  %v7029 = vpop.f32.mrb[0].mxu0
  %7030 = vdwg.mxu0
  %v7031 = vadd.f32 %v6247, %v6713
  %v7032 = vadd.f32 %v6252, %v6718
  %v7033 = vadd.f32 %v6257, %v6723
  %v7034 = vadd.f32 %v6262, %v6728
  %v7035 = vadd.f32 %v6267, %v6733
  %v7036 = vadd.f32 %v6272, %v6738
  %v7037 = vadd.f32 %v6277, %v6743
  %v7038 = vadd.f32 %v6282, %v6748
  %v7039 = vadd.f32 %v6287, %v6753
  %v7040 = vadd.f32 %v6292, %v6758
  %v7041 = vadd.f32 %v6297, %v6763
  %v7042 = vadd.f32 %v6302, %v6768
  %v7043 = vadd.f32 %v6307, %v6773
  %v7044 = vadd.f32 %v6312, %v6778
  %v7045 = vadd.f32 %v6317, %v6783
  %v7046 = vadd.f32 %v6322, %v6788
  %v7047 = vadd.f32 %v6327, %v6793
  %v7048 = vadd.f32 %v6332, %v6798
  %v7049 = vadd.f32 %v6337, %v6803
  %v7050 = vadd.f32 %v6342, %v6808
  %v7051 = vadd.f32 %v6347, %v6813
  %v7052 = vadd.f32 %v6352, %v6818
  %v7053 = vadd.f32 %v6357, %v6823
  %v7054 = vadd.f32 %v6362, %v6828
  %v7055 = vadd.f32 %v6367, %v6833
  %v7056 = vadd.f32 %v6372, %v6838
  %v7057 = vadd.f32 %v6377, %v6843
  %v7058 = vadd.f32 %v6382, %v6848
  %v7059 = vadd.f32 %v6387, %v6853
  %v7060 = vadd.f32 %v6392, %v6858
  %v7061 = vadd.f32 %v6397, %v6863
  %v7062 = vadd.f32 %v6402, %v6868
  %v7063 = vadd.f32 %v6407, %v6873
  %v7064 = vadd.f32 %v6412, %v6878
  %v7065 = vadd.f32 %v6417, %v6883
  %v7066 = vadd.f32 %v6422, %v6888
  %v7067 = vadd.f32 %v6427, %v6893
  %v7068 = vadd.f32 %v6432, %v6898
  %v7069 = vadd.f32 %v6437, %v6903
  %v7070 = vadd.f32 %v6442, %v6908
  %v7071 = vadd.f32 %v6447, %v6913
  %v7072 = vadd.f32 %v6452, %v6918
  %v7073 = vadd.f32 %v6457, %v6923
  %v7074 = vadd.f32 %v6462, %v6928
  %v7075 = vadd.f32 %v6467, %v6933
  %v7076 = vadd.f32 %v6472, %v6938
  %v7077 = vadd.f32 %v6477, %v6943
  %v7078 = vadd.f32 %v6482, %v6948
  %v7079 = vadd.f32 %v6487, %v6953
  %v7080 = vadd.f32 %v6492, %v6958
  %v7081 = vadd.f32 %v6497, %v6963
  %v7082 = vadd.f32 %v6502, %v6968
  %v7083 = vadd.f32 %v6507, %v6973
  %v7084 = vadd.f32 %v6512, %v6978
  %v7085 = vadd.f32 %v6517, %v6983
  %v7086 = vadd.f32 %v6522, %v6988
  %v7087 = vadd.f32 %v6527, %v6993
  %v7088 = vadd.f32 %v6532, %v6998
  %v7089 = vadd.f32 %v6537, %v7003
  %v7090 = vadd.f32 %v6542, %v7008
  %v7091 = vadd.f32 %v6547, %v7013
  %v7092 = vadd.f32 %v6552, %v7018
  %v7093 = vadd.f32 %v6557, %v7023
  %v7094 = vadd.f32 %v6562, %v7028
  %v7095 = vld [vmem:[%s5568] sm:$0xff]
  %v7096 = vld [vmem:[%s5568 + $0x8] sm:$0xff]
  %v7097 = vld [vmem:[%s5568 + $0x18] sm:$0xff]
  %v7098 = vld [vmem:[%s5568 + $0x20] sm:$0xff]
  %v7099 = vld [vmem:[%s5568 + $0x30] sm:$0xff]
  %v7100 = vld [vmem:[%s5568 + $0x38] sm:$0xff]
  %v7101 = vld [vmem:[%s5568 + $0x48] sm:$0xff]
  %v7102 = vld [vmem:[%s5568 + $0x50] sm:$0xff]
  %v7103 = vld [vmem:[%s5568 + $0x60] sm:$0xff]
  %v7104 = vld [vmem:[%s5568 + $0x68] sm:$0xff]
  %v7105 = vld [vmem:[%s5568 + $0x78] sm:$0xff]
  %v7106 = vld [vmem:[%s5568 + $0x80] sm:$0xff]
  %v7107 = vld [vmem:[%s5568 + $0x90] sm:$0xff]
  %v7108 = vld [vmem:[%s5568 + $0x98] sm:$0xff]
  %v7109 = vld [vmem:[%s5568 + $0xa8] sm:$0xff]
  %v7110 = vld [vmem:[%s5568 + $0xb0] sm:$0xff]
  %v7111 = vld [vmem:[%s5568 + $0xc0] sm:$0xff]
  %v7112 = vld [vmem:[%s5568 + $0xc8] sm:$0xff]
  %v7113 = vld [vmem:[%s5568 + $0xd8] sm:$0xff]
  %v7114 = vld [vmem:[%s5568 + $0xe0] sm:$0xff]
  %v7115 = vld [vmem:[%s5568 + $0xf0] sm:$0xff]
  %v7116 = vld [vmem:[%s5568 + $0xf8] sm:$0xff]
  %v7117 = vld [vmem:[%s5568 + $0x108] sm:$0xff]
  %v7118 = vld [vmem:[%s5568 + $0x110] sm:$0xff]
  %v7119 = vld [vmem:[%s5568 + $0x120] sm:$0xff]
  %v7120 = vld [vmem:[%s5568 + $0x128] sm:$0xff]
  %v7121 = vld [vmem:[%s5568 + $0x138] sm:$0xff]
  %v7122 = vld [vmem:[%s5568 + $0x140] sm:$0xff]
  %v7123 = vld [vmem:[%s5568 + $0x150] sm:$0xff]
  %v7124 = vld [vmem:[%s5568 + $0x158] sm:$0xff]
  %v7125 = vld [vmem:[%s5568 + $0x168] sm:$0xff]
  %v7126 = vld [vmem:[%s5568 + $0x170] sm:$0xff]
  %v7127 = vld [vmem:[%s5568 + $0x1b0] sm:$0xff]
  %v7128 = vld [vmem:[%s5568 + $0x1b8] sm:$0xff]
  %v7129 = vld [vmem:[%s5568 + $0x1c8] sm:$0xff]
  %v7130 = vld [vmem:[%s5568 + $0x1d0] sm:$0xff]
  %v7131 = vld [vmem:[%s5568 + $0x1e0] sm:$0xff]
  %v7132 = vld [vmem:[%s5568 + $0x1e8] sm:$0xff]
  %v7133 = vld [vmem:[%s5568 + $0x1f8] sm:$0xff]
  %v7134 = vld [vmem:[%s5568 + $0x200] sm:$0xff]
  %v7135 = vld [vmem:[%s5568 + $0x210] sm:$0xff]
  %v7136 = vld [vmem:[%s5568 + $0x218] sm:$0xff]
  %v7137 = vld [vmem:[%s5568 + $0x228] sm:$0xff]
  %v7138 = vld [vmem:[%s5568 + $0x230] sm:$0xff]
  %v7139 = vld [vmem:[%s5568 + $0x240] sm:$0xff]
  %v7140 = vld [vmem:[%s5568 + $0x248] sm:$0xff]
  %v7141 = vld [vmem:[%s5568 + $0x258] sm:$0xff]
  %v7142 = vld [vmem:[%s5568 + $0x260] sm:$0xff]
  %v7143 = vld [vmem:[%s5568 + $0x270] sm:$0xff]
  %v7144 = vld [vmem:[%s5568 + $0x278] sm:$0xff]
  %v7145 = vld [vmem:[%s5568 + $0x288] sm:$0xff]
  %v7146 = vld [vmem:[%s5568 + $0x290] sm:$0xff]
  %v7147 = vld [vmem:[%s5568 + $0x2a0] sm:$0xff]
  %v7148 = vld [vmem:[%s5568 + $0x2a8] sm:$0xff]
  %v7149 = vld [vmem:[%s5568 + $0x2b8] sm:$0xff]
  %v7150 = vld [vmem:[%s5568 + $0x2c0] sm:$0xff]
  %v7151 = vld [vmem:[%s5568 + $0x2d0] sm:$0xff]
  %v7152 = vld [vmem:[%s5568 + $0x2d8] sm:$0xff]
  %v7153 = vld [vmem:[%s5568 + $0x2e8] sm:$0xff]
  %v7154 = vld [vmem:[%s5568 + $0x2f0] sm:$0xff]
  %v7155 = vld [vmem:[%s5568 + $0x300] sm:$0xff]
  %v7156 = vld [vmem:[%s5568 + $0x308] sm:$0xff]
  %v7157 = vld [vmem:[%s5568 + $0x318] sm:$0xff]
  %v7158 = vld [vmem:[%s5568 + $0x320] sm:$0xff]
  %s7159 = scalar_lea.vmem %s5, 384
  %v7160 = vld [vmem:[%s7159] sm:$0xff]
  %v7161 = vld [vmem:[%s7159 + $0x8] sm:$0xff]
  %v7162 = vld [vmem:[%s7159 + $0x10] sm:$0xff]
  %v7163 = vld [vmem:[%s7159 + $0x18] sm:$0xff]
  %v7164 = vld [vmem:[%s7159 + $0x20] sm:$0xff]
  %v7165 = vld [vmem:[%s7159 + $0x28] sm:$0xff]
  %v7166 = vld [vmem:[%s7159 + $0x30] sm:$0xff]
  %v7167 = vld [vmem:[%s7159 + $0x38] sm:$0xff]
  %v7168 = vld [vmem:[%s7159 + $0x40] sm:$0xff]
  %v7169 = vld [vmem:[%s7159 + $0x48] sm:$0xff]
  %v7170 = vld [vmem:[%s7159 + $0x50] sm:$0xff]
  %v7171 = vld [vmem:[%s7159 + $0x58] sm:$0xff]
  %v7172 = vld [vmem:[%s7159 + $0x60] sm:$0xff]
  %v7173 = vld [vmem:[%s7159 + $0x68] sm:$0xff]
  %v7174 = vld [vmem:[%s7159 + $0x70] sm:$0xff]
  %v7175 = vld [vmem:[%s7159 + $0x78] sm:$0xff]
  %7176 = vmatprep.subr.mxu0 0.0
  %7177 = vmatpush1.msra.mxu0 %v7160
  %7178 = vmatprep.subr.mxu0 0.0
  %7179 = vmatpush1.msra.mxu0 %v7161
  %7180 = vmatprep.subr.mxu0 0.0
  %7181 = vmatpush1.msra.mxu0 %v7162
  %7182 = vmatprep.subr.mxu0 0.0
  %7183 = vmatpush1.msra.mxu0 %v7163
  %7184 = vmatprep.subr.mxu0 0.0
  %7185 = vmatpush1.msra.mxu0 %v7164
  %7186 = vmatprep.subr.mxu0 0.0
  %7187 = vmatpush1.msra.mxu0 %v7165
  %7188 = vmatprep.subr.mxu0 0.0
  %7189 = vmatpush1.msra.mxu0 %v7166
  %7190 = vmatprep.subr.mxu0 0.0
  %7191 = vmatpush1.msra.mxu0 %v7167
  %7192 = vmatprep.subr.mxu0 0.0
  %7193 = vmatpush1.msra.mxu0 %v7168
  %7194 = vmatprep.subr.mxu0 0.0
  %7195 = vmatpush1.msra.mxu0 %v7169
  %7196 = vmatprep.subr.mxu0 0.0
  %7197 = vmatpush1.msra.mxu0 %v7170
  %7198 = vmatprep.subr.mxu0 0.0
  %7199 = vmatpush1.msra.mxu0 %v7171
  %7200 = vmatprep.subr.mxu0 0.0
  %7201 = vmatpush1.msra.mxu0 %v7172
  %7202 = vmatprep.subr.mxu0 0.0
  %7203 = vmatpush1.msra.mxu0 %v7173
  %7204 = vmatprep.subr.mxu0 0.0
  %7205 = vmatpush1.msra.mxu0 %v7174
  %7206 = vmatprep.subr.mxu0 0.0
  %7207 = vmatpush1.msra.mxu0 %v7175
  %7208 = vmatprep.subr.mxu0 0.0
  %7209 = vmatpush1.msra.mxu0 0.0
  %7210 = vmatprep.subr.mxu0 0.0
  %7211 = vmatpush1.msra.mxu0 0.0
  %7212 = vmatprep.subr.mxu0 0.0
  %7213 = vmatpush1.msra.mxu0 0.0
  %7214 = vmatprep.subr.mxu0 0.0
  %7215 = vmatpush1.msra.mxu0 0.0
  %7216 = vmatprep.subr.mxu0 0.0
  %7217 = vmatpush1.msra.mxu0 0.0
  %7218 = vmatprep.subr.mxu0 0.0
  %7219 = vmatpush1.msra.mxu0 0.0
  %7220 = vmatprep.subr.mxu0 0.0
  %7221 = vmatpush1.msra.mxu0 0.0
  %7222 = vmatprep.subr.mxu0 0.0
  %7223 = vmatpush1.msra.mxu0 0.0
  %7224 = vmatprep.subr.mxu0 0.0
  %7225 = vmatpush1.msra.mxu0 0.0
  %7226 = vmatprep.subr.mxu0 0.0
  %7227 = vmatpush1.msra.mxu0 0.0
  %7228 = vmatprep.subr.mxu0 0.0
  %7229 = vmatpush1.msra.mxu0 0.0
  %7230 = vmatprep.subr.mxu0 0.0
  %7231 = vmatpush1.msra.mxu0 0.0
  %7232 = vmatprep.subr.mxu0 0.0
  %7233 = vmatpush1.msra.mxu0 0.0
  %7234 = vmatprep.subr.mxu0 0.0
  %7235 = vmatpush1.msra.mxu0 0.0
  %7236 = vmatprep.subr.mxu0 0.0
  %7237 = vmatpush1.msra.mxu0 0.0
  %7238 = vmatprep.subr.mxu0 0.0
  %7239 = vmatpush1.msra.mxu0 0.0
  %7240 = vmatprep.mubr.f32.mxu0 0.0
  %7241 = vmatmul.mubr.f32.gmra.mrb[0].mxu0 %v7095
  %v7242 = vpop.f32.mrb[0].mxu0
  %v7243 = vadd.f32 0.0, %v7242
  %v7244 = vpop.f32.mrb[0].mxu0
  %7245 = vmatprep.mubr.f32.mxu0 0.0
  %7246 = vmatmul.mubr.f32.gmra.mrb[0].mxu0 %v7096
  %v7247 = vpop.f32.mrb[0].mxu0
  %v7248 = vadd.f32 0.0, %v7247
  %v7249 = vpop.f32.mrb[0].mxu0
  %7250 = vmatprep.mubr.f32.mxu0 0.0
  %7251 = vmatmul.mubr.f32.gmra.mrb[0].mxu0 %v7097
  %v7252 = vpop.f32.mrb[0].mxu0
  %v7253 = vadd.f32 0.0, %v7252
  %v7254 = vpop.f32.mrb[0].mxu0
  %7255 = vmatprep.mubr.f32.mxu0 0.0
  %7256 = vmatmul.mubr.f32.gmra.mrb[0].mxu0 %v7098
  %v7257 = vpop.f32.mrb[0].mxu0
  %v7258 = vadd.f32 0.0, %v7257
  %v7259 = vpop.f32.mrb[0].mxu0
  %7260 = vmatprep.mubr.f32.mxu0 0.0
  %7261 = vmatmul.mubr.f32.gmra.mrb[0].mxu0 %v7099
  %v7262 = vpop.f32.mrb[0].mxu0
  %v7263 = vadd.f32 0.0, %v7262
  %v7264 = vpop.f32.mrb[0].mxu0
  %7265 = vmatprep.mubr.f32.mxu0 0.0
  %7266 = vmatmul.mubr.f32.gmra.mrb[0].mxu0 %v7100
  %v7267 = vpop.f32.mrb[0].mxu0
  %v7268 = vadd.f32 0.0, %v7267
  %v7269 = vpop.f32.mrb[0].mxu0
  %7270 = vmatprep.mubr.f32.mxu0 0.0
  %7271 = vmatmul.mubr.f32.gmra.mrb[0].mxu0 %v7101
  %v7272 = vpop.f32.mrb[0].mxu0
  %v7273 = vadd.f32 0.0, %v7272
  %v7274 = vpop.f32.mrb[0].mxu0
  %7275 = vmatprep.mubr.f32.mxu0 0.0
  %7276 = vmatmul.mubr.f32.gmra.mrb[0].mxu0 %v7102
  %v7277 = vpop.f32.mrb[0].mxu0
  %v7278 = vadd.f32 0.0, %v7277
  %v7279 = vpop.f32.mrb[0].mxu0
  %7280 = vmatprep.mubr.f32.mxu0 0.0
  %7281 = vmatmul.mubr.f32.gmra.mrb[0].mxu0 %v7103
  %v7282 = vpop.f32.mrb[0].mxu0
  %v7283 = vadd.f32 0.0, %v7282
  %v7284 = vpop.f32.mrb[0].mxu0
  %7285 = vmatprep.mubr.f32.mxu0 0.0
  %7286 = vmatmul.mubr.f32.gmra.mrb[0].mxu0 %v7104
  %v7287 = vpop.f32.mrb[0].mxu0
  %v7288 = vadd.f32 0.0, %v7287
  %v7289 = vpop.f32.mrb[0].mxu0
  %7290 = vmatprep.mubr.f32.mxu0 0.0
  %7291 = vmatmul.mubr.f32.gmra.mrb[0].mxu0 %v7105
  %v7292 = vpop.f32.mrb[0].mxu0
  %v7293 = vadd.f32 0.0, %v7292
  %v7294 = vpop.f32.mrb[0].mxu0
  %7295 = vmatprep.mubr.f32.mxu0 0.0
  %7296 = vmatmul.mubr.f32.gmra.mrb[0].mxu0 %v7106
  %v7297 = vpop.f32.mrb[0].mxu0
  %v7298 = vadd.f32 0.0, %v7297
  %v7299 = vpop.f32.mrb[0].mxu0
  %7300 = vmatprep.mubr.f32.mxu0 0.0
  %7301 = vmatmul.mubr.f32.gmra.mrb[0].mxu0 %v7107
  %v7302 = vpop.f32.mrb[0].mxu0
  %v7303 = vadd.f32 0.0, %v7302
  %v7304 = vpop.f32.mrb[0].mxu0
  %7305 = vmatprep.mubr.f32.mxu0 0.0
  %7306 = vmatmul.mubr.f32.gmra.mrb[0].mxu0 %v7108
  %v7307 = vpop.f32.mrb[0].mxu0
  %v7308 = vadd.f32 0.0, %v7307
  %v7309 = vpop.f32.mrb[0].mxu0
  %7310 = vmatprep.mubr.f32.mxu0 0.0
  %7311 = vmatmul.mubr.f32.gmra.mrb[0].mxu0 %v7109
  %v7312 = vpop.f32.mrb[0].mxu0
  %v7313 = vadd.f32 0.0, %v7312
  %v7314 = vpop.f32.mrb[0].mxu0
  %7315 = vmatprep.mubr.f32.mxu0 0.0
  %7316 = vmatmul.mubr.f32.gmra.mrb[0].mxu0 %v7110
  %v7317 = vpop.f32.mrb[0].mxu0
  %v7318 = vadd.f32 0.0, %v7317
  %v7319 = vpop.f32.mrb[0].mxu0
  %7320 = vmatprep.mubr.f32.mxu0 0.0
  %7321 = vmatmul.mubr.f32.gmra.mrb[0].mxu0 %v7111
  %v7322 = vpop.f32.mrb[0].mxu0
  %v7323 = vadd.f32 0.0, %v7322
  %v7324 = vpop.f32.mrb[0].mxu0
  %7325 = vmatprep.mubr.f32.mxu0 0.0
  %7326 = vmatmul.mubr.f32.gmra.mrb[0].mxu0 %v7112
  %v7327 = vpop.f32.mrb[0].mxu0
  %v7328 = vadd.f32 0.0, %v7327
  %v7329 = vpop.f32.mrb[0].mxu0
  %7330 = vmatprep.mubr.f32.mxu0 0.0
  %7331 = vmatmul.mubr.f32.gmra.mrb[0].mxu0 %v7113
  %v7332 = vpop.f32.mrb[0].mxu0
  %v7333 = vadd.f32 0.0, %v7332
  %v7334 = vpop.f32.mrb[0].mxu0
  %7335 = vmatprep.mubr.f32.mxu0 0.0
  %7336 = vmatmul.mubr.f32.gmra.mrb[0].mxu0 %v7114
  %v7337 = vpop.f32.mrb[0].mxu0
  %v7338 = vadd.f32 0.0, %v7337
  %v7339 = vpop.f32.mrb[0].mxu0
  %7340 = vmatprep.mubr.f32.mxu0 0.0
  %7341 = vmatmul.mubr.f32.gmra.mrb[0].mxu0 %v7115
  %v7342 = vpop.f32.mrb[0].mxu0
  %v7343 = vadd.f32 0.0, %v7342
  %v7344 = vpop.f32.mrb[0].mxu0
  %7345 = vmatprep.mubr.f32.mxu0 0.0
  %7346 = vmatmul.mubr.f32.gmra.mrb[0].mxu0 %v7116
  %v7347 = vpop.f32.mrb[0].mxu0
  %v7348 = vadd.f32 0.0, %v7347
  %v7349 = vpop.f32.mrb[0].mxu0
  %7350 = vmatprep.mubr.f32.mxu0 0.0
  %7351 = vmatmul.mubr.f32.gmra.mrb[0].mxu0 %v7117
  %v7352 = vpop.f32.mrb[0].mxu0
  %v7353 = vadd.f32 0.0, %v7352
  %v7354 = vpop.f32.mrb[0].mxu0
  %7355 = vmatprep.mubr.f32.mxu0 0.0
  %7356 = vmatmul.mubr.f32.gmra.mrb[0].mxu0 %v7118
  %v7357 = vpop.f32.mrb[0].mxu0
  %v7358 = vadd.f32 0.0, %v7357
  %v7359 = vpop.f32.mrb[0].mxu0
  %7360 = vmatprep.mubr.f32.mxu0 0.0
  %7361 = vmatmul.mubr.f32.gmra.mrb[0].mxu0 %v7119
  %v7362 = vpop.f32.mrb[0].mxu0
  %v7363 = vadd.f32 0.0, %v7362
  %v7364 = vpop.f32.mrb[0].mxu0
  %7365 = vmatprep.mubr.f32.mxu0 0.0
  %7366 = vmatmul.mubr.f32.gmra.mrb[0].mxu0 %v7120
  %v7367 = vpop.f32.mrb[0].mxu0
  %v7368 = vadd.f32 0.0, %v7367
  %v7369 = vpop.f32.mrb[0].mxu0
  %7370 = vmatprep.mubr.f32.mxu0 0.0
  %7371 = vmatmul.mubr.f32.gmra.mrb[0].mxu0 %v7121
  %v7372 = vpop.f32.mrb[0].mxu0
  %v7373 = vadd.f32 0.0, %v7372
  %v7374 = vpop.f32.mrb[0].mxu0
  %7375 = vmatprep.mubr.f32.mxu0 0.0
  %7376 = vmatmul.mubr.f32.gmra.mrb[0].mxu0 %v7122
  %v7377 = vpop.f32.mrb[0].mxu0
  %v7378 = vadd.f32 0.0, %v7377
  %v7379 = vpop.f32.mrb[0].mxu0
  %7380 = vmatprep.mubr.f32.mxu0 0.0
  %7381 = vmatmul.mubr.f32.gmra.mrb[0].mxu0 %v7123
  %v7382 = vpop.f32.mrb[0].mxu0
  %v7383 = vadd.f32 0.0, %v7382
  %v7384 = vpop.f32.mrb[0].mxu0
  %7385 = vmatprep.mubr.f32.mxu0 0.0
  %7386 = vmatmul.mubr.f32.gmra.mrb[0].mxu0 %v7124
  %v7387 = vpop.f32.mrb[0].mxu0
  %v7388 = vadd.f32 0.0, %v7387
  %v7389 = vpop.f32.mrb[0].mxu0
  %7390 = vmatprep.mubr.f32.mxu0 0.0
  %7391 = vmatmul.mubr.f32.gmra.mrb[0].mxu0 %v7125
  %v7392 = vpop.f32.mrb[0].mxu0
  %v7393 = vadd.f32 0.0, %v7392
  %v7394 = vpop.f32.mrb[0].mxu0
  %7395 = vmatprep.mubr.f32.mxu0 0.0
  %7396 = vmatmul.mubr.f32.gmra.mrb[0].mxu0 %v7126
  %v7397 = vpop.f32.mrb[0].mxu0
  %v7398 = vadd.f32 0.0, %v7397
  %v7399 = vpop.f32.mrb[0].mxu0
  %7400 = vmatprep.mubr.f32.mxu0 0.0
  %7401 = vmatmul.mubr.f32.gmra.mrb[0].mxu0 %v7127
  %v7402 = vpop.f32.mrb[0].mxu0
  %v7403 = vadd.f32 0.0, %v7402
  %v7404 = vpop.f32.mrb[0].mxu0
  %7405 = vmatprep.mubr.f32.mxu0 0.0
  %7406 = vmatmul.mubr.f32.gmra.mrb[0].mxu0 %v7128
  %v7407 = vpop.f32.mrb[0].mxu0
  %v7408 = vadd.f32 0.0, %v7407
  %v7409 = vpop.f32.mrb[0].mxu0
  %7410 = vmatprep.mubr.f32.mxu0 0.0
  %7411 = vmatmul.mubr.f32.gmra.mrb[0].mxu0 %v7129
  %v7412 = vpop.f32.mrb[0].mxu0
  %v7413 = vadd.f32 0.0, %v7412
  %v7414 = vpop.f32.mrb[0].mxu0
  %7415 = vmatprep.mubr.f32.mxu0 0.0
  %7416 = vmatmul.mubr.f32.gmra.mrb[0].mxu0 %v7130
  %v7417 = vpop.f32.mrb[0].mxu0
  %v7418 = vadd.f32 0.0, %v7417
  %v7419 = vpop.f32.mrb[0].mxu0
  %7420 = vmatprep.mubr.f32.mxu0 0.0
  %7421 = vmatmul.mubr.f32.gmra.mrb[0].mxu0 %v7131
  %v7422 = vpop.f32.mrb[0].mxu0
  %v7423 = vadd.f32 0.0, %v7422
  %v7424 = vpop.f32.mrb[0].mxu0
  %7425 = vmatprep.mubr.f32.mxu0 0.0
  %7426 = vmatmul.mubr.f32.gmra.mrb[0].mxu0 %v7132
  %v7427 = vpop.f32.mrb[0].mxu0
  %v7428 = vadd.f32 0.0, %v7427
  %v7429 = vpop.f32.mrb[0].mxu0
  %7430 = vmatprep.mubr.f32.mxu0 0.0
  %7431 = vmatmul.mubr.f32.gmra.mrb[0].mxu0 %v7133
  %v7432 = vpop.f32.mrb[0].mxu0
  %v7433 = vadd.f32 0.0, %v7432
  %v7434 = vpop.f32.mrb[0].mxu0
  %7435 = vmatprep.mubr.f32.mxu0 0.0
  %7436 = vmatmul.mubr.f32.gmra.mrb[0].mxu0 %v7134
  %v7437 = vpop.f32.mrb[0].mxu0
  %v7438 = vadd.f32 0.0, %v7437
  %v7439 = vpop.f32.mrb[0].mxu0
  %7440 = vmatprep.mubr.f32.mxu0 0.0
  %7441 = vmatmul.mubr.f32.gmra.mrb[0].mxu0 %v7135
  %v7442 = vpop.f32.mrb[0].mxu0
  %v7443 = vadd.f32 0.0, %v7442
  %v7444 = vpop.f32.mrb[0].mxu0
  %7445 = vmatprep.mubr.f32.mxu0 0.0
  %7446 = vmatmul.mubr.f32.gmra.mrb[0].mxu0 %v7136
  %v7447 = vpop.f32.mrb[0].mxu0
  %v7448 = vadd.f32 0.0, %v7447
  %v7449 = vpop.f32.mrb[0].mxu0
  %7450 = vmatprep.mubr.f32.mxu0 0.0
  %7451 = vmatmul.mubr.f32.gmra.mrb[0].mxu0 %v7137
  %v7452 = vpop.f32.mrb[0].mxu0
  %v7453 = vadd.f32 0.0, %v7452
  %v7454 = vpop.f32.mrb[0].mxu0
  %7455 = vmatprep.mubr.f32.mxu0 0.0
  %7456 = vmatmul.mubr.f32.gmra.mrb[0].mxu0 %v7138
  %v7457 = vpop.f32.mrb[0].mxu0
  %v7458 = vadd.f32 0.0, %v7457
  %v7459 = vpop.f32.mrb[0].mxu0
  %7460 = vmatprep.mubr.f32.mxu0 0.0
  %7461 = vmatmul.mubr.f32.gmra.mrb[0].mxu0 %v7139
  %v7462 = vpop.f32.mrb[0].mxu0
  %v7463 = vadd.f32 0.0, %v7462
  %v7464 = vpop.f32.mrb[0].mxu0
  %7465 = vmatprep.mubr.f32.mxu0 0.0
  %7466 = vmatmul.mubr.f32.gmra.mrb[0].mxu0 %v7140
  %v7467 = vpop.f32.mrb[0].mxu0
  %v7468 = vadd.f32 0.0, %v7467
  %v7469 = vpop.f32.mrb[0].mxu0
  %7470 = vmatprep.mubr.f32.mxu0 0.0
  %7471 = vmatmul.mubr.f32.gmra.mrb[0].mxu0 %v7141
  %v7472 = vpop.f32.mrb[0].mxu0
  %v7473 = vadd.f32 0.0, %v7472
  %v7474 = vpop.f32.mrb[0].mxu0
  %7475 = vmatprep.mubr.f32.mxu0 0.0
  %7476 = vmatmul.mubr.f32.gmra.mrb[0].mxu0 %v7142
  %v7477 = vpop.f32.mrb[0].mxu0
  %v7478 = vadd.f32 0.0, %v7477
  %v7479 = vpop.f32.mrb[0].mxu0
  %7480 = vmatprep.mubr.f32.mxu0 0.0
  %7481 = vmatmul.mubr.f32.gmra.mrb[0].mxu0 %v7143
  %v7482 = vpop.f32.mrb[0].mxu0
  %v7483 = vadd.f32 0.0, %v7482
  %v7484 = vpop.f32.mrb[0].mxu0
  %7485 = vmatprep.mubr.f32.mxu0 0.0
  %7486 = vmatmul.mubr.f32.gmra.mrb[0].mxu0 %v7144
  %v7487 = vpop.f32.mrb[0].mxu0
  %v7488 = vadd.f32 0.0, %v7487
  %v7489 = vpop.f32.mrb[0].mxu0
  %7490 = vmatprep.mubr.f32.mxu0 0.0
  %7491 = vmatmul.mubr.f32.gmra.mrb[0].mxu0 %v7145
  %v7492 = vpop.f32.mrb[0].mxu0
  %v7493 = vadd.f32 0.0, %v7492
  %v7494 = vpop.f32.mrb[0].mxu0
  %7495 = vmatprep.mubr.f32.mxu0 0.0
  %7496 = vmatmul.mubr.f32.gmra.mrb[0].mxu0 %v7146
  %v7497 = vpop.f32.mrb[0].mxu0
  %v7498 = vadd.f32 0.0, %v7497
  %v7499 = vpop.f32.mrb[0].mxu0
  %7500 = vmatprep.mubr.f32.mxu0 0.0
  %7501 = vmatmul.mubr.f32.gmra.mrb[0].mxu0 %v7147
  %v7502 = vpop.f32.mrb[0].mxu0
  %v7503 = vadd.f32 0.0, %v7502
  %v7504 = vpop.f32.mrb[0].mxu0
  %7505 = vmatprep.mubr.f32.mxu0 0.0
  %7506 = vmatmul.mubr.f32.gmra.mrb[0].mxu0 %v7148
  %v7507 = vpop.f32.mrb[0].mxu0
  %v7508 = vadd.f32 0.0, %v7507
  %v7509 = vpop.f32.mrb[0].mxu0
  %7510 = vmatprep.mubr.f32.mxu0 0.0
  %7511 = vmatmul.mubr.f32.gmra.mrb[0].mxu0 %v7149
  %v7512 = vpop.f32.mrb[0].mxu0
  %v7513 = vadd.f32 0.0, %v7512
  %v7514 = vpop.f32.mrb[0].mxu0
  %7515 = vmatprep.mubr.f32.mxu0 0.0
  %7516 = vmatmul.mubr.f32.gmra.mrb[0].mxu0 %v7150
  %v7517 = vpop.f32.mrb[0].mxu0
  %v7518 = vadd.f32 0.0, %v7517
  %v7519 = vpop.f32.mrb[0].mxu0
  %7520 = vmatprep.mubr.f32.mxu0 0.0
  %7521 = vmatmul.mubr.f32.gmra.mrb[0].mxu0 %v7151
  %v7522 = vpop.f32.mrb[0].mxu0
  %v7523 = vadd.f32 0.0, %v7522
  %v7524 = vpop.f32.mrb[0].mxu0
  %7525 = vmatprep.mubr.f32.mxu0 0.0
  %7526 = vmatmul.mubr.f32.gmra.mrb[0].mxu0 %v7152
  %v7527 = vpop.f32.mrb[0].mxu0
  %v7528 = vadd.f32 0.0, %v7527
  %v7529 = vpop.f32.mrb[0].mxu0
  %7530 = vmatprep.mubr.f32.mxu0 0.0
  %7531 = vmatmul.mubr.f32.gmra.mrb[0].mxu0 %v7153
  %v7532 = vpop.f32.mrb[0].mxu0
  %v7533 = vadd.f32 0.0, %v7532
  %v7534 = vpop.f32.mrb[0].mxu0
  %7535 = vmatprep.mubr.f32.mxu0 0.0
  %7536 = vmatmul.mubr.f32.gmra.mrb[0].mxu0 %v7154
  %v7537 = vpop.f32.mrb[0].mxu0
  %v7538 = vadd.f32 0.0, %v7537
  %v7539 = vpop.f32.mrb[0].mxu0
  %7540 = vmatprep.mubr.f32.mxu0 0.0
  %7541 = vmatmul.mubr.f32.gmra.mrb[0].mxu0 %v7155
  %v7542 = vpop.f32.mrb[0].mxu0
  %v7543 = vadd.f32 0.0, %v7542
  %v7544 = vpop.f32.mrb[0].mxu0
  %7545 = vmatprep.mubr.f32.mxu0 0.0
  %7546 = vmatmul.mubr.f32.gmra.mrb[0].mxu0 %v7156
  %v7547 = vpop.f32.mrb[0].mxu0
  %v7548 = vadd.f32 0.0, %v7547
  %v7549 = vpop.f32.mrb[0].mxu0
  %7550 = vmatprep.mubr.f32.mxu0 0.0
  %7551 = vmatmul.mubr.f32.gmra.mrb[0].mxu0 %v7157
  %v7552 = vpop.f32.mrb[0].mxu0
  %v7553 = vadd.f32 0.0, %v7552
  %v7554 = vpop.f32.mrb[0].mxu0
  %7555 = vmatprep.mubr.f32.mxu0 0.0
  %7556 = vmatmul.mubr.f32.gmra.mrb[0].mxu0 %v7158
  %v7557 = vpop.f32.mrb[0].mxu0
  %v7558 = vadd.f32 0.0, %v7557
  %v7559 = vpop.f32.mrb[0].mxu0
  %7560 = vdwg.mxu0
  %v7561 = vadd.f32 %v7031, %v7243
  %v7562 = vadd.f32 %v7032, %v7248
  %v7563 = vadd.f32 %v7033, %v7253
  %v7564 = vadd.f32 %v7034, %v7258
  %v7565 = vadd.f32 %v7035, %v7263
  %v7566 = vadd.f32 %v7036, %v7268
  %v7567 = vadd.f32 %v7037, %v7273
  %v7568 = vadd.f32 %v7038, %v7278
  %v7569 = vadd.f32 %v7039, %v7283
  %v7570 = vadd.f32 %v7040, %v7288
  %v7571 = vadd.f32 %v7041, %v7293
  %v7572 = vadd.f32 %v7042, %v7298
  %v7573 = vadd.f32 %v7043, %v7303
  %v7574 = vadd.f32 %v7044, %v7308
  %v7575 = vadd.f32 %v7045, %v7313
  %v7576 = vadd.f32 %v7046, %v7318
  %v7577 = vadd.f32 %v7047, %v7323
  %v7578 = vadd.f32 %v7048, %v7328
  %v7579 = vadd.f32 %v7049, %v7333
  %v7580 = vadd.f32 %v7050, %v7338
  %v7581 = vadd.f32 %v7051, %v7343
  %v7582 = vadd.f32 %v7052, %v7348
  %v7583 = vadd.f32 %v7053, %v7353
  %v7584 = vadd.f32 %v7054, %v7358
  %v7585 = vadd.f32 %v7055, %v7363
  %v7586 = vadd.f32 %v7056, %v7368
  %v7587 = vadd.f32 %v7057, %v7373
  %v7588 = vadd.f32 %v7058, %v7378
  %v7589 = vadd.f32 %v7059, %v7383
  %v7590 = vadd.f32 %v7060, %v7388
  %v7591 = vadd.f32 %v7061, %v7393
  %v7592 = vadd.f32 %v7062, %v7398
  %v7593 = vadd.f32 %v7063, %v7403
  %v7594 = vadd.f32 %v7064, %v7408
  %v7595 = vadd.f32 %v7065, %v7413
  %v7596 = vadd.f32 %v7066, %v7418
  %v7597 = vadd.f32 %v7067, %v7423
  %v7598 = vadd.f32 %v7068, %v7428
  %v7599 = vadd.f32 %v7069, %v7433
  %v7600 = vadd.f32 %v7070, %v7438
  %v7601 = vadd.f32 %v7071, %v7443
  %v7602 = vadd.f32 %v7072, %v7448
  %v7603 = vadd.f32 %v7073, %v7453
  %v7604 = vadd.f32 %v7074, %v7458
  %v7605 = vadd.f32 %v7075, %v7463
  %v7606 = vadd.f32 %v7076, %v7468
  %v7607 = vadd.f32 %v7077, %v7473
  %v7608 = vadd.f32 %v7078, %v7478
  %v7609 = vadd.f32 %v7079, %v7483
  %v7610 = vadd.f32 %v7080, %v7488
  %v7611 = vadd.f32 %v7081, %v7493
  %v7612 = vadd.f32 %v7082, %v7498
  %v7613 = vadd.f32 %v7083, %v7503
  %v7614 = vadd.f32 %v7084, %v7508
  %v7615 = vadd.f32 %v7085, %v7513
  %v7616 = vadd.f32 %v7086, %v7518
  %v7617 = vadd.f32 %v7087, %v7523
  %v7618 = vadd.f32 %v7088, %v7528
  %v7619 = vadd.f32 %v7089, %v7533
  %v7620 = vadd.f32 %v7090, %v7538
  %v7621 = vadd.f32 %v7091, %v7543
  %v7622 = vadd.f32 %v7092, %v7548
  %v7623 = vadd.f32 %v7093, %v7553
  %v7624 = vadd.f32 %v7094, %v7558
  %v7625 = vld [vmem:[%s5568 + $0x1] sm:$0xff]
  %v7626 = vld [vmem:[%s5568 + $0x9] sm:$0xff]
  %v7627 = vld [vmem:[%s5568 + $0x19] sm:$0xff]
  %v7628 = vld [vmem:[%s5568 + $0x21] sm:$0xff]
  %v7629 = vld [vmem:[%s5568 + $0x31] sm:$0xff]
  %v7630 = vld [vmem:[%s5568 + $0x39] sm:$0xff]
  %v7631 = vld [vmem:[%s5568 + $0x49] sm:$0xff]
  %v7632 = vld [vmem:[%s5568 + $0x51] sm:$0xff]
  %v7633 = vld [vmem:[%s5568 + $0x61] sm:$0xff]
  %v7634 = vld [vmem:[%s5568 + $0x69] sm:$0xff]
  %v7635 = vld [vmem:[%s5568 + $0x79] sm:$0xff]
  %v7636 = vld [vmem:[%s5568 + $0x81] sm:$0xff]
  %v7637 = vld [vmem:[%s5568 + $0x91] sm:$0xff]
  %v7638 = vld [vmem:[%s5568 + $0x99] sm:$0xff]
  %v7639 = vld [vmem:[%s5568 + $0xa9] sm:$0xff]
  %v7640 = vld [vmem:[%s5568 + $0xb1] sm:$0xff]
  %v7641 = vld [vmem:[%s5568 + $0xc1] sm:$0xff]
  %v7642 = vld [vmem:[%s5568 + $0xc9] sm:$0xff]
  %v7643 = vld [vmem:[%s5568 + $0xd9] sm:$0xff]
  %v7644 = vld [vmem:[%s5568 + $0xe1] sm:$0xff]
  %v7645 = vld [vmem:[%s5568 + $0xf1] sm:$0xff]
  %v7646 = vld [vmem:[%s5568 + $0xf9] sm:$0xff]
  %v7647 = vld [vmem:[%s5568 + $0x109] sm:$0xff]
  %v7648 = vld [vmem:[%s5568 + $0x111] sm:$0xff]
  %v7649 = vld [vmem:[%s5568 + $0x121] sm:$0xff]
  %v7650 = vld [vmem:[%s5568 + $0x129] sm:$0xff]
  %v7651 = vld [vmem:[%s5568 + $0x139] sm:$0xff]
  %v7652 = vld [vmem:[%s5568 + $0x141] sm:$0xff]
  %v7653 = vld [vmem:[%s5568 + $0x151] sm:$0xff]
  %v7654 = vld [vmem:[%s5568 + $0x159] sm:$0xff]
  %v7655 = vld [vmem:[%s5568 + $0x169] sm:$0xff]
  %v7656 = vld [vmem:[%s5568 + $0x171] sm:$0xff]
  %v7657 = vld [vmem:[%s5568 + $0x1b1] sm:$0xff]
  %v7658 = vld [vmem:[%s5568 + $0x1b9] sm:$0xff]
  %v7659 = vld [vmem:[%s5568 + $0x1c9] sm:$0xff]
  %v7660 = vld [vmem:[%s5568 + $0x1d1] sm:$0xff]
  %v7661 = vld [vmem:[%s5568 + $0x1e1] sm:$0xff]
  %v7662 = vld [vmem:[%s5568 + $0x1e9] sm:$0xff]
  %v7663 = vld [vmem:[%s5568 + $0x1f9] sm:$0xff]
  %v7664 = vld [vmem:[%s5568 + $0x201] sm:$0xff]
  %v7665 = vld [vmem:[%s5568 + $0x211] sm:$0xff]
  %v7666 = vld [vmem:[%s5568 + $0x219] sm:$0xff]
  %v7667 = vld [vmem:[%s5568 + $0x229] sm:$0xff]
  %v7668 = vld [vmem:[%s5568 + $0x231] sm:$0xff]
  %v7669 = vld [vmem:[%s5568 + $0x241] sm:$0xff]
  %v7670 = vld [vmem:[%s5568 + $0x249] sm:$0xff]
  %v7671 = vld [vmem:[%s5568 + $0x259] sm:$0xff]
  %v7672 = vld [vmem:[%s5568 + $0x261] sm:$0xff]
  %v7673 = vld [vmem:[%s5568 + $0x271] sm:$0xff]
  %v7674 = vld [vmem:[%s5568 + $0x279] sm:$0xff]
  %v7675 = vld [vmem:[%s5568 + $0x289] sm:$0xff]
  %v7676 = vld [vmem:[%s5568 + $0x291] sm:$0xff]
  %v7677 = vld [vmem:[%s5568 + $0x2a1] sm:$0xff]
  %v7678 = vld [vmem:[%s5568 + $0x2a9] sm:$0xff]
  %v7679 = vld [vmem:[%s5568 + $0x2b9] sm:$0xff]
  %v7680 = vld [vmem:[%s5568 + $0x2c1] sm:$0xff]
  %v7681 = vld [vmem:[%s5568 + $0x2d1] sm:$0xff]
  %v7682 = vld [vmem:[%s5568 + $0x2d9] sm:$0xff]
  %v7683 = vld [vmem:[%s5568 + $0x2e9] sm:$0xff]
  %v7684 = vld [vmem:[%s5568 + $0x2f1] sm:$0xff]
  %v7685 = vld [vmem:[%s5568 + $0x301] sm:$0xff]
  %v7686 = vld [vmem:[%s5568 + $0x309] sm:$0xff]
  %v7687 = vld [vmem:[%s5568 + $0x319] sm:$0xff]
  %v7688 = vld [vmem:[%s5568 + $0x321] sm:$0xff]
  %s7689 = scalar_lea.vmem %s5, 512
  %v7690 = vld [vmem:[%s7689] sm:$0xff]
  %v7691 = vld [vmem:[%s7689 + $0x8] sm:$0xff]
  %v7692 = vld [vmem:[%s7689 + $0x10] sm:$0xff]
  %v7693 = vld [vmem:[%s7689 + $0x18] sm:$0xff]
  %v7694 = vld [vmem:[%s7689 + $0x20] sm:$0xff]
  %v7695 = vld [vmem:[%s7689 + $0x28] sm:$0xff]
  %v7696 = vld [vmem:[%s7689 + $0x30] sm:$0xff]
  %v7697 = vld [vmem:[%s7689 + $0x38] sm:$0xff]
  %v7698 = vld [vmem:[%s7689 + $0x40] sm:$0xff]
  %v7699 = vld [vmem:[%s7689 + $0x48] sm:$0xff]
  %v7700 = vld [vmem:[%s7689 + $0x50] sm:$0xff]
  %v7701 = vld [vmem:[%s7689 + $0x58] sm:$0xff]
  %v7702 = vld [vmem:[%s7689 + $0x60] sm:$0xff]
  %v7703 = vld [vmem:[%s7689 + $0x68] sm:$0xff]
  %v7704 = vld [vmem:[%s7689 + $0x70] sm:$0xff]
  %v7705 = vld [vmem:[%s7689 + $0x78] sm:$0xff]
  %7706 = vmatprep.subr.mxu0 0.0
  %7707 = vmatpush1.msra.mxu0 %v7690
  %7708 = vmatprep.subr.mxu0 0.0
  %7709 = vmatpush1.msra.mxu0 %v7691
  %7710 = vmatprep.subr.mxu0 0.0
  %7711 = vmatpush1.msra.mxu0 %v7692
  %7712 = vmatprep.subr.mxu0 0.0
  %7713 = vmatpush1.msra.mxu0 %v7693
  %7714 = vmatprep.subr.mxu0 0.0
  %7715 = vmatpush1.msra.mxu0 %v7694
  %7716 = vmatprep.subr.mxu0 0.0
  %7717 = vmatpush1.msra.mxu0 %v7695
  %7718 = vmatprep.subr.mxu0 0.0
  %7719 = vmatpush1.msra.mxu0 %v7696
  %7720 = vmatprep.subr.mxu0 0.0
  %7721 = vmatpush1.msra.mxu0 %v7697
  %7722 = vmatprep.subr.mxu0 0.0
  %7723 = vmatpush1.msra.mxu0 %v7698
  %7724 = vmatprep.subr.mxu0 0.0
  %7725 = vmatpush1.msra.mxu0 %v7699
  %7726 = vmatprep.subr.mxu0 0.0
  %7727 = vmatpush1.msra.mxu0 %v7700
  %7728 = vmatprep.subr.mxu0 0.0
  %7729 = vmatpush1.msra.mxu0 %v7701
  %7730 = vmatprep.subr.mxu0 0.0
  %7731 = vmatpush1.msra.mxu0 %v7702
  %7732 = vmatprep.subr.mxu0 0.0
  %7733 = vmatpush1.msra.mxu0 %v7703
  %7734 = vmatprep.subr.mxu0 0.0
  %7735 = vmatpush1.msra.mxu0 %v7704
  %7736 = vmatprep.subr.mxu0 0.0
  %7737 = vmatpush1.msra.mxu0 %v7705
  %7738 = vmatprep.subr.mxu0 0.0
  %7739 = vmatpush1.msra.mxu0 0.0
  %7740 = vmatprep.subr.mxu0 0.0
  %7741 = vmatpush1.msra.mxu0 0.0
  %7742 = vmatprep.subr.mxu0 0.0
  %7743 = vmatpush1.msra.mxu0 0.0
  %7744 = vmatprep.subr.mxu0 0.0
  %7745 = vmatpush1.msra.mxu0 0.0
  %7746 = vmatprep.subr.mxu0 0.0
  %7747 = vmatpush1.msra.mxu0 0.0
  %7748 = vmatprep.subr.mxu0 0.0
  %7749 = vmatpush1.msra.mxu0 0.0
  %7750 = vmatprep.subr.mxu0 0.0
  %7751 = vmatpush1.msra.mxu0 0.0
  %7752 = vmatprep.subr.mxu0 0.0
  %7753 = vmatpush1.msra.mxu0 0.0
  %7754 = vmatprep.subr.mxu0 0.0
  %7755 = vmatpush1.msra.mxu0 0.0
  %7756 = vmatprep.subr.mxu0 0.0
  %7757 = vmatpush1.msra.mxu0 0.0
  %7758 = vmatprep.subr.mxu0 0.0
  %7759 = vmatpush1.msra.mxu0 0.0
  %7760 = vmatprep.subr.mxu0 0.0
  %7761 = vmatpush1.msra.mxu0 0.0
  %7762 = vmatprep.subr.mxu0 0.0
  %7763 = vmatpush1.msra.mxu0 0.0
  %7764 = vmatprep.subr.mxu0 0.0
  %7765 = vmatpush1.msra.mxu0 0.0
  %7766 = vmatprep.subr.mxu0 0.0
  %7767 = vmatpush1.msra.mxu0 0.0
  %7768 = vmatprep.subr.mxu0 0.0
  %7769 = vmatpush1.msra.mxu0 0.0
  %7770 = vmatprep.mubr.f32.mxu0 0.0
  %7771 = vmatmul.mubr.f32.gmra.mrb[0].mxu0 %v7625
  %v7772 = vpop.f32.mrb[0].mxu0
  %v7773 = vadd.f32 0.0, %v7772
  %v7774 = vpop.f32.mrb[0].mxu0
  %7775 = vmatprep.mubr.f32.mxu0 0.0
  %7776 = vmatmul.mubr.f32.gmra.mrb[0].mxu0 %v7626
  %v7777 = vpop.f32.mrb[0].mxu0
  %v7778 = vadd.f32 0.0, %v7777
  %v7779 = vpop.f32.mrb[0].mxu0
  %7780 = vmatprep.mubr.f32.mxu0 0.0
  %7781 = vmatmul.mubr.f32.gmra.mrb[0].mxu0 %v7627
  %v7782 = vpop.f32.mrb[0].mxu0
  %v7783 = vadd.f32 0.0, %v7782
  %v7784 = vpop.f32.mrb[0].mxu0
  %7785 = vmatprep.mubr.f32.mxu0 0.0
  %7786 = vmatmul.mubr.f32.gmra.mrb[0].mxu0 %v7628
  %v7787 = vpop.f32.mrb[0].mxu0
  %v7788 = vadd.f32 0.0, %v7787
  %v7789 = vpop.f32.mrb[0].mxu0
  %7790 = vmatprep.mubr.f32.mxu0 0.0
  %7791 = vmatmul.mubr.f32.gmra.mrb[0].mxu0 %v7629
  %v7792 = vpop.f32.mrb[0].mxu0
  %v7793 = vadd.f32 0.0, %v7792
  %v7794 = vpop.f32.mrb[0].mxu0
  %7795 = vmatprep.mubr.f32.mxu0 0.0
  %7796 = vmatmul.mubr.f32.gmra.mrb[0].mxu0 %v7630
  %v7797 = vpop.f32.mrb[0].mxu0
  %v7798 = vadd.f32 0.0, %v7797
  %v7799 = vpop.f32.mrb[0].mxu0
  %7800 = vmatprep.mubr.f32.mxu0 0.0
  %7801 = vmatmul.mubr.f32.gmra.mrb[0].mxu0 %v7631
  %v7802 = vpop.f32.mrb[0].mxu0
  %v7803 = vadd.f32 0.0, %v7802
  %v7804 = vpop.f32.mrb[0].mxu0
  %7805 = vmatprep.mubr.f32.mxu0 0.0
  %7806 = vmatmul.mubr.f32.gmra.mrb[0].mxu0 %v7632
  %v7807 = vpop.f32.mrb[0].mxu0
  %v7808 = vadd.f32 0.0, %v7807
  %v7809 = vpop.f32.mrb[0].mxu0
  %7810 = vmatprep.mubr.f32.mxu0 0.0
  %7811 = vmatmul.mubr.f32.gmra.mrb[0].mxu0 %v7633
  %v7812 = vpop.f32.mrb[0].mxu0
  %v7813 = vadd.f32 0.0, %v7812
  %v7814 = vpop.f32.mrb[0].mxu0
  %7815 = vmatprep.mubr.f32.mxu0 0.0
  %7816 = vmatmul.mubr.f32.gmra.mrb[0].mxu0 %v7634
  %v7817 = vpop.f32.mrb[0].mxu0
  %v7818 = vadd.f32 0.0, %v7817
  %v7819 = vpop.f32.mrb[0].mxu0
  %7820 = vmatprep.mubr.f32.mxu0 0.0
  %7821 = vmatmul.mubr.f32.gmra.mrb[0].mxu0 %v7635
  %v7822 = vpop.f32.mrb[0].mxu0
  %v7823 = vadd.f32 0.0, %v7822
  %v7824 = vpop.f32.mrb[0].mxu0
  %7825 = vmatprep.mubr.f32.mxu0 0.0
  %7826 = vmatmul.mubr.f32.gmra.mrb[0].mxu0 %v7636
  %v7827 = vpop.f32.mrb[0].mxu0
  %v7828 = vadd.f32 0.0, %v7827
  %v7829 = vpop.f32.mrb[0].mxu0
  %7830 = vmatprep.mubr.f32.mxu0 0.0
  %7831 = vmatmul.mubr.f32.gmra.mrb[0].mxu0 %v7637
  %v7832 = vpop.f32.mrb[0].mxu0
  %v7833 = vadd.f32 0.0, %v7832
  %v7834 = vpop.f32.mrb[0].mxu0
  %7835 = vmatprep.mubr.f32.mxu0 0.0
  %7836 = vmatmul.mubr.f32.gmra.mrb[0].mxu0 %v7638
  %v7837 = vpop.f32.mrb[0].mxu0
  %v7838 = vadd.f32 0.0, %v7837
  %v7839 = vpop.f32.mrb[0].mxu0
  %7840 = vmatprep.mubr.f32.mxu0 0.0
  %7841 = vmatmul.mubr.f32.gmra.mrb[0].mxu0 %v7639
  %v7842 = vpop.f32.mrb[0].mxu0
  %v7843 = vadd.f32 0.0, %v7842
  %v7844 = vpop.f32.mrb[0].mxu0
  %7845 = vmatprep.mubr.f32.mxu0 0.0
  %7846 = vmatmul.mubr.f32.gmra.mrb[0].mxu0 %v7640
  %v7847 = vpop.f32.mrb[0].mxu0
  %v7848 = vadd.f32 0.0, %v7847
  %v7849 = vpop.f32.mrb[0].mxu0
  %7850 = vmatprep.mubr.f32.mxu0 0.0
  %7851 = vmatmul.mubr.f32.gmra.mrb[0].mxu0 %v7641
  %v7852 = vpop.f32.mrb[0].mxu0
  %v7853 = vadd.f32 0.0, %v7852
  %v7854 = vpop.f32.mrb[0].mxu0
  %7855 = vmatprep.mubr.f32.mxu0 0.0
  %7856 = vmatmul.mubr.f32.gmra.mrb[0].mxu0 %v7642
  %v7857 = vpop.f32.mrb[0].mxu0
  %v7858 = vadd.f32 0.0, %v7857
  %v7859 = vpop.f32.mrb[0].mxu0
  %7860 = vmatprep.mubr.f32.mxu0 0.0
  %7861 = vmatmul.mubr.f32.gmra.mrb[0].mxu0 %v7643
  %v7862 = vpop.f32.mrb[0].mxu0
  %v7863 = vadd.f32 0.0, %v7862
  %v7864 = vpop.f32.mrb[0].mxu0
  %7865 = vmatprep.mubr.f32.mxu0 0.0
  %7866 = vmatmul.mubr.f32.gmra.mrb[0].mxu0 %v7644
  %v7867 = vpop.f32.mrb[0].mxu0
  %v7868 = vadd.f32 0.0, %v7867
  %v7869 = vpop.f32.mrb[0].mxu0
  %7870 = vmatprep.mubr.f32.mxu0 0.0
  %7871 = vmatmul.mubr.f32.gmra.mrb[0].mxu0 %v7645
  %v7872 = vpop.f32.mrb[0].mxu0
  %v7873 = vadd.f32 0.0, %v7872
  %v7874 = vpop.f32.mrb[0].mxu0
  %7875 = vmatprep.mubr.f32.mxu0 0.0
  %7876 = vmatmul.mubr.f32.gmra.mrb[0].mxu0 %v7646
  %v7877 = vpop.f32.mrb[0].mxu0
  %v7878 = vadd.f32 0.0, %v7877
  %v7879 = vpop.f32.mrb[0].mxu0
  %7880 = vmatprep.mubr.f32.mxu0 0.0
  %7881 = vmatmul.mubr.f32.gmra.mrb[0].mxu0 %v7647
  %v7882 = vpop.f32.mrb[0].mxu0
  %v7883 = vadd.f32 0.0, %v7882
  %v7884 = vpop.f32.mrb[0].mxu0
  %7885 = vmatprep.mubr.f32.mxu0 0.0
  %7886 = vmatmul.mubr.f32.gmra.mrb[0].mxu0 %v7648
  %v7887 = vpop.f32.mrb[0].mxu0
  %v7888 = vadd.f32 0.0, %v7887
  %v7889 = vpop.f32.mrb[0].mxu0
  %7890 = vmatprep.mubr.f32.mxu0 0.0
  %7891 = vmatmul.mubr.f32.gmra.mrb[0].mxu0 %v7649
  %v7892 = vpop.f32.mrb[0].mxu0
  %v7893 = vadd.f32 0.0, %v7892
  %v7894 = vpop.f32.mrb[0].mxu0
  %7895 = vmatprep.mubr.f32.mxu0 0.0
  %7896 = vmatmul.mubr.f32.gmra.mrb[0].mxu0 %v7650
  %v7897 = vpop.f32.mrb[0].mxu0
  %v7898 = vadd.f32 0.0, %v7897
  %v7899 = vpop.f32.mrb[0].mxu0
  %7900 = vmatprep.mubr.f32.mxu0 0.0
  %7901 = vmatmul.mubr.f32.gmra.mrb[0].mxu0 %v7651
  %v7902 = vpop.f32.mrb[0].mxu0
  %v7903 = vadd.f32 0.0, %v7902
  %v7904 = vpop.f32.mrb[0].mxu0
  %7905 = vmatprep.mubr.f32.mxu0 0.0
  %7906 = vmatmul.mubr.f32.gmra.mrb[0].mxu0 %v7652
  %v7907 = vpop.f32.mrb[0].mxu0
  %v7908 = vadd.f32 0.0, %v7907
  %v7909 = vpop.f32.mrb[0].mxu0
  %7910 = vmatprep.mubr.f32.mxu0 0.0
  %7911 = vmatmul.mubr.f32.gmra.mrb[0].mxu0 %v7653
  %v7912 = vpop.f32.mrb[0].mxu0
  %v7913 = vadd.f32 0.0, %v7912
  %v7914 = vpop.f32.mrb[0].mxu0
  %7915 = vmatprep.mubr.f32.mxu0 0.0
  %7916 = vmatmul.mubr.f32.gmra.mrb[0].mxu0 %v7654
  %v7917 = vpop.f32.mrb[0].mxu0
  %v7918 = vadd.f32 0.0, %v7917
  %v7919 = vpop.f32.mrb[0].mxu0
  %7920 = vmatprep.mubr.f32.mxu0 0.0
  %7921 = vmatmul.mubr.f32.gmra.mrb[0].mxu0 %v7655
  %v7922 = vpop.f32.mrb[0].mxu0
  %v7923 = vadd.f32 0.0, %v7922
  %v7924 = vpop.f32.mrb[0].mxu0
  %7925 = vmatprep.mubr.f32.mxu0 0.0
  %7926 = vmatmul.mubr.f32.gmra.mrb[0].mxu0 %v7656
  %v7927 = vpop.f32.mrb[0].mxu0
  %v7928 = vadd.f32 0.0, %v7927
  %v7929 = vpop.f32.mrb[0].mxu0
  %7930 = vmatprep.mubr.f32.mxu0 0.0
  %7931 = vmatmul.mubr.f32.gmra.mrb[0].mxu0 %v7657
  %v7932 = vpop.f32.mrb[0].mxu0
  %v7933 = vadd.f32 0.0, %v7932
  %v7934 = vpop.f32.mrb[0].mxu0
  %7935 = vmatprep.mubr.f32.mxu0 0.0
  %7936 = vmatmul.mubr.f32.gmra.mrb[0].mxu0 %v7658
  %v7937 = vpop.f32.mrb[0].mxu0
  %v7938 = vadd.f32 0.0, %v7937
  %v7939 = vpop.f32.mrb[0].mxu0
  %7940 = vmatprep.mubr.f32.mxu0 0.0
  %7941 = vmatmul.mubr.f32.gmra.mrb[0].mxu0 %v7659
  %v7942 = vpop.f32.mrb[0].mxu0
  %v7943 = vadd.f32 0.0, %v7942
  %v7944 = vpop.f32.mrb[0].mxu0
  %7945 = vmatprep.mubr.f32.mxu0 0.0
  %7946 = vmatmul.mubr.f32.gmra.mrb[0].mxu0 %v7660
  %v7947 = vpop.f32.mrb[0].mxu0
  %v7948 = vadd.f32 0.0, %v7947
  %v7949 = vpop.f32.mrb[0].mxu0
  %7950 = vmatprep.mubr.f32.mxu0 0.0
  %7951 = vmatmul.mubr.f32.gmra.mrb[0].mxu0 %v7661
  %v7952 = vpop.f32.mrb[0].mxu0
  %v7953 = vadd.f32 0.0, %v7952
  %v7954 = vpop.f32.mrb[0].mxu0
  %7955 = vmatprep.mubr.f32.mxu0 0.0
  %7956 = vmatmul.mubr.f32.gmra.mrb[0].mxu0 %v7662
  %v7957 = vpop.f32.mrb[0].mxu0
  %v7958 = vadd.f32 0.0, %v7957
  %v7959 = vpop.f32.mrb[0].mxu0
  %7960 = vmatprep.mubr.f32.mxu0 0.0
  %7961 = vmatmul.mubr.f32.gmra.mrb[0].mxu0 %v7663
  %v7962 = vpop.f32.mrb[0].mxu0
  %v7963 = vadd.f32 0.0, %v7962
  %v7964 = vpop.f32.mrb[0].mxu0
  %7965 = vmatprep.mubr.f32.mxu0 0.0
  %7966 = vmatmul.mubr.f32.gmra.mrb[0].mxu0 %v7664
  %v7967 = vpop.f32.mrb[0].mxu0
  %v7968 = vadd.f32 0.0, %v7967
  %v7969 = vpop.f32.mrb[0].mxu0
  %7970 = vmatprep.mubr.f32.mxu0 0.0
  %7971 = vmatmul.mubr.f32.gmra.mrb[0].mxu0 %v7665
  %v7972 = vpop.f32.mrb[0].mxu0
  %v7973 = vadd.f32 0.0, %v7972
  %v7974 = vpop.f32.mrb[0].mxu0
  %7975 = vmatprep.mubr.f32.mxu0 0.0
  %7976 = vmatmul.mubr.f32.gmra.mrb[0].mxu0 %v7666
  %v7977 = vpop.f32.mrb[0].mxu0
  %v7978 = vadd.f32 0.0, %v7977
  %v7979 = vpop.f32.mrb[0].mxu0
  %7980 = vmatprep.mubr.f32.mxu0 0.0
  %7981 = vmatmul.mubr.f32.gmra.mrb[0].mxu0 %v7667
  %v7982 = vpop.f32.mrb[0].mxu0
  %v7983 = vadd.f32 0.0, %v7982
  %v7984 = vpop.f32.mrb[0].mxu0
  %7985 = vmatprep.mubr.f32.mxu0 0.0
  %7986 = vmatmul.mubr.f32.gmra.mrb[0].mxu0 %v7668
  %v7987 = vpop.f32.mrb[0].mxu0
  %v7988 = vadd.f32 0.0, %v7987
  %v7989 = vpop.f32.mrb[0].mxu0
  %7990 = vmatprep.mubr.f32.mxu0 0.0
  %7991 = vmatmul.mubr.f32.gmra.mrb[0].mxu0 %v7669
  %v7992 = vpop.f32.mrb[0].mxu0
  %v7993 = vadd.f32 0.0, %v7992
  %v7994 = vpop.f32.mrb[0].mxu0
  %7995 = vmatprep.mubr.f32.mxu0 0.0
  %7996 = vmatmul.mubr.f32.gmra.mrb[0].mxu0 %v7670
  %v7997 = vpop.f32.mrb[0].mxu0
  %v7998 = vadd.f32 0.0, %v7997
  %v7999 = vpop.f32.mrb[0].mxu0
  %8000 = vmatprep.mubr.f32.mxu0 0.0
  %8001 = vmatmul.mubr.f32.gmra.mrb[0].mxu0 %v7671
  %v8002 = vpop.f32.mrb[0].mxu0
  %v8003 = vadd.f32 0.0, %v8002
  %v8004 = vpop.f32.mrb[0].mxu0
  %8005 = vmatprep.mubr.f32.mxu0 0.0
  %8006 = vmatmul.mubr.f32.gmra.mrb[0].mxu0 %v7672
  %v8007 = vpop.f32.mrb[0].mxu0
  %v8008 = vadd.f32 0.0, %v8007
  %v8009 = vpop.f32.mrb[0].mxu0
  %8010 = vmatprep.mubr.f32.mxu0 0.0
  %8011 = vmatmul.mubr.f32.gmra.mrb[0].mxu0 %v7673
  %v8012 = vpop.f32.mrb[0].mxu0
  %v8013 = vadd.f32 0.0, %v8012
  %v8014 = vpop.f32.mrb[0].mxu0
  %8015 = vmatprep.mubr.f32.mxu0 0.0
  %8016 = vmatmul.mubr.f32.gmra.mrb[0].mxu0 %v7674
  %v8017 = vpop.f32.mrb[0].mxu0
  %v8018 = vadd.f32 0.0, %v8017
  %v8019 = vpop.f32.mrb[0].mxu0
  %8020 = vmatprep.mubr.f32.mxu0 0.0
  %8021 = vmatmul.mubr.f32.gmra.mrb[0].mxu0 %v7675
  %v8022 = vpop.f32.mrb[0].mxu0
  %v8023 = vadd.f32 0.0, %v8022
  %v8024 = vpop.f32.mrb[0].mxu0
  %8025 = vmatprep.mubr.f32.mxu0 0.0
  %8026 = vmatmul.mubr.f32.gmra.mrb[0].mxu0 %v7676
  %v8027 = vpop.f32.mrb[0].mxu0
  %v8028 = vadd.f32 0.0, %v8027
  %v8029 = vpop.f32.mrb[0].mxu0
  %8030 = vmatprep.mubr.f32.mxu0 0.0
  %8031 = vmatmul.mubr.f32.gmra.mrb[0].mxu0 %v7677
  %v8032 = vpop.f32.mrb[0].mxu0
  %v8033 = vadd.f32 0.0, %v8032
  %v8034 = vpop.f32.mrb[0].mxu0
  %8035 = vmatprep.mubr.f32.mxu0 0.0
  %8036 = vmatmul.mubr.f32.gmra.mrb[0].mxu0 %v7678
  %v8037 = vpop.f32.mrb[0].mxu0
  %v8038 = vadd.f32 0.0, %v8037
  %v8039 = vpop.f32.mrb[0].mxu0
  %8040 = vmatprep.mubr.f32.mxu0 0.0
  %8041 = vmatmul.mubr.f32.gmra.mrb[0].mxu0 %v7679
  %v8042 = vpop.f32.mrb[0].mxu0
  %v8043 = vadd.f32 0.0, %v8042
  %v8044 = vpop.f32.mrb[0].mxu0
  %8045 = vmatprep.mubr.f32.mxu0 0.0
  %8046 = vmatmul.mubr.f32.gmra.mrb[0].mxu0 %v7680
  %v8047 = vpop.f32.mrb[0].mxu0
  %v8048 = vadd.f32 0.0, %v8047
  %v8049 = vpop.f32.mrb[0].mxu0
  %8050 = vmatprep.mubr.f32.mxu0 0.0
  %8051 = vmatmul.mubr.f32.gmra.mrb[0].mxu0 %v7681
  %v8052 = vpop.f32.mrb[0].mxu0
  %v8053 = vadd.f32 0.0, %v8052
  %v8054 = vpop.f32.mrb[0].mxu0
  %8055 = vmatprep.mubr.f32.mxu0 0.0
  %8056 = vmatmul.mubr.f32.gmra.mrb[0].mxu0 %v7682
  %v8057 = vpop.f32.mrb[0].mxu0
  %v8058 = vadd.f32 0.0, %v8057
  %v8059 = vpop.f32.mrb[0].mxu0
  %8060 = vmatprep.mubr.f32.mxu0 0.0
  %8061 = vmatmul.mubr.f32.gmra.mrb[0].mxu0 %v7683
  %v8062 = vpop.f32.mrb[0].mxu0
  %v8063 = vadd.f32 0.0, %v8062
  %v8064 = vpop.f32.mrb[0].mxu0
  %8065 = vmatprep.mubr.f32.mxu0 0.0
  %8066 = vmatmul.mubr.f32.gmra.mrb[0].mxu0 %v7684
  %v8067 = vpop.f32.mrb[0].mxu0
  %v8068 = vadd.f32 0.0, %v8067
  %v8069 = vpop.f32.mrb[0].mxu0
  %8070 = vmatprep.mubr.f32.mxu0 0.0
  %8071 = vmatmul.mubr.f32.gmra.mrb[0].mxu0 %v7685
  %v8072 = vpop.f32.mrb[0].mxu0
  %v8073 = vadd.f32 0.0, %v8072
  %v8074 = vpop.f32.mrb[0].mxu0
  %8075 = vmatprep.mubr.f32.mxu0 0.0
  %8076 = vmatmul.mubr.f32.gmra.mrb[0].mxu0 %v7686
  %v8077 = vpop.f32.mrb[0].mxu0
  %v8078 = vadd.f32 0.0, %v8077
  %v8079 = vpop.f32.mrb[0].mxu0
  %8080 = vmatprep.mubr.f32.mxu0 0.0
  %8081 = vmatmul.mubr.f32.gmra.mrb[0].mxu0 %v7687
  %v8082 = vpop.f32.mrb[0].mxu0
  %v8083 = vadd.f32 0.0, %v8082
  %v8084 = vpop.f32.mrb[0].mxu0
  %8085 = vmatprep.mubr.f32.mxu0 0.0
  %8086 = vmatmul.mubr.f32.gmra.mrb[0].mxu0 %v7688
  %v8087 = vpop.f32.mrb[0].mxu0
  %v8088 = vadd.f32 0.0, %v8087
  %v8089 = vpop.f32.mrb[0].mxu0
  %8090 = vdwg.mxu0
  %v8091 = vadd.f32 %v7561, %v7773
  %v8092 = vadd.f32 %v7562, %v7778
  %v8093 = vadd.f32 %v7563, %v7783
  %v8094 = vadd.f32 %v7564, %v7788
  %v8095 = vadd.f32 %v7565, %v7793
  %v8096 = vadd.f32 %v7566, %v7798
  %v8097 = vadd.f32 %v7567, %v7803
  %v8098 = vadd.f32 %v7568, %v7808
  %v8099 = vadd.f32 %v7569, %v7813
  %v8100 = vadd.f32 %v7570, %v7818
  %v8101 = vadd.f32 %v7571, %v7823
  %v8102 = vadd.f32 %v7572, %v7828
  %v8103 = vadd.f32 %v7573, %v7833
  %v8104 = vadd.f32 %v7574, %v7838
  %v8105 = vadd.f32 %v7575, %v7843
  %v8106 = vadd.f32 %v7576, %v7848
  %v8107 = vadd.f32 %v7577, %v7853
  %v8108 = vadd.f32 %v7578, %v7858
  %v8109 = vadd.f32 %v7579, %v7863
  %v8110 = vadd.f32 %v7580, %v7868
  %v8111 = vadd.f32 %v7581, %v7873
  %v8112 = vadd.f32 %v7582, %v7878
  %v8113 = vadd.f32 %v7583, %v7883
  %v8114 = vadd.f32 %v7584, %v7888
  %v8115 = vadd.f32 %v7585, %v7893
  %v8116 = vadd.f32 %v7586, %v7898
  %v8117 = vadd.f32 %v7587, %v7903
  %v8118 = vadd.f32 %v7588, %v7908
  %v8119 = vadd.f32 %v7589, %v7913
  %v8120 = vadd.f32 %v7590, %v7918
  %v8121 = vadd.f32 %v7591, %v7923
  %v8122 = vadd.f32 %v7592, %v7928
  %v8123 = vadd.f32 %v7593, %v7933
  %v8124 = vadd.f32 %v7594, %v7938
  %v8125 = vadd.f32 %v7595, %v7943
  %v8126 = vadd.f32 %v7596, %v7948
  %v8127 = vadd.f32 %v7597, %v7953
  %v8128 = vadd.f32 %v7598, %v7958
  %v8129 = vadd.f32 %v7599, %v7963
  %v8130 = vadd.f32 %v7600, %v7968
  %v8131 = vadd.f32 %v7601, %v7973
  %v8132 = vadd.f32 %v7602, %v7978
  %v8133 = vadd.f32 %v7603, %v7983
  %v8134 = vadd.f32 %v7604, %v7988
  %v8135 = vadd.f32 %v7605, %v7993
  %v8136 = vadd.f32 %v7606, %v7998
  %v8137 = vadd.f32 %v7607, %v8003
  %v8138 = vadd.f32 %v7608, %v8008
  %v8139 = vadd.f32 %v7609, %v8013
  %v8140 = vadd.f32 %v7610, %v8018
  %v8141 = vadd.f32 %v7611, %v8023
  %v8142 = vadd.f32 %v7612, %v8028
  %v8143 = vadd.f32 %v7613, %v8033
  %v8144 = vadd.f32 %v7614, %v8038
  %v8145 = vadd.f32 %v7615, %v8043
  %v8146 = vadd.f32 %v7616, %v8048
  %v8147 = vadd.f32 %v7617, %v8053
  %v8148 = vadd.f32 %v7618, %v8058
  %v8149 = vadd.f32 %v7619, %v8063
  %v8150 = vadd.f32 %v7620, %v8068
  %v8151 = vadd.f32 %v7621, %v8073
  %v8152 = vadd.f32 %v7622, %v8078
  %v8153 = vadd.f32 %v7623, %v8083
  %v8154 = vadd.f32 %v7624, %v8088
  %v8155 = vld [vmem:[%s5568 + $0x2] sm:$0xff]
  %v8156 = vld [vmem:[%s5568 + $0xa] sm:$0xff]
  %v8157 = vld [vmem:[%s5568 + $0x1a] sm:$0xff]
  %v8158 = vld [vmem:[%s5568 + $0x22] sm:$0xff]
  %v8159 = vld [vmem:[%s5568 + $0x32] sm:$0xff]
  %v8160 = vld [vmem:[%s5568 + $0x3a] sm:$0xff]
  %v8161 = vld [vmem:[%s5568 + $0x4a] sm:$0xff]
  %v8162 = vld [vmem:[%s5568 + $0x52] sm:$0xff]
  %v8163 = vld [vmem:[%s5568 + $0x62] sm:$0xff]
  %v8164 = vld [vmem:[%s5568 + $0x6a] sm:$0xff]
  %v8165 = vld [vmem:[%s5568 + $0x7a] sm:$0xff]
  %v8166 = vld [vmem:[%s5568 + $0x82] sm:$0xff]
  %v8167 = vld [vmem:[%s5568 + $0x92] sm:$0xff]
  %v8168 = vld [vmem:[%s5568 + $0x9a] sm:$0xff]
  %v8169 = vld [vmem:[%s5568 + $0xaa] sm:$0xff]
  %v8170 = vld [vmem:[%s5568 + $0xb2] sm:$0xff]
  %v8171 = vld [vmem:[%s5568 + $0xc2] sm:$0xff]
  %v8172 = vld [vmem:[%s5568 + $0xca] sm:$0xff]
  %v8173 = vld [vmem:[%s5568 + $0xda] sm:$0xff]
  %v8174 = vld [vmem:[%s5568 + $0xe2] sm:$0xff]
  %v8175 = vld [vmem:[%s5568 + $0xf2] sm:$0xff]
  %v8176 = vld [vmem:[%s5568 + $0xfa] sm:$0xff]
  %v8177 = vld [vmem:[%s5568 + $0x10a] sm:$0xff]
  %v8178 = vld [vmem:[%s5568 + $0x112] sm:$0xff]
  %v8179 = vld [vmem:[%s5568 + $0x122] sm:$0xff]
  %v8180 = vld [vmem:[%s5568 + $0x12a] sm:$0xff]
  %v8181 = vld [vmem:[%s5568 + $0x13a] sm:$0xff]
  %v8182 = vld [vmem:[%s5568 + $0x142] sm:$0xff]
  %v8183 = vld [vmem:[%s5568 + $0x152] sm:$0xff]
  %v8184 = vld [vmem:[%s5568 + $0x15a] sm:$0xff]
  %v8185 = vld [vmem:[%s5568 + $0x16a] sm:$0xff]
  %v8186 = vld [vmem:[%s5568 + $0x172] sm:$0xff]
  %v8187 = vld [vmem:[%s5568 + $0x1b2] sm:$0xff]
  %v8188 = vld [vmem:[%s5568 + $0x1ba] sm:$0xff]
  %v8189 = vld [vmem:[%s5568 + $0x1ca] sm:$0xff]
  %v8190 = vld [vmem:[%s5568 + $0x1d2] sm:$0xff]
  %v8191 = vld [vmem:[%s5568 + $0x1e2] sm:$0xff]
  %v8192 = vld [vmem:[%s5568 + $0x1ea] sm:$0xff]
  %v8193 = vld [vmem:[%s5568 + $0x1fa] sm:$0xff]
  %v8194 = vld [vmem:[%s5568 + $0x202] sm:$0xff]
  %v8195 = vld [vmem:[%s5568 + $0x212] sm:$0xff]
  %v8196 = vld [vmem:[%s5568 + $0x21a] sm:$0xff]
  %v8197 = vld [vmem:[%s5568 + $0x22a] sm:$0xff]
  %v8198 = vld [vmem:[%s5568 + $0x232] sm:$0xff]
  %v8199 = vld [vmem:[%s5568 + $0x242] sm:$0xff]
  %v8200 = vld [vmem:[%s5568 + $0x24a] sm:$0xff]
  %v8201 = vld [vmem:[%s5568 + $0x25a] sm:$0xff]
  %v8202 = vld [vmem:[%s5568 + $0x262] sm:$0xff]
  %v8203 = vld [vmem:[%s5568 + $0x272] sm:$0xff]
  %v8204 = vld [vmem:[%s5568 + $0x27a] sm:$0xff]
  %v8205 = vld [vmem:[%s5568 + $0x28a] sm:$0xff]
  %v8206 = vld [vmem:[%s5568 + $0x292] sm:$0xff]
  %v8207 = vld [vmem:[%s5568 + $0x2a2] sm:$0xff]
  %v8208 = vld [vmem:[%s5568 + $0x2aa] sm:$0xff]
  %v8209 = vld [vmem:[%s5568 + $0x2ba] sm:$0xff]
  %v8210 = vld [vmem:[%s5568 + $0x2c2] sm:$0xff]
  %v8211 = vld [vmem:[%s5568 + $0x2d2] sm:$0xff]
  %v8212 = vld [vmem:[%s5568 + $0x2da] sm:$0xff]
  %v8213 = vld [vmem:[%s5568 + $0x2ea] sm:$0xff]
  %v8214 = vld [vmem:[%s5568 + $0x2f2] sm:$0xff]
  %v8215 = vld [vmem:[%s5568 + $0x302] sm:$0xff]
  %v8216 = vld [vmem:[%s5568 + $0x30a] sm:$0xff]
  %v8217 = vld [vmem:[%s5568 + $0x31a] sm:$0xff]
  %v8218 = vld [vmem:[%s5568 + $0x322] sm:$0xff]
  %s8219 = scalar_lea.vmem %s5, 640
  %v8220 = vld [vmem:[%s8219] sm:$0xff]
  %v8221 = vld [vmem:[%s8219 + $0x8] sm:$0xff]
  %v8222 = vld [vmem:[%s8219 + $0x10] sm:$0xff]
  %v8223 = vld [vmem:[%s8219 + $0x18] sm:$0xff]
  %v8224 = vld [vmem:[%s8219 + $0x20] sm:$0xff]
  %v8225 = vld [vmem:[%s8219 + $0x28] sm:$0xff]
  %v8226 = vld [vmem:[%s8219 + $0x30] sm:$0xff]
  %v8227 = vld [vmem:[%s8219 + $0x38] sm:$0xff]
  %v8228 = vld [vmem:[%s8219 + $0x40] sm:$0xff]
  %v8229 = vld [vmem:[%s8219 + $0x48] sm:$0xff]
  %v8230 = vld [vmem:[%s8219 + $0x50] sm:$0xff]
  %v8231 = vld [vmem:[%s8219 + $0x58] sm:$0xff]
  %v8232 = vld [vmem:[%s8219 + $0x60] sm:$0xff]
  %v8233 = vld [vmem:[%s8219 + $0x68] sm:$0xff]
  %v8234 = vld [vmem:[%s8219 + $0x70] sm:$0xff]
  %v8235 = vld [vmem:[%s8219 + $0x78] sm:$0xff]
  %8236 = vmatprep.subr.mxu0 0.0
  %8237 = vmatpush1.msra.mxu0 %v8220
  %8238 = vmatprep.subr.mxu0 0.0
  %8239 = vmatpush1.msra.mxu0 %v8221
  %8240 = vmatprep.subr.mxu0 0.0
  %8241 = vmatpush1.msra.mxu0 %v8222
  %8242 = vmatprep.subr.mxu0 0.0
  %8243 = vmatpush1.msra.mxu0 %v8223
  %8244 = vmatprep.subr.mxu0 0.0
  %8245 = vmatpush1.msra.mxu0 %v8224
  %8246 = vmatprep.subr.mxu0 0.0
  %8247 = vmatpush1.msra.mxu0 %v8225
  %8248 = vmatprep.subr.mxu0 0.0
  %8249 = vmatpush1.msra.mxu0 %v8226
  %8250 = vmatprep.subr.mxu0 0.0
  %8251 = vmatpush1.msra.mxu0 %v8227
  %8252 = vmatprep.subr.mxu0 0.0
  %8253 = vmatpush1.msra.mxu0 %v8228
  %8254 = vmatprep.subr.mxu0 0.0
  %8255 = vmatpush1.msra.mxu0 %v8229
  %8256 = vmatprep.subr.mxu0 0.0
  %8257 = vmatpush1.msra.mxu0 %v8230
  %8258 = vmatprep.subr.mxu0 0.0
  %8259 = vmatpush1.msra.mxu0 %v8231
  %8260 = vmatprep.subr.mxu0 0.0
  %8261 = vmatpush1.msra.mxu0 %v8232
  %8262 = vmatprep.subr.mxu0 0.0
  %8263 = vmatpush1.msra.mxu0 %v8233
  %8264 = vmatprep.subr.mxu0 0.0
  %8265 = vmatpush1.msra.mxu0 %v8234
  %8266 = vmatprep.subr.mxu0 0.0
  %8267 = vmatpush1.msra.mxu0 %v8235
  %8268 = vmatprep.subr.mxu0 0.0
  %8269 = vmatpush1.msra.mxu0 0.0
  %8270 = vmatprep.subr.mxu0 0.0
  %8271 = vmatpush1.msra.mxu0 0.0
  %8272 = vmatprep.subr.mxu0 0.0
  %8273 = vmatpush1.msra.mxu0 0.0
  %8274 = vmatprep.subr.mxu0 0.0
  %8275 = vmatpush1.msra.mxu0 0.0
  %8276 = vmatprep.subr.mxu0 0.0
  %8277 = vmatpush1.msra.mxu0 0.0
  %8278 = vmatprep.subr.mxu0 0.0
  %8279 = vmatpush1.msra.mxu0 0.0
  %8280 = vmatprep.subr.mxu0 0.0
  %8281 = vmatpush1.msra.mxu0 0.0
  %8282 = vmatprep.subr.mxu0 0.0
  %8283 = vmatpush1.msra.mxu0 0.0
  %8284 = vmatprep.subr.mxu0 0.0
  %8285 = vmatpush1.msra.mxu0 0.0
  %8286 = vmatprep.subr.mxu0 0.0
  %8287 = vmatpush1.msra.mxu0 0.0
  %8288 = vmatprep.subr.mxu0 0.0
  %8289 = vmatpush1.msra.mxu0 0.0
  %8290 = vmatprep.subr.mxu0 0.0
  %8291 = vmatpush1.msra.mxu0 0.0
  %8292 = vmatprep.subr.mxu0 0.0
  %8293 = vmatpush1.msra.mxu0 0.0
  %8294 = vmatprep.subr.mxu0 0.0
  %8295 = vmatpush1.msra.mxu0 0.0
  %8296 = vmatprep.subr.mxu0 0.0
  %8297 = vmatpush1.msra.mxu0 0.0
  %8298 = vmatprep.subr.mxu0 0.0
  %8299 = vmatpush1.msra.mxu0 0.0
  %8300 = vmatprep.mubr.f32.mxu0 0.0
  %8301 = vmatmul.mubr.f32.gmra.mrb[0].mxu0 %v8155
  %v8302 = vpop.f32.mrb[0].mxu0
  %v8303 = vadd.f32 0.0, %v8302
  %v8304 = vpop.f32.mrb[0].mxu0
  %8305 = vmatprep.mubr.f32.mxu0 0.0
  %8306 = vmatmul.mubr.f32.gmra.mrb[0].mxu0 %v8156
  %v8307 = vpop.f32.mrb[0].mxu0
  %v8308 = vadd.f32 0.0, %v8307
  %v8309 = vpop.f32.mrb[0].mxu0
  %8310 = vmatprep.mubr.f32.mxu0 0.0
  %8311 = vmatmul.mubr.f32.gmra.mrb[0].mxu0 %v8157
  %v8312 = vpop.f32.mrb[0].mxu0
  %v8313 = vadd.f32 0.0, %v8312
  %v8314 = vpop.f32.mrb[0].mxu0
  %8315 = vmatprep.mubr.f32.mxu0 0.0
  %8316 = vmatmul.mubr.f32.gmra.mrb[0].mxu0 %v8158
  %v8317 = vpop.f32.mrb[0].mxu0
  %v8318 = vadd.f32 0.0, %v8317
  %v8319 = vpop.f32.mrb[0].mxu0
  %8320 = vmatprep.mubr.f32.mxu0 0.0
  %8321 = vmatmul.mubr.f32.gmra.mrb[0].mxu0 %v8159
  %v8322 = vpop.f32.mrb[0].mxu0
  %v8323 = vadd.f32 0.0, %v8322
  %v8324 = vpop.f32.mrb[0].mxu0
  %8325 = vmatprep.mubr.f32.mxu0 0.0
  %8326 = vmatmul.mubr.f32.gmra.mrb[0].mxu0 %v8160
  %v8327 = vpop.f32.mrb[0].mxu0
  %v8328 = vadd.f32 0.0, %v8327
  %v8329 = vpop.f32.mrb[0].mxu0
  %8330 = vmatprep.mubr.f32.mxu0 0.0
  %8331 = vmatmul.mubr.f32.gmra.mrb[0].mxu0 %v8161
  %v8332 = vpop.f32.mrb[0].mxu0
  %v8333 = vadd.f32 0.0, %v8332
  %v8334 = vpop.f32.mrb[0].mxu0
  %8335 = vmatprep.mubr.f32.mxu0 0.0
  %8336 = vmatmul.mubr.f32.gmra.mrb[0].mxu0 %v8162
  %v8337 = vpop.f32.mrb[0].mxu0
  %v8338 = vadd.f32 0.0, %v8337
  %v8339 = vpop.f32.mrb[0].mxu0
  %8340 = vmatprep.mubr.f32.mxu0 0.0
  %8341 = vmatmul.mubr.f32.gmra.mrb[0].mxu0 %v8163
  %v8342 = vpop.f32.mrb[0].mxu0
  %v8343 = vadd.f32 0.0, %v8342
  %v8344 = vpop.f32.mrb[0].mxu0
  %8345 = vmatprep.mubr.f32.mxu0 0.0
  %8346 = vmatmul.mubr.f32.gmra.mrb[0].mxu0 %v8164
  %v8347 = vpop.f32.mrb[0].mxu0
  %v8348 = vadd.f32 0.0, %v8347
  %v8349 = vpop.f32.mrb[0].mxu0
  %8350 = vmatprep.mubr.f32.mxu0 0.0
  %8351 = vmatmul.mubr.f32.gmra.mrb[0].mxu0 %v8165
  %v8352 = vpop.f32.mrb[0].mxu0
  %v8353 = vadd.f32 0.0, %v8352
  %v8354 = vpop.f32.mrb[0].mxu0
  %8355 = vmatprep.mubr.f32.mxu0 0.0
  %8356 = vmatmul.mubr.f32.gmra.mrb[0].mxu0 %v8166
  %v8357 = vpop.f32.mrb[0].mxu0
  %v8358 = vadd.f32 0.0, %v8357
  %v8359 = vpop.f32.mrb[0].mxu0
  %8360 = vmatprep.mubr.f32.mxu0 0.0
  %8361 = vmatmul.mubr.f32.gmra.mrb[0].mxu0 %v8167
  %v8362 = vpop.f32.mrb[0].mxu0
  %v8363 = vadd.f32 0.0, %v8362
  %v8364 = vpop.f32.mrb[0].mxu0
  %8365 = vmatprep.mubr.f32.mxu0 0.0
  %8366 = vmatmul.mubr.f32.gmra.mrb[0].mxu0 %v8168
  %v8367 = vpop.f32.mrb[0].mxu0
  %v8368 = vadd.f32 0.0, %v8367
  %v8369 = vpop.f32.mrb[0].mxu0
  %8370 = vmatprep.mubr.f32.mxu0 0.0
  %8371 = vmatmul.mubr.f32.gmra.mrb[0].mxu0 %v8169
  %v8372 = vpop.f32.mrb[0].mxu0
  %v8373 = vadd.f32 0.0, %v8372
  %v8374 = vpop.f32.mrb[0].mxu0
  %8375 = vmatprep.mubr.f32.mxu0 0.0
  %8376 = vmatmul.mubr.f32.gmra.mrb[0].mxu0 %v8170
  %v8377 = vpop.f32.mrb[0].mxu0
  %v8378 = vadd.f32 0.0, %v8377
  %v8379 = vpop.f32.mrb[0].mxu0
  %8380 = vmatprep.mubr.f32.mxu0 0.0
  %8381 = vmatmul.mubr.f32.gmra.mrb[0].mxu0 %v8171
  %v8382 = vpop.f32.mrb[0].mxu0
  %v8383 = vadd.f32 0.0, %v8382
  %v8384 = vpop.f32.mrb[0].mxu0
  %8385 = vmatprep.mubr.f32.mxu0 0.0
  %8386 = vmatmul.mubr.f32.gmra.mrb[0].mxu0 %v8172
  %v8387 = vpop.f32.mrb[0].mxu0
  %v8388 = vadd.f32 0.0, %v8387
  %v8389 = vpop.f32.mrb[0].mxu0
  %8390 = vmatprep.mubr.f32.mxu0 0.0
  %8391 = vmatmul.mubr.f32.gmra.mrb[0].mxu0 %v8173
  %v8392 = vpop.f32.mrb[0].mxu0
  %v8393 = vadd.f32 0.0, %v8392
  %v8394 = vpop.f32.mrb[0].mxu0
  %8395 = vmatprep.mubr.f32.mxu0 0.0
  %8396 = vmatmul.mubr.f32.gmra.mrb[0].mxu0 %v8174
  %v8397 = vpop.f32.mrb[0].mxu0
  %v8398 = vadd.f32 0.0, %v8397
  %v8399 = vpop.f32.mrb[0].mxu0
  %8400 = vmatprep.mubr.f32.mxu0 0.0
  %8401 = vmatmul.mubr.f32.gmra.mrb[0].mxu0 %v8175
  %v8402 = vpop.f32.mrb[0].mxu0
  %v8403 = vadd.f32 0.0, %v8402
  %v8404 = vpop.f32.mrb[0].mxu0
  %8405 = vmatprep.mubr.f32.mxu0 0.0
  %8406 = vmatmul.mubr.f32.gmra.mrb[0].mxu0 %v8176
  %v8407 = vpop.f32.mrb[0].mxu0
  %v8408 = vadd.f32 0.0, %v8407
  %v8409 = vpop.f32.mrb[0].mxu0
  %8410 = vmatprep.mubr.f32.mxu0 0.0
  %8411 = vmatmul.mubr.f32.gmra.mrb[0].mxu0 %v8177
  %v8412 = vpop.f32.mrb[0].mxu0
  %v8413 = vadd.f32 0.0, %v8412
  %v8414 = vpop.f32.mrb[0].mxu0
  %8415 = vmatprep.mubr.f32.mxu0 0.0
  %8416 = vmatmul.mubr.f32.gmra.mrb[0].mxu0 %v8178
  %v8417 = vpop.f32.mrb[0].mxu0
  %v8418 = vadd.f32 0.0, %v8417
  %v8419 = vpop.f32.mrb[0].mxu0
  %8420 = vmatprep.mubr.f32.mxu0 0.0
  %8421 = vmatmul.mubr.f32.gmra.mrb[0].mxu0 %v8179
  %v8422 = vpop.f32.mrb[0].mxu0
  %v8423 = vadd.f32 0.0, %v8422
  %v8424 = vpop.f32.mrb[0].mxu0
  %8425 = vmatprep.mubr.f32.mxu0 0.0
  %8426 = vmatmul.mubr.f32.gmra.mrb[0].mxu0 %v8180
  %v8427 = vpop.f32.mrb[0].mxu0
  %v8428 = vadd.f32 0.0, %v8427
  %v8429 = vpop.f32.mrb[0].mxu0
  %8430 = vmatprep.mubr.f32.mxu0 0.0
  %8431 = vmatmul.mubr.f32.gmra.mrb[0].mxu0 %v8181
  %v8432 = vpop.f32.mrb[0].mxu0
  %v8433 = vadd.f32 0.0, %v8432
  %v8434 = vpop.f32.mrb[0].mxu0
  %8435 = vmatprep.mubr.f32.mxu0 0.0
  %8436 = vmatmul.mubr.f32.gmra.mrb[0].mxu0 %v8182
  %v8437 = vpop.f32.mrb[0].mxu0
  %v8438 = vadd.f32 0.0, %v8437
  %v8439 = vpop.f32.mrb[0].mxu0
  %8440 = vmatprep.mubr.f32.mxu0 0.0
  %8441 = vmatmul.mubr.f32.gmra.mrb[0].mxu0 %v8183
  %v8442 = vpop.f32.mrb[0].mxu0
  %v8443 = vadd.f32 0.0, %v8442
  %v8444 = vpop.f32.mrb[0].mxu0
  %8445 = vmatprep.mubr.f32.mxu0 0.0
  %8446 = vmatmul.mubr.f32.gmra.mrb[0].mxu0 %v8184
  %v8447 = vpop.f32.mrb[0].mxu0
  %v8448 = vadd.f32 0.0, %v8447
  %v8449 = vpop.f32.mrb[0].mxu0
  %8450 = vmatprep.mubr.f32.mxu0 0.0
  %8451 = vmatmul.mubr.f32.gmra.mrb[0].mxu0 %v8185
  %v8452 = vpop.f32.mrb[0].mxu0
  %v8453 = vadd.f32 0.0, %v8452
  %v8454 = vpop.f32.mrb[0].mxu0
  %8455 = vmatprep.mubr.f32.mxu0 0.0
  %8456 = vmatmul.mubr.f32.gmra.mrb[0].mxu0 %v8186
  %v8457 = vpop.f32.mrb[0].mxu0
  %v8458 = vadd.f32 0.0, %v8457
  %v8459 = vpop.f32.mrb[0].mxu0
  %8460 = vmatprep.mubr.f32.mxu0 0.0
  %8461 = vmatmul.mubr.f32.gmra.mrb[0].mxu0 %v8187
  %v8462 = vpop.f32.mrb[0].mxu0
  %v8463 = vadd.f32 0.0, %v8462
  %v8464 = vpop.f32.mrb[0].mxu0
  %8465 = vmatprep.mubr.f32.mxu0 0.0
  %8466 = vmatmul.mubr.f32.gmra.mrb[0].mxu0 %v8188
  %v8467 = vpop.f32.mrb[0].mxu0
  %v8468 = vadd.f32 0.0, %v8467
  %v8469 = vpop.f32.mrb[0].mxu0
  %8470 = vmatprep.mubr.f32.mxu0 0.0
  %8471 = vmatmul.mubr.f32.gmra.mrb[0].mxu0 %v8189
  %v8472 = vpop.f32.mrb[0].mxu0
  %v8473 = vadd.f32 0.0, %v8472
  %v8474 = vpop.f32.mrb[0].mxu0
  %8475 = vmatprep.mubr.f32.mxu0 0.0
  %8476 = vmatmul.mubr.f32.gmra.mrb[0].mxu0 %v8190
  %v8477 = vpop.f32.mrb[0].mxu0
  %v8478 = vadd.f32 0.0, %v8477
  %v8479 = vpop.f32.mrb[0].mxu0
  %8480 = vmatprep.mubr.f32.mxu0 0.0
  %8481 = vmatmul.mubr.f32.gmra.mrb[0].mxu0 %v8191
  %v8482 = vpop.f32.mrb[0].mxu0
  %v8483 = vadd.f32 0.0, %v8482
  %v8484 = vpop.f32.mrb[0].mxu0
  %8485 = vmatprep.mubr.f32.mxu0 0.0
  %8486 = vmatmul.mubr.f32.gmra.mrb[0].mxu0 %v8192
  %v8487 = vpop.f32.mrb[0].mxu0
  %v8488 = vadd.f32 0.0, %v8487
  %v8489 = vpop.f32.mrb[0].mxu0
  %8490 = vmatprep.mubr.f32.mxu0 0.0
  %8491 = vmatmul.mubr.f32.gmra.mrb[0].mxu0 %v8193
  %v8492 = vpop.f32.mrb[0].mxu0
  %v8493 = vadd.f32 0.0, %v8492
  %v8494 = vpop.f32.mrb[0].mxu0
  %8495 = vmatprep.mubr.f32.mxu0 0.0
  %8496 = vmatmul.mubr.f32.gmra.mrb[0].mxu0 %v8194
  %v8497 = vpop.f32.mrb[0].mxu0
  %v8498 = vadd.f32 0.0, %v8497
  %v8499 = vpop.f32.mrb[0].mxu0
  %8500 = vmatprep.mubr.f32.mxu0 0.0
  %8501 = vmatmul.mubr.f32.gmra.mrb[0].mxu0 %v8195
  %v8502 = vpop.f32.mrb[0].mxu0
  %v8503 = vadd.f32 0.0, %v8502
  %v8504 = vpop.f32.mrb[0].mxu0
  %8505 = vmatprep.mubr.f32.mxu0 0.0
  %8506 = vmatmul.mubr.f32.gmra.mrb[0].mxu0 %v8196
  %v8507 = vpop.f32.mrb[0].mxu0
  %v8508 = vadd.f32 0.0, %v8507
  %v8509 = vpop.f32.mrb[0].mxu0
  %8510 = vmatprep.mubr.f32.mxu0 0.0
  %8511 = vmatmul.mubr.f32.gmra.mrb[0].mxu0 %v8197
  %v8512 = vpop.f32.mrb[0].mxu0
  %v8513 = vadd.f32 0.0, %v8512
  %v8514 = vpop.f32.mrb[0].mxu0
  %8515 = vmatprep.mubr.f32.mxu0 0.0
  %8516 = vmatmul.mubr.f32.gmra.mrb[0].mxu0 %v8198
  %v8517 = vpop.f32.mrb[0].mxu0
  %v8518 = vadd.f32 0.0, %v8517
  %v8519 = vpop.f32.mrb[0].mxu0
  %8520 = vmatprep.mubr.f32.mxu0 0.0
  %8521 = vmatmul.mubr.f32.gmra.mrb[0].mxu0 %v8199
  %v8522 = vpop.f32.mrb[0].mxu0
  %v8523 = vadd.f32 0.0, %v8522
  %v8524 = vpop.f32.mrb[0].mxu0
  %8525 = vmatprep.mubr.f32.mxu0 0.0
  %8526 = vmatmul.mubr.f32.gmra.mrb[0].mxu0 %v8200
  %v8527 = vpop.f32.mrb[0].mxu0
  %v8528 = vadd.f32 0.0, %v8527
  %v8529 = vpop.f32.mrb[0].mxu0
  %8530 = vmatprep.mubr.f32.mxu0 0.0
  %8531 = vmatmul.mubr.f32.gmra.mrb[0].mxu0 %v8201
  %v8532 = vpop.f32.mrb[0].mxu0
  %v8533 = vadd.f32 0.0, %v8532
  %v8534 = vpop.f32.mrb[0].mxu0
  %8535 = vmatprep.mubr.f32.mxu0 0.0
  %8536 = vmatmul.mubr.f32.gmra.mrb[0].mxu0 %v8202
  %v8537 = vpop.f32.mrb[0].mxu0
  %v8538 = vadd.f32 0.0, %v8537
  %v8539 = vpop.f32.mrb[0].mxu0
  %8540 = vmatprep.mubr.f32.mxu0 0.0
  %8541 = vmatmul.mubr.f32.gmra.mrb[0].mxu0 %v8203
  %v8542 = vpop.f32.mrb[0].mxu0
  %v8543 = vadd.f32 0.0, %v8542
  %v8544 = vpop.f32.mrb[0].mxu0
  %8545 = vmatprep.mubr.f32.mxu0 0.0
  %8546 = vmatmul.mubr.f32.gmra.mrb[0].mxu0 %v8204
  %v8547 = vpop.f32.mrb[0].mxu0
  %v8548 = vadd.f32 0.0, %v8547
  %v8549 = vpop.f32.mrb[0].mxu0
  %8550 = vmatprep.mubr.f32.mxu0 0.0
  %8551 = vmatmul.mubr.f32.gmra.mrb[0].mxu0 %v8205
  %v8552 = vpop.f32.mrb[0].mxu0
  %v8553 = vadd.f32 0.0, %v8552
  %v8554 = vpop.f32.mrb[0].mxu0
  %8555 = vmatprep.mubr.f32.mxu0 0.0
  %8556 = vmatmul.mubr.f32.gmra.mrb[0].mxu0 %v8206
  %v8557 = vpop.f32.mrb[0].mxu0
  %v8558 = vadd.f32 0.0, %v8557
  %v8559 = vpop.f32.mrb[0].mxu0
  %8560 = vmatprep.mubr.f32.mxu0 0.0
  %8561 = vmatmul.mubr.f32.gmra.mrb[0].mxu0 %v8207
  %v8562 = vpop.f32.mrb[0].mxu0
  %v8563 = vadd.f32 0.0, %v8562
  %v8564 = vpop.f32.mrb[0].mxu0
  %8565 = vmatprep.mubr.f32.mxu0 0.0
  %8566 = vmatmul.mubr.f32.gmra.mrb[0].mxu0 %v8208
  %v8567 = vpop.f32.mrb[0].mxu0
  %v8568 = vadd.f32 0.0, %v8567
  %v8569 = vpop.f32.mrb[0].mxu0
  %8570 = vmatprep.mubr.f32.mxu0 0.0
  %8571 = vmatmul.mubr.f32.gmra.mrb[0].mxu0 %v8209
  %v8572 = vpop.f32.mrb[0].mxu0
  %v8573 = vadd.f32 0.0, %v8572
  %v8574 = vpop.f32.mrb[0].mxu0
  %8575 = vmatprep.mubr.f32.mxu0 0.0
  %8576 = vmatmul.mubr.f32.gmra.mrb[0].mxu0 %v8210
  %v8577 = vpop.f32.mrb[0].mxu0
  %v8578 = vadd.f32 0.0, %v8577
  %v8579 = vpop.f32.mrb[0].mxu0
  %8580 = vmatprep.mubr.f32.mxu0 0.0
  %8581 = vmatmul.mubr.f32.gmra.mrb[0].mxu0 %v8211
  %v8582 = vpop.f32.mrb[0].mxu0
  %v8583 = vadd.f32 0.0, %v8582
  %v8584 = vpop.f32.mrb[0].mxu0
  %8585 = vmatprep.mubr.f32.mxu0 0.0
  %8586 = vmatmul.mubr.f32.gmra.mrb[0].mxu0 %v8212
  %v8587 = vpop.f32.mrb[0].mxu0
  %v8588 = vadd.f32 0.0, %v8587
  %v8589 = vpop.f32.mrb[0].mxu0
  %8590 = vmatprep.mubr.f32.mxu0 0.0
  %8591 = vmatmul.mubr.f32.gmra.mrb[0].mxu0 %v8213
  %v8592 = vpop.f32.mrb[0].mxu0
  %v8593 = vadd.f32 0.0, %v8592
  %v8594 = vpop.f32.mrb[0].mxu0
  %8595 = vmatprep.mubr.f32.mxu0 0.0
  %8596 = vmatmul.mubr.f32.gmra.mrb[0].mxu0 %v8214
  %v8597 = vpop.f32.mrb[0].mxu0
  %v8598 = vadd.f32 0.0, %v8597
  %v8599 = vpop.f32.mrb[0].mxu0
  %8600 = vmatprep.mubr.f32.mxu0 0.0
  %8601 = vmatmul.mubr.f32.gmra.mrb[0].mxu0 %v8215
  %v8602 = vpop.f32.mrb[0].mxu0
  %v8603 = vadd.f32 0.0, %v8602
  %v8604 = vpop.f32.mrb[0].mxu0
  %8605 = vmatprep.mubr.f32.mxu0 0.0
  %8606 = vmatmul.mubr.f32.gmra.mrb[0].mxu0 %v8216
  %v8607 = vpop.f32.mrb[0].mxu0
  %v8608 = vadd.f32 0.0, %v8607
  %v8609 = vpop.f32.mrb[0].mxu0
  %8610 = vmatprep.mubr.f32.mxu0 0.0
  %8611 = vmatmul.mubr.f32.gmra.mrb[0].mxu0 %v8217
  %v8612 = vpop.f32.mrb[0].mxu0
  %v8613 = vadd.f32 0.0, %v8612
  %v8614 = vpop.f32.mrb[0].mxu0
  %8615 = vmatprep.mubr.f32.mxu0 0.0
  %8616 = vmatmul.mubr.f32.gmra.mrb[0].mxu0 %v8218
  %v8617 = vpop.f32.mrb[0].mxu0
  %v8618 = vadd.f32 0.0, %v8617
  %v8619 = vpop.f32.mrb[0].mxu0
  %8620 = vdwg.mxu0
  %v8621 = vadd.f32 %v8091, %v8303
  %v8622 = vadd.f32 %v8092, %v8308
  %v8623 = vadd.f32 %v8093, %v8313
  %v8624 = vadd.f32 %v8094, %v8318
  %v8625 = vadd.f32 %v8095, %v8323
  %v8626 = vadd.f32 %v8096, %v8328
  %v8627 = vadd.f32 %v8097, %v8333
  %v8628 = vadd.f32 %v8098, %v8338
  %v8629 = vadd.f32 %v8099, %v8343
  %v8630 = vadd.f32 %v8100, %v8348
  %v8631 = vadd.f32 %v8101, %v8353
  %v8632 = vadd.f32 %v8102, %v8358
  %v8633 = vadd.f32 %v8103, %v8363
  %v8634 = vadd.f32 %v8104, %v8368
  %v8635 = vadd.f32 %v8105, %v8373
  %v8636 = vadd.f32 %v8106, %v8378
  %v8637 = vadd.f32 %v8107, %v8383
  %v8638 = vadd.f32 %v8108, %v8388
  %v8639 = vadd.f32 %v8109, %v8393
  %v8640 = vadd.f32 %v8110, %v8398
  %v8641 = vadd.f32 %v8111, %v8403
  %v8642 = vadd.f32 %v8112, %v8408
  %v8643 = vadd.f32 %v8113, %v8413
  %v8644 = vadd.f32 %v8114, %v8418
  %v8645 = vadd.f32 %v8115, %v8423
  %v8646 = vadd.f32 %v8116, %v8428
  %v8647 = vadd.f32 %v8117, %v8433
  %v8648 = vadd.f32 %v8118, %v8438
  %v8649 = vadd.f32 %v8119, %v8443
  %v8650 = vadd.f32 %v8120, %v8448
  %v8651 = vadd.f32 %v8121, %v8453
  %v8652 = vadd.f32 %v8122, %v8458
  %v8653 = vadd.f32 %v8123, %v8463
  %v8654 = vadd.f32 %v8124, %v8468
  %v8655 = vadd.f32 %v8125, %v8473
  %v8656 = vadd.f32 %v8126, %v8478
  %v8657 = vadd.f32 %v8127, %v8483
  %v8658 = vadd.f32 %v8128, %v8488
  %v8659 = vadd.f32 %v8129, %v8493
  %v8660 = vadd.f32 %v8130, %v8498
  %v8661 = vadd.f32 %v8131, %v8503
  %v8662 = vadd.f32 %v8132, %v8508
  %v8663 = vadd.f32 %v8133, %v8513
  %v8664 = vadd.f32 %v8134, %v8518
  %v8665 = vadd.f32 %v8135, %v8523
  %v8666 = vadd.f32 %v8136, %v8528
  %v8667 = vadd.f32 %v8137, %v8533
  %v8668 = vadd.f32 %v8138, %v8538
  %v8669 = vadd.f32 %v8139, %v8543
  %v8670 = vadd.f32 %v8140, %v8548
  %v8671 = vadd.f32 %v8141, %v8553
  %v8672 = vadd.f32 %v8142, %v8558
  %v8673 = vadd.f32 %v8143, %v8563
  %v8674 = vadd.f32 %v8144, %v8568
  %v8675 = vadd.f32 %v8145, %v8573
  %v8676 = vadd.f32 %v8146, %v8578
  %v8677 = vadd.f32 %v8147, %v8583
  %v8678 = vadd.f32 %v8148, %v8588
  %v8679 = vadd.f32 %v8149, %v8593
  %v8680 = vadd.f32 %v8150, %v8598
  %v8681 = vadd.f32 %v8151, %v8603
  %v8682 = vadd.f32 %v8152, %v8608
  %v8683 = vadd.f32 %v8153, %v8613
  %v8684 = vadd.f32 %v8154, %v8618
  %s8685 = scalar_lea.vmem [#allocation3], 48
  %v8686 = vld [vmem:[%s8685] sm:$0xff]
  %v8687 = vld [vmem:[%s8685 + $0x8] sm:$0xff]
  %v8688 = vld [vmem:[%s8685 + $0x18] sm:$0xff]
  %v8689 = vld [vmem:[%s8685 + $0x20] sm:$0xff]
  %v8690 = vld [vmem:[%s8685 + $0x30] sm:$0xff]
  %v8691 = vld [vmem:[%s8685 + $0x38] sm:$0xff]
  %v8692 = vld [vmem:[%s8685 + $0x48] sm:$0xff]
  %v8693 = vld [vmem:[%s8685 + $0x50] sm:$0xff]
  %v8694 = vld [vmem:[%s8685 + $0x60] sm:$0xff]
  %v8695 = vld [vmem:[%s8685 + $0x68] sm:$0xff]
  %v8696 = vld [vmem:[%s8685 + $0x78] sm:$0xff]
  %v8697 = vld [vmem:[%s8685 + $0x80] sm:$0xff]
  %v8698 = vld [vmem:[%s8685 + $0x90] sm:$0xff]
  %v8699 = vld [vmem:[%s8685 + $0x98] sm:$0xff]
  %v8700 = vld [vmem:[%s8685 + $0xa8] sm:$0xff]
  %v8701 = vld [vmem:[%s8685 + $0xb0] sm:$0xff]
  %v8702 = vld [vmem:[%s8685 + $0xc0] sm:$0xff]
  %v8703 = vld [vmem:[%s8685 + $0xc8] sm:$0xff]
  %v8704 = vld [vmem:[%s8685 + $0xd8] sm:$0xff]
  %v8705 = vld [vmem:[%s8685 + $0xe0] sm:$0xff]
  %v8706 = vld [vmem:[%s8685 + $0xf0] sm:$0xff]
  %v8707 = vld [vmem:[%s8685 + $0xf8] sm:$0xff]
  %v8708 = vld [vmem:[%s8685 + $0x108] sm:$0xff]
  %v8709 = vld [vmem:[%s8685 + $0x110] sm:$0xff]
  %v8710 = vld [vmem:[%s8685 + $0x120] sm:$0xff]
  %v8711 = vld [vmem:[%s8685 + $0x128] sm:$0xff]
  %v8712 = vld [vmem:[%s8685 + $0x138] sm:$0xff]
  %v8713 = vld [vmem:[%s8685 + $0x140] sm:$0xff]
  %v8714 = vld [vmem:[%s8685 + $0x150] sm:$0xff]
  %v8715 = vld [vmem:[%s8685 + $0x158] sm:$0xff]
  %v8716 = vld [vmem:[%s8685 + $0x168] sm:$0xff]
  %v8717 = vld [vmem:[%s8685 + $0x170] sm:$0xff]
  %v8718 = vld [vmem:[%s8685 + $0x1b0] sm:$0xff]
  %v8719 = vld [vmem:[%s8685 + $0x1b8] sm:$0xff]
  %v8720 = vld [vmem:[%s8685 + $0x1c8] sm:$0xff]
  %v8721 = vld [vmem:[%s8685 + $0x1d0] sm:$0xff]
  %v8722 = vld [vmem:[%s8685 + $0x1e0] sm:$0xff]
  %v8723 = vld [vmem:[%s8685 + $0x1e8] sm:$0xff]
  %v8724 = vld [vmem:[%s8685 + $0x1f8] sm:$0xff]
  %v8725 = vld [vmem:[%s8685 + $0x200] sm:$0xff]
  %v8726 = vld [vmem:[%s8685 + $0x210] sm:$0xff]
  %v8727 = vld [vmem:[%s8685 + $0x218] sm:$0xff]
  %v8728 = vld [vmem:[%s8685 + $0x228] sm:$0xff]
  %v8729 = vld [vmem:[%s8685 + $0x230] sm:$0xff]
  %v8730 = vld [vmem:[%s8685 + $0x240] sm:$0xff]
  %v8731 = vld [vmem:[%s8685 + $0x248] sm:$0xff]
  %v8732 = vld [vmem:[%s8685 + $0x258] sm:$0xff]
  %v8733 = vld [vmem:[%s8685 + $0x260] sm:$0xff]
  %v8734 = vld [vmem:[%s8685 + $0x270] sm:$0xff]
  %v8735 = vld [vmem:[%s8685 + $0x278] sm:$0xff]
  %v8736 = vld [vmem:[%s8685 + $0x288] sm:$0xff]
  %v8737 = vld [vmem:[%s8685 + $0x290] sm:$0xff]
  %v8738 = vld [vmem:[%s8685 + $0x2a0] sm:$0xff]
  %v8739 = vld [vmem:[%s8685 + $0x2a8] sm:$0xff]
  %v8740 = vld [vmem:[%s8685 + $0x2b8] sm:$0xff]
  %v8741 = vld [vmem:[%s8685 + $0x2c0] sm:$0xff]
  %v8742 = vld [vmem:[%s8685 + $0x2d0] sm:$0xff]
  %v8743 = vld [vmem:[%s8685 + $0x2d8] sm:$0xff]
  %v8744 = vld [vmem:[%s8685 + $0x2e8] sm:$0xff]
  %v8745 = vld [vmem:[%s8685 + $0x2f0] sm:$0xff]
  %v8746 = vld [vmem:[%s8685 + $0x300] sm:$0xff]
  %v8747 = vld [vmem:[%s8685 + $0x308] sm:$0xff]
  %v8748 = vld [vmem:[%s8685 + $0x318] sm:$0xff]
  %v8749 = vld [vmem:[%s8685 + $0x320] sm:$0xff]
  %s8750 = scalar_lea.vmem %s5, 768
  %v8751 = vld [vmem:[%s8750] sm:$0xff]
  %v8752 = vld [vmem:[%s8750 + $0x8] sm:$0xff]
  %v8753 = vld [vmem:[%s8750 + $0x10] sm:$0xff]
  %v8754 = vld [vmem:[%s8750 + $0x18] sm:$0xff]
  %v8755 = vld [vmem:[%s8750 + $0x20] sm:$0xff]
  %v8756 = vld [vmem:[%s8750 + $0x28] sm:$0xff]
  %v8757 = vld [vmem:[%s8750 + $0x30] sm:$0xff]
  %v8758 = vld [vmem:[%s8750 + $0x38] sm:$0xff]
  %v8759 = vld [vmem:[%s8750 + $0x40] sm:$0xff]
  %v8760 = vld [vmem:[%s8750 + $0x48] sm:$0xff]
  %v8761 = vld [vmem:[%s8750 + $0x50] sm:$0xff]
  %v8762 = vld [vmem:[%s8750 + $0x58] sm:$0xff]
  %v8763 = vld [vmem:[%s8750 + $0x60] sm:$0xff]
  %v8764 = vld [vmem:[%s8750 + $0x68] sm:$0xff]
  %v8765 = vld [vmem:[%s8750 + $0x70] sm:$0xff]
  %v8766 = vld [vmem:[%s8750 + $0x78] sm:$0xff]
  %8767 = vmatprep.subr.mxu0 0.0
  %8768 = vmatpush1.msra.mxu0 %v8751
  %8769 = vmatprep.subr.mxu0 0.0
  %8770 = vmatpush1.msra.mxu0 %v8752
  %8771 = vmatprep.subr.mxu0 0.0
  %8772 = vmatpush1.msra.mxu0 %v8753
  %8773 = vmatprep.subr.mxu0 0.0
  %8774 = vmatpush1.msra.mxu0 %v8754
  %8775 = vmatprep.subr.mxu0 0.0
  %8776 = vmatpush1.msra.mxu0 %v8755
  %8777 = vmatprep.subr.mxu0 0.0
  %8778 = vmatpush1.msra.mxu0 %v8756
  %8779 = vmatprep.subr.mxu0 0.0
  %8780 = vmatpush1.msra.mxu0 %v8757
  %8781 = vmatprep.subr.mxu0 0.0
  %8782 = vmatpush1.msra.mxu0 %v8758
  %8783 = vmatprep.subr.mxu0 0.0
  %8784 = vmatpush1.msra.mxu0 %v8759
  %8785 = vmatprep.subr.mxu0 0.0
  %8786 = vmatpush1.msra.mxu0 %v8760
  %8787 = vmatprep.subr.mxu0 0.0
  %8788 = vmatpush1.msra.mxu0 %v8761
  %8789 = vmatprep.subr.mxu0 0.0
  %8790 = vmatpush1.msra.mxu0 %v8762
  %8791 = vmatprep.subr.mxu0 0.0
  %8792 = vmatpush1.msra.mxu0 %v8763
  %8793 = vmatprep.subr.mxu0 0.0
  %8794 = vmatpush1.msra.mxu0 %v8764
  %8795 = vmatprep.subr.mxu0 0.0
  %8796 = vmatpush1.msra.mxu0 %v8765
  %8797 = vmatprep.subr.mxu0 0.0
  %8798 = vmatpush1.msra.mxu0 %v8766
  %8799 = vmatprep.subr.mxu0 0.0
  %8800 = vmatpush1.msra.mxu0 0.0
  %8801 = vmatprep.subr.mxu0 0.0
  %8802 = vmatpush1.msra.mxu0 0.0
  %8803 = vmatprep.subr.mxu0 0.0
  %8804 = vmatpush1.msra.mxu0 0.0
  %8805 = vmatprep.subr.mxu0 0.0
  %8806 = vmatpush1.msra.mxu0 0.0
  %8807 = vmatprep.subr.mxu0 0.0
  %8808 = vmatpush1.msra.mxu0 0.0
  %8809 = vmatprep.subr.mxu0 0.0
  %8810 = vmatpush1.msra.mxu0 0.0
  %8811 = vmatprep.subr.mxu0 0.0
  %8812 = vmatpush1.msra.mxu0 0.0
  %8813 = vmatprep.subr.mxu0 0.0
  %8814 = vmatpush1.msra.mxu0 0.0
  %8815 = vmatprep.subr.mxu0 0.0
  %8816 = vmatpush1.msra.mxu0 0.0
  %8817 = vmatprep.subr.mxu0 0.0
  %8818 = vmatpush1.msra.mxu0 0.0
  %8819 = vmatprep.subr.mxu0 0.0
  %8820 = vmatpush1.msra.mxu0 0.0
  %8821 = vmatprep.subr.mxu0 0.0
  %8822 = vmatpush1.msra.mxu0 0.0
  %8823 = vmatprep.subr.mxu0 0.0
  %8824 = vmatpush1.msra.mxu0 0.0
  %8825 = vmatprep.subr.mxu0 0.0
  %8826 = vmatpush1.msra.mxu0 0.0
  %8827 = vmatprep.subr.mxu0 0.0
  %8828 = vmatpush1.msra.mxu0 0.0
  %8829 = vmatprep.subr.mxu0 0.0
  %8830 = vmatpush1.msra.mxu0 0.0
  %8831 = vmatprep.mubr.f32.mxu0 0.0
  %8832 = vmatmul.mubr.f32.gmra.mrb[0].mxu0 %v8686
  %v8833 = vpop.f32.mrb[0].mxu0
  %v8834 = vadd.f32 0.0, %v8833
  %v8835 = vpop.f32.mrb[0].mxu0
  %8836 = vmatprep.mubr.f32.mxu0 0.0
  %8837 = vmatmul.mubr.f32.gmra.mrb[0].mxu0 %v8687
  %v8838 = vpop.f32.mrb[0].mxu0
  %v8839 = vadd.f32 0.0, %v8838
  %v8840 = vpop.f32.mrb[0].mxu0
  %8841 = vmatprep.mubr.f32.mxu0 0.0
  %8842 = vmatmul.mubr.f32.gmra.mrb[0].mxu0 %v8688
  %v8843 = vpop.f32.mrb[0].mxu0
  %v8844 = vadd.f32 0.0, %v8843
  %v8845 = vpop.f32.mrb[0].mxu0
  %8846 = vmatprep.mubr.f32.mxu0 0.0
  %8847 = vmatmul.mubr.f32.gmra.mrb[0].mxu0 %v8689
  %v8848 = vpop.f32.mrb[0].mxu0
  %v8849 = vadd.f32 0.0, %v8848
  %v8850 = vpop.f32.mrb[0].mxu0
  %8851 = vmatprep.mubr.f32.mxu0 0.0
  %8852 = vmatmul.mubr.f32.gmra.mrb[0].mxu0 %v8690
  %v8853 = vpop.f32.mrb[0].mxu0
  %v8854 = vadd.f32 0.0, %v8853
  %v8855 = vpop.f32.mrb[0].mxu0
  %8856 = vmatprep.mubr.f32.mxu0 0.0
  %8857 = vmatmul.mubr.f32.gmra.mrb[0].mxu0 %v8691
  %v8858 = vpop.f32.mrb[0].mxu0
  %v8859 = vadd.f32 0.0, %v8858
  %v8860 = vpop.f32.mrb[0].mxu0
  %8861 = vmatprep.mubr.f32.mxu0 0.0
  %8862 = vmatmul.mubr.f32.gmra.mrb[0].mxu0 %v8692
  %v8863 = vpop.f32.mrb[0].mxu0
  %v8864 = vadd.f32 0.0, %v8863
  %v8865 = vpop.f32.mrb[0].mxu0
  %8866 = vmatprep.mubr.f32.mxu0 0.0
  %8867 = vmatmul.mubr.f32.gmra.mrb[0].mxu0 %v8693
  %v8868 = vpop.f32.mrb[0].mxu0
  %v8869 = vadd.f32 0.0, %v8868
  %v8870 = vpop.f32.mrb[0].mxu0
  %8871 = vmatprep.mubr.f32.mxu0 0.0
  %8872 = vmatmul.mubr.f32.gmra.mrb[0].mxu0 %v8694
  %v8873 = vpop.f32.mrb[0].mxu0
  %v8874 = vadd.f32 0.0, %v8873
  %v8875 = vpop.f32.mrb[0].mxu0
  %8876 = vmatprep.mubr.f32.mxu0 0.0
  %8877 = vmatmul.mubr.f32.gmra.mrb[0].mxu0 %v8695
  %v8878 = vpop.f32.mrb[0].mxu0
  %v8879 = vadd.f32 0.0, %v8878
  %v8880 = vpop.f32.mrb[0].mxu0
  %8881 = vmatprep.mubr.f32.mxu0 0.0
  %8882 = vmatmul.mubr.f32.gmra.mrb[0].mxu0 %v8696
  %v8883 = vpop.f32.mrb[0].mxu0
  %v8884 = vadd.f32 0.0, %v8883
  %v8885 = vpop.f32.mrb[0].mxu0
  %8886 = vmatprep.mubr.f32.mxu0 0.0
  %8887 = vmatmul.mubr.f32.gmra.mrb[0].mxu0 %v8697
  %v8888 = vpop.f32.mrb[0].mxu0
  %v8889 = vadd.f32 0.0, %v8888
  %v8890 = vpop.f32.mrb[0].mxu0
  %8891 = vmatprep.mubr.f32.mxu0 0.0
  %8892 = vmatmul.mubr.f32.gmra.mrb[0].mxu0 %v8698
  %v8893 = vpop.f32.mrb[0].mxu0
  %v8894 = vadd.f32 0.0, %v8893
  %v8895 = vpop.f32.mrb[0].mxu0
  %8896 = vmatprep.mubr.f32.mxu0 0.0
  %8897 = vmatmul.mubr.f32.gmra.mrb[0].mxu0 %v8699
  %v8898 = vpop.f32.mrb[0].mxu0
  %v8899 = vadd.f32 0.0, %v8898
  %v8900 = vpop.f32.mrb[0].mxu0
  %8901 = vmatprep.mubr.f32.mxu0 0.0
  %8902 = vmatmul.mubr.f32.gmra.mrb[0].mxu0 %v8700
  %v8903 = vpop.f32.mrb[0].mxu0
  %v8904 = vadd.f32 0.0, %v8903
  %v8905 = vpop.f32.mrb[0].mxu0
  %8906 = vmatprep.mubr.f32.mxu0 0.0
  %8907 = vmatmul.mubr.f32.gmra.mrb[0].mxu0 %v8701
  %v8908 = vpop.f32.mrb[0].mxu0
  %v8909 = vadd.f32 0.0, %v8908
  %v8910 = vpop.f32.mrb[0].mxu0
  %8911 = vmatprep.mubr.f32.mxu0 0.0
  %8912 = vmatmul.mubr.f32.gmra.mrb[0].mxu0 %v8702
  %v8913 = vpop.f32.mrb[0].mxu0
  %v8914 = vadd.f32 0.0, %v8913
  %v8915 = vpop.f32.mrb[0].mxu0
  %8916 = vmatprep.mubr.f32.mxu0 0.0
  %8917 = vmatmul.mubr.f32.gmra.mrb[0].mxu0 %v8703
  %v8918 = vpop.f32.mrb[0].mxu0
  %v8919 = vadd.f32 0.0, %v8918
  %v8920 = vpop.f32.mrb[0].mxu0
  %8921 = vmatprep.mubr.f32.mxu0 0.0
  %8922 = vmatmul.mubr.f32.gmra.mrb[0].mxu0 %v8704
  %v8923 = vpop.f32.mrb[0].mxu0
  %v8924 = vadd.f32 0.0, %v8923
  %v8925 = vpop.f32.mrb[0].mxu0
  %8926 = vmatprep.mubr.f32.mxu0 0.0
  %8927 = vmatmul.mubr.f32.gmra.mrb[0].mxu0 %v8705
  %v8928 = vpop.f32.mrb[0].mxu0
  %v8929 = vadd.f32 0.0, %v8928
  %v8930 = vpop.f32.mrb[0].mxu0
  %8931 = vmatprep.mubr.f32.mxu0 0.0
  %8932 = vmatmul.mubr.f32.gmra.mrb[0].mxu0 %v8706
  %v8933 = vpop.f32.mrb[0].mxu0
  %v8934 = vadd.f32 0.0, %v8933
  %v8935 = vpop.f32.mrb[0].mxu0
  %8936 = vmatprep.mubr.f32.mxu0 0.0
  %8937 = vmatmul.mubr.f32.gmra.mrb[0].mxu0 %v8707
  %v8938 = vpop.f32.mrb[0].mxu0
  %v8939 = vadd.f32 0.0, %v8938
  %v8940 = vpop.f32.mrb[0].mxu0
  %8941 = vmatprep.mubr.f32.mxu0 0.0
  %8942 = vmatmul.mubr.f32.gmra.mrb[0].mxu0 %v8708
  %v8943 = vpop.f32.mrb[0].mxu0
  %v8944 = vadd.f32 0.0, %v8943
  %v8945 = vpop.f32.mrb[0].mxu0
  %8946 = vmatprep.mubr.f32.mxu0 0.0
  %8947 = vmatmul.mubr.f32.gmra.mrb[0].mxu0 %v8709
  %v8948 = vpop.f32.mrb[0].mxu0
  %v8949 = vadd.f32 0.0, %v8948
  %v8950 = vpop.f32.mrb[0].mxu0
  %8951 = vmatprep.mubr.f32.mxu0 0.0
  %8952 = vmatmul.mubr.f32.gmra.mrb[0].mxu0 %v8710
  %v8953 = vpop.f32.mrb[0].mxu0
  %v8954 = vadd.f32 0.0, %v8953
  %v8955 = vpop.f32.mrb[0].mxu0
  %8956 = vmatprep.mubr.f32.mxu0 0.0
  %8957 = vmatmul.mubr.f32.gmra.mrb[0].mxu0 %v8711
  %v8958 = vpop.f32.mrb[0].mxu0
  %v8959 = vadd.f32 0.0, %v8958
  %v8960 = vpop.f32.mrb[0].mxu0
  %8961 = vmatprep.mubr.f32.mxu0 0.0
  %8962 = vmatmul.mubr.f32.gmra.mrb[0].mxu0 %v8712
  %v8963 = vpop.f32.mrb[0].mxu0
  %v8964 = vadd.f32 0.0, %v8963
  %v8965 = vpop.f32.mrb[0].mxu0
  %8966 = vmatprep.mubr.f32.mxu0 0.0
  %8967 = vmatmul.mubr.f32.gmra.mrb[0].mxu0 %v8713
  %v8968 = vpop.f32.mrb[0].mxu0
  %v8969 = vadd.f32 0.0, %v8968
  %v8970 = vpop.f32.mrb[0].mxu0
  %8971 = vmatprep.mubr.f32.mxu0 0.0
  %8972 = vmatmul.mubr.f32.gmra.mrb[0].mxu0 %v8714
  %v8973 = vpop.f32.mrb[0].mxu0
  %v8974 = vadd.f32 0.0, %v8973
  %v8975 = vpop.f32.mrb[0].mxu0
  %8976 = vmatprep.mubr.f32.mxu0 0.0
  %8977 = vmatmul.mubr.f32.gmra.mrb[0].mxu0 %v8715
  %v8978 = vpop.f32.mrb[0].mxu0
  %v8979 = vadd.f32 0.0, %v8978
  %v8980 = vpop.f32.mrb[0].mxu0
  %8981 = vmatprep.mubr.f32.mxu0 0.0
  %8982 = vmatmul.mubr.f32.gmra.mrb[0].mxu0 %v8716
  %v8983 = vpop.f32.mrb[0].mxu0
  %v8984 = vadd.f32 0.0, %v8983
  %v8985 = vpop.f32.mrb[0].mxu0
  %8986 = vmatprep.mubr.f32.mxu0 0.0
  %8987 = vmatmul.mubr.f32.gmra.mrb[0].mxu0 %v8717
  %v8988 = vpop.f32.mrb[0].mxu0
  %v8989 = vadd.f32 0.0, %v8988
  %v8990 = vpop.f32.mrb[0].mxu0
  %8991 = vmatprep.mubr.f32.mxu0 0.0
  %8992 = vmatmul.mubr.f32.gmra.mrb[0].mxu0 %v8718
  %v8993 = vpop.f32.mrb[0].mxu0
  %v8994 = vadd.f32 0.0, %v8993
  %v8995 = vpop.f32.mrb[0].mxu0
  %8996 = vmatprep.mubr.f32.mxu0 0.0
  %8997 = vmatmul.mubr.f32.gmra.mrb[0].mxu0 %v8719
  %v8998 = vpop.f32.mrb[0].mxu0
  %v8999 = vadd.f32 0.0, %v8998
  %v9000 = vpop.f32.mrb[0].mxu0
  %9001 = vmatprep.mubr.f32.mxu0 0.0
  %9002 = vmatmul.mubr.f32.gmra.mrb[0].mxu0 %v8720
  %v9003 = vpop.f32.mrb[0].mxu0
  %v9004 = vadd.f32 0.0, %v9003
  %v9005 = vpop.f32.mrb[0].mxu0
  %9006 = vmatprep.mubr.f32.mxu0 0.0
  %9007 = vmatmul.mubr.f32.gmra.mrb[0].mxu0 %v8721
  %v9008 = vpop.f32.mrb[0].mxu0
  %v9009 = vadd.f32 0.0, %v9008
  %v9010 = vpop.f32.mrb[0].mxu0
  %9011 = vmatprep.mubr.f32.mxu0 0.0
  %9012 = vmatmul.mubr.f32.gmra.mrb[0].mxu0 %v8722
  %v9013 = vpop.f32.mrb[0].mxu0
  %v9014 = vadd.f32 0.0, %v9013
  %v9015 = vpop.f32.mrb[0].mxu0
  %9016 = vmatprep.mubr.f32.mxu0 0.0
  %9017 = vmatmul.mubr.f32.gmra.mrb[0].mxu0 %v8723
  %v9018 = vpop.f32.mrb[0].mxu0
  %v9019 = vadd.f32 0.0, %v9018
  %v9020 = vpop.f32.mrb[0].mxu0
  %9021 = vmatprep.mubr.f32.mxu0 0.0
  %9022 = vmatmul.mubr.f32.gmra.mrb[0].mxu0 %v8724
  %v9023 = vpop.f32.mrb[0].mxu0
  %v9024 = vadd.f32 0.0, %v9023
  %v9025 = vpop.f32.mrb[0].mxu0
  %9026 = vmatprep.mubr.f32.mxu0 0.0
  %9027 = vmatmul.mubr.f32.gmra.mrb[0].mxu0 %v8725
  %v9028 = vpop.f32.mrb[0].mxu0
  %v9029 = vadd.f32 0.0, %v9028
  %v9030 = vpop.f32.mrb[0].mxu0
  %9031 = vmatprep.mubr.f32.mxu0 0.0
  %9032 = vmatmul.mubr.f32.gmra.mrb[0].mxu0 %v8726
  %v9033 = vpop.f32.mrb[0].mxu0
  %v9034 = vadd.f32 0.0, %v9033
  %v9035 = vpop.f32.mrb[0].mxu0
  %9036 = vmatprep.mubr.f32.mxu0 0.0
  %9037 = vmatmul.mubr.f32.gmra.mrb[0].mxu0 %v8727
  %v9038 = vpop.f32.mrb[0].mxu0
  %v9039 = vadd.f32 0.0, %v9038
  %v9040 = vpop.f32.mrb[0].mxu0
  %9041 = vmatprep.mubr.f32.mxu0 0.0
  %9042 = vmatmul.mubr.f32.gmra.mrb[0].mxu0 %v8728
  %v9043 = vpop.f32.mrb[0].mxu0
  %v9044 = vadd.f32 0.0, %v9043
  %v9045 = vpop.f32.mrb[0].mxu0
  %9046 = vmatprep.mubr.f32.mxu0 0.0
  %9047 = vmatmul.mubr.f32.gmra.mrb[0].mxu0 %v8729
  %v9048 = vpop.f32.mrb[0].mxu0
  %v9049 = vadd.f32 0.0, %v9048
  %v9050 = vpop.f32.mrb[0].mxu0
  %9051 = vmatprep.mubr.f32.mxu0 0.0
  %9052 = vmatmul.mubr.f32.gmra.mrb[0].mxu0 %v8730
  %v9053 = vpop.f32.mrb[0].mxu0
  %v9054 = vadd.f32 0.0, %v9053
  %v9055 = vpop.f32.mrb[0].mxu0
  %9056 = vmatprep.mubr.f32.mxu0 0.0
  %9057 = vmatmul.mubr.f32.gmra.mrb[0].mxu0 %v8731
  %v9058 = vpop.f32.mrb[0].mxu0
  %v9059 = vadd.f32 0.0, %v9058
  %v9060 = vpop.f32.mrb[0].mxu0
  %9061 = vmatprep.mubr.f32.mxu0 0.0
  %9062 = vmatmul.mubr.f32.gmra.mrb[0].mxu0 %v8732
  %v9063 = vpop.f32.mrb[0].mxu0
  %v9064 = vadd.f32 0.0, %v9063
  %v9065 = vpop.f32.mrb[0].mxu0
  %9066 = vmatprep.mubr.f32.mxu0 0.0
  %9067 = vmatmul.mubr.f32.gmra.mrb[0].mxu0 %v8733
  %v9068 = vpop.f32.mrb[0].mxu0
  %v9069 = vadd.f32 0.0, %v9068
  %v9070 = vpop.f32.mrb[0].mxu0
  %9071 = vmatprep.mubr.f32.mxu0 0.0
  %9072 = vmatmul.mubr.f32.gmra.mrb[0].mxu0 %v8734
  %v9073 = vpop.f32.mrb[0].mxu0
  %v9074 = vadd.f32 0.0, %v9073
  %v9075 = vpop.f32.mrb[0].mxu0
  %9076 = vmatprep.mubr.f32.mxu0 0.0
  %9077 = vmatmul.mubr.f32.gmra.mrb[0].mxu0 %v8735
  %v9078 = vpop.f32.mrb[0].mxu0
  %v9079 = vadd.f32 0.0, %v9078
  %v9080 = vpop.f32.mrb[0].mxu0
  %9081 = vmatprep.mubr.f32.mxu0 0.0
  %9082 = vmatmul.mubr.f32.gmra.mrb[0].mxu0 %v8736
  %v9083 = vpop.f32.mrb[0].mxu0
  %v9084 = vadd.f32 0.0, %v9083
  %v9085 = vpop.f32.mrb[0].mxu0
  %9086 = vmatprep.mubr.f32.mxu0 0.0
  %9087 = vmatmul.mubr.f32.gmra.mrb[0].mxu0 %v8737
  %v9088 = vpop.f32.mrb[0].mxu0
  %v9089 = vadd.f32 0.0, %v9088
  %v9090 = vpop.f32.mrb[0].mxu0
  %9091 = vmatprep.mubr.f32.mxu0 0.0
  %9092 = vmatmul.mubr.f32.gmra.mrb[0].mxu0 %v8738
  %v9093 = vpop.f32.mrb[0].mxu0
  %v9094 = vadd.f32 0.0, %v9093
  %v9095 = vpop.f32.mrb[0].mxu0
  %9096 = vmatprep.mubr.f32.mxu0 0.0
  %9097 = vmatmul.mubr.f32.gmra.mrb[0].mxu0 %v8739
  %v9098 = vpop.f32.mrb[0].mxu0
  %v9099 = vadd.f32 0.0, %v9098
  %v9100 = vpop.f32.mrb[0].mxu0
  %9101 = vmatprep.mubr.f32.mxu0 0.0
  %9102 = vmatmul.mubr.f32.gmra.mrb[0].mxu0 %v8740
  %v9103 = vpop.f32.mrb[0].mxu0
  %v9104 = vadd.f32 0.0, %v9103
  %v9105 = vpop.f32.mrb[0].mxu0
  %9106 = vmatprep.mubr.f32.mxu0 0.0
  %9107 = vmatmul.mubr.f32.gmra.mrb[0].mxu0 %v8741
  %v9108 = vpop.f32.mrb[0].mxu0
  %v9109 = vadd.f32 0.0, %v9108
  %v9110 = vpop.f32.mrb[0].mxu0
  %9111 = vmatprep.mubr.f32.mxu0 0.0
  %9112 = vmatmul.mubr.f32.gmra.mrb[0].mxu0 %v8742
  %v9113 = vpop.f32.mrb[0].mxu0
  %v9114 = vadd.f32 0.0, %v9113
  %v9115 = vpop.f32.mrb[0].mxu0
  %9116 = vmatprep.mubr.f32.mxu0 0.0
  %9117 = vmatmul.mubr.f32.gmra.mrb[0].mxu0 %v8743
  %v9118 = vpop.f32.mrb[0].mxu0
  %v9119 = vadd.f32 0.0, %v9118
  %v9120 = vpop.f32.mrb[0].mxu0
  %9121 = vmatprep.mubr.f32.mxu0 0.0
  %9122 = vmatmul.mubr.f32.gmra.mrb[0].mxu0 %v8744
  %v9123 = vpop.f32.mrb[0].mxu0
  %v9124 = vadd.f32 0.0, %v9123
  %v9125 = vpop.f32.mrb[0].mxu0
  %9126 = vmatprep.mubr.f32.mxu0 0.0
  %9127 = vmatmul.mubr.f32.gmra.mrb[0].mxu0 %v8745
  %v9128 = vpop.f32.mrb[0].mxu0
  %v9129 = vadd.f32 0.0, %v9128
  %v9130 = vpop.f32.mrb[0].mxu0
  %9131 = vmatprep.mubr.f32.mxu0 0.0
  %9132 = vmatmul.mubr.f32.gmra.mrb[0].mxu0 %v8746
  %v9133 = vpop.f32.mrb[0].mxu0
  %v9134 = vadd.f32 0.0, %v9133
  %v9135 = vpop.f32.mrb[0].mxu0
  %9136 = vmatprep.mubr.f32.mxu0 0.0
  %9137 = vmatmul.mubr.f32.gmra.mrb[0].mxu0 %v8747
  %v9138 = vpop.f32.mrb[0].mxu0
  %v9139 = vadd.f32 0.0, %v9138
  %v9140 = vpop.f32.mrb[0].mxu0
  %9141 = vmatprep.mubr.f32.mxu0 0.0
  %9142 = vmatmul.mubr.f32.gmra.mrb[0].mxu0 %v8748
  %v9143 = vpop.f32.mrb[0].mxu0
  %v9144 = vadd.f32 0.0, %v9143
  %v9145 = vpop.f32.mrb[0].mxu0
  %9146 = vmatprep.mubr.f32.mxu0 0.0
  %9147 = vmatmul.mubr.f32.gmra.mrb[0].mxu0 %v8749
  %v9148 = vpop.f32.mrb[0].mxu0
  %v9149 = vadd.f32 0.0, %v9148
  %v9150 = vpop.f32.mrb[0].mxu0
  %9151 = vdwg.mxu0
  %v9152 = vadd.f32 %v8621, %v8834
  %v9153 = vadd.f32 %v8622, %v8839
  %v9154 = vadd.f32 %v8623, %v8844
  %v9155 = vadd.f32 %v8624, %v8849
  %v9156 = vadd.f32 %v8625, %v8854
  %v9157 = vadd.f32 %v8626, %v8859
  %v9158 = vadd.f32 %v8627, %v8864
  %v9159 = vadd.f32 %v8628, %v8869
  %v9160 = vadd.f32 %v8629, %v8874
  %v9161 = vadd.f32 %v8630, %v8879
  %v9162 = vadd.f32 %v8631, %v8884
  %v9163 = vadd.f32 %v8632, %v8889
  %v9164 = vadd.f32 %v8633, %v8894
  %v9165 = vadd.f32 %v8634, %v8899
  %v9166 = vadd.f32 %v8635, %v8904
  %v9167 = vadd.f32 %v8636, %v8909
  %v9168 = vadd.f32 %v8637, %v8914
  %v9169 = vadd.f32 %v8638, %v8919
  %v9170 = vadd.f32 %v8639, %v8924
  %v9171 = vadd.f32 %v8640, %v8929
  %v9172 = vadd.f32 %v8641, %v8934
  %v9173 = vadd.f32 %v8642, %v8939
  %v9174 = vadd.f32 %v8643, %v8944
  %v9175 = vadd.f32 %v8644, %v8949
  %v9176 = vadd.f32 %v8645, %v8954
  %v9177 = vadd.f32 %v8646, %v8959
  %v9178 = vadd.f32 %v8647, %v8964
  %v9179 = vadd.f32 %v8648, %v8969
  %v9180 = vadd.f32 %v8649, %v8974
  %v9181 = vadd.f32 %v8650, %v8979
  %v9182 = vadd.f32 %v8651, %v8984
  %v9183 = vadd.f32 %v8652, %v8989
  %v9184 = vadd.f32 %v8653, %v8994
  %v9185 = vadd.f32 %v8654, %v8999
  %v9186 = vadd.f32 %v8655, %v9004
  %v9187 = vadd.f32 %v8656, %v9009
  %v9188 = vadd.f32 %v8657, %v9014
  %v9189 = vadd.f32 %v8658, %v9019
  %v9190 = vadd.f32 %v8659, %v9024
  %v9191 = vadd.f32 %v8660, %v9029
  %v9192 = vadd.f32 %v8661, %v9034
  %v9193 = vadd.f32 %v8662, %v9039
  %v9194 = vadd.f32 %v8663, %v9044
  %v9195 = vadd.f32 %v8664, %v9049
  %v9196 = vadd.f32 %v8665, %v9054
  %v9197 = vadd.f32 %v8666, %v9059
  %v9198 = vadd.f32 %v8667, %v9064
  %v9199 = vadd.f32 %v8668, %v9069
  %v9200 = vadd.f32 %v8669, %v9074
  %v9201 = vadd.f32 %v8670, %v9079
  %v9202 = vadd.f32 %v8671, %v9084
  %v9203 = vadd.f32 %v8672, %v9089
  %v9204 = vadd.f32 %v8673, %v9094
  %v9205 = vadd.f32 %v8674, %v9099
  %v9206 = vadd.f32 %v8675, %v9104
  %v9207 = vadd.f32 %v8676, %v9109
  %v9208 = vadd.f32 %v8677, %v9114
  %v9209 = vadd.f32 %v8678, %v9119
  %v9210 = vadd.f32 %v8679, %v9124
  %v9211 = vadd.f32 %v8680, %v9129
  %v9212 = vadd.f32 %v8681, %v9134
  %v9213 = vadd.f32 %v8682, %v9139
  %v9214 = vadd.f32 %v8683, %v9144
  %v9215 = vadd.f32 %v8684, %v9149
  %v9216 = vld [vmem:[%s8685 + $0x1] sm:$0xff]
  %v9217 = vld [vmem:[%s8685 + $0x9] sm:$0xff]
  %v9218 = vld [vmem:[%s8685 + $0x19] sm:$0xff]
  %v9219 = vld [vmem:[%s8685 + $0x21] sm:$0xff]
  %v9220 = vld [vmem:[%s8685 + $0x31] sm:$0xff]
  %v9221 = vld [vmem:[%s8685 + $0x39] sm:$0xff]
  %v9222 = vld [vmem:[%s8685 + $0x49] sm:$0xff]
  %v9223 = vld [vmem:[%s8685 + $0x51] sm:$0xff]
  %v9224 = vld [vmem:[%s8685 + $0x61] sm:$0xff]
  %v9225 = vld [vmem:[%s8685 + $0x69] sm:$0xff]
  %v9226 = vld [vmem:[%s8685 + $0x79] sm:$0xff]
  %v9227 = vld [vmem:[%s8685 + $0x81] sm:$0xff]
  %v9228 = vld [vmem:[%s8685 + $0x91] sm:$0xff]
  %v9229 = vld [vmem:[%s8685 + $0x99] sm:$0xff]
  %v9230 = vld [vmem:[%s8685 + $0xa9] sm:$0xff]
  %v9231 = vld [vmem:[%s8685 + $0xb1] sm:$0xff]
  %v9232 = vld [vmem:[%s8685 + $0xc1] sm:$0xff]
  %v9233 = vld [vmem:[%s8685 + $0xc9] sm:$0xff]
  %v9234 = vld [vmem:[%s8685 + $0xd9] sm:$0xff]
  %v9235 = vld [vmem:[%s8685 + $0xe1] sm:$0xff]
  %v9236 = vld [vmem:[%s8685 + $0xf1] sm:$0xff]
  %v9237 = vld [vmem:[%s8685 + $0xf9] sm:$0xff]
  %v9238 = vld [vmem:[%s8685 + $0x109] sm:$0xff]
  %v9239 = vld [vmem:[%s8685 + $0x111] sm:$0xff]
  %v9240 = vld [vmem:[%s8685 + $0x121] sm:$0xff]
  %v9241 = vld [vmem:[%s8685 + $0x129] sm:$0xff]
  %v9242 = vld [vmem:[%s8685 + $0x139] sm:$0xff]
  %v9243 = vld [vmem:[%s8685 + $0x141] sm:$0xff]
  %v9244 = vld [vmem:[%s8685 + $0x151] sm:$0xff]
  %v9245 = vld [vmem:[%s8685 + $0x159] sm:$0xff]
  %v9246 = vld [vmem:[%s8685 + $0x169] sm:$0xff]
  %v9247 = vld [vmem:[%s8685 + $0x171] sm:$0xff]
  %v9248 = vld [vmem:[%s8685 + $0x1b1] sm:$0xff]
  %v9249 = vld [vmem:[%s8685 + $0x1b9] sm:$0xff]
  %v9250 = vld [vmem:[%s8685 + $0x1c9] sm:$0xff]
  %v9251 = vld [vmem:[%s8685 + $0x1d1] sm:$0xff]
  %v9252 = vld [vmem:[%s8685 + $0x1e1] sm:$0xff]
  %v9253 = vld [vmem:[%s8685 + $0x1e9] sm:$0xff]
  %v9254 = vld [vmem:[%s8685 + $0x1f9] sm:$0xff]
  %v9255 = vld [vmem:[%s8685 + $0x201] sm:$0xff]
  %v9256 = vld [vmem:[%s8685 + $0x211] sm:$0xff]
  %v9257 = vld [vmem:[%s8685 + $0x219] sm:$0xff]
  %v9258 = vld [vmem:[%s8685 + $0x229] sm:$0xff]
  %v9259 = vld [vmem:[%s8685 + $0x231] sm:$0xff]
  %v9260 = vld [vmem:[%s8685 + $0x241] sm:$0xff]
  %v9261 = vld [vmem:[%s8685 + $0x249] sm:$0xff]
  %v9262 = vld [vmem:[%s8685 + $0x259] sm:$0xff]
  %v9263 = vld [vmem:[%s8685 + $0x261] sm:$0xff]
  %v9264 = vld [vmem:[%s8685 + $0x271] sm:$0xff]
  %v9265 = vld [vmem:[%s8685 + $0x279] sm:$0xff]
  %v9266 = vld [vmem:[%s8685 + $0x289] sm:$0xff]
  %v9267 = vld [vmem:[%s8685 + $0x291] sm:$0xff]
  %v9268 = vld [vmem:[%s8685 + $0x2a1] sm:$0xff]
  %v9269 = vld [vmem:[%s8685 + $0x2a9] sm:$0xff]
  %v9270 = vld [vmem:[%s8685 + $0x2b9] sm:$0xff]
  %v9271 = vld [vmem:[%s8685 + $0x2c1] sm:$0xff]
  %v9272 = vld [vmem:[%s8685 + $0x2d1] sm:$0xff]
  %v9273 = vld [vmem:[%s8685 + $0x2d9] sm:$0xff]
  %v9274 = vld [vmem:[%s8685 + $0x2e9] sm:$0xff]
  %v9275 = vld [vmem:[%s8685 + $0x2f1] sm:$0xff]
  %v9276 = vld [vmem:[%s8685 + $0x301] sm:$0xff]
  %v9277 = vld [vmem:[%s8685 + $0x309] sm:$0xff]
  %v9278 = vld [vmem:[%s8685 + $0x319] sm:$0xff]
  %v9279 = vld [vmem:[%s8685 + $0x321] sm:$0xff]
  %s9280 = scalar_lea.vmem %s5, 896
  %v9281 = vld [vmem:[%s9280] sm:$0xff]
  %v9282 = vld [vmem:[%s9280 + $0x8] sm:$0xff]
  %v9283 = vld [vmem:[%s9280 + $0x10] sm:$0xff]
  %v9284 = vld [vmem:[%s9280 + $0x18] sm:$0xff]
  %v9285 = vld [vmem:[%s9280 + $0x20] sm:$0xff]
  %v9286 = vld [vmem:[%s9280 + $0x28] sm:$0xff]
  %v9287 = vld [vmem:[%s9280 + $0x30] sm:$0xff]
  %v9288 = vld [vmem:[%s9280 + $0x38] sm:$0xff]
  %v9289 = vld [vmem:[%s9280 + $0x40] sm:$0xff]
  %v9290 = vld [vmem:[%s9280 + $0x48] sm:$0xff]
  %v9291 = vld [vmem:[%s9280 + $0x50] sm:$0xff]
  %v9292 = vld [vmem:[%s9280 + $0x58] sm:$0xff]
  %v9293 = vld [vmem:[%s9280 + $0x60] sm:$0xff]
  %v9294 = vld [vmem:[%s9280 + $0x68] sm:$0xff]
  %v9295 = vld [vmem:[%s9280 + $0x70] sm:$0xff]
  %v9296 = vld [vmem:[%s9280 + $0x78] sm:$0xff]
  %9297 = vmatprep.subr.mxu0 0.0
  %9298 = vmatpush1.msra.mxu0 %v9281
  %9299 = vmatprep.subr.mxu0 0.0
  %9300 = vmatpush1.msra.mxu0 %v9282
  %9301 = vmatprep.subr.mxu0 0.0
  %9302 = vmatpush1.msra.mxu0 %v9283
  %9303 = vmatprep.subr.mxu0 0.0
  %9304 = vmatpush1.msra.mxu0 %v9284
  %9305 = vmatprep.subr.mxu0 0.0
  %9306 = vmatpush1.msra.mxu0 %v9285
  %9307 = vmatprep.subr.mxu0 0.0
  %9308 = vmatpush1.msra.mxu0 %v9286
  %9309 = vmatprep.subr.mxu0 0.0
  %9310 = vmatpush1.msra.mxu0 %v9287
  %9311 = vmatprep.subr.mxu0 0.0
  %9312 = vmatpush1.msra.mxu0 %v9288
  %9313 = vmatprep.subr.mxu0 0.0
  %9314 = vmatpush1.msra.mxu0 %v9289
  %9315 = vmatprep.subr.mxu0 0.0
  %9316 = vmatpush1.msra.mxu0 %v9290
  %9317 = vmatprep.subr.mxu0 0.0
  %9318 = vmatpush1.msra.mxu0 %v9291
  %9319 = vmatprep.subr.mxu0 0.0
  %9320 = vmatpush1.msra.mxu0 %v9292
  %9321 = vmatprep.subr.mxu0 0.0
  %9322 = vmatpush1.msra.mxu0 %v9293
  %9323 = vmatprep.subr.mxu0 0.0
  %9324 = vmatpush1.msra.mxu0 %v9294
  %9325 = vmatprep.subr.mxu0 0.0
  %9326 = vmatpush1.msra.mxu0 %v9295
  %9327 = vmatprep.subr.mxu0 0.0
  %9328 = vmatpush1.msra.mxu0 %v9296
  %9329 = vmatprep.subr.mxu0 0.0
  %9330 = vmatpush1.msra.mxu0 0.0
  %9331 = vmatprep.subr.mxu0 0.0
  %9332 = vmatpush1.msra.mxu0 0.0
  %9333 = vmatprep.subr.mxu0 0.0
  %9334 = vmatpush1.msra.mxu0 0.0
  %9335 = vmatprep.subr.mxu0 0.0
  %9336 = vmatpush1.msra.mxu0 0.0
  %9337 = vmatprep.subr.mxu0 0.0
  %9338 = vmatpush1.msra.mxu0 0.0
  %9339 = vmatprep.subr.mxu0 0.0
  %9340 = vmatpush1.msra.mxu0 0.0
  %9341 = vmatprep.subr.mxu0 0.0
  %9342 = vmatpush1.msra.mxu0 0.0
  %9343 = vmatprep.subr.mxu0 0.0
  %9344 = vmatpush1.msra.mxu0 0.0
  %9345 = vmatprep.subr.mxu0 0.0
  %9346 = vmatpush1.msra.mxu0 0.0
  %9347 = vmatprep.subr.mxu0 0.0
  %9348 = vmatpush1.msra.mxu0 0.0
  %9349 = vmatprep.subr.mxu0 0.0
  %9350 = vmatpush1.msra.mxu0 0.0
  %9351 = vmatprep.subr.mxu0 0.0
  %9352 = vmatpush1.msra.mxu0 0.0
  %9353 = vmatprep.subr.mxu0 0.0
  %9354 = vmatpush1.msra.mxu0 0.0
  %9355 = vmatprep.subr.mxu0 0.0
  %9356 = vmatpush1.msra.mxu0 0.0
  %9357 = vmatprep.subr.mxu0 0.0
  %9358 = vmatpush1.msra.mxu0 0.0
  %9359 = vmatprep.subr.mxu0 0.0
  %9360 = vmatpush1.msra.mxu0 0.0
  %9361 = vmatprep.mubr.f32.mxu0 0.0
  %9362 = vmatmul.mubr.f32.gmra.mrb[0].mxu0 %v9216
  %v9363 = vpop.f32.mrb[0].mxu0
  %v9364 = vadd.f32 0.0, %v9363
  %v9365 = vpop.f32.mrb[0].mxu0
  %9366 = vmatprep.mubr.f32.mxu0 0.0
  %9367 = vmatmul.mubr.f32.gmra.mrb[0].mxu0 %v9217
  %v9368 = vpop.f32.mrb[0].mxu0
  %v9369 = vadd.f32 0.0, %v9368
  %v9370 = vpop.f32.mrb[0].mxu0
  %9371 = vmatprep.mubr.f32.mxu0 0.0
  %9372 = vmatmul.mubr.f32.gmra.mrb[0].mxu0 %v9218
  %v9373 = vpop.f32.mrb[0].mxu0
  %v9374 = vadd.f32 0.0, %v9373
  %v9375 = vpop.f32.mrb[0].mxu0
  %9376 = vmatprep.mubr.f32.mxu0 0.0
  %9377 = vmatmul.mubr.f32.gmra.mrb[0].mxu0 %v9219
  %v9378 = vpop.f32.mrb[0].mxu0
  %v9379 = vadd.f32 0.0, %v9378
  %v9380 = vpop.f32.mrb[0].mxu0
  %9381 = vmatprep.mubr.f32.mxu0 0.0
  %9382 = vmatmul.mubr.f32.gmra.mrb[0].mxu0 %v9220
  %v9383 = vpop.f32.mrb[0].mxu0
  %v9384 = vadd.f32 0.0, %v9383
  %v9385 = vpop.f32.mrb[0].mxu0
  %9386 = vmatprep.mubr.f32.mxu0 0.0
  %9387 = vmatmul.mubr.f32.gmra.mrb[0].mxu0 %v9221
  %v9388 = vpop.f32.mrb[0].mxu0
  %v9389 = vadd.f32 0.0, %v9388
  %v9390 = vpop.f32.mrb[0].mxu0
  %9391 = vmatprep.mubr.f32.mxu0 0.0
  %9392 = vmatmul.mubr.f32.gmra.mrb[0].mxu0 %v9222
  %v9393 = vpop.f32.mrb[0].mxu0
  %v9394 = vadd.f32 0.0, %v9393
  %v9395 = vpop.f32.mrb[0].mxu0
  %9396 = vmatprep.mubr.f32.mxu0 0.0
  %9397 = vmatmul.mubr.f32.gmra.mrb[0].mxu0 %v9223
  %v9398 = vpop.f32.mrb[0].mxu0
  %v9399 = vadd.f32 0.0, %v9398
  %v9400 = vpop.f32.mrb[0].mxu0
  %9401 = vmatprep.mubr.f32.mxu0 0.0
  %9402 = vmatmul.mubr.f32.gmra.mrb[0].mxu0 %v9224
  %v9403 = vpop.f32.mrb[0].mxu0
  %v9404 = vadd.f32 0.0, %v9403
  %v9405 = vpop.f32.mrb[0].mxu0
  %9406 = vmatprep.mubr.f32.mxu0 0.0
  %9407 = vmatmul.mubr.f32.gmra.mrb[0].mxu0 %v9225
  %v9408 = vpop.f32.mrb[0].mxu0
  %v9409 = vadd.f32 0.0, %v9408
  %v9410 = vpop.f32.mrb[0].mxu0
  %9411 = vmatprep.mubr.f32.mxu0 0.0
  %9412 = vmatmul.mubr.f32.gmra.mrb[0].mxu0 %v9226
  %v9413 = vpop.f32.mrb[0].mxu0
  %v9414 = vadd.f32 0.0, %v9413
  %v9415 = vpop.f32.mrb[0].mxu0
  %9416 = vmatprep.mubr.f32.mxu0 0.0
  %9417 = vmatmul.mubr.f32.gmra.mrb[0].mxu0 %v9227
  %v9418 = vpop.f32.mrb[0].mxu0
  %v9419 = vadd.f32 0.0, %v9418
  %v9420 = vpop.f32.mrb[0].mxu0
  %9421 = vmatprep.mubr.f32.mxu0 0.0
  %9422 = vmatmul.mubr.f32.gmra.mrb[0].mxu0 %v9228
  %v9423 = vpop.f32.mrb[0].mxu0
  %v9424 = vadd.f32 0.0, %v9423
  %v9425 = vpop.f32.mrb[0].mxu0
  %9426 = vmatprep.mubr.f32.mxu0 0.0
  %9427 = vmatmul.mubr.f32.gmra.mrb[0].mxu0 %v9229
  %v9428 = vpop.f32.mrb[0].mxu0
  %v9429 = vadd.f32 0.0, %v9428
  %v9430 = vpop.f32.mrb[0].mxu0
  %9431 = vmatprep.mubr.f32.mxu0 0.0
  %9432 = vmatmul.mubr.f32.gmra.mrb[0].mxu0 %v9230
  %v9433 = vpop.f32.mrb[0].mxu0
  %v9434 = vadd.f32 0.0, %v9433
  %v9435 = vpop.f32.mrb[0].mxu0
  %9436 = vmatprep.mubr.f32.mxu0 0.0
  %9437 = vmatmul.mubr.f32.gmra.mrb[0].mxu0 %v9231
  %v9438 = vpop.f32.mrb[0].mxu0
  %v9439 = vadd.f32 0.0, %v9438
  %v9440 = vpop.f32.mrb[0].mxu0
  %9441 = vmatprep.mubr.f32.mxu0 0.0
  %9442 = vmatmul.mubr.f32.gmra.mrb[0].mxu0 %v9232
  %v9443 = vpop.f32.mrb[0].mxu0
  %v9444 = vadd.f32 0.0, %v9443
  %v9445 = vpop.f32.mrb[0].mxu0
  %9446 = vmatprep.mubr.f32.mxu0 0.0
  %9447 = vmatmul.mubr.f32.gmra.mrb[0].mxu0 %v9233
  %v9448 = vpop.f32.mrb[0].mxu0
  %v9449 = vadd.f32 0.0, %v9448
  %v9450 = vpop.f32.mrb[0].mxu0
  %9451 = vmatprep.mubr.f32.mxu0 0.0
  %9452 = vmatmul.mubr.f32.gmra.mrb[0].mxu0 %v9234
  %v9453 = vpop.f32.mrb[0].mxu0
  %v9454 = vadd.f32 0.0, %v9453
  %v9455 = vpop.f32.mrb[0].mxu0
  %9456 = vmatprep.mubr.f32.mxu0 0.0
  %9457 = vmatmul.mubr.f32.gmra.mrb[0].mxu0 %v9235
  %v9458 = vpop.f32.mrb[0].mxu0
  %v9459 = vadd.f32 0.0, %v9458
  %v9460 = vpop.f32.mrb[0].mxu0
  %9461 = vmatprep.mubr.f32.mxu0 0.0
  %9462 = vmatmul.mubr.f32.gmra.mrb[0].mxu0 %v9236
  %v9463 = vpop.f32.mrb[0].mxu0
  %v9464 = vadd.f32 0.0, %v9463
  %v9465 = vpop.f32.mrb[0].mxu0
  %9466 = vmatprep.mubr.f32.mxu0 0.0
  %9467 = vmatmul.mubr.f32.gmra.mrb[0].mxu0 %v9237
  %v9468 = vpop.f32.mrb[0].mxu0
  %v9469 = vadd.f32 0.0, %v9468
  %v9470 = vpop.f32.mrb[0].mxu0
  %9471 = vmatprep.mubr.f32.mxu0 0.0
  %9472 = vmatmul.mubr.f32.gmra.mrb[0].mxu0 %v9238
  %v9473 = vpop.f32.mrb[0].mxu0
  %v9474 = vadd.f32 0.0, %v9473
  %v9475 = vpop.f32.mrb[0].mxu0
  %9476 = vmatprep.mubr.f32.mxu0 0.0
  %9477 = vmatmul.mubr.f32.gmra.mrb[0].mxu0 %v9239
  %v9478 = vpop.f32.mrb[0].mxu0
  %v9479 = vadd.f32 0.0, %v9478
  %v9480 = vpop.f32.mrb[0].mxu0
  %9481 = vmatprep.mubr.f32.mxu0 0.0
  %9482 = vmatmul.mubr.f32.gmra.mrb[0].mxu0 %v9240
  %v9483 = vpop.f32.mrb[0].mxu0
  %v9484 = vadd.f32 0.0, %v9483
  %v9485 = vpop.f32.mrb[0].mxu0
  %9486 = vmatprep.mubr.f32.mxu0 0.0
  %9487 = vmatmul.mubr.f32.gmra.mrb[0].mxu0 %v9241
  %v9488 = vpop.f32.mrb[0].mxu0
  %v9489 = vadd.f32 0.0, %v9488
  %v9490 = vpop.f32.mrb[0].mxu0
  %9491 = vmatprep.mubr.f32.mxu0 0.0
  %9492 = vmatmul.mubr.f32.gmra.mrb[0].mxu0 %v9242
  %v9493 = vpop.f32.mrb[0].mxu0
  %v9494 = vadd.f32 0.0, %v9493
  %v9495 = vpop.f32.mrb[0].mxu0
  %9496 = vmatprep.mubr.f32.mxu0 0.0
  %9497 = vmatmul.mubr.f32.gmra.mrb[0].mxu0 %v9243
  %v9498 = vpop.f32.mrb[0].mxu0
  %v9499 = vadd.f32 0.0, %v9498
  %v9500 = vpop.f32.mrb[0].mxu0
  %9501 = vmatprep.mubr.f32.mxu0 0.0
  %9502 = vmatmul.mubr.f32.gmra.mrb[0].mxu0 %v9244
  %v9503 = vpop.f32.mrb[0].mxu0
  %v9504 = vadd.f32 0.0, %v9503
  %v9505 = vpop.f32.mrb[0].mxu0
  %9506 = vmatprep.mubr.f32.mxu0 0.0
  %9507 = vmatmul.mubr.f32.gmra.mrb[0].mxu0 %v9245
  %v9508 = vpop.f32.mrb[0].mxu0
  %v9509 = vadd.f32 0.0, %v9508
  %v9510 = vpop.f32.mrb[0].mxu0
  %9511 = vmatprep.mubr.f32.mxu0 0.0
  %9512 = vmatmul.mubr.f32.gmra.mrb[0].mxu0 %v9246
  %v9513 = vpop.f32.mrb[0].mxu0
  %v9514 = vadd.f32 0.0, %v9513
  %v9515 = vpop.f32.mrb[0].mxu0
  %9516 = vmatprep.mubr.f32.mxu0 0.0
  %9517 = vmatmul.mubr.f32.gmra.mrb[0].mxu0 %v9247
  %v9518 = vpop.f32.mrb[0].mxu0
  %v9519 = vadd.f32 0.0, %v9518
  %v9520 = vpop.f32.mrb[0].mxu0
  %9521 = vmatprep.mubr.f32.mxu0 0.0
  %9522 = vmatmul.mubr.f32.gmra.mrb[0].mxu0 %v9248
  %v9523 = vpop.f32.mrb[0].mxu0
  %v9524 = vadd.f32 0.0, %v9523
  %v9525 = vpop.f32.mrb[0].mxu0
  %9526 = vmatprep.mubr.f32.mxu0 0.0
  %9527 = vmatmul.mubr.f32.gmra.mrb[0].mxu0 %v9249
  %v9528 = vpop.f32.mrb[0].mxu0
  %v9529 = vadd.f32 0.0, %v9528
  %v9530 = vpop.f32.mrb[0].mxu0
  %9531 = vmatprep.mubr.f32.mxu0 0.0
  %9532 = vmatmul.mubr.f32.gmra.mrb[0].mxu0 %v9250
  %v9533 = vpop.f32.mrb[0].mxu0
  %v9534 = vadd.f32 0.0, %v9533
  %v9535 = vpop.f32.mrb[0].mxu0
  %9536 = vmatprep.mubr.f32.mxu0 0.0
  %9537 = vmatmul.mubr.f32.gmra.mrb[0].mxu0 %v9251
  %v9538 = vpop.f32.mrb[0].mxu0
  %v9539 = vadd.f32 0.0, %v9538
  %v9540 = vpop.f32.mrb[0].mxu0
  %9541 = vmatprep.mubr.f32.mxu0 0.0
  %9542 = vmatmul.mubr.f32.gmra.mrb[0].mxu0 %v9252
  %v9543 = vpop.f32.mrb[0].mxu0
  %v9544 = vadd.f32 0.0, %v9543
  %v9545 = vpop.f32.mrb[0].mxu0
  %9546 = vmatprep.mubr.f32.mxu0 0.0
  %9547 = vmatmul.mubr.f32.gmra.mrb[0].mxu0 %v9253
  %v9548 = vpop.f32.mrb[0].mxu0
  %v9549 = vadd.f32 0.0, %v9548
  %v9550 = vpop.f32.mrb[0].mxu0
  %9551 = vmatprep.mubr.f32.mxu0 0.0
  %9552 = vmatmul.mubr.f32.gmra.mrb[0].mxu0 %v9254
  %v9553 = vpop.f32.mrb[0].mxu0
  %v9554 = vadd.f32 0.0, %v9553
  %v9555 = vpop.f32.mrb[0].mxu0
  %9556 = vmatprep.mubr.f32.mxu0 0.0
  %9557 = vmatmul.mubr.f32.gmra.mrb[0].mxu0 %v9255
  %v9558 = vpop.f32.mrb[0].mxu0
  %v9559 = vadd.f32 0.0, %v9558
  %v9560 = vpop.f32.mrb[0].mxu0
  %9561 = vmatprep.mubr.f32.mxu0 0.0
  %9562 = vmatmul.mubr.f32.gmra.mrb[0].mxu0 %v9256
  %v9563 = vpop.f32.mrb[0].mxu0
  %v9564 = vadd.f32 0.0, %v9563
  %v9565 = vpop.f32.mrb[0].mxu0
  %9566 = vmatprep.mubr.f32.mxu0 0.0
  %9567 = vmatmul.mubr.f32.gmra.mrb[0].mxu0 %v9257
  %v9568 = vpop.f32.mrb[0].mxu0
  %v9569 = vadd.f32 0.0, %v9568
  %v9570 = vpop.f32.mrb[0].mxu0
  %9571 = vmatprep.mubr.f32.mxu0 0.0
  %9572 = vmatmul.mubr.f32.gmra.mrb[0].mxu0 %v9258
  %v9573 = vpop.f32.mrb[0].mxu0
  %v9574 = vadd.f32 0.0, %v9573
  %v9575 = vpop.f32.mrb[0].mxu0
  %9576 = vmatprep.mubr.f32.mxu0 0.0
  %9577 = vmatmul.mubr.f32.gmra.mrb[0].mxu0 %v9259
  %v9578 = vpop.f32.mrb[0].mxu0
  %v9579 = vadd.f32 0.0, %v9578
  %v9580 = vpop.f32.mrb[0].mxu0
  %9581 = vmatprep.mubr.f32.mxu0 0.0
  %9582 = vmatmul.mubr.f32.gmra.mrb[0].mxu0 %v9260
  %v9583 = vpop.f32.mrb[0].mxu0
  %v9584 = vadd.f32 0.0, %v9583
  %v9585 = vpop.f32.mrb[0].mxu0
  %9586 = vmatprep.mubr.f32.mxu0 0.0
  %9587 = vmatmul.mubr.f32.gmra.mrb[0].mxu0 %v9261
  %v9588 = vpop.f32.mrb[0].mxu0
  %v9589 = vadd.f32 0.0, %v9588
  %v9590 = vpop.f32.mrb[0].mxu0
  %9591 = vmatprep.mubr.f32.mxu0 0.0
  %9592 = vmatmul.mubr.f32.gmra.mrb[0].mxu0 %v9262
  %v9593 = vpop.f32.mrb[0].mxu0
  %v9594 = vadd.f32 0.0, %v9593
  %v9595 = vpop.f32.mrb[0].mxu0
  %9596 = vmatprep.mubr.f32.mxu0 0.0
  %9597 = vmatmul.mubr.f32.gmra.mrb[0].mxu0 %v9263
  %v9598 = vpop.f32.mrb[0].mxu0
  %v9599 = vadd.f32 0.0, %v9598
  %v9600 = vpop.f32.mrb[0].mxu0
  %9601 = vmatprep.mubr.f32.mxu0 0.0
  %9602 = vmatmul.mubr.f32.gmra.mrb[0].mxu0 %v9264
  %v9603 = vpop.f32.mrb[0].mxu0
  %v9604 = vadd.f32 0.0, %v9603
  %v9605 = vpop.f32.mrb[0].mxu0
  %9606 = vmatprep.mubr.f32.mxu0 0.0
  %9607 = vmatmul.mubr.f32.gmra.mrb[0].mxu0 %v9265
  %v9608 = vpop.f32.mrb[0].mxu0
  %v9609 = vadd.f32 0.0, %v9608
  %v9610 = vpop.f32.mrb[0].mxu0
  %9611 = vmatprep.mubr.f32.mxu0 0.0
  %9612 = vmatmul.mubr.f32.gmra.mrb[0].mxu0 %v9266
  %v9613 = vpop.f32.mrb[0].mxu0
  %v9614 = vadd.f32 0.0, %v9613
  %v9615 = vpop.f32.mrb[0].mxu0
  %9616 = vmatprep.mubr.f32.mxu0 0.0
  %9617 = vmatmul.mubr.f32.gmra.mrb[0].mxu0 %v9267
  %v9618 = vpop.f32.mrb[0].mxu0
  %v9619 = vadd.f32 0.0, %v9618
  %v9620 = vpop.f32.mrb[0].mxu0
  %9621 = vmatprep.mubr.f32.mxu0 0.0
  %9622 = vmatmul.mubr.f32.gmra.mrb[0].mxu0 %v9268
  %v9623 = vpop.f32.mrb[0].mxu0
  %v9624 = vadd.f32 0.0, %v9623
  %v9625 = vpop.f32.mrb[0].mxu0
  %9626 = vmatprep.mubr.f32.mxu0 0.0
  %9627 = vmatmul.mubr.f32.gmra.mrb[0].mxu0 %v9269
  %v9628 = vpop.f32.mrb[0].mxu0
  %v9629 = vadd.f32 0.0, %v9628
  %v9630 = vpop.f32.mrb[0].mxu0
  %9631 = vmatprep.mubr.f32.mxu0 0.0
  %9632 = vmatmul.mubr.f32.gmra.mrb[0].mxu0 %v9270
  %v9633 = vpop.f32.mrb[0].mxu0
  %v9634 = vadd.f32 0.0, %v9633
  %v9635 = vpop.f32.mrb[0].mxu0
  %9636 = vmatprep.mubr.f32.mxu0 0.0
  %9637 = vmatmul.mubr.f32.gmra.mrb[0].mxu0 %v9271
  %v9638 = vpop.f32.mrb[0].mxu0
  %v9639 = vadd.f32 0.0, %v9638
  %v9640 = vpop.f32.mrb[0].mxu0
  %9641 = vmatprep.mubr.f32.mxu0 0.0
  %9642 = vmatmul.mubr.f32.gmra.mrb[0].mxu0 %v9272
  %v9643 = vpop.f32.mrb[0].mxu0
  %v9644 = vadd.f32 0.0, %v9643
  %v9645 = vpop.f32.mrb[0].mxu0
  %9646 = vmatprep.mubr.f32.mxu0 0.0
  %9647 = vmatmul.mubr.f32.gmra.mrb[0].mxu0 %v9273
  %v9648 = vpop.f32.mrb[0].mxu0
  %v9649 = vadd.f32 0.0, %v9648
  %v9650 = vpop.f32.mrb[0].mxu0
  %9651 = vmatprep.mubr.f32.mxu0 0.0
  %9652 = vmatmul.mubr.f32.gmra.mrb[0].mxu0 %v9274
  %v9653 = vpop.f32.mrb[0].mxu0
  %v9654 = vadd.f32 0.0, %v9653
  %v9655 = vpop.f32.mrb[0].mxu0
  %9656 = vmatprep.mubr.f32.mxu0 0.0
  %9657 = vmatmul.mubr.f32.gmra.mrb[0].mxu0 %v9275
  %v9658 = vpop.f32.mrb[0].mxu0
  %v9659 = vadd.f32 0.0, %v9658
  %v9660 = vpop.f32.mrb[0].mxu0
  %9661 = vmatprep.mubr.f32.mxu0 0.0
  %9662 = vmatmul.mubr.f32.gmra.mrb[0].mxu0 %v9276
  %v9663 = vpop.f32.mrb[0].mxu0
  %v9664 = vadd.f32 0.0, %v9663
  %v9665 = vpop.f32.mrb[0].mxu0
  %9666 = vmatprep.mubr.f32.mxu0 0.0
  %9667 = vmatmul.mubr.f32.gmra.mrb[0].mxu0 %v9277
  %v9668 = vpop.f32.mrb[0].mxu0
  %v9669 = vadd.f32 0.0, %v9668
  %v9670 = vpop.f32.mrb[0].mxu0
  %9671 = vmatprep.mubr.f32.mxu0 0.0
  %9672 = vmatmul.mubr.f32.gmra.mrb[0].mxu0 %v9278
  %v9673 = vpop.f32.mrb[0].mxu0
  %v9674 = vadd.f32 0.0, %v9673
  %v9675 = vpop.f32.mrb[0].mxu0
  %9676 = vmatprep.mubr.f32.mxu0 0.0
  %9677 = vmatmul.mubr.f32.gmra.mrb[0].mxu0 %v9279
  %v9678 = vpop.f32.mrb[0].mxu0
  %v9679 = vadd.f32 0.0, %v9678
  %v9680 = vpop.f32.mrb[0].mxu0
  %9681 = vdwg.mxu0
  %v9682 = vadd.f32 %v9152, %v9364
  %v9683 = vadd.f32 %v9153, %v9369
  %v9684 = vadd.f32 %v9154, %v9374
  %v9685 = vadd.f32 %v9155, %v9379
  %v9686 = vadd.f32 %v9156, %v9384
  %v9687 = vadd.f32 %v9157, %v9389
  %v9688 = vadd.f32 %v9158, %v9394
  %v9689 = vadd.f32 %v9159, %v9399
  %v9690 = vadd.f32 %v9160, %v9404
  %v9691 = vadd.f32 %v9161, %v9409
  %v9692 = vadd.f32 %v9162, %v9414
  %v9693 = vadd.f32 %v9163, %v9419
  %v9694 = vadd.f32 %v9164, %v9424
  %v9695 = vadd.f32 %v9165, %v9429
  %v9696 = vadd.f32 %v9166, %v9434
  %v9697 = vadd.f32 %v9167, %v9439
  %v9698 = vadd.f32 %v9168, %v9444
  %v9699 = vadd.f32 %v9169, %v9449
  %v9700 = vadd.f32 %v9170, %v9454
  %v9701 = vadd.f32 %v9171, %v9459
  %v9702 = vadd.f32 %v9172, %v9464
  %v9703 = vadd.f32 %v9173, %v9469
  %v9704 = vadd.f32 %v9174, %v9474
  %v9705 = vadd.f32 %v9175, %v9479
  %v9706 = vadd.f32 %v9176, %v9484
  %v9707 = vadd.f32 %v9177, %v9489
  %v9708 = vadd.f32 %v9178, %v9494
  %v9709 = vadd.f32 %v9179, %v9499
  %v9710 = vadd.f32 %v9180, %v9504
  %v9711 = vadd.f32 %v9181, %v9509
  %v9712 = vadd.f32 %v9182, %v9514
  %v9713 = vadd.f32 %v9183, %v9519
  %v9714 = vadd.f32 %v9184, %v9524
  %v9715 = vadd.f32 %v9185, %v9529
  %v9716 = vadd.f32 %v9186, %v9534
  %v9717 = vadd.f32 %v9187, %v9539
  %v9718 = vadd.f32 %v9188, %v9544
  %v9719 = vadd.f32 %v9189, %v9549
  %v9720 = vadd.f32 %v9190, %v9554
  %v9721 = vadd.f32 %v9191, %v9559
  %v9722 = vadd.f32 %v9192, %v9564
  %v9723 = vadd.f32 %v9193, %v9569
  %v9724 = vadd.f32 %v9194, %v9574
  %v9725 = vadd.f32 %v9195, %v9579
  %v9726 = vadd.f32 %v9196, %v9584
  %v9727 = vadd.f32 %v9197, %v9589
  %v9728 = vadd.f32 %v9198, %v9594
  %v9729 = vadd.f32 %v9199, %v9599
  %v9730 = vadd.f32 %v9200, %v9604
  %v9731 = vadd.f32 %v9201, %v9609
  %v9732 = vadd.f32 %v9202, %v9614
  %v9733 = vadd.f32 %v9203, %v9619
  %v9734 = vadd.f32 %v9204, %v9624
  %v9735 = vadd.f32 %v9205, %v9629
  %v9736 = vadd.f32 %v9206, %v9634
  %v9737 = vadd.f32 %v9207, %v9639
  %v9738 = vadd.f32 %v9208, %v9644
  %v9739 = vadd.f32 %v9209, %v9649
  %v9740 = vadd.f32 %v9210, %v9654
  %v9741 = vadd.f32 %v9211, %v9659
  %v9742 = vadd.f32 %v9212, %v9664
  %v9743 = vadd.f32 %v9213, %v9669
  %v9744 = vadd.f32 %v9214, %v9674
  %v9745 = vadd.f32 %v9215, %v9679
  %v9746 = vld [vmem:[%s8685 + $0x2] sm:$0xff]
  %v9747 = vld [vmem:[%s8685 + $0xa] sm:$0xff]
  %v9748 = vld [vmem:[%s8685 + $0x1a] sm:$0xff]
  %v9749 = vld [vmem:[%s8685 + $0x22] sm:$0xff]
  %v9750 = vld [vmem:[%s8685 + $0x32] sm:$0xff]
  %v9751 = vld [vmem:[%s8685 + $0x3a] sm:$0xff]
  %v9752 = vld [vmem:[%s8685 + $0x4a] sm:$0xff]
  %v9753 = vld [vmem:[%s8685 + $0x52] sm:$0xff]
  %v9754 = vld [vmem:[%s8685 + $0x62] sm:$0xff]
  %v9755 = vld [vmem:[%s8685 + $0x6a] sm:$0xff]
  %v9756 = vld [vmem:[%s8685 + $0x7a] sm:$0xff]
  %v9757 = vld [vmem:[%s8685 + $0x82] sm:$0xff]
  %v9758 = vld [vmem:[%s8685 + $0x92] sm:$0xff]
  %v9759 = vld [vmem:[%s8685 + $0x9a] sm:$0xff]
  %v9760 = vld [vmem:[%s8685 + $0xaa] sm:$0xff]
  %v9761 = vld [vmem:[%s8685 + $0xb2] sm:$0xff]
  %v9762 = vld [vmem:[%s8685 + $0xc2] sm:$0xff]
  %v9763 = vld [vmem:[%s8685 + $0xca] sm:$0xff]
  %v9764 = vld [vmem:[%s8685 + $0xda] sm:$0xff]
  %v9765 = vld [vmem:[%s8685 + $0xe2] sm:$0xff]
  %v9766 = vld [vmem:[%s8685 + $0xf2] sm:$0xff]
  %v9767 = vld [vmem:[%s8685 + $0xfa] sm:$0xff]
  %v9768 = vld [vmem:[%s8685 + $0x10a] sm:$0xff]
  %v9769 = vld [vmem:[%s8685 + $0x112] sm:$0xff]
  %v9770 = vld [vmem:[%s8685 + $0x122] sm:$0xff]
  %v9771 = vld [vmem:[%s8685 + $0x12a] sm:$0xff]
  %v9772 = vld [vmem:[%s8685 + $0x13a] sm:$0xff]
  %v9773 = vld [vmem:[%s8685 + $0x142] sm:$0xff]
  %v9774 = vld [vmem:[%s8685 + $0x152] sm:$0xff]
  %v9775 = vld [vmem:[%s8685 + $0x15a] sm:$0xff]
  %v9776 = vld [vmem:[%s8685 + $0x16a] sm:$0xff]
  %v9777 = vld [vmem:[%s8685 + $0x172] sm:$0xff]
  %v9778 = vld [vmem:[%s8685 + $0x1b2] sm:$0xff]
  %v9779 = vld [vmem:[%s8685 + $0x1ba] sm:$0xff]
  %v9780 = vld [vmem:[%s8685 + $0x1ca] sm:$0xff]
  %v9781 = vld [vmem:[%s8685 + $0x1d2] sm:$0xff]
  %v9782 = vld [vmem:[%s8685 + $0x1e2] sm:$0xff]
  %v9783 = vld [vmem:[%s8685 + $0x1ea] sm:$0xff]
  %v9784 = vld [vmem:[%s8685 + $0x1fa] sm:$0xff]
  %v9785 = vld [vmem:[%s8685 + $0x202] sm:$0xff]
  %v9786 = vld [vmem:[%s8685 + $0x212] sm:$0xff]
  %v9787 = vld [vmem:[%s8685 + $0x21a] sm:$0xff]
  %v9788 = vld [vmem:[%s8685 + $0x22a] sm:$0xff]
  %v9789 = vld [vmem:[%s8685 + $0x232] sm:$0xff]
  %v9790 = vld [vmem:[%s8685 + $0x242] sm:$0xff]
  %v9791 = vld [vmem:[%s8685 + $0x24a] sm:$0xff]
  %v9792 = vld [vmem:[%s8685 + $0x25a] sm:$0xff]
  %v9793 = vld [vmem:[%s8685 + $0x262] sm:$0xff]
  %v9794 = vld [vmem:[%s8685 + $0x272] sm:$0xff]
  %v9795 = vld [vmem:[%s8685 + $0x27a] sm:$0xff]
  %v9796 = vld [vmem:[%s8685 + $0x28a] sm:$0xff]
  %v9797 = vld [vmem:[%s8685 + $0x292] sm:$0xff]
  %v9798 = vld [vmem:[%s8685 + $0x2a2] sm:$0xff]
  %v9799 = vld [vmem:[%s8685 + $0x2aa] sm:$0xff]
  %v9800 = vld [vmem:[%s8685 + $0x2ba] sm:$0xff]
  %v9801 = vld [vmem:[%s8685 + $0x2c2] sm:$0xff]
  %v9802 = vld [vmem:[%s8685 + $0x2d2] sm:$0xff]
  %v9803 = vld [vmem:[%s8685 + $0x2da] sm:$0xff]
  %v9804 = vld [vmem:[%s8685 + $0x2ea] sm:$0xff]
  %v9805 = vld [vmem:[%s8685 + $0x2f2] sm:$0xff]
  %v9806 = vld [vmem:[%s8685 + $0x302] sm:$0xff]
  %v9807 = vld [vmem:[%s8685 + $0x30a] sm:$0xff]
  %v9808 = vld [vmem:[%s8685 + $0x31a] sm:$0xff]
  %v9809 = vld [vmem:[%s8685 + $0x322] sm:$0xff]
  %s9810 = scalar_lea.vmem %s5, 1024
  %v9811 = vld [vmem:[%s9810] sm:$0xff]
  %v9812 = vld [vmem:[%s9810 + $0x8] sm:$0xff]
  %v9813 = vld [vmem:[%s9810 + $0x10] sm:$0xff]
  %v9814 = vld [vmem:[%s9810 + $0x18] sm:$0xff]
  %v9815 = vld [vmem:[%s9810 + $0x20] sm:$0xff]
  %v9816 = vld [vmem:[%s9810 + $0x28] sm:$0xff]
  %v9817 = vld [vmem:[%s9810 + $0x30] sm:$0xff]
  %v9818 = vld [vmem:[%s9810 + $0x38] sm:$0xff]
  %v9819 = vld [vmem:[%s9810 + $0x40] sm:$0xff]
  %v9820 = vld [vmem:[%s9810 + $0x48] sm:$0xff]
  %v9821 = vld [vmem:[%s9810 + $0x50] sm:$0xff]
  %v9822 = vld [vmem:[%s9810 + $0x58] sm:$0xff]
  %v9823 = vld [vmem:[%s9810 + $0x60] sm:$0xff]
  %v9824 = vld [vmem:[%s9810 + $0x68] sm:$0xff]
  %v9825 = vld [vmem:[%s9810 + $0x70] sm:$0xff]
  %v9826 = vld [vmem:[%s9810 + $0x78] sm:$0xff]
  %9827 = vmatprep.subr.mxu0 0.0
  %9828 = vmatpush1.msra.mxu0 %v9811
  %9829 = vmatprep.subr.mxu0 0.0
  %9830 = vmatpush1.msra.mxu0 %v9812
  %9831 = vmatprep.subr.mxu0 0.0
  %9832 = vmatpush1.msra.mxu0 %v9813
  %9833 = vmatprep.subr.mxu0 0.0
  %9834 = vmatpush1.msra.mxu0 %v9814
  %9835 = vmatprep.subr.mxu0 0.0
  %9836 = vmatpush1.msra.mxu0 %v9815
  %9837 = vmatprep.subr.mxu0 0.0
  %9838 = vmatpush1.msra.mxu0 %v9816
  %9839 = vmatprep.subr.mxu0 0.0
  %9840 = vmatpush1.msra.mxu0 %v9817
  %9841 = vmatprep.subr.mxu0 0.0
  %9842 = vmatpush1.msra.mxu0 %v9818
  %9843 = vmatprep.subr.mxu0 0.0
  %9844 = vmatpush1.msra.mxu0 %v9819
  %9845 = vmatprep.subr.mxu0 0.0
  %9846 = vmatpush1.msra.mxu0 %v9820
  %9847 = vmatprep.subr.mxu0 0.0
  %9848 = vmatpush1.msra.mxu0 %v9821
  %9849 = vmatprep.subr.mxu0 0.0
  %9850 = vmatpush1.msra.mxu0 %v9822
  %9851 = vmatprep.subr.mxu0 0.0
  %9852 = vmatpush1.msra.mxu0 %v9823
  %9853 = vmatprep.subr.mxu0 0.0
  %9854 = vmatpush1.msra.mxu0 %v9824
  %9855 = vmatprep.subr.mxu0 0.0
  %9856 = vmatpush1.msra.mxu0 %v9825
  %9857 = vmatprep.subr.mxu0 0.0
  %9858 = vmatpush1.msra.mxu0 %v9826
  %9859 = vmatprep.subr.mxu0 0.0
  %9860 = vmatpush1.msra.mxu0 0.0
  %9861 = vmatprep.subr.mxu0 0.0
  %9862 = vmatpush1.msra.mxu0 0.0
  %9863 = vmatprep.subr.mxu0 0.0
  %9864 = vmatpush1.msra.mxu0 0.0
  %9865 = vmatprep.subr.mxu0 0.0
  %9866 = vmatpush1.msra.mxu0 0.0
  %9867 = vmatprep.subr.mxu0 0.0
  %9868 = vmatpush1.msra.mxu0 0.0
  %9869 = vmatprep.subr.mxu0 0.0
  %9870 = vmatpush1.msra.mxu0 0.0
  %9871 = vmatprep.subr.mxu0 0.0
  %9872 = vmatpush1.msra.mxu0 0.0
  %9873 = vmatprep.subr.mxu0 0.0
  %9874 = vmatpush1.msra.mxu0 0.0
  %9875 = vmatprep.subr.mxu0 0.0
  %9876 = vmatpush1.msra.mxu0 0.0
  %9877 = vmatprep.subr.mxu0 0.0
  %9878 = vmatpush1.msra.mxu0 0.0
  %9879 = vmatprep.subr.mxu0 0.0
  %9880 = vmatpush1.msra.mxu0 0.0
  %9881 = vmatprep.subr.mxu0 0.0
  %9882 = vmatpush1.msra.mxu0 0.0
  %9883 = vmatprep.subr.mxu0 0.0
  %9884 = vmatpush1.msra.mxu0 0.0
  %9885 = vmatprep.subr.mxu0 0.0
  %9886 = vmatpush1.msra.mxu0 0.0
  %9887 = vmatprep.subr.mxu0 0.0
  %9888 = vmatpush1.msra.mxu0 0.0
  %9889 = vmatprep.subr.mxu0 0.0
  %9890 = vmatpush1.msra.mxu0 0.0
  %9891 = vmatprep.mubr.f32.mxu0 0.0
  %9892 = vmatmul.mubr.f32.gmra.mrb[0].mxu0 %v9746
  %v9893 = vpop.f32.mrb[0].mxu0
  %v9894 = vadd.f32 0.0, %v9893
  %v9895 = vpop.f32.mrb[0].mxu0
  %9896 = vmatprep.mubr.f32.mxu0 0.0
  %9897 = vmatmul.mubr.f32.gmra.mrb[0].mxu0 %v9747
  %v9898 = vpop.f32.mrb[0].mxu0
  %v9899 = vadd.f32 0.0, %v9898
  %v9900 = vpop.f32.mrb[0].mxu0
  %9901 = vmatprep.mubr.f32.mxu0 0.0
  %9902 = vmatmul.mubr.f32.gmra.mrb[0].mxu0 %v9748
  %v9903 = vpop.f32.mrb[0].mxu0
  %v9904 = vadd.f32 0.0, %v9903
  %v9905 = vpop.f32.mrb[0].mxu0
  %9906 = vmatprep.mubr.f32.mxu0 0.0
  %9907 = vmatmul.mubr.f32.gmra.mrb[0].mxu0 %v9749
  %v9908 = vpop.f32.mrb[0].mxu0
  %v9909 = vadd.f32 0.0, %v9908
  %v9910 = vpop.f32.mrb[0].mxu0
  %9911 = vmatprep.mubr.f32.mxu0 0.0
  %9912 = vmatmul.mubr.f32.gmra.mrb[0].mxu0 %v9750
  %v9913 = vpop.f32.mrb[0].mxu0
  %v9914 = vadd.f32 0.0, %v9913
  %v9915 = vpop.f32.mrb[0].mxu0
  %9916 = vmatprep.mubr.f32.mxu0 0.0
  %9917 = vmatmul.mubr.f32.gmra.mrb[0].mxu0 %v9751
  %v9918 = vpop.f32.mrb[0].mxu0
  %v9919 = vadd.f32 0.0, %v9918
  %v9920 = vpop.f32.mrb[0].mxu0
  %9921 = vmatprep.mubr.f32.mxu0 0.0
  %9922 = vmatmul.mubr.f32.gmra.mrb[0].mxu0 %v9752
  %v9923 = vpop.f32.mrb[0].mxu0
  %v9924 = vadd.f32 0.0, %v9923
  %v9925 = vpop.f32.mrb[0].mxu0
  %9926 = vmatprep.mubr.f32.mxu0 0.0
  %9927 = vmatmul.mubr.f32.gmra.mrb[0].mxu0 %v9753
  %v9928 = vpop.f32.mrb[0].mxu0
  %v9929 = vadd.f32 0.0, %v9928
  %v9930 = vpop.f32.mrb[0].mxu0
  %9931 = vmatprep.mubr.f32.mxu0 0.0
  %9932 = vmatmul.mubr.f32.gmra.mrb[0].mxu0 %v9754
  %v9933 = vpop.f32.mrb[0].mxu0
  %v9934 = vadd.f32 0.0, %v9933
  %v9935 = vpop.f32.mrb[0].mxu0
  %9936 = vmatprep.mubr.f32.mxu0 0.0
  %9937 = vmatmul.mubr.f32.gmra.mrb[0].mxu0 %v9755
  %v9938 = vpop.f32.mrb[0].mxu0
  %v9939 = vadd.f32 0.0, %v9938
  %v9940 = vpop.f32.mrb[0].mxu0
  %9941 = vmatprep.mubr.f32.mxu0 0.0
  %9942 = vmatmul.mubr.f32.gmra.mrb[0].mxu0 %v9756
  %v9943 = vpop.f32.mrb[0].mxu0
  %v9944 = vadd.f32 0.0, %v9943
  %v9945 = vpop.f32.mrb[0].mxu0
  %9946 = vmatprep.mubr.f32.mxu0 0.0
  %9947 = vmatmul.mubr.f32.gmra.mrb[0].mxu0 %v9757
  %v9948 = vpop.f32.mrb[0].mxu0
  %v9949 = vadd.f32 0.0, %v9948
  %v9950 = vpop.f32.mrb[0].mxu0
  %9951 = vmatprep.mubr.f32.mxu0 0.0
  %9952 = vmatmul.mubr.f32.gmra.mrb[0].mxu0 %v9758
  %v9953 = vpop.f32.mrb[0].mxu0
  %v9954 = vadd.f32 0.0, %v9953
  %v9955 = vpop.f32.mrb[0].mxu0
  %9956 = vmatprep.mubr.f32.mxu0 0.0
  %9957 = vmatmul.mubr.f32.gmra.mrb[0].mxu0 %v9759
  %v9958 = vpop.f32.mrb[0].mxu0
  %v9959 = vadd.f32 0.0, %v9958
  %v9960 = vpop.f32.mrb[0].mxu0
  %9961 = vmatprep.mubr.f32.mxu0 0.0
  %9962 = vmatmul.mubr.f32.gmra.mrb[0].mxu0 %v9760
  %v9963 = vpop.f32.mrb[0].mxu0
  %v9964 = vadd.f32 0.0, %v9963
  %v9965 = vpop.f32.mrb[0].mxu0
  %9966 = vmatprep.mubr.f32.mxu0 0.0
  %9967 = vmatmul.mubr.f32.gmra.mrb[0].mxu0 %v9761
  %v9968 = vpop.f32.mrb[0].mxu0
  %v9969 = vadd.f32 0.0, %v9968
  %v9970 = vpop.f32.mrb[0].mxu0
  %9971 = vmatprep.mubr.f32.mxu0 0.0
  %9972 = vmatmul.mubr.f32.gmra.mrb[0].mxu0 %v9762
  %v9973 = vpop.f32.mrb[0].mxu0
  %v9974 = vadd.f32 0.0, %v9973
  %v9975 = vpop.f32.mrb[0].mxu0
  %9976 = vmatprep.mubr.f32.mxu0 0.0
  %9977 = vmatmul.mubr.f32.gmra.mrb[0].mxu0 %v9763
  %v9978 = vpop.f32.mrb[0].mxu0
  %v9979 = vadd.f32 0.0, %v9978
  %v9980 = vpop.f32.mrb[0].mxu0
  %9981 = vmatprep.mubr.f32.mxu0 0.0
  %9982 = vmatmul.mubr.f32.gmra.mrb[0].mxu0 %v9764
  %v9983 = vpop.f32.mrb[0].mxu0
  %v9984 = vadd.f32 0.0, %v9983
  %v9985 = vpop.f32.mrb[0].mxu0
  %9986 = vmatprep.mubr.f32.mxu0 0.0
  %9987 = vmatmul.mubr.f32.gmra.mrb[0].mxu0 %v9765
  %v9988 = vpop.f32.mrb[0].mxu0
  %v9989 = vadd.f32 0.0, %v9988
  %v9990 = vpop.f32.mrb[0].mxu0
  %9991 = vmatprep.mubr.f32.mxu0 0.0
  %9992 = vmatmul.mubr.f32.gmra.mrb[0].mxu0 %v9766
  %v9993 = vpop.f32.mrb[0].mxu0
  %v9994 = vadd.f32 0.0, %v9993
  %v9995 = vpop.f32.mrb[0].mxu0
  %9996 = vmatprep.mubr.f32.mxu0 0.0
  %9997 = vmatmul.mubr.f32.gmra.mrb[0].mxu0 %v9767
  %v9998 = vpop.f32.mrb[0].mxu0
  %v9999 = vadd.f32 0.0, %v9998
  %v10000 = vpop.f32.mrb[0].mxu0
  %10001 = vmatprep.mubr.f32.mxu0 0.0
  %10002 = vmatmul.mubr.f32.gmra.mrb[0].mxu0 %v9768
  %v10003 = vpop.f32.mrb[0].mxu0
  %v10004 = vadd.f32 0.0, %v10003
  %v10005 = vpop.f32.mrb[0].mxu0
  %10006 = vmatprep.mubr.f32.mxu0 0.0
  %10007 = vmatmul.mubr.f32.gmra.mrb[0].mxu0 %v9769
  %v10008 = vpop.f32.mrb[0].mxu0
  %v10009 = vadd.f32 0.0, %v10008
  %v10010 = vpop.f32.mrb[0].mxu0
  %10011 = vmatprep.mubr.f32.mxu0 0.0
  %10012 = vmatmul.mubr.f32.gmra.mrb[0].mxu0 %v9770
  %v10013 = vpop.f32.mrb[0].mxu0
  %v10014 = vadd.f32 0.0, %v10013
  %v10015 = vpop.f32.mrb[0].mxu0
  %10016 = vmatprep.mubr.f32.mxu0 0.0
  %10017 = vmatmul.mubr.f32.gmra.mrb[0].mxu0 %v9771
  %v10018 = vpop.f32.mrb[0].mxu0
  %v10019 = vadd.f32 0.0, %v10018
  %v10020 = vpop.f32.mrb[0].mxu0
  %10021 = vmatprep.mubr.f32.mxu0 0.0
  %10022 = vmatmul.mubr.f32.gmra.mrb[0].mxu0 %v9772
  %v10023 = vpop.f32.mrb[0].mxu0
  %v10024 = vadd.f32 0.0, %v10023
  %v10025 = vpop.f32.mrb[0].mxu0
  %10026 = vmatprep.mubr.f32.mxu0 0.0
  %10027 = vmatmul.mubr.f32.gmra.mrb[0].mxu0 %v9773
  %v10028 = vpop.f32.mrb[0].mxu0
  %v10029 = vadd.f32 0.0, %v10028
  %v10030 = vpop.f32.mrb[0].mxu0
  %10031 = vmatprep.mubr.f32.mxu0 0.0
  %10032 = vmatmul.mubr.f32.gmra.mrb[0].mxu0 %v9774
  %v10033 = vpop.f32.mrb[0].mxu0
  %v10034 = vadd.f32 0.0, %v10033
  %v10035 = vpop.f32.mrb[0].mxu0
  %10036 = vmatprep.mubr.f32.mxu0 0.0
  %10037 = vmatmul.mubr.f32.gmra.mrb[0].mxu0 %v9775
  %v10038 = vpop.f32.mrb[0].mxu0
  %v10039 = vadd.f32 0.0, %v10038
  %v10040 = vpop.f32.mrb[0].mxu0
  %10041 = vmatprep.mubr.f32.mxu0 0.0
  %10042 = vmatmul.mubr.f32.gmra.mrb[0].mxu0 %v9776
  %v10043 = vpop.f32.mrb[0].mxu0
  %v10044 = vadd.f32 0.0, %v10043
  %v10045 = vpop.f32.mrb[0].mxu0
  %10046 = vmatprep.mubr.f32.mxu0 0.0
  %10047 = vmatmul.mubr.f32.gmra.mrb[0].mxu0 %v9777
  %v10048 = vpop.f32.mrb[0].mxu0
  %v10049 = vadd.f32 0.0, %v10048
  %v10050 = vpop.f32.mrb[0].mxu0
  %10051 = vmatprep.mubr.f32.mxu0 0.0
  %10052 = vmatmul.mubr.f32.gmra.mrb[0].mxu0 %v9778
  %v10053 = vpop.f32.mrb[0].mxu0
  %v10054 = vadd.f32 0.0, %v10053
  %v10055 = vpop.f32.mrb[0].mxu0
  %10056 = vmatprep.mubr.f32.mxu0 0.0
  %10057 = vmatmul.mubr.f32.gmra.mrb[0].mxu0 %v9779
  %v10058 = vpop.f32.mrb[0].mxu0
  %v10059 = vadd.f32 0.0, %v10058
  %v10060 = vpop.f32.mrb[0].mxu0
  %10061 = vmatprep.mubr.f32.mxu0 0.0
  %10062 = vmatmul.mubr.f32.gmra.mrb[0].mxu0 %v9780
  %v10063 = vpop.f32.mrb[0].mxu0
  %v10064 = vadd.f32 0.0, %v10063
  %v10065 = vpop.f32.mrb[0].mxu0
  %10066 = vmatprep.mubr.f32.mxu0 0.0
  %10067 = vmatmul.mubr.f32.gmra.mrb[0].mxu0 %v9781
  %v10068 = vpop.f32.mrb[0].mxu0
  %v10069 = vadd.f32 0.0, %v10068
  %v10070 = vpop.f32.mrb[0].mxu0
  %10071 = vmatprep.mubr.f32.mxu0 0.0
  %10072 = vmatmul.mubr.f32.gmra.mrb[0].mxu0 %v9782
  %v10073 = vpop.f32.mrb[0].mxu0
  %v10074 = vadd.f32 0.0, %v10073
  %v10075 = vpop.f32.mrb[0].mxu0
  %10076 = vmatprep.mubr.f32.mxu0 0.0
  %10077 = vmatmul.mubr.f32.gmra.mrb[0].mxu0 %v9783
  %v10078 = vpop.f32.mrb[0].mxu0
  %v10079 = vadd.f32 0.0, %v10078
  %v10080 = vpop.f32.mrb[0].mxu0
  %10081 = vmatprep.mubr.f32.mxu0 0.0
  %10082 = vmatmul.mubr.f32.gmra.mrb[0].mxu0 %v9784
  %v10083 = vpop.f32.mrb[0].mxu0
  %v10084 = vadd.f32 0.0, %v10083
  %v10085 = vpop.f32.mrb[0].mxu0
  %10086 = vmatprep.mubr.f32.mxu0 0.0
  %10087 = vmatmul.mubr.f32.gmra.mrb[0].mxu0 %v9785
  %v10088 = vpop.f32.mrb[0].mxu0
  %v10089 = vadd.f32 0.0, %v10088
  %v10090 = vpop.f32.mrb[0].mxu0
  %10091 = vmatprep.mubr.f32.mxu0 0.0
  %10092 = vmatmul.mubr.f32.gmra.mrb[0].mxu0 %v9786
  %v10093 = vpop.f32.mrb[0].mxu0
  %v10094 = vadd.f32 0.0, %v10093
  %v10095 = vpop.f32.mrb[0].mxu0
  %10096 = vmatprep.mubr.f32.mxu0 0.0
  %10097 = vmatmul.mubr.f32.gmra.mrb[0].mxu0 %v9787
  %v10098 = vpop.f32.mrb[0].mxu0
  %v10099 = vadd.f32 0.0, %v10098
  %v10100 = vpop.f32.mrb[0].mxu0
  %10101 = vmatprep.mubr.f32.mxu0 0.0
  %10102 = vmatmul.mubr.f32.gmra.mrb[0].mxu0 %v9788
  %v10103 = vpop.f32.mrb[0].mxu0
  %v10104 = vadd.f32 0.0, %v10103
  %v10105 = vpop.f32.mrb[0].mxu0
  %10106 = vmatprep.mubr.f32.mxu0 0.0
  %10107 = vmatmul.mubr.f32.gmra.mrb[0].mxu0 %v9789
  %v10108 = vpop.f32.mrb[0].mxu0
  %v10109 = vadd.f32 0.0, %v10108
  %v10110 = vpop.f32.mrb[0].mxu0
  %10111 = vmatprep.mubr.f32.mxu0 0.0
  %10112 = vmatmul.mubr.f32.gmra.mrb[0].mxu0 %v9790
  %v10113 = vpop.f32.mrb[0].mxu0
  %v10114 = vadd.f32 0.0, %v10113
  %v10115 = vpop.f32.mrb[0].mxu0
  %10116 = vmatprep.mubr.f32.mxu0 0.0
  %10117 = vmatmul.mubr.f32.gmra.mrb[0].mxu0 %v9791
  %v10118 = vpop.f32.mrb[0].mxu0
  %v10119 = vadd.f32 0.0, %v10118
  %v10120 = vpop.f32.mrb[0].mxu0
  %10121 = vmatprep.mubr.f32.mxu0 0.0
  %10122 = vmatmul.mubr.f32.gmra.mrb[0].mxu0 %v9792
  %v10123 = vpop.f32.mrb[0].mxu0
  %v10124 = vadd.f32 0.0, %v10123
  %v10125 = vpop.f32.mrb[0].mxu0
  %10126 = vmatprep.mubr.f32.mxu0 0.0
  %10127 = vmatmul.mubr.f32.gmra.mrb[0].mxu0 %v9793
  %v10128 = vpop.f32.mrb[0].mxu0
  %v10129 = vadd.f32 0.0, %v10128
  %v10130 = vpop.f32.mrb[0].mxu0
  %10131 = vmatprep.mubr.f32.mxu0 0.0
  %10132 = vmatmul.mubr.f32.gmra.mrb[0].mxu0 %v9794
  %v10133 = vpop.f32.mrb[0].mxu0
  %v10134 = vadd.f32 0.0, %v10133
  %v10135 = vpop.f32.mrb[0].mxu0
  %10136 = vmatprep.mubr.f32.mxu0 0.0
  %10137 = vmatmul.mubr.f32.gmra.mrb[0].mxu0 %v9795
  %v10138 = vpop.f32.mrb[0].mxu0
  %v10139 = vadd.f32 0.0, %v10138
  %v10140 = vpop.f32.mrb[0].mxu0
  %10141 = vmatprep.mubr.f32.mxu0 0.0
  %10142 = vmatmul.mubr.f32.gmra.mrb[0].mxu0 %v9796
  %v10143 = vpop.f32.mrb[0].mxu0
  %v10144 = vadd.f32 0.0, %v10143
  %v10145 = vpop.f32.mrb[0].mxu0
  %10146 = vmatprep.mubr.f32.mxu0 0.0
  %10147 = vmatmul.mubr.f32.gmra.mrb[0].mxu0 %v9797
  %v10148 = vpop.f32.mrb[0].mxu0
  %v10149 = vadd.f32 0.0, %v10148
  %v10150 = vpop.f32.mrb[0].mxu0
  %10151 = vmatprep.mubr.f32.mxu0 0.0
  %10152 = vmatmul.mubr.f32.gmra.mrb[0].mxu0 %v9798
  %v10153 = vpop.f32.mrb[0].mxu0
  %v10154 = vadd.f32 0.0, %v10153
  %v10155 = vpop.f32.mrb[0].mxu0
  %10156 = vmatprep.mubr.f32.mxu0 0.0
  %10157 = vmatmul.mubr.f32.gmra.mrb[0].mxu0 %v9799
  %v10158 = vpop.f32.mrb[0].mxu0
  %v10159 = vadd.f32 0.0, %v10158
  %v10160 = vpop.f32.mrb[0].mxu0
  %10161 = vmatprep.mubr.f32.mxu0 0.0
  %10162 = vmatmul.mubr.f32.gmra.mrb[0].mxu0 %v9800
  %v10163 = vpop.f32.mrb[0].mxu0
  %v10164 = vadd.f32 0.0, %v10163
  %v10165 = vpop.f32.mrb[0].mxu0
  %10166 = vmatprep.mubr.f32.mxu0 0.0
  %10167 = vmatmul.mubr.f32.gmra.mrb[0].mxu0 %v9801
  %v10168 = vpop.f32.mrb[0].mxu0
  %v10169 = vadd.f32 0.0, %v10168
  %v10170 = vpop.f32.mrb[0].mxu0
  %10171 = vmatprep.mubr.f32.mxu0 0.0
  %10172 = vmatmul.mubr.f32.gmra.mrb[0].mxu0 %v9802
  %v10173 = vpop.f32.mrb[0].mxu0
  %v10174 = vadd.f32 0.0, %v10173
  %v10175 = vpop.f32.mrb[0].mxu0
  %10176 = vmatprep.mubr.f32.mxu0 0.0
  %10177 = vmatmul.mubr.f32.gmra.mrb[0].mxu0 %v9803
  %v10178 = vpop.f32.mrb[0].mxu0
  %v10179 = vadd.f32 0.0, %v10178
  %v10180 = vpop.f32.mrb[0].mxu0
  %10181 = vmatprep.mubr.f32.mxu0 0.0
  %10182 = vmatmul.mubr.f32.gmra.mrb[0].mxu0 %v9804
  %v10183 = vpop.f32.mrb[0].mxu0
  %v10184 = vadd.f32 0.0, %v10183
  %v10185 = vpop.f32.mrb[0].mxu0
  %10186 = vmatprep.mubr.f32.mxu0 0.0
  %10187 = vmatmul.mubr.f32.gmra.mrb[0].mxu0 %v9805
  %v10188 = vpop.f32.mrb[0].mxu0
  %v10189 = vadd.f32 0.0, %v10188
  %v10190 = vpop.f32.mrb[0].mxu0
  %10191 = vmatprep.mubr.f32.mxu0 0.0
  %10192 = vmatmul.mubr.f32.gmra.mrb[0].mxu0 %v9806
  %v10193 = vpop.f32.mrb[0].mxu0
  %v10194 = vadd.f32 0.0, %v10193
  %v10195 = vpop.f32.mrb[0].mxu0
  %10196 = vmatprep.mubr.f32.mxu0 0.0
  %10197 = vmatmul.mubr.f32.gmra.mrb[0].mxu0 %v9807
  %v10198 = vpop.f32.mrb[0].mxu0
  %v10199 = vadd.f32 0.0, %v10198
  %v10200 = vpop.f32.mrb[0].mxu0
  %10201 = vmatprep.mubr.f32.mxu0 0.0
  %10202 = vmatmul.mubr.f32.gmra.mrb[0].mxu0 %v9808
  %v10203 = vpop.f32.mrb[0].mxu0
  %v10204 = vadd.f32 0.0, %v10203
  %v10205 = vpop.f32.mrb[0].mxu0
  %10206 = vmatprep.mubr.f32.mxu0 0.0
  %10207 = vmatmul.mubr.f32.gmra.mrb[0].mxu0 %v9809
  %v10208 = vpop.f32.mrb[0].mxu0
  %v10209 = vadd.f32 0.0, %v10208
  %v10210 = vpop.f32.mrb[0].mxu0
  %10211 = vdwg.mxu0
  %v10212 = vadd.f32 %v9682, %v9894
  %v10213 = vadd.f32 %v9683, %v9899
  %v10214 = vadd.f32 %v9684, %v9904
  %v10215 = vadd.f32 %v9685, %v9909
  %v10216 = vadd.f32 %v9686, %v9914
  %v10217 = vadd.f32 %v9687, %v9919
  %v10218 = vadd.f32 %v9688, %v9924
  %v10219 = vadd.f32 %v9689, %v9929
  %v10220 = vadd.f32 %v9690, %v9934
  %v10221 = vadd.f32 %v9691, %v9939
  %v10222 = vadd.f32 %v9692, %v9944
  %v10223 = vadd.f32 %v9693, %v9949
  %v10224 = vadd.f32 %v9694, %v9954
  %v10225 = vadd.f32 %v9695, %v9959
  %v10226 = vadd.f32 %v9696, %v9964
  %v10227 = vadd.f32 %v9697, %v9969
  %v10228 = vadd.f32 %v9698, %v9974
  %v10229 = vadd.f32 %v9699, %v9979
  %v10230 = vadd.f32 %v9700, %v9984
  %v10231 = vadd.f32 %v9701, %v9989
  %v10232 = vadd.f32 %v9702, %v9994
  %v10233 = vadd.f32 %v9703, %v9999
  %v10234 = vadd.f32 %v9704, %v10004
  %v10235 = vadd.f32 %v9705, %v10009
  %v10236 = vadd.f32 %v9706, %v10014
  %v10237 = vadd.f32 %v9707, %v10019
  %v10238 = vadd.f32 %v9708, %v10024
  %v10239 = vadd.f32 %v9709, %v10029
  %v10240 = vadd.f32 %v9710, %v10034
  %v10241 = vadd.f32 %v9711, %v10039
  %v10242 = vadd.f32 %v9712, %v10044
  %v10243 = vadd.f32 %v9713, %v10049
  %v10244 = vadd.f32 %v9714, %v10054
  %v10245 = vadd.f32 %v9715, %v10059
  %v10246 = vadd.f32 %v9716, %v10064
  %v10247 = vadd.f32 %v9717, %v10069
  %v10248 = vadd.f32 %v9718, %v10074
  %v10249 = vadd.f32 %v9719, %v10079
  %v10250 = vadd.f32 %v9720, %v10084
  %v10251 = vadd.f32 %v9721, %v10089
  %v10252 = vadd.f32 %v9722, %v10094
  %v10253 = vadd.f32 %v9723, %v10099
  %v10254 = vadd.f32 %v9724, %v10104
  %v10255 = vadd.f32 %v9725, %v10109
  %v10256 = vadd.f32 %v9726, %v10114
  %v10257 = vadd.f32 %v9727, %v10119
  %v10258 = vadd.f32 %v9728, %v10124
  %v10259 = vadd.f32 %v9729, %v10129
  %v10260 = vadd.f32 %v9730, %v10134
  %v10261 = vadd.f32 %v9731, %v10139
  %v10262 = vadd.f32 %v9732, %v10144
  %v10263 = vadd.f32 %v9733, %v10149
  %v10264 = vadd.f32 %v9734, %v10154
  %v10265 = vadd.f32 %v9735, %v10159
  %v10266 = vadd.f32 %v9736, %v10164
  %v10267 = vadd.f32 %v9737, %v10169
  %v10268 = vadd.f32 %v9738, %v10174
  %v10269 = vadd.f32 %v9739, %v10179
  %v10270 = vadd.f32 %v9740, %v10184
  %v10271 = vadd.f32 %v9741, %v10189
  %v10272 = vadd.f32 %v9742, %v10194
  %v10273 = vadd.f32 %v9743, %v10199
  %v10274 = vadd.f32 %v9744, %v10204
  %v10275 = vadd.f32 %v9745, %v10209
  %v10277 = vlaneseq
  %v10278 = vshrl.u32 %v10277, 7
  %v10279 = vsub.s32 0, %v10278
  %v10280 = vrot.slane %v5633, %v10279
  %v10282 = vadd.f32 %v10212, %v10280
  %v10283 = vadd.f32 %v10213, %v10280
  %v10284 = vadd.f32 %v10214, %v10280
  %v10285 = vadd.f32 %v10215, %v10280
  %v10286 = vadd.f32 %v10216, %v10280
  %v10287 = vadd.f32 %v10217, %v10280
  %v10288 = vadd.f32 %v10218, %v10280
  %v10289 = vadd.f32 %v10219, %v10280
  %v10290 = vadd.f32 %v10220, %v10280
  %v10291 = vadd.f32 %v10221, %v10280
  %v10292 = vadd.f32 %v10222, %v10280
  %v10293 = vadd.f32 %v10223, %v10280
  %v10294 = vadd.f32 %v10224, %v10280
  %v10295 = vadd.f32 %v10225, %v10280
  %v10296 = vadd.f32 %v10226, %v10280
  %v10297 = vadd.f32 %v10227, %v10280
  %v10298 = vadd.f32 %v10228, %v10280
  %v10299 = vadd.f32 %v10229, %v10280
  %v10300 = vadd.f32 %v10230, %v10280
  %v10301 = vadd.f32 %v10231, %v10280
  %v10302 = vadd.f32 %v10232, %v10280
  %v10303 = vadd.f32 %v10233, %v10280
  %v10304 = vadd.f32 %v10234, %v10280
  %v10305 = vadd.f32 %v10235, %v10280
  %v10306 = vadd.f32 %v10236, %v10280
  %v10307 = vadd.f32 %v10237, %v10280
  %v10308 = vadd.f32 %v10238, %v10280
  %v10309 = vadd.f32 %v10239, %v10280
  %v10310 = vadd.f32 %v10240, %v10280
  %v10311 = vadd.f32 %v10241, %v10280
  %v10312 = vadd.f32 %v10242, %v10280
  %v10313 = vadd.f32 %v10243, %v10280
  %v10314 = vadd.f32 %v10244, %v10280
  %v10315 = vadd.f32 %v10245, %v10280
  %v10316 = vadd.f32 %v10246, %v10280
  %v10317 = vadd.f32 %v10247, %v10280
  %v10318 = vadd.f32 %v10248, %v10280
  %v10319 = vadd.f32 %v10249, %v10280
  %v10320 = vadd.f32 %v10250, %v10280
  %v10321 = vadd.f32 %v10251, %v10280
  %v10322 = vadd.f32 %v10252, %v10280
  %v10323 = vadd.f32 %v10253, %v10280
  %v10324 = vadd.f32 %v10254, %v10280
  %v10325 = vadd.f32 %v10255, %v10280
  %v10326 = vadd.f32 %v10256, %v10280
  %v10327 = vadd.f32 %v10257, %v10280
  %v10328 = vadd.f32 %v10258, %v10280
  %v10329 = vadd.f32 %v10259, %v10280
  %v10330 = vadd.f32 %v10260, %v10280
  %v10331 = vadd.f32 %v10261, %v10280
  %v10332 = vadd.f32 %v10262, %v10280
  %v10333 = vadd.f32 %v10263, %v10280
  %v10334 = vadd.f32 %v10264, %v10280
  %v10335 = vadd.f32 %v10265, %v10280
  %v10336 = vadd.f32 %v10266, %v10280
  %v10337 = vadd.f32 %v10267, %v10280
  %v10338 = vadd.f32 %v10268, %v10280
  %v10339 = vadd.f32 %v10269, %v10280
  %v10340 = vadd.f32 %v10270, %v10280
  %v10341 = vadd.f32 %v10271, %v10280
  %v10342 = vadd.f32 %v10272, %v10280
  %v10343 = vadd.f32 %v10273, %v10280
  %v10344 = vadd.f32 %v10274, %v10280
  %v10345 = vadd.f32 %v10275, %v10280
  %v10346 = vld [vmem:[%s7] sm:$0x1]
  %v10347 = vld [vmem:[%s8] sm:$0x1]
  %v10348 = vadd.f32 %v10282, %v10283
  %v10349 = vadd.f32 %v10348, %v10284
  %v10350 = vadd.f32 %v10349, %v10285
  %v10351 = vadd.f32 %v10350, %v10286
  %v10352 = vadd.f32 %v10351, %v10287
  %v10353 = vadd.f32 %v10352, %v10288
  %v10354 = vadd.f32 %v10353, %v10289
  %v10355 = vadd.f32 %v10354, %v10290
  %v10356 = vadd.f32 %v10355, %v10291
  %v10357 = vadd.f32 %v10356, %v10292
  %v10358 = vadd.f32 %v10357, %v10293
  %v10359 = vadd.f32 %v10358, %v10294
  %v10360 = vadd.f32 %v10359, %v10295
  %v10361 = vadd.f32 %v10360, %v10296
  %v10362 = vadd.f32 %v10361, %v10297
  %v10363 = vadd.f32 %v10362, %v10298
  %v10364 = vadd.f32 %v10363, %v10299
  %v10365 = vadd.f32 %v10364, %v10300
  %v10366 = vadd.f32 %v10365, %v10301
  %v10367 = vadd.f32 %v10366, %v10302
  %v10368 = vadd.f32 %v10367, %v10303
  %v10369 = vadd.f32 %v10368, %v10304
  %v10370 = vadd.f32 %v10369, %v10305
  %v10371 = vadd.f32 %v10370, %v10306
  %v10372 = vadd.f32 %v10371, %v10307
  %v10373 = vadd.f32 %v10372, %v10308
  %v10374 = vadd.f32 %v10373, %v10309
  %v10375 = vadd.f32 %v10374, %v10310
  %v10376 = vadd.f32 %v10375, %v10311
  %v10377 = vadd.f32 %v10376, %v10312
  %v10378 = vadd.f32 %v10377, %v10313
  %v10379 = vadd.f32 %v10378, %v10314
  %v10380 = vadd.f32 %v10379, %v10315
  %v10381 = vadd.f32 %v10380, %v10316
  %v10382 = vadd.f32 %v10381, %v10317
  %v10383 = vadd.f32 %v10382, %v10318
  %v10384 = vadd.f32 %v10383, %v10319
  %v10385 = vadd.f32 %v10384, %v10320
  %v10386 = vadd.f32 %v10385, %v10321
  %v10387 = vadd.f32 %v10386, %v10322
  %v10388 = vadd.f32 %v10387, %v10323
  %v10389 = vadd.f32 %v10388, %v10324
  %v10390 = vadd.f32 %v10389, %v10325
  %v10391 = vadd.f32 %v10390, %v10326
  %v10392 = vadd.f32 %v10391, %v10327
  %v10393 = vadd.f32 %v10392, %v10328
  %v10394 = vadd.f32 %v10393, %v10329
  %v10395 = vadd.f32 %v10394, %v10330
  %v10396 = vadd.f32 %v10395, %v10331
  %v10397 = vadd.f32 %v10396, %v10332
  %v10398 = vadd.f32 %v10397, %v10333
  %v10399 = vadd.f32 %v10398, %v10334
  %v10400 = vadd.f32 %v10399, %v10335
  %v10401 = vadd.f32 %v10400, %v10336
  %v10402 = vadd.f32 %v10401, %v10337
  %v10403 = vadd.f32 %v10402, %v10338
  %v10404 = vadd.f32 %v10403, %v10339
  %v10405 = vadd.f32 %v10404, %v10340
  %v10406 = vadd.f32 %v10405, %v10341
  %v10407 = vadd.f32 %v10406, %v10342
  %v10408 = vadd.f32 %v10407, %v10343
  %v10409 = vadd.f32 %v10408, %v10344
  %v10410 = vadd.f32 %v10409, %v10345
  %v10411 = vrot.slane %v10410, 4
  %v10412 = vadd.f32 %v10410, %v10411
  %v10413 = vrot.slane %v10412, 2
  %v10414 = vadd.f32 %v10412, %v10413
  %v10415 = vrot.slane %v10414, 1
  %v10416 = vadd.f32 %v10414, %v10415
  %v10417 = vmul.f32 %v10416, 0.001953125
  %v10418 = vsub.f32 %v10282, %v10417
  %v10419 = vsub.f32 %v10283, %v10417
  %v10420 = vsub.f32 %v10284, %v10417
  %v10421 = vsub.f32 %v10285, %v10417
  %v10422 = vsub.f32 %v10286, %v10417
  %v10423 = vsub.f32 %v10287, %v10417
  %v10424 = vsub.f32 %v10288, %v10417
  %v10425 = vsub.f32 %v10289, %v10417
  %v10426 = vsub.f32 %v10290, %v10417
  %v10427 = vsub.f32 %v10291, %v10417
  %v10428 = vsub.f32 %v10292, %v10417
  %v10429 = vsub.f32 %v10293, %v10417
  %v10430 = vsub.f32 %v10294, %v10417
  %v10431 = vsub.f32 %v10295, %v10417
  %v10432 = vsub.f32 %v10296, %v10417
  %v10433 = vsub.f32 %v10297, %v10417
  %v10434 = vsub.f32 %v10298, %v10417
  %v10435 = vsub.f32 %v10299, %v10417
  %v10436 = vsub.f32 %v10300, %v10417
  %v10437 = vsub.f32 %v10301, %v10417
  %v10438 = vsub.f32 %v10302, %v10417
  %v10439 = vsub.f32 %v10303, %v10417
  %v10440 = vsub.f32 %v10304, %v10417
  %v10441 = vsub.f32 %v10305, %v10417
  %v10442 = vsub.f32 %v10306, %v10417
  %v10443 = vsub.f32 %v10307, %v10417
  %v10444 = vsub.f32 %v10308, %v10417
  %v10445 = vsub.f32 %v10309, %v10417
  %v10446 = vsub.f32 %v10310, %v10417
  %v10447 = vsub.f32 %v10311, %v10417
  %v10448 = vsub.f32 %v10312, %v10417
  %v10449 = vsub.f32 %v10313, %v10417
  %v10450 = vsub.f32 %v10314, %v10417
  %v10451 = vsub.f32 %v10315, %v10417
  %v10452 = vsub.f32 %v10316, %v10417
  %v10453 = vsub.f32 %v10317, %v10417
  %v10454 = vsub.f32 %v10318, %v10417
  %v10455 = vsub.f32 %v10319, %v10417
  %v10456 = vsub.f32 %v10320, %v10417
  %v10457 = vsub.f32 %v10321, %v10417
  %v10458 = vsub.f32 %v10322, %v10417
  %v10459 = vsub.f32 %v10323, %v10417
  %v10460 = vsub.f32 %v10324, %v10417
  %v10461 = vsub.f32 %v10325, %v10417
  %v10462 = vsub.f32 %v10326, %v10417
  %v10463 = vsub.f32 %v10327, %v10417
  %v10464 = vsub.f32 %v10328, %v10417
  %v10465 = vsub.f32 %v10329, %v10417
  %v10466 = vsub.f32 %v10330, %v10417
  %v10467 = vsub.f32 %v10331, %v10417
  %v10468 = vsub.f32 %v10332, %v10417
  %v10469 = vsub.f32 %v10333, %v10417
  %v10470 = vsub.f32 %v10334, %v10417
  %v10471 = vsub.f32 %v10335, %v10417
  %v10472 = vsub.f32 %v10336, %v10417
  %v10473 = vsub.f32 %v10337, %v10417
  %v10474 = vsub.f32 %v10338, %v10417
  %v10475 = vsub.f32 %v10339, %v10417
  %v10476 = vsub.f32 %v10340, %v10417
  %v10477 = vsub.f32 %v10341, %v10417
  %v10478 = vsub.f32 %v10342, %v10417
  %v10479 = vsub.f32 %v10343, %v10417
  %v10480 = vsub.f32 %v10344, %v10417
  %v10481 = vsub.f32 %v10345, %v10417
  %v10482 = vmul.f32 %v10418, %v10418
  %v10483 = vmul.f32 %v10419, %v10419
  %v10484 = vmul.f32 %v10420, %v10420
  %v10485 = vmul.f32 %v10421, %v10421
  %v10486 = vmul.f32 %v10422, %v10422
  %v10487 = vmul.f32 %v10423, %v10423
  %v10488 = vmul.f32 %v10424, %v10424
  %v10489 = vmul.f32 %v10425, %v10425
  %v10490 = vmul.f32 %v10426, %v10426
  %v10491 = vmul.f32 %v10427, %v10427
  %v10492 = vmul.f32 %v10428, %v10428
  %v10493 = vmul.f32 %v10429, %v10429
  %v10494 = vmul.f32 %v10430, %v10430
  %v10495 = vmul.f32 %v10431, %v10431
  %v10496 = vmul.f32 %v10432, %v10432
  %v10497 = vmul.f32 %v10433, %v10433
  %v10498 = vmul.f32 %v10434, %v10434
  %v10499 = vmul.f32 %v10435, %v10435
  %v10500 = vmul.f32 %v10436, %v10436
  %v10501 = vmul.f32 %v10437, %v10437
  %v10502 = vmul.f32 %v10438, %v10438
  %v10503 = vmul.f32 %v10439, %v10439
  %v10504 = vmul.f32 %v10440, %v10440
  %v10505 = vmul.f32 %v10441, %v10441
  %v10506 = vmul.f32 %v10442, %v10442
  %v10507 = vmul.f32 %v10443, %v10443
  %v10508 = vmul.f32 %v10444, %v10444
  %v10509 = vmul.f32 %v10445, %v10445
  %v10510 = vmul.f32 %v10446, %v10446
  %v10511 = vmul.f32 %v10447, %v10447
  %v10512 = vmul.f32 %v10448, %v10448
  %v10513 = vmul.f32 %v10449, %v10449
  %v10514 = vmul.f32 %v10450, %v10450
  %v10515 = vmul.f32 %v10451, %v10451
  %v10516 = vmul.f32 %v10452, %v10452
  %v10517 = vmul.f32 %v10453, %v10453
  %v10518 = vmul.f32 %v10454, %v10454
  %v10519 = vmul.f32 %v10455, %v10455
  %v10520 = vmul.f32 %v10456, %v10456
  %v10521 = vmul.f32 %v10457, %v10457
  %v10522 = vmul.f32 %v10458, %v10458
  %v10523 = vmul.f32 %v10459, %v10459
  %v10524 = vmul.f32 %v10460, %v10460
  %v10525 = vmul.f32 %v10461, %v10461
  %v10526 = vmul.f32 %v10462, %v10462
  %v10527 = vmul.f32 %v10463, %v10463
  %v10528 = vmul.f32 %v10464, %v10464
  %v10529 = vmul.f32 %v10465, %v10465
  %v10530 = vmul.f32 %v10466, %v10466
  %v10531 = vmul.f32 %v10467, %v10467
  %v10532 = vmul.f32 %v10468, %v10468
  %v10533 = vmul.f32 %v10469, %v10469
  %v10534 = vmul.f32 %v10470, %v10470
  %v10535 = vmul.f32 %v10471, %v10471
  %v10536 = vmul.f32 %v10472, %v10472
  %v10537 = vmul.f32 %v10473, %v10473
  %v10538 = vmul.f32 %v10474, %v10474
  %v10539 = vmul.f32 %v10475, %v10475
  %v10540 = vmul.f32 %v10476, %v10476
  %v10541 = vmul.f32 %v10477, %v10477
  %v10542 = vmul.f32 %v10478, %v10478
  %v10543 = vmul.f32 %v10479, %v10479
  %v10544 = vmul.f32 %v10480, %v10480
  %v10545 = vmul.f32 %v10481, %v10481
  %v10546 = vadd.f32 %v10482, %v10483
  %v10547 = vadd.f32 %v10546, %v10484
  %v10548 = vadd.f32 %v10547, %v10485
  %v10549 = vadd.f32 %v10548, %v10486
  %v10550 = vadd.f32 %v10549, %v10487
  %v10551 = vadd.f32 %v10550, %v10488
  %v10552 = vadd.f32 %v10551, %v10489
  %v10553 = vadd.f32 %v10552, %v10490
  %v10554 = vadd.f32 %v10553, %v10491
  %v10555 = vadd.f32 %v10554, %v10492
  %v10556 = vadd.f32 %v10555, %v10493
  %v10557 = vadd.f32 %v10556, %v10494
  %v10558 = vadd.f32 %v10557, %v10495
  %v10559 = vadd.f32 %v10558, %v10496
  %v10560 = vadd.f32 %v10559, %v10497
  %v10561 = vadd.f32 %v10560, %v10498
  %v10562 = vadd.f32 %v10561, %v10499
  %v10563 = vadd.f32 %v10562, %v10500
  %v10564 = vadd.f32 %v10563, %v10501
  %v10565 = vadd.f32 %v10564, %v10502
  %v10566 = vadd.f32 %v10565, %v10503
  %v10567 = vadd.f32 %v10566, %v10504
  %v10568 = vadd.f32 %v10567, %v10505
  %v10569 = vadd.f32 %v10568, %v10506
  %v10570 = vadd.f32 %v10569, %v10507
  %v10571 = vadd.f32 %v10570, %v10508
  %v10572 = vadd.f32 %v10571, %v10509
  %v10573 = vadd.f32 %v10572, %v10510
  %v10574 = vadd.f32 %v10573, %v10511
  %v10575 = vadd.f32 %v10574, %v10512
  %v10576 = vadd.f32 %v10575, %v10513
  %v10577 = vadd.f32 %v10576, %v10514
  %v10578 = vadd.f32 %v10577, %v10515
  %v10579 = vadd.f32 %v10578, %v10516
  %v10580 = vadd.f32 %v10579, %v10517
  %v10581 = vadd.f32 %v10580, %v10518
  %v10582 = vadd.f32 %v10581, %v10519
  %v10583 = vadd.f32 %v10582, %v10520
  %v10584 = vadd.f32 %v10583, %v10521
  %v10585 = vadd.f32 %v10584, %v10522
  %v10586 = vadd.f32 %v10585, %v10523
  %v10587 = vadd.f32 %v10586, %v10524
  %v10588 = vadd.f32 %v10587, %v10525
  %v10589 = vadd.f32 %v10588, %v10526
  %v10590 = vadd.f32 %v10589, %v10527
  %v10591 = vadd.f32 %v10590, %v10528
  %v10592 = vadd.f32 %v10591, %v10529
  %v10593 = vadd.f32 %v10592, %v10530
  %v10594 = vadd.f32 %v10593, %v10531
  %v10595 = vadd.f32 %v10594, %v10532
  %v10596 = vadd.f32 %v10595, %v10533
  %v10597 = vadd.f32 %v10596, %v10534
  %v10598 = vadd.f32 %v10597, %v10535
  %v10599 = vadd.f32 %v10598, %v10536
  %v10600 = vadd.f32 %v10599, %v10537
  %v10601 = vadd.f32 %v10600, %v10538
  %v10602 = vadd.f32 %v10601, %v10539
  %v10603 = vadd.f32 %v10602, %v10540
  %v10604 = vadd.f32 %v10603, %v10541
  %v10605 = vadd.f32 %v10604, %v10542
  %v10606 = vadd.f32 %v10605, %v10543
  %v10607 = vadd.f32 %v10606, %v10544
  %v10608 = vadd.f32 %v10607, %v10545
  %v10609 = vrot.slane %v10608, 4
  %v10610 = vadd.f32 %v10608, %v10609
  %v10611 = vrot.slane %v10610, 2
  %v10612 = vadd.f32 %v10610, %v10611
  %v10613 = vrot.slane %v10612, 1
  %v10614 = vadd.f32 %v10612, %v10613
  %v10615 = vmul.f32 %v10614, 0.001953125
  %v10616 = vadd.f32 %v10615, 1e-05
  %v10617 = vrsqrt.pop %v10616
  %v10618 = vmul.f32 %v10346, %v10617
  %v10620 = vlaneseq
  %v10621 = vshrl.u32 %v10620, 7
  %v10622 = vsub.s32 0, %v10621
  %v10623 = vrot.slane %v10618, %v10622
  %v10625 = vmul.f32 %v10418, %v10623
  %v10626 = vmul.f32 %v10419, %v10623
  %v10627 = vmul.f32 %v10420, %v10623
  %v10628 = vmul.f32 %v10421, %v10623
  %v10629 = vmul.f32 %v10422, %v10623
  %v10630 = vmul.f32 %v10423, %v10623
  %v10631 = vmul.f32 %v10424, %v10623
  %v10632 = vmul.f32 %v10425, %v10623
  %v10633 = vmul.f32 %v10426, %v10623
  %v10634 = vmul.f32 %v10427, %v10623
  %v10635 = vmul.f32 %v10428, %v10623
  %v10636 = vmul.f32 %v10429, %v10623
  %v10637 = vmul.f32 %v10430, %v10623
  %v10638 = vmul.f32 %v10431, %v10623
  %v10639 = vmul.f32 %v10432, %v10623
  %v10640 = vmul.f32 %v10433, %v10623
  %v10641 = vmul.f32 %v10434, %v10623
  %v10642 = vmul.f32 %v10435, %v10623
  %v10643 = vmul.f32 %v10436, %v10623
  %v10644 = vmul.f32 %v10437, %v10623
  %v10645 = vmul.f32 %v10438, %v10623
  %v10646 = vmul.f32 %v10439, %v10623
  %v10647 = vmul.f32 %v10440, %v10623
  %v10648 = vmul.f32 %v10441, %v10623
  %v10649 = vmul.f32 %v10442, %v10623
  %v10650 = vmul.f32 %v10443, %v10623
  %v10651 = vmul.f32 %v10444, %v10623
  %v10652 = vmul.f32 %v10445, %v10623
  %v10653 = vmul.f32 %v10446, %v10623
  %v10654 = vmul.f32 %v10447, %v10623
  %v10655 = vmul.f32 %v10448, %v10623
  %v10656 = vmul.f32 %v10449, %v10623
  %v10657 = vmul.f32 %v10450, %v10623
  %v10658 = vmul.f32 %v10451, %v10623
  %v10659 = vmul.f32 %v10452, %v10623
  %v10660 = vmul.f32 %v10453, %v10623
  %v10661 = vmul.f32 %v10454, %v10623
  %v10662 = vmul.f32 %v10455, %v10623
  %v10663 = vmul.f32 %v10456, %v10623
  %v10664 = vmul.f32 %v10457, %v10623
  %v10665 = vmul.f32 %v10458, %v10623
  %v10666 = vmul.f32 %v10459, %v10623
  %v10667 = vmul.f32 %v10460, %v10623
  %v10668 = vmul.f32 %v10461, %v10623
  %v10669 = vmul.f32 %v10462, %v10623
  %v10670 = vmul.f32 %v10463, %v10623
  %v10671 = vmul.f32 %v10464, %v10623
  %v10672 = vmul.f32 %v10465, %v10623
  %v10673 = vmul.f32 %v10466, %v10623
  %v10674 = vmul.f32 %v10467, %v10623
  %v10675 = vmul.f32 %v10468, %v10623
  %v10676 = vmul.f32 %v10469, %v10623
  %v10677 = vmul.f32 %v10470, %v10623
  %v10678 = vmul.f32 %v10471, %v10623
  %v10679 = vmul.f32 %v10472, %v10623
  %v10680 = vmul.f32 %v10473, %v10623
  %v10681 = vmul.f32 %v10474, %v10623
  %v10682 = vmul.f32 %v10475, %v10623
  %v10683 = vmul.f32 %v10476, %v10623
  %v10684 = vmul.f32 %v10477, %v10623
  %v10685 = vmul.f32 %v10478, %v10623
  %v10686 = vmul.f32 %v10479, %v10623
  %v10687 = vmul.f32 %v10480, %v10623
  %v10688 = vmul.f32 %v10481, %v10623
  %v10690 = vlaneseq
  %v10691 = vshrl.u32 %v10690, 7
  %v10692 = vsub.s32 0, %v10691
  %v10693 = vrot.slane %v10347, %v10692
  %v10695 = vadd.f32 %v10625, %v10693
  %v10696 = vadd.f32 %v10626, %v10693
  %v10697 = vadd.f32 %v10627, %v10693
  %v10698 = vadd.f32 %v10628, %v10693
  %v10699 = vadd.f32 %v10629, %v10693
  %v10700 = vadd.f32 %v10630, %v10693
  %v10701 = vadd.f32 %v10631, %v10693
  %v10702 = vadd.f32 %v10632, %v10693
  %v10703 = vadd.f32 %v10633, %v10693
  %v10704 = vadd.f32 %v10634, %v10693
  %v10705 = vadd.f32 %v10635, %v10693
  %v10706 = vadd.f32 %v10636, %v10693
  %v10707 = vadd.f32 %v10637, %v10693
  %v10708 = vadd.f32 %v10638, %v10693
  %v10709 = vadd.f32 %v10639, %v10693
  %v10710 = vadd.f32 %v10640, %v10693
  %v10711 = vadd.f32 %v10641, %v10693
  %v10712 = vadd.f32 %v10642, %v10693
  %v10713 = vadd.f32 %v10643, %v10693
  %v10714 = vadd.f32 %v10644, %v10693
  %v10715 = vadd.f32 %v10645, %v10693
  %v10716 = vadd.f32 %v10646, %v10693
  %v10717 = vadd.f32 %v10647, %v10693
  %v10718 = vadd.f32 %v10648, %v10693
  %v10719 = vadd.f32 %v10649, %v10693
  %v10720 = vadd.f32 %v10650, %v10693
  %v10721 = vadd.f32 %v10651, %v10693
  %v10722 = vadd.f32 %v10652, %v10693
  %v10723 = vadd.f32 %v10653, %v10693
  %v10724 = vadd.f32 %v10654, %v10693
  %v10725 = vadd.f32 %v10655, %v10693
  %v10726 = vadd.f32 %v10656, %v10693
  %v10727 = vadd.f32 %v10657, %v10693
  %v10728 = vadd.f32 %v10658, %v10693
  %v10729 = vadd.f32 %v10659, %v10693
  %v10730 = vadd.f32 %v10660, %v10693
  %v10731 = vadd.f32 %v10661, %v10693
  %v10732 = vadd.f32 %v10662, %v10693
  %v10733 = vadd.f32 %v10663, %v10693
  %v10734 = vadd.f32 %v10664, %v10693
  %v10735 = vadd.f32 %v10665, %v10693
  %v10736 = vadd.f32 %v10666, %v10693
  %v10737 = vadd.f32 %v10667, %v10693
  %v10738 = vadd.f32 %v10668, %v10693
  %v10739 = vadd.f32 %v10669, %v10693
  %v10740 = vadd.f32 %v10670, %v10693
  %v10741 = vadd.f32 %v10671, %v10693
  %v10742 = vadd.f32 %v10672, %v10693
  %v10743 = vadd.f32 %v10673, %v10693
  %v10744 = vadd.f32 %v10674, %v10693
  %v10745 = vadd.f32 %v10675, %v10693
  %v10746 = vadd.f32 %v10676, %v10693
  %v10747 = vadd.f32 %v10677, %v10693
  %v10748 = vadd.f32 %v10678, %v10693
  %v10749 = vadd.f32 %v10679, %v10693
  %v10750 = vadd.f32 %v10680, %v10693
  %v10751 = vadd.f32 %v10681, %v10693
  %v10752 = vadd.f32 %v10682, %v10693
  %v10753 = vadd.f32 %v10683, %v10693
  %v10754 = vadd.f32 %v10684, %v10693
  %v10755 = vadd.f32 %v10685, %v10693
  %v10756 = vadd.f32 %v10686, %v10693
  %v10757 = vadd.f32 %v10687, %v10693
  %v10758 = vadd.f32 %v10688, %v10693
  %v10759 = vmax.f32 %v10695, 0.0
  %v10760 = vmax.f32 %v10696, 0.0
  %v10761 = vmax.f32 %v10697, 0.0
  %v10762 = vmax.f32 %v10698, 0.0
  %v10763 = vmax.f32 %v10699, 0.0
  %v10764 = vmax.f32 %v10700, 0.0
  %v10765 = vmax.f32 %v10701, 0.0
  %v10766 = vmax.f32 %v10702, 0.0
  %v10767 = vmax.f32 %v10703, 0.0
  %v10768 = vmax.f32 %v10704, 0.0
  %v10769 = vmax.f32 %v10705, 0.0
  %v10770 = vmax.f32 %v10706, 0.0
  %v10771 = vmax.f32 %v10707, 0.0
  %v10772 = vmax.f32 %v10708, 0.0
  %v10773 = vmax.f32 %v10709, 0.0
  %v10774 = vmax.f32 %v10710, 0.0
  %v10775 = vmax.f32 %v10711, 0.0
  %v10776 = vmax.f32 %v10712, 0.0
  %v10777 = vmax.f32 %v10713, 0.0
  %v10778 = vmax.f32 %v10714, 0.0
  %v10779 = vmax.f32 %v10715, 0.0
  %v10780 = vmax.f32 %v10716, 0.0
  %v10781 = vmax.f32 %v10717, 0.0
  %v10782 = vmax.f32 %v10718, 0.0
  %v10783 = vmax.f32 %v10719, 0.0
  %v10784 = vmax.f32 %v10720, 0.0
  %v10785 = vmax.f32 %v10721, 0.0
  %v10786 = vmax.f32 %v10722, 0.0
  %v10787 = vmax.f32 %v10723, 0.0
  %v10788 = vmax.f32 %v10724, 0.0
  %v10789 = vmax.f32 %v10725, 0.0
  %v10790 = vmax.f32 %v10726, 0.0
  %v10791 = vmax.f32 %v10727, 0.0
  %v10792 = vmax.f32 %v10728, 0.0
  %v10793 = vmax.f32 %v10729, 0.0
  %v10794 = vmax.f32 %v10730, 0.0
  %v10795 = vmax.f32 %v10731, 0.0
  %v10796 = vmax.f32 %v10732, 0.0
  %v10797 = vmax.f32 %v10733, 0.0
  %v10798 = vmax.f32 %v10734, 0.0
  %v10799 = vmax.f32 %v10735, 0.0
  %v10800 = vmax.f32 %v10736, 0.0
  %v10801 = vmax.f32 %v10737, 0.0
  %v10802 = vmax.f32 %v10738, 0.0
  %v10803 = vmax.f32 %v10739, 0.0
  %v10804 = vmax.f32 %v10740, 0.0
  %v10805 = vmax.f32 %v10741, 0.0
  %v10806 = vmax.f32 %v10742, 0.0
  %v10807 = vmax.f32 %v10743, 0.0
  %v10808 = vmax.f32 %v10744, 0.0
  %v10809 = vmax.f32 %v10745, 0.0
  %v10810 = vmax.f32 %v10746, 0.0
  %v10811 = vmax.f32 %v10747, 0.0
  %v10812 = vmax.f32 %v10748, 0.0
  %v10813 = vmax.f32 %v10749, 0.0
  %v10814 = vmax.f32 %v10750, 0.0
  %v10815 = vmax.f32 %v10751, 0.0
  %v10816 = vmax.f32 %v10752, 0.0
  %v10817 = vmax.f32 %v10753, 0.0
  %v10818 = vmax.f32 %v10754, 0.0
  %v10819 = vmax.f32 %v10755, 0.0
  %v10820 = vmax.f32 %v10756, 0.0
  %v10821 = vmax.f32 %v10757, 0.0
  %v10822 = vmax.f32 %v10758, 0.0
  %vm10823 = vcmask 64512
  %10824 = vst.msk [vmem:[%s9] sm:$0xff] %vm10823, %v10759
  %10825 = vst.msk [vmem:[%s9 + $0x8] sm:$0xff] %vm10823, %v10760
  %10826 = vst.msk [vmem:[%s9 + $0x10] sm:$0xff] %vm10823, %v10761
  %10827 = vst.msk [vmem:[%s9 + $0x18] sm:$0xff] %vm10823, %v10762
  %10828 = vst.msk [vmem:[%s9 + $0x20] sm:$0xff] %vm10823, %v10763
  %10829 = vst.msk [vmem:[%s9 + $0x28] sm:$0xff] %vm10823, %v10764
  %10830 = vst.msk [vmem:[%s9 + $0x30] sm:$0xff] %vm10823, %v10765
  %10831 = vst.msk [vmem:[%s9 + $0x38] sm:$0xff] %vm10823, %v10766
  %10832 = vst.msk [vmem:[%s9 + $0x40] sm:$0xff] %vm10823, %v10767
  %10833 = vst.msk [vmem:[%s9 + $0x48] sm:$0xff] %vm10823, %v10768
  %10834 = vst.msk [vmem:[%s9 + $0x50] sm:$0xff] %vm10823, %v10769
  %10835 = vst.msk [vmem:[%s9 + $0x58] sm:$0xff] %vm10823, %v10770
  %10836 = vst.msk [vmem:[%s9 + $0x60] sm:$0xff] %vm10823, %v10771
  %10837 = vst.msk [vmem:[%s9 + $0x68] sm:$0xff] %vm10823, %v10772
  %10838 = vst.msk [vmem:[%s9 + $0x70] sm:$0xff] %vm10823, %v10773
  %10839 = vst.msk [vmem:[%s9 + $0x78] sm:$0xff] %vm10823, %v10774
  %10840 = vst.msk [vmem:[%s9 + $0x80] sm:$0xff] %vm10823, %v10775
  %10841 = vst.msk [vmem:[%s9 + $0x88] sm:$0xff] %vm10823, %v10776
  %10842 = vst.msk [vmem:[%s9 + $0x90] sm:$0xff] %vm10823, %v10777
  %10843 = vst.msk [vmem:[%s9 + $0x98] sm:$0xff] %vm10823, %v10778
  %10844 = vst.msk [vmem:[%s9 + $0xa0] sm:$0xff] %vm10823, %v10779
  %10845 = vst.msk [vmem:[%s9 + $0xa8] sm:$0xff] %vm10823, %v10780
  %10846 = vst.msk [vmem:[%s9 + $0xb0] sm:$0xff] %vm10823, %v10781
  %10847 = vst.msk [vmem:[%s9 + $0xb8] sm:$0xff] %vm10823, %v10782
  %10848 = vst.msk [vmem:[%s9 + $0xc0] sm:$0xff] %vm10823, %v10783
  %10849 = vst.msk [vmem:[%s9 + $0xc8] sm:$0xff] %vm10823, %v10784
  %10850 = vst.msk [vmem:[%s9 + $0xd0] sm:$0xff] %vm10823, %v10785
  %10851 = vst.msk [vmem:[%s9 + $0xd8] sm:$0xff] %vm10823, %v10786
  %10852 = vst.msk [vmem:[%s9 + $0xe0] sm:$0xff] %vm10823, %v10787
  %10853 = vst.msk [vmem:[%s9 + $0xe8] sm:$0xff] %vm10823, %v10788
  %10854 = vst.msk [vmem:[%s9 + $0xf0] sm:$0xff] %vm10823, %v10789
  %10855 = vst.msk [vmem:[%s9 + $0xf8] sm:$0xff] %vm10823, %v10790
  %10856 = vst.msk [vmem:[%s9 + $0x100] sm:$0xff] %vm10823, %v10791
  %10857 = vst.msk [vmem:[%s9 + $0x108] sm:$0xff] %vm10823, %v10792
  %10858 = vst.msk [vmem:[%s9 + $0x110] sm:$0xff] %vm10823, %v10793
  %10859 = vst.msk [vmem:[%s9 + $0x118] sm:$0xff] %vm10823, %v10794
  %10860 = vst.msk [vmem:[%s9 + $0x120] sm:$0xff] %vm10823, %v10795
  %10861 = vst.msk [vmem:[%s9 + $0x128] sm:$0xff] %vm10823, %v10796
  %10862 = vst.msk [vmem:[%s9 + $0x130] sm:$0xff] %vm10823, %v10797
  %10863 = vst.msk [vmem:[%s9 + $0x138] sm:$0xff] %vm10823, %v10798
  %10864 = vst.msk [vmem:[%s9 + $0x140] sm:$0xff] %vm10823, %v10799
  %10865 = vst.msk [vmem:[%s9 + $0x148] sm:$0xff] %vm10823, %v10800
  %10866 = vst.msk [vmem:[%s9 + $0x150] sm:$0xff] %vm10823, %v10801
  %10867 = vst.msk [vmem:[%s9 + $0x158] sm:$0xff] %vm10823, %v10802
  %10868 = vst.msk [vmem:[%s9 + $0x160] sm:$0xff] %vm10823, %v10803
  %10869 = vst.msk [vmem:[%s9 + $0x168] sm:$0xff] %vm10823, %v10804
  %10870 = vst.msk [vmem:[%s9 + $0x170] sm:$0xff] %vm10823, %v10805
  %10871 = vst.msk [vmem:[%s9 + $0x178] sm:$0xff] %vm10823, %v10806
  %10872 = vst.msk [vmem:[%s9 + $0x180] sm:$0xff] %vm10823, %v10807
  %10873 = vst.msk [vmem:[%s9 + $0x188] sm:$0xff] %vm10823, %v10808
  %10874 = vst.msk [vmem:[%s9 + $0x190] sm:$0xff] %vm10823, %v10809
  %10875 = vst.msk [vmem:[%s9 + $0x198] sm:$0xff] %vm10823, %v10810
  %10876 = vst.msk [vmem:[%s9 + $0x1a0] sm:$0xff] %vm10823, %v10811
  %10877 = vst.msk [vmem:[%s9 + $0x1a8] sm:$0xff] %vm10823, %v10812
  %10878 = vst.msk [vmem:[%s9 + $0x1b0] sm:$0xff] %vm10823, %v10813
  %10879 = vst.msk [vmem:[%s9 + $0x1b8] sm:$0xff] %vm10823, %v10814
  %10880 = vst.msk [vmem:[%s9 + $0x1c0] sm:$0xff] %vm10823, %v10815
  %10881 = vst.msk [vmem:[%s9 + $0x1c8] sm:$0xff] %vm10823, %v10816
  %10882 = vst.msk [vmem:[%s9 + $0x1d0] sm:$0xff] %vm10823, %v10817
  %10883 = vst.msk [vmem:[%s9 + $0x1d8] sm:$0xff] %vm10823, %v10818
  %10884 = vst.msk [vmem:[%s9 + $0x1e0] sm:$0xff] %vm10823, %v10819
  %10885 = vst.msk [vmem:[%s9 + $0x1e8] sm:$0xff] %vm10823, %v10820
  %10886 = vst.msk [vmem:[%s9 + $0x1f0] sm:$0xff] %vm10823, %v10821
  %10887 = vst.msk [vmem:[%s9 + $0x1f8] sm:$0xff] %vm10823, %v10822
  // Predicated region
  $region38: #{double_conv.1} parent=0 // pred_check
    _
  $region39: #{double_conv.1} parent=0 // pred_check_branch
    %10889 = sbr.rel (0) target = $region41
  $region40: #{double_conv.1} parent=0 // pred_region
    _
  $region41: #{double_conv.1} parent=0 // pred_fallthru
    _
  // Predicated region
  $region42: #{double_conv.1} parent=0 // pred_check
    _
  $region43: #{double_conv.1} parent=0 // pred_check_branch
    %10891 = sbr.rel (0) target = $region45
  $region44: #{double_conv.1} parent=0 // pred_region
    _
  $region45: #{double_conv.1} parent=0 // pred_fallthru
    _

</llo_original>
